<compile_context>
chip_gen: v6e
topology: v6e:2x2x1
jax: 0.10.0
libtpu: 0.0.40
codegen_flags: <defaults>
</compile_context>

<pallas_src>
import functools
import math

import numpy as np
import jax
import jax.numpy as jnp
from jax import lax
from jax.experimental import pallas as pl
from jax.experimental.pallas import tpu as pltpu

INV_SQRT2 = 1.0 / math.sqrt(2.0)
FRN_EPS = 1e-6


# ---------------------------------------------------------------------------
# Host-side constant matrices (built once at trace time with numpy).
# ---------------------------------------------------------------------------
def _shift_matrices(H, W):
    """S[k, out_pix, in_pix]: zero-padded 3x3 tap k = a*3+b selection."""
    S = np.zeros((9, H * W, H * W), np.float32)
    for a in range(3):
        for b in range(3):
            k = a * 3 + b
            for h in range(H):
                hs = h + a - 1
                if not (0 <= hs < H):
                    continue
                for w in range(W):
                    ws = w + b - 1
                    if 0 <= ws < W:
                        S[k, h * W + w, hs * W + ws] = 1.0
    return S


def _pool_matrix(H, W):
    """P[out_pix, in_pix]: 2x2 average pool (stride 2)."""
    H2, W2 = H // 2, W // 2
    P = np.zeros((H2 * W2, H * W), np.float32)
    for i in range(H2):
        for j in range(W2):
            m = i * W2 + j
            for di in range(2):
                for dj in range(2):
                    P[m, (2 * i + di) * W + (2 * j + dj)] = 0.25
    return P


# ---------------------------------------------------------------------------
# Fused Pallas kernel: whole ActFirstResBlk for one sample.
# ---------------------------------------------------------------------------
def _act_first_res_blk_kernel(
    x_ref,                                   # (1, HW, Cin)
    ps1_ref,                                 # (9, HW2, HW)   pool @ shift taps
    k1_ref, b1_ref,                          # (9, Cin, Cin), (1, Cin)
    g1_ref, be1_ref, t1_ref,                 # FRN1 params (1, Cin)
    s2_ref,                                  # (9, HW2, HW2)  shift taps
    k2_ref, b2_ref,                          # (9, Cin, Cout), (1, Cout)
    g2_ref, be2_ref, t2_ref,                 # FRN2 params (1, Cin)
    psc_ref,                                 # (HW2, HW)      pool for shortcut
    wsc_ref,                                 # (Cin, Cout)    1x1 shortcut conv
    o_ref,                                   # (1, HW2, Cout)
    *, eps):
    x = x_ref[0].astype(jnp.float32)                         # (HW, Cin)

    # ---- FRN1 (norm1): x * rsqrt(mean(x^2)); max(gamma*x + beta, tau) ----
    nu2 = jnp.mean(x * x, axis=0, keepdims=True)             # (1, Cin)
    y = x * lax.rsqrt(nu2 + eps)
    y = jnp.maximum(g1_ref[...] * y + be1_ref[...], t1_ref[...])

    # ---- conv1 (3x3, zero pad 1) fused with 2x2 avg-pool (PS_k = P @ S_k) --
    t = jnp.dot(jnp.dot(ps1_ref[0], y, preferred_element_type=jnp.float32),
                k1_ref[0], preferred_element_type=jnp.float32)
    for k in range(1, 9):
        yk = jnp.dot(ps1_ref[k], y, preferred_element_type=jnp.float32)
        t = t + jnp.dot(yk, k1_ref[k], preferred_element_type=jnp.float32)
    t = t + b1_ref[...]                      # bias commutes with the average

    # ---- FRN2 (norm2) ----
    nu2b = jnp.mean(t * t, axis=0, keepdims=True)
    z = t * lax.rsqrt(nu2b + eps)
    z = jnp.maximum(g2_ref[...] * z + be2_ref[...], t2_ref[...])

    # ---- conv2 (3x3, zero pad 1) ----
    r = jnp.dot(jnp.dot(s2_ref[0], z, preferred_element_type=jnp.float32),
                k2_ref[0], preferred_element_type=jnp.float32)
    for k in range(1, 9):
        zk = jnp.dot(s2_ref[k], z, preferred_element_type=jnp.float32)
        r = r + jnp.dot(zk, k2_ref[k], preferred_element_type=jnp.float32)
    r = r + b2_ref[...]

    # ---- shortcut: 1x1 conv (no bias) + avg-pool ----
    s = jnp.dot(x, wsc_ref[...], preferred_element_type=jnp.float32)
    sc = jnp.dot(psc_ref[...], s, preferred_element_type=jnp.float32)

    o_ref[0] = (INV_SQRT2 * (sc + r)).astype(o_ref.dtype)


# ---------------------------------------------------------------------------
# Wrapper.
# ---------------------------------------------------------------------------
@functools.partial(jax.jit, static_argnames=("downsample",))
def act_first_res_blk_forward(params, x_nchw, downsample=True):
    N, Cin, H, W = x_nchw.shape
    Cout = params["w2"].shape[-1]
    learned_sc = "w_sc" in params
    HW = H * W

    if downsample:
        H2, W2 = H // 2, W // 2
        P = _pool_matrix(H, W)                                  # (HW2, HW)
    else:
        H2, W2 = H, W
        P = np.eye(HW, dtype=np.float32)
    HW2 = H2 * W2

    S1 = _shift_matrices(H, W)                                  # (9, HW, HW)
    PS1 = np.einsum("mp,kpq->kmq", P, S1).astype(np.float32)    # (9, HW2, HW)
    S2 = _shift_matrices(H2, W2)                                # (9, HW2, HW2)

    x_flat = jnp.transpose(x_nchw, (0, 2, 3, 1)).reshape(N, HW, Cin)

    K1 = params["w1"].reshape(9, Cin, Cin)
    K2 = params["w2"].reshape(9, Cin, Cout)
    b1 = params["b1"].reshape(1, Cin)
    b2 = params["b2"].reshape(1, Cout)
    g1 = params["gamma1"].reshape(1, Cin)
    be1 = params["beta1"].reshape(1, Cin)
    t1 = params["tau1"].reshape(1, Cin)
    g2 = params["gamma2"].reshape(1, Cin)
    be2 = params["beta2"].reshape(1, Cin)
    t2 = params["tau2"].reshape(1, Cin)
    wsc = params["w_sc"] if learned_sc else jnp.eye(Cin, dtype=jnp.float32)
    Csc = wsc.shape[-1]

    out_flat = pl.pallas_call(
        functools.partial(_act_first_res_blk_kernel, eps=FRN_EPS),
        out_shape=jax.ShapeDtypeStruct((N, HW2, Cout), jnp.float32),
        grid=(N,),
        in_specs=[
            pl.BlockSpec((1, HW, Cin), lambda n: (n, 0, 0)),      # x
            pl.BlockSpec((9, HW2, HW), lambda n: (0, 0, 0)),      # PS1
            pl.BlockSpec((9, Cin, Cin), lambda n: (0, 0, 0)),     # K1
            pl.BlockSpec((1, Cin), lambda n: (0, 0)),             # b1
            pl.BlockSpec((1, Cin), lambda n: (0, 0)),             # gamma1
            pl.BlockSpec((1, Cin), lambda n: (0, 0)),             # beta1
            pl.BlockSpec((1, Cin), lambda n: (0, 0)),             # tau1
            pl.BlockSpec((9, HW2, HW2), lambda n: (0, 0, 0)),     # S2
            pl.BlockSpec((9, Cin, Cout), lambda n: (0, 0, 0)),    # K2
            pl.BlockSpec((1, Cout), lambda n: (0, 0)),            # b2
            pl.BlockSpec((1, Cin), lambda n: (0, 0)),             # gamma2
            pl.BlockSpec((1, Cin), lambda n: (0, 0)),             # beta2
            pl.BlockSpec((1, Cin), lambda n: (0, 0)),             # tau2
            pl.BlockSpec((HW2, HW), lambda n: (0, 0)),            # P (shortcut)
            pl.BlockSpec((Cin, Csc), lambda n: (0, 0)),           # w_sc
        ],
        out_specs=pl.BlockSpec((1, HW2, Cout), lambda n: (n, 0, 0)),
        compiler_params=pltpu.CompilerParams(
            dimension_semantics=("parallel",)),
    )(x_flat, jnp.asarray(PS1), K1, b1, g1, be1, t1,
      jnp.asarray(S2), K2, b2, g2, be2, t2, jnp.asarray(P), wsc)

    return jnp.transpose(out_flat.reshape(N, H2, W2, Cout), (0, 3, 1, 2))


# ---------------------------------------------------------------------------
# Parameters + pure-JAX reference (for a sanity check in __main__).
# ---------------------------------------------------------------------------
def init_params(key, dim_in, dim_out):
    ks = jax.random.split(key, 12)

    def conv_w(k, kh, kw, cin, cout):
        return (jax.random.normal(k, (kh, kw, cin, cout), jnp.float32)
                * math.sqrt(2.0 / (kh * kw * cin)))

    p = dict(
        w1=conv_w(ks[0], 3, 3, dim_in, dim_in),
        b1=0.05 * jax.random.normal(ks[1], (dim_in,), jnp.float32),
        w2=conv_w(ks[2], 3, 3, dim_in, dim_out),
        b2=0.05 * jax.random.normal(ks[3], (dim_out,), jnp.float32),
        gamma1=1.0 + 0.1 * jax.random.normal(ks[4], (dim_in,), jnp.float32),
        beta1=0.1 * jax.random.normal(ks[5], (dim_in,), jnp.float32),
        tau1=0.1 * jax.random.normal(ks[6], (dim_in,), jnp.float32),
        gamma2=1.0 + 0.1 * jax.random.normal(ks[7], (dim_in,), jnp.float32),
        beta2=0.1 * jax.random.normal(ks[8], (dim_in,), jnp.float32),
        tau2=0.1 * jax.random.normal(ks[9], (dim_in,), jnp.float32),
    )
    if dim_in != dim_out:
        p["w_sc"] = conv_w(ks[10], 1, 1, dim_in, dim_out).reshape(dim_in, dim_out)
    return p


def reference_forward(params, x, downsample=True):
    eps = FRN_EPS

    def frn(v, g, b, t):
        nu2 = jnp.mean(v * v, axis=(2, 3), keepdims=True)
        vn = v * lax.rsqrt(nu2 + eps)
        return jnp.maximum(g.reshape(1, -1, 1, 1) * vn + b.reshape(1, -1, 1, 1),
                           t.reshape(1, -1, 1, 1))

    def conv3(v, w_hwio, b):
        y = lax.conv_general_dilated(
            v, w_hwio, window_strides=(1, 1), padding=((1, 1), (1, 1)),
            dimension_numbers=("NCHW", "HWIO", "NCHW"))
        return y + b.reshape(1, -1, 1, 1)

    def avgpool2(v):
        n, c, h, w = v.shape
        return v.reshape(n, c, h // 2, 2, w // 2, 2).mean(axis=(3, 5))

    h = frn(x, params["gamma1"], params["beta1"], params["tau1"])
    h = conv3(h, params["w1"], params["b1"])
    if downsample:
        h = avgpool2(h)
    h = frn(h, params["gamma2"], params["beta2"], params["tau2"])
    h = conv3(h, params["w2"], params["b2"])

    s = x
    if "w_sc" in params:
        s = jnp.einsum("nchw,cd->ndhw", s, params["w_sc"])
    if downsample:
        s = avgpool2(s)
    return (s + h) * INV_SQRT2


# ---------------------------------------------------------------------------
if __name__ == "__main__":
    N, DIM_IN, DIM_OUT, H, W = 2, 64, 128, 16, 16

    key = jax.random.PRNGKey(0)
    kp, kx = jax.random.split(key)
    params = init_params(kp, DIM_IN, DIM_OUT)
    x = jax.random.normal(kx, (N, DIM_IN, H, W), jnp.float32)

    out = act_first_res_blk_forward(params, x, downsample=True)
    out = jax.block_until_ready(out)
    assert out.shape == (N, DIM_OUT, H // 2, W // 2), out.shape
    assert bool(jnp.all(jnp.isfinite(out)))

    ref = reference_forward(params, x, downsample=True)
    max_err = float(jnp.max(jnp.abs(out - ref)))
    if not (math.isfinite(max_err) and max_err < 7.5e-2):
        raise AssertionError(f"mismatch vs reference: max abs err = {max_err}")

    print("KERNEL_OK")
</pallas_src>

<mosaic_0001>
module attributes {stable_mosaic.version = 11 : i64} {
  func.func @_act_first_res_blk_kernel(%arg0: i32, %arg1: memref<1x256x64xf32, #tpu.memory_space<vmem>>, %arg2: memref<9x64x256xf32, #tpu.memory_space<vmem>>, %arg3: memref<9x64x64xf32, #tpu.memory_space<vmem>>, %arg4: memref<1x64xf32, #tpu.memory_space<vmem>>, %arg5: memref<1x64xf32, #tpu.memory_space<vmem>>, %arg6: memref<1x64xf32, #tpu.memory_space<vmem>>, %arg7: memref<1x64xf32, #tpu.memory_space<vmem>>, %arg8: memref<9x64x64xf32, #tpu.memory_space<vmem>>, %arg9: memref<9x64x128xf32, #tpu.memory_space<vmem>>, %arg10: memref<1x128xf32, #tpu.memory_space<vmem>>, %arg11: memref<1x64xf32, #tpu.memory_space<vmem>>, %arg12: memref<1x64xf32, #tpu.memory_space<vmem>>, %arg13: memref<1x64xf32, #tpu.memory_space<vmem>>, %arg14: memref<64x256xf32, #tpu.memory_space<vmem>>, %arg15: memref<64x128xf32, #tpu.memory_space<vmem>>, %arg16: memref<1x64x128xf32, #tpu.memory_space<vmem>>) attributes {dimension_semantics = [#tpu.dimension_semantics<parallel>], iteration_bounds = array<i64: 2>, scalar_prefetch = 0 : i64, scratch_operands = 0 : i64, tpu.core_type = #tpu.core_type<tc>, window_params = [{transform_indices = @transform_0, window_bounds = array<i64: 1, 256, 64>}, {pipeline_mode = #tpu.pipeline_mode<synchronous>, transform_indices = @transform_1, window_bounds = array<i64: 9, 64, 256>}, {pipeline_mode = #tpu.pipeline_mode<synchronous>, transform_indices = @transform_2, window_bounds = array<i64: 9, 64, 64>}, {pipeline_mode = #tpu.pipeline_mode<synchronous>, transform_indices = @transform_3, window_bounds = array<i64: 1, 64>}, {pipeline_mode = #tpu.pipeline_mode<synchronous>, transform_indices = @transform_4, window_bounds = array<i64: 1, 64>}, {pipeline_mode = #tpu.pipeline_mode<synchronous>, transform_indices = @transform_5, window_bounds = array<i64: 1, 64>}, {pipeline_mode = #tpu.pipeline_mode<synchronous>, transform_indices = @transform_6, window_bounds = array<i64: 1, 64>}, {pipeline_mode = #tpu.pipeline_mode<synchronous>, transform_indices = @transform_7, window_bounds = array<i64: 9, 64, 64>}, {pipeline_mode = #tpu.pipeline_mode<synchronous>, transform_indices = @transform_8, window_bounds = array<i64: 9, 64, 128>}, {pipeline_mode = #tpu.pipeline_mode<synchronous>, transform_indices = @transform_9, window_bounds = array<i64: 1, 128>}, {pipeline_mode = #tpu.pipeline_mode<synchronous>, transform_indices = @transform_10, window_bounds = array<i64: 1, 64>}, {pipeline_mode = #tpu.pipeline_mode<synchronous>, transform_indices = @transform_11, window_bounds = array<i64: 1, 64>}, {pipeline_mode = #tpu.pipeline_mode<synchronous>, transform_indices = @transform_12, window_bounds = array<i64: 1, 64>}, {pipeline_mode = #tpu.pipeline_mode<synchronous>, transform_indices = @transform_13, window_bounds = array<i64: 64, 256>}, {pipeline_mode = #tpu.pipeline_mode<synchronous>, transform_indices = @transform_14, window_bounds = array<i64: 64, 128>}, {transform_indices = @transform_15, window_bounds = array<i64: 1, 64, 128>}]} {
    %c0 = arith.constant 0 : index
    %c0_0 = arith.constant 0 : index
    %c0_1 = arith.constant 0 : index
    %0 = vector.load %arg1[%c0, %c0_0, %c0_1] : memref<1x256x64xf32, #tpu.memory_space<vmem>>, vector<1x256x64xf32>
    %1 = vector.shape_cast %0 : vector<1x256x64xf32> to vector<256x64xf32>
    %2 = arith.mulf %1, %1 : vector<256x64xf32>
    %cst = arith.constant dense<0.000000e+00> : vector<64xf32>
    %3 = vector.multi_reduction <add>, %2, %cst [0] : vector<256x64xf32> to vector<64xf32>
    %4 = vector.shape_cast %3 : vector<64xf32> to vector<1x64xf32>
    %cst_2 = arith.constant 2.560000e+02 : f32
    %5 = vector.broadcast %cst_2 : f32 to vector<1x64xf32>
    %6 = arith.divf %4, %5 : vector<1x64xf32>
    %cst_3 = arith.constant 9.99999997E-7 : f32
    %7 = vector.broadcast %cst_3 : f32 to vector<1x64xf32>
    %8 = arith.addf %6, %7 : vector<1x64xf32>
    %9 = math.rsqrt %8 : vector<1x64xf32>
    %10 = vector.broadcast %9 : vector<1x64xf32> to vector<256x64xf32>
    %11 = arith.mulf %1, %10 : vector<256x64xf32>
    %c0_4 = arith.constant 0 : index
    %c0_5 = arith.constant 0 : index
    %12 = vector.load %arg5[%c0_4, %c0_5] : memref<1x64xf32, #tpu.memory_space<vmem>>, vector<1x64xf32>
    %13 = vector.broadcast %12 : vector<1x64xf32> to vector<256x64xf32>
    %14 = arith.mulf %13, %11 : vector<256x64xf32>
    %c0_6 = arith.constant 0 : index
    %c0_7 = arith.constant 0 : index
    %15 = vector.load %arg6[%c0_6, %c0_7] : memref<1x64xf32, #tpu.memory_space<vmem>>, vector<1x64xf32>
    %16 = vector.broadcast %15 : vector<1x64xf32> to vector<256x64xf32>
    %17 = arith.addf %14, %16 : vector<256x64xf32>
    %c0_8 = arith.constant 0 : index
    %c0_9 = arith.constant 0 : index
    %18 = vector.load %arg7[%c0_8, %c0_9] : memref<1x64xf32, #tpu.memory_space<vmem>>, vector<1x64xf32>
    %19 = vector.broadcast %18 : vector<1x64xf32> to vector<256x64xf32>
    %20 = arith.maximumf %17, %19 : vector<256x64xf32>
    %c0_10 = arith.constant 0 : index
    %c0_11 = arith.constant 0 : index
    %c0_12 = arith.constant 0 : index
    %21 = vector.load %arg2[%c0_10, %c0_11, %c0_12] : memref<9x64x256xf32, #tpu.memory_space<vmem>>, vector<1x64x256xf32>
    %22 = vector.shape_cast %21 : vector<1x64x256xf32> to vector<64x256xf32>
    %cst_13 = arith.constant dense<0.000000e+00> : vector<64x64xf32>
    %23 = tpu.matmul %22, %20, %cst_13 {dimension_numbers = #tpu.dot_dimension_numbers<[1], [0], [0], [1], [0, 0, 1, 1], [], []>} : vector<64x256xf32>, vector<256x64xf32>, vector<64x64xf32> -> vector<64x64xf32>
    %c0_14 = arith.constant 0 : index
    %c0_15 = arith.constant 0 : index
    %c0_16 = arith.constant 0 : index
    %24 = vector.load %arg3[%c0_14, %c0_15, %c0_16] : memref<9x64x64xf32, #tpu.memory_space<vmem>>, vector<1x64x64xf32>
    %25 = vector.shape_cast %24 : vector<1x64x64xf32> to vector<64x64xf32>
    %cst_17 = arith.constant dense<0.000000e+00> : vector<64x64xf32>
    %26 = tpu.matmul %23, %25, %cst_17 {dimension_numbers = #tpu.dot_dimension_numbers<[1], [0], [0], [1], [0, 0, 1, 1], [], []>} : vector<64x64xf32>, vector<64x64xf32>, vector<64x64xf32> -> vector<64x64xf32>
    %c1 = arith.constant 1 : index
    %c0_18 = arith.constant 0 : index
    %c0_19 = arith.constant 0 : index
    %27 = vector.load %arg2[%c1, %c0_18, %c0_19] : memref<9x64x256xf32, #tpu.memory_space<vmem>>, vector<1x64x256xf32>
    %28 = vector.shape_cast %27 : vector<1x64x256xf32> to vector<64x256xf32>
    %cst_20 = arith.constant dense<0.000000e+00> : vector<64x64xf32>
    %29 = tpu.matmul %28, %20, %cst_20 {dimension_numbers = #tpu.dot_dimension_numbers<[1], [0], [0], [1], [0, 0, 1, 1], [], []>} : vector<64x256xf32>, vector<256x64xf32>, vector<64x64xf32> -> vector<64x64xf32>
    %c1_21 = arith.constant 1 : index
    %c0_22 = arith.constant 0 : index
    %c0_23 = arith.constant 0 : index
    %30 = vector.load %arg3[%c1_21, %c0_22, %c0_23] : memref<9x64x64xf32, #tpu.memory_space<vmem>>, vector<1x64x64xf32>
    %31 = vector.shape_cast %30 : vector<1x64x64xf32> to vector<64x64xf32>
    %cst_24 = arith.constant dense<0.000000e+00> : vector<64x64xf32>
    %32 = tpu.matmul %29, %31, %cst_24 {dimension_numbers = #tpu.dot_dimension_numbers<[1], [0], [0], [1], [0, 0, 1, 1], [], []>} : vector<64x64xf32>, vector<64x64xf32>, vector<64x64xf32> -> vector<64x64xf32>
    %33 = arith.addf %26, %32 : vector<64x64xf32>
    %c2 = arith.constant 2 : index
    %c0_25 = arith.constant 0 : index
    %c0_26 = arith.constant 0 : index
    %34 = vector.load %arg2[%c2, %c0_25, %c0_26] : memref<9x64x256xf32, #tpu.memory_space<vmem>>, vector<1x64x256xf32>
    %35 = vector.shape_cast %34 : vector<1x64x256xf32> to vector<64x256xf32>
    %cst_27 = arith.constant dense<0.000000e+00> : vector<64x64xf32>
    %36 = tpu.matmul %35, %20, %cst_27 {dimension_numbers = #tpu.dot_dimension_numbers<[1], [0], [0], [1], [0, 0, 1, 1], [], []>} : vector<64x256xf32>, vector<256x64xf32>, vector<64x64xf32> -> vector<64x64xf32>
    %c2_28 = arith.constant 2 : index
    %c0_29 = arith.constant 0 : index
    %c0_30 = arith.constant 0 : index
    %37 = vector.load %arg3[%c2_28, %c0_29, %c0_30] : memref<9x64x64xf32, #tpu.memory_space<vmem>>, vector<1x64x64xf32>
    %38 = vector.shape_cast %37 : vector<1x64x64xf32> to vector<64x64xf32>
    %cst_31 = arith.constant dense<0.000000e+00> : vector<64x64xf32>
    %39 = tpu.matmul %36, %38, %cst_31 {dimension_numbers = #tpu.dot_dimension_numbers<[1], [0], [0], [1], [0, 0, 1, 1], [], []>} : vector<64x64xf32>, vector<64x64xf32>, vector<64x64xf32> -> vector<64x64xf32>
    %40 = arith.addf %33, %39 : vector<64x64xf32>
    %c3 = arith.constant 3 : index
    %c0_32 = arith.constant 0 : index
    %c0_33 = arith.constant 0 : index
    %41 = vector.load %arg2[%c3, %c0_32, %c0_33] : memref<9x64x256xf32, #tpu.memory_space<vmem>>, vector<1x64x256xf32>
    %42 = vector.shape_cast %41 : vector<1x64x256xf32> to vector<64x256xf32>
    %cst_34 = arith.constant dense<0.000000e+00> : vector<64x64xf32>
    %43 = tpu.matmul %42, %20, %cst_34 {dimension_numbers = #tpu.dot_dimension_numbers<[1], [0], [0], [1], [0, 0, 1, 1], [], []>} : vector<64x256xf32>, vector<256x64xf32>, vector<64x64xf32> -> vector<64x64xf32>
    %c3_35 = arith.constant 3 : index
    %c0_36 = arith.constant 0 : index
    %c0_37 = arith.constant 0 : index
    %44 = vector.load %arg3[%c3_35, %c0_36, %c0_37] : memref<9x64x64xf32, #tpu.memory_space<vmem>>, vector<1x64x64xf32>
    %45 = vector.shape_cast %44 : vector<1x64x64xf32> to vector<64x64xf32>
    %cst_38 = arith.constant dense<0.000000e+00> : vector<64x64xf32>
    %46 = tpu.matmul %43, %45, %cst_38 {dimension_numbers = #tpu.dot_dimension_numbers<[1], [0], [0], [1], [0, 0, 1, 1], [], []>} : vector<64x64xf32>, vector<64x64xf32>, vector<64x64xf32> -> vector<64x64xf32>
    %47 = arith.addf %40, %46 : vector<64x64xf32>
    %c4 = arith.constant 4 : index
    %c0_39 = arith.constant 0 : index
    %c0_40 = arith.constant 0 : index
    %48 = vector.load %arg2[%c4, %c0_39, %c0_40] : memref<9x64x256xf32, #tpu.memory_space<vmem>>, vector<1x64x256xf32>
    %49 = vector.shape_cast %48 : vector<1x64x256xf32> to vector<64x256xf32>
    %cst_41 = arith.constant dense<0.000000e+00> : vector<64x64xf32>
    %50 = tpu.matmul %49, %20, %cst_41 {dimension_numbers = #tpu.dot_dimension_numbers<[1], [0], [0], [1], [0, 0, 1, 1], [], []>} : vector<64x256xf32>, vector<256x64xf32>, vector<64x64xf32> -> vector<64x64xf32>
    %c4_42 = arith.constant 4 : index
    %c0_43 = arith.constant 0 : index
    %c0_44 = arith.constant 0 : index
    %51 = vector.load %arg3[%c4_42, %c0_43, %c0_44] : memref<9x64x64xf32, #tpu.memory_space<vmem>>, vector<1x64x64xf32>
    %52 = vector.shape_cast %51 : vector<1x64x64xf32> to vector<64x64xf32>
    %cst_45 = arith.constant dense<0.000000e+00> : vector<64x64xf32>
    %53 = tpu.matmul %50, %52, %cst_45 {dimension_numbers = #tpu.dot_dimension_numbers<[1], [0], [0], [1], [0, 0, 1, 1], [], []>} : vector<64x64xf32>, vector<64x64xf32>, vector<64x64xf32> -> vector<64x64xf32>
    %54 = arith.addf %47, %53 : vector<64x64xf32>
    %c5 = arith.constant 5 : index
    %c0_46 = arith.constant 0 : index
    %c0_47 = arith.constant 0 : index
    %55 = vector.load %arg2[%c5, %c0_46, %c0_47] : memref<9x64x256xf32, #tpu.memory_space<vmem>>, vector<1x64x256xf32>
    %56 = vector.shape_cast %55 : vector<1x64x256xf32> to vector<64x256xf32>
    %cst_48 = arith.constant dense<0.000000e+00> : vector<64x64xf32>
    %57 = tpu.matmul %56, %20, %cst_48 {dimension_numbers = #tpu.dot_dimension_numbers<[1], [0], [0], [1], [0, 0, 1, 1], [], []>} : vector<64x256xf32>, vector<256x64xf32>, vector<64x64xf32> -> vector<64x64xf32>
    %c5_49 = arith.constant 5 : index
    %c0_50 = arith.constant 0 : index
    %c0_51 = arith.constant 0 : index
    %58 = vector.load %arg3[%c5_49, %c0_50, %c0_51] : memref<9x64x64xf32, #tpu.memory_space<vmem>>, vector<1x64x64xf32>
    %59 = vector.shape_cast %58 : vector<1x64x64xf32> to vector<64x64xf32>
    %cst_52 = arith.constant dense<0.000000e+00> : vector<64x64xf32>
    %60 = tpu.matmul %57, %59, %cst_52 {dimension_numbers = #tpu.dot_dimension_numbers<[1], [0], [0], [1], [0, 0, 1, 1], [], []>} : vector<64x64xf32>, vector<64x64xf32>, vector<64x64xf32> -> vector<64x64xf32>
    %61 = arith.addf %54, %60 : vector<64x64xf32>
    %c6 = arith.constant 6 : index
    %c0_53 = arith.constant 0 : index
    %c0_54 = arith.constant 0 : index
    %62 = vector.load %arg2[%c6, %c0_53, %c0_54] : memref<9x64x256xf32, #tpu.memory_space<vmem>>, vector<1x64x256xf32>
    %63 = vector.shape_cast %62 : vector<1x64x256xf32> to vector<64x256xf32>
    %cst_55 = arith.constant dense<0.000000e+00> : vector<64x64xf32>
    %64 = tpu.matmul %63, %20, %cst_55 {dimension_numbers = #tpu.dot_dimension_numbers<[1], [0], [0], [1], [0, 0, 1, 1], [], []>} : vector<64x256xf32>, vector<256x64xf32>, vector<64x64xf32> -> vector<64x64xf32>
    %c6_56 = arith.constant 6 : index
    %c0_57 = arith.constant 0 : index
    %c0_58 = arith.constant 0 : index
    %65 = vector.load %arg3[%c6_56, %c0_57, %c0_58] : memref<9x64x64xf32, #tpu.memory_space<vmem>>, vector<1x64x64xf32>
    %66 = vector.shape_cast %65 : vector<1x64x64xf32> to vector<64x64xf32>
    %cst_59 = arith.constant dense<0.000000e+00> : vector<64x64xf32>
    %67 = tpu.matmul %64, %66, %cst_59 {dimension_numbers = #tpu.dot_dimension_numbers<[1], [0], [0], [1], [0, 0, 1, 1], [], []>} : vector<64x64xf32>, vector<64x64xf32>, vector<64x64xf32> -> vector<64x64xf32>
    %68 = arith.addf %61, %67 : vector<64x64xf32>
    %c7 = arith.constant 7 : index
    %c0_60 = arith.constant 0 : index
    %c0_61 = arith.constant 0 : index
    %69 = vector.load %arg2[%c7, %c0_60, %c0_61] : memref<9x64x256xf32, #tpu.memory_space<vmem>>, vector<1x64x256xf32>
    %70 = vector.shape_cast %69 : vector<1x64x256xf32> to vector<64x256xf32>
    %cst_62 = arith.constant dense<0.000000e+00> : vector<64x64xf32>
    %71 = tpu.matmul %70, %20, %cst_62 {dimension_numbers = #tpu.dot_dimension_numbers<[1], [0], [0], [1], [0, 0, 1, 1], [], []>} : vector<64x256xf32>, vector<256x64xf32>, vector<64x64xf32> -> vector<64x64xf32>
    %c7_63 = arith.constant 7 : index
    %c0_64 = arith.constant 0 : index
    %c0_65 = arith.constant 0 : index
    %72 = vector.load %arg3[%c7_63, %c0_64, %c0_65] : memref<9x64x64xf32, #tpu.memory_space<vmem>>, vector<1x64x64xf32>
    %73 = vector.shape_cast %72 : vector<1x64x64xf32> to vector<64x64xf32>
    %cst_66 = arith.constant dense<0.000000e+00> : vector<64x64xf32>
    %74 = tpu.matmul %71, %73, %cst_66 {dimension_numbers = #tpu.dot_dimension_numbers<[1], [0], [0], [1], [0, 0, 1, 1], [], []>} : vector<64x64xf32>, vector<64x64xf32>, vector<64x64xf32> -> vector<64x64xf32>
    %75 = arith.addf %68, %74 : vector<64x64xf32>
    %c8 = arith.constant 8 : index
    %c0_67 = arith.constant 0 : index
    %c0_68 = arith.constant 0 : index
    %76 = vector.load %arg2[%c8, %c0_67, %c0_68] : memref<9x64x256xf32, #tpu.memory_space<vmem>>, vector<1x64x256xf32>
    %77 = vector.shape_cast %76 : vector<1x64x256xf32> to vector<64x256xf32>
    %cst_69 = arith.constant dense<0.000000e+00> : vector<64x64xf32>
    %78 = tpu.matmul %77, %20, %cst_69 {dimension_numbers = #tpu.dot_dimension_numbers<[1], [0], [0], [1], [0, 0, 1, 1], [], []>} : vector<64x256xf32>, vector<256x64xf32>, vector<64x64xf32> -> vector<64x64xf32>
    %c8_70 = arith.constant 8 : index
    %c0_71 = arith.constant 0 : index
    %c0_72 = arith.constant 0 : index
    %79 = vector.load %arg3[%c8_70, %c0_71, %c0_72] : memref<9x64x64xf32, #tpu.memory_space<vmem>>, vector<1x64x64xf32>
    %80 = vector.shape_cast %79 : vector<1x64x64xf32> to vector<64x64xf32>
    %cst_73 = arith.constant dense<0.000000e+00> : vector<64x64xf32>
    %81 = tpu.matmul %78, %80, %cst_73 {dimension_numbers = #tpu.dot_dimension_numbers<[1], [0], [0], [1], [0, 0, 1, 1], [], []>} : vector<64x64xf32>, vector<64x64xf32>, vector<64x64xf32> -> vector<64x64xf32>
    %82 = arith.addf %75, %81 : vector<64x64xf32>
    %c0_74 = arith.constant 0 : index
    %c0_75 = arith.constant 0 : index
    %83 = vector.load %arg4[%c0_74, %c0_75] : memref<1x64xf32, #tpu.memory_space<vmem>>, vector<1x64xf32>
    %84 = vector.broadcast %83 : vector<1x64xf32> to vector<64x64xf32>
    %85 = arith.addf %82, %84 : vector<64x64xf32>
    %86 = arith.mulf %85, %85 : vector<64x64xf32>
    %cst_76 = arith.constant dense<0.000000e+00> : vector<64xf32>
    %87 = vector.multi_reduction <add>, %86, %cst_76 [0] : vector<64x64xf32> to vector<64xf32>
    %88 = vector.shape_cast %87 : vector<64xf32> to vector<1x64xf32>
    %cst_77 = arith.constant 6.400000e+01 : f32
    %89 = vector.broadcast %cst_77 : f32 to vector<1x64xf32>
    %90 = arith.divf %88, %89 : vector<1x64xf32>
    %cst_78 = arith.constant 9.99999997E-7 : f32
    %91 = vector.broadcast %cst_78 : f32 to vector<1x64xf32>
    %92 = arith.addf %90, %91 : vector<1x64xf32>
    %93 = math.rsqrt %92 : vector<1x64xf32>
    %94 = vector.broadcast %93 : vector<1x64xf32> to vector<64x64xf32>
    %95 = arith.mulf %85, %94 : vector<64x64xf32>
    %c0_79 = arith.constant 0 : index
    %c0_80 = arith.constant 0 : index
    %96 = vector.load %arg11[%c0_79, %c0_80] : memref<1x64xf32, #tpu.memory_space<vmem>>, vector<1x64xf32>
    %97 = vector.broadcast %96 : vector<1x64xf32> to vector<64x64xf32>
    %98 = arith.mulf %97, %95 : vector<64x64xf32>
    %c0_81 = arith.constant 0 : index
    %c0_82 = arith.constant 0 : index
    %99 = vector.load %arg12[%c0_81, %c0_82] : memref<1x64xf32, #tpu.memory_space<vmem>>, vector<1x64xf32>
    %100 = vector.broadcast %99 : vector<1x64xf32> to vector<64x64xf32>
    %101 = arith.addf %98, %100 : vector<64x64xf32>
    %c0_83 = arith.constant 0 : index
    %c0_84 = arith.constant 0 : index
    %102 = vector.load %arg13[%c0_83, %c0_84] : memref<1x64xf32, #tpu.memory_space<vmem>>, vector<1x64xf32>
    %103 = vector.broadcast %102 : vector<1x64xf32> to vector<64x64xf32>
    %104 = arith.maximumf %101, %103 : vector<64x64xf32>
    %c0_85 = arith.constant 0 : index
    %c0_86 = arith.constant 0 : index
    %c0_87 = arith.constant 0 : index
    %105 = vector.load %arg8[%c0_85, %c0_86, %c0_87] : memref<9x64x64xf32, #tpu.memory_space<vmem>>, vector<1x64x64xf32>
    %106 = vector.shape_cast %105 : vector<1x64x64xf32> to vector<64x64xf32>
    %cst_88 = arith.constant dense<0.000000e+00> : vector<64x64xf32>
    %107 = tpu.matmul %106, %104, %cst_88 {dimension_numbers = #tpu.dot_dimension_numbers<[1], [0], [0], [1], [0, 0, 1, 1], [], []>} : vector<64x64xf32>, vector<64x64xf32>, vector<64x64xf32> -> vector<64x64xf32>
    %c0_89 = arith.constant 0 : index
    %c0_90 = arith.constant 0 : index
    %c0_91 = arith.constant 0 : index
    %108 = vector.load %arg9[%c0_89, %c0_90, %c0_91] : memref<9x64x128xf32, #tpu.memory_space<vmem>>, vector<1x64x128xf32>
    %109 = vector.shape_cast %108 : vector<1x64x128xf32> to vector<64x128xf32>
    %cst_92 = arith.constant dense<0.000000e+00> : vector<64x128xf32>
    %110 = tpu.matmul %107, %109, %cst_92 {dimension_numbers = #tpu.dot_dimension_numbers<[1], [0], [0], [1], [0, 0, 1, 1], [], []>} : vector<64x64xf32>, vector<64x128xf32>, vector<64x128xf32> -> vector<64x128xf32>
    %c1_93 = arith.constant 1 : index
    %c0_94 = arith.constant 0 : index
    %c0_95 = arith.constant 0 : index
    %111 = vector.load %arg8[%c1_93, %c0_94, %c0_95] : memref<9x64x64xf32, #tpu.memory_space<vmem>>, vector<1x64x64xf32>
    %112 = vector.shape_cast %111 : vector<1x64x64xf32> to vector<64x64xf32>
    %cst_96 = arith.constant dense<0.000000e+00> : vector<64x64xf32>
    %113 = tpu.matmul %112, %104, %cst_96 {dimension_numbers = #tpu.dot_dimension_numbers<[1], [0], [0], [1], [0, 0, 1, 1], [], []>} : vector<64x64xf32>, vector<64x64xf32>, vector<64x64xf32> -> vector<64x64xf32>
    %c1_97 = arith.constant 1 : index
    %c0_98 = arith.constant 0 : index
    %c0_99 = arith.constant 0 : index
    %114 = vector.load %arg9[%c1_97, %c0_98, %c0_99] : memref<9x64x128xf32, #tpu.memory_space<vmem>>, vector<1x64x128xf32>
    %115 = vector.shape_cast %114 : vector<1x64x128xf32> to vector<64x128xf32>
    %cst_100 = arith.constant dense<0.000000e+00> : vector<64x128xf32>
    %116 = tpu.matmul %113, %115, %cst_100 {dimension_numbers = #tpu.dot_dimension_numbers<[1], [0], [0], [1], [0, 0, 1, 1], [], []>} : vector<64x64xf32>, vector<64x128xf32>, vector<64x128xf32> -> vector<64x128xf32>
    %117 = arith.addf %110, %116 : vector<64x128xf32>
    %c2_101 = arith.constant 2 : index
    %c0_102 = arith.constant 0 : index
    %c0_103 = arith.constant 0 : index
    %118 = vector.load %arg8[%c2_101, %c0_102, %c0_103] : memref<9x64x64xf32, #tpu.memory_space<vmem>>, vector<1x64x64xf32>
    %119 = vector.shape_cast %118 : vector<1x64x64xf32> to vector<64x64xf32>
    %cst_104 = arith.constant dense<0.000000e+00> : vector<64x64xf32>
    %120 = tpu.matmul %119, %104, %cst_104 {dimension_numbers = #tpu.dot_dimension_numbers<[1], [0], [0], [1], [0, 0, 1, 1], [], []>} : vector<64x64xf32>, vector<64x64xf32>, vector<64x64xf32> -> vector<64x64xf32>
    %c2_105 = arith.constant 2 : index
    %c0_106 = arith.constant 0 : index
    %c0_107 = arith.constant 0 : index
    %121 = vector.load %arg9[%c2_105, %c0_106, %c0_107] : memref<9x64x128xf32, #tpu.memory_space<vmem>>, vector<1x64x128xf32>
    %122 = vector.shape_cast %121 : vector<1x64x128xf32> to vector<64x128xf32>
    %cst_108 = arith.constant dense<0.000000e+00> : vector<64x128xf32>
    %123 = tpu.matmul %120, %122, %cst_108 {dimension_numbers = #tpu.dot_dimension_numbers<[1], [0], [0], [1], [0, 0, 1, 1], [], []>} : vector<64x64xf32>, vector<64x128xf32>, vector<64x128xf32> -> vector<64x128xf32>
    %124 = arith.addf %117, %123 : vector<64x128xf32>
    %c3_109 = arith.constant 3 : index
    %c0_110 = arith.constant 0 : index
    %c0_111 = arith.constant 0 : index
    %125 = vector.load %arg8[%c3_109, %c0_110, %c0_111] : memref<9x64x64xf32, #tpu.memory_space<vmem>>, vector<1x64x64xf32>
    %126 = vector.shape_cast %125 : vector<1x64x64xf32> to vector<64x64xf32>
    %cst_112 = arith.constant dense<0.000000e+00> : vector<64x64xf32>
    %127 = tpu.matmul %126, %104, %cst_112 {dimension_numbers = #tpu.dot_dimension_numbers<[1], [0], [0], [1], [0, 0, 1, 1], [], []>} : vector<64x64xf32>, vector<64x64xf32>, vector<64x64xf32> -> vector<64x64xf32>
    %c3_113 = arith.constant 3 : index
    %c0_114 = arith.constant 0 : index
    %c0_115 = arith.constant 0 : index
    %128 = vector.load %arg9[%c3_113, %c0_114, %c0_115] : memref<9x64x128xf32, #tpu.memory_space<vmem>>, vector<1x64x128xf32>
    %129 = vector.shape_cast %128 : vector<1x64x128xf32> to vector<64x128xf32>
    %cst_116 = arith.constant dense<0.000000e+00> : vector<64x128xf32>
    %130 = tpu.matmul %127, %129, %cst_116 {dimension_numbers = #tpu.dot_dimension_numbers<[1], [0], [0], [1], [0, 0, 1, 1], [], []>} : vector<64x64xf32>, vector<64x128xf32>, vector<64x128xf32> -> vector<64x128xf32>
    %131 = arith.addf %124, %130 : vector<64x128xf32>
    %c4_117 = arith.constant 4 : index
    %c0_118 = arith.constant 0 : index
    %c0_119 = arith.constant 0 : index
    %132 = vector.load %arg8[%c4_117, %c0_118, %c0_119] : memref<9x64x64xf32, #tpu.memory_space<vmem>>, vector<1x64x64xf32>
    %133 = vector.shape_cast %132 : vector<1x64x64xf32> to vector<64x64xf32>
    %cst_120 = arith.constant dense<0.000000e+00> : vector<64x64xf32>
    %134 = tpu.matmul %133, %104, %cst_120 {dimension_numbers = #tpu.dot_dimension_numbers<[1], [0], [0], [1], [0, 0, 1, 1], [], []>} : vector<64x64xf32>, vector<64x64xf32>, vector<64x64xf32> -> vector<64x64xf32>
    %c4_121 = arith.constant 4 : index
    %c0_122 = arith.constant 0 : index
    %c0_123 = arith.constant 0 : index
    %135 = vector.load %arg9[%c4_121, %c0_122, %c0_123] : memref<9x64x128xf32, #tpu.memory_space<vmem>>, vector<1x64x128xf32>
    %136 = vector.shape_cast %135 : vector<1x64x128xf32> to vector<64x128xf32>
    %cst_124 = arith.constant dense<0.000000e+00> : vector<64x128xf32>
    %137 = tpu.matmul %134, %136, %cst_124 {dimension_numbers = #tpu.dot_dimension_numbers<[1], [0], [0], [1], [0, 0, 1, 1], [], []>} : vector<64x64xf32>, vector<64x128xf32>, vector<64x128xf32> -> vector<64x128xf32>
    %138 = arith.addf %131, %137 : vector<64x128xf32>
    %c5_125 = arith.constant 5 : index
    %c0_126 = arith.constant 0 : index
    %c0_127 = arith.constant 0 : index
    %139 = vector.load %arg8[%c5_125, %c0_126, %c0_127] : memref<9x64x64xf32, #tpu.memory_space<vmem>>, vector<1x64x64xf32>
    %140 = vector.shape_cast %139 : vector<1x64x64xf32> to vector<64x64xf32>
    %cst_128 = arith.constant dense<0.000000e+00> : vector<64x64xf32>
    %141 = tpu.matmul %140, %104, %cst_128 {dimension_numbers = #tpu.dot_dimension_numbers<[1], [0], [0], [1], [0, 0, 1, 1], [], []>} : vector<64x64xf32>, vector<64x64xf32>, vector<64x64xf32> -> vector<64x64xf32>
    %c5_129 = arith.constant 5 : index
    %c0_130 = arith.constant 0 : index
    %c0_131 = arith.constant 0 : index
    %142 = vector.load %arg9[%c5_129, %c0_130, %c0_131] : memref<9x64x128xf32, #tpu.memory_space<vmem>>, vector<1x64x128xf32>
    %143 = vector.shape_cast %142 : vector<1x64x128xf32> to vector<64x128xf32>
    %cst_132 = arith.constant dense<0.000000e+00> : vector<64x128xf32>
    %144 = tpu.matmul %141, %143, %cst_132 {dimension_numbers = #tpu.dot_dimension_numbers<[1], [0], [0], [1], [0, 0, 1, 1], [], []>} : vector<64x64xf32>, vector<64x128xf32>, vector<64x128xf32> -> vector<64x128xf32>
    %145 = arith.addf %138, %144 : vector<64x128xf32>
    %c6_133 = arith.constant 6 : index
    %c0_134 = arith.constant 0 : index
    %c0_135 = arith.constant 0 : index
    %146 = vector.load %arg8[%c6_133, %c0_134, %c0_135] : memref<9x64x64xf32, #tpu.memory_space<vmem>>, vector<1x64x64xf32>
    %147 = vector.shape_cast %146 : vector<1x64x64xf32> to vector<64x64xf32>
    %cst_136 = arith.constant dense<0.000000e+00> : vector<64x64xf32>
    %148 = tpu.matmul %147, %104, %cst_136 {dimension_numbers = #tpu.dot_dimension_numbers<[1], [0], [0], [1], [0, 0, 1, 1], [], []>} : vector<64x64xf32>, vector<64x64xf32>, vector<64x64xf32> -> vector<64x64xf32>
    %c6_137 = arith.constant 6 : index
    %c0_138 = arith.constant 0 : index
    %c0_139 = arith.constant 0 : index
    %149 = vector.load %arg9[%c6_137, %c0_138, %c0_139] : memref<9x64x128xf32, #tpu.memory_space<vmem>>, vector<1x64x128xf32>
    %150 = vector.shape_cast %149 : vector<1x64x128xf32> to vector<64x128xf32>
    %cst_140 = arith.constant dense<0.000000e+00> : vector<64x128xf32>
    %151 = tpu.matmul %148, %150, %cst_140 {dimension_numbers = #tpu.dot_dimension_numbers<[1], [0], [0], [1], [0, 0, 1, 1], [], []>} : vector<64x64xf32>, vector<64x128xf32>, vector<64x128xf32> -> vector<64x128xf32>
    %152 = arith.addf %145, %151 : vector<64x128xf32>
    %c7_141 = arith.constant 7 : index
    %c0_142 = arith.constant 0 : index
    %c0_143 = arith.constant 0 : index
    %153 = vector.load %arg8[%c7_141, %c0_142, %c0_143] : memref<9x64x64xf32, #tpu.memory_space<vmem>>, vector<1x64x64xf32>
    %154 = vector.shape_cast %153 : vector<1x64x64xf32> to vector<64x64xf32>
    %cst_144 = arith.constant dense<0.000000e+00> : vector<64x64xf32>
    %155 = tpu.matmul %154, %104, %cst_144 {dimension_numbers = #tpu.dot_dimension_numbers<[1], [0], [0], [1], [0, 0, 1, 1], [], []>} : vector<64x64xf32>, vector<64x64xf32>, vector<64x64xf32> -> vector<64x64xf32>
    %c7_145 = arith.constant 7 : index
    %c0_146 = arith.constant 0 : index
    %c0_147 = arith.constant 0 : index
    %156 = vector.load %arg9[%c7_145, %c0_146, %c0_147] : memref<9x64x128xf32, #tpu.memory_space<vmem>>, vector<1x64x128xf32>
    %157 = vector.shape_cast %156 : vector<1x64x128xf32> to vector<64x128xf32>
    %cst_148 = arith.constant dense<0.000000e+00> : vector<64x128xf32>
    %158 = tpu.matmul %155, %157, %cst_148 {dimension_numbers = #tpu.dot_dimension_numbers<[1], [0], [0], [1], [0, 0, 1, 1], [], []>} : vector<64x64xf32>, vector<64x128xf32>, vector<64x128xf32> -> vector<64x128xf32>
    %159 = arith.addf %152, %158 : vector<64x128xf32>
    %c8_149 = arith.constant 8 : index
    %c0_150 = arith.constant 0 : index
    %c0_151 = arith.constant 0 : index
    %160 = vector.load %arg8[%c8_149, %c0_150, %c0_151] : memref<9x64x64xf32, #tpu.memory_space<vmem>>, vector<1x64x64xf32>
    %161 = vector.shape_cast %160 : vector<1x64x64xf32> to vector<64x64xf32>
    %cst_152 = arith.constant dense<0.000000e+00> : vector<64x64xf32>
    %162 = tpu.matmul %161, %104, %cst_152 {dimension_numbers = #tpu.dot_dimension_numbers<[1], [0], [0], [1], [0, 0, 1, 1], [], []>} : vector<64x64xf32>, vector<64x64xf32>, vector<64x64xf32> -> vector<64x64xf32>
    %c8_153 = arith.constant 8 : index
    %c0_154 = arith.constant 0 : index
    %c0_155 = arith.constant 0 : index
    %163 = vector.load %arg9[%c8_153, %c0_154, %c0_155] : memref<9x64x128xf32, #tpu.memory_space<vmem>>, vector<1x64x128xf32>
    %164 = vector.shape_cast %163 : vector<1x64x128xf32> to vector<64x128xf32>
    %cst_156 = arith.constant dense<0.000000e+00> : vector<64x128xf32>
    %165 = tpu.matmul %162, %164, %cst_156 {dimension_numbers = #tpu.dot_dimension_numbers<[1], [0], [0], [1], [0, 0, 1, 1], [], []>} : vector<64x64xf32>, vector<64x128xf32>, vector<64x128xf32> -> vector<64x128xf32>
    %166 = arith.addf %159, %165 : vector<64x128xf32>
    %c0_157 = arith.constant 0 : index
    %c0_158 = arith.constant 0 : index
    %167 = vector.load %arg10[%c0_157, %c0_158] : memref<1x128xf32, #tpu.memory_space<vmem>>, vector<1x128xf32>
    %168 = vector.broadcast %167 : vector<1x128xf32> to vector<64x128xf32>
    %169 = arith.addf %166, %168 : vector<64x128xf32>
    %c0_159 = arith.constant 0 : index
    %c0_160 = arith.constant 0 : index
    %170 = vector.load %arg15[%c0_159, %c0_160] : memref<64x128xf32, #tpu.memory_space<vmem>>, vector<64x128xf32>
    %cst_161 = arith.constant dense<0.000000e+00> : vector<256x128xf32>
    %171 = tpu.matmul %1, %170, %cst_161 {dimension_numbers = #tpu.dot_dimension_numbers<[1], [0], [0], [1], [0, 0, 1, 1], [], []>} : vector<256x64xf32>, vector<64x128xf32>, vector<256x128xf32> -> vector<256x128xf32>
    %c0_162 = arith.constant 0 : index
    %c0_163 = arith.constant 0 : index
    %172 = vector.load %arg14[%c0_162, %c0_163] : memref<64x256xf32, #tpu.memory_space<vmem>>, vector<64x256xf32>
    %cst_164 = arith.constant dense<0.000000e+00> : vector<64x128xf32>
    %173 = tpu.matmul %172, %171, %cst_164 {dimension_numbers = #tpu.dot_dimension_numbers<[1], [0], [0], [1], [0, 0, 1, 1], [], []>} : vector<64x256xf32>, vector<256x128xf32>, vector<64x128xf32> -> vector<64x128xf32>
    %174 = arith.addf %173, %169 : vector<64x128xf32>
    %cst_165 = arith.constant 0.707106769 : f32
    %175 = vector.broadcast %cst_165 : f32 to vector<64x128xf32>
    %176 = arith.mulf %175, %174 : vector<64x128xf32>
    %c0_166 = arith.constant 0 : index
    %c0_167 = arith.constant 0 : index
    %c0_168 = arith.constant 0 : index
    %177 = vector.load %arg16[%c0_166, %c0_167, %c0_168] : memref<1x64x128xf32, #tpu.memory_space<vmem>>, vector<1x64x128xf32>
    %178 = vector.shape_cast %177 : vector<1x64x128xf32> to vector<64x128xf32>
    %179 = vector.shape_cast %176 : vector<64x128xf32> to vector<1x64x128xf32>
    tpu.vector_store %arg16[%c0_166, %c0_167, %c0_168], %179 {strides = array<i32>} : memref<1x64x128xf32, #tpu.memory_space<vmem>>, vector<1x64x128xf32>,
    return
  }
  func.func @transform_0(%arg0: i32) -> (i32, i32, i32) {
    %c0_i32 = arith.constant 0 : i32
    %c0_i32_0 = arith.constant 0 : i32
    %c0_i32_1 = arith.constant 0 : i32
    return %arg0, %c0_i32, %c0_i32_0 : i32, i32, i32
  }
  func.func @transform_1(%arg0: i32) -> (i32, i32, i32) {
    %c0_i32 = arith.constant 0 : i32
    %c0_i32_0 = arith.constant 0 : i32
    %c0_i32_1 = arith.constant 0 : i32
    %c0_i32_2 = arith.constant 0 : i32
    return %c0_i32, %c0_i32_0, %c0_i32_1 : i32, i32, i32
  }
  func.func @transform_2(%arg0: i32) -> (i32, i32, i32) {
    %c0_i32 = arith.constant 0 : i32
    %c0_i32_0 = arith.constant 0 : i32
    %c0_i32_1 = arith.constant 0 : i32
    %c0_i32_2 = arith.constant 0 : i32
    return %c0_i32, %c0_i32_0, %c0_i32_1 : i32, i32, i32
  }
  func.func @transform_3(%arg0: i32) -> (i32, i32) {
    %c0_i32 = arith.constant 0 : i32
    %c0_i32_0 = arith.constant 0 : i32
    %c0_i32_1 = arith.constant 0 : i32
    return %c0_i32, %c0_i32_0 : i32, i32
  }
  func.func @transform_4(%arg0: i32) -> (i32, i32) {
    %c0_i32 = arith.constant 0 : i32
    %c0_i32_0 = arith.constant 0 : i32
    %c0_i32_1 = arith.constant 0 : i32
    return %c0_i32, %c0_i32_0 : i32, i32
  }
  func.func @transform_5(%arg0: i32) -> (i32, i32) {
    %c0_i32 = arith.constant 0 : i32
    %c0_i32_0 = arith.constant 0 : i32
    %c0_i32_1 = arith.constant 0 : i32
    return %c0_i32, %c0_i32_0 : i32, i32
  }
  func.func @transform_6(%arg0: i32) -> (i32, i32) {
    %c0_i32 = arith.constant 0 : i32
    %c0_i32_0 = arith.constant 0 : i32
    %c0_i32_1 = arith.constant 0 : i32
    return %c0_i32, %c0_i32_0 : i32, i32
  }
  func.func @transform_7(%arg0: i32) -> (i32, i32, i32) {
    %c0_i32 = arith.constant 0 : i32
    %c0_i32_0 = arith.constant 0 : i32
    %c0_i32_1 = arith.constant 0 : i32
    %c0_i32_2 = arith.constant 0 : i32
    return %c0_i32, %c0_i32_0, %c0_i32_1 : i32, i32, i32
  }
  func.func @transform_8(%arg0: i32) -> (i32, i32, i32) {
    %c0_i32 = arith.constant 0 : i32
    %c0_i32_0 = arith.constant 0 : i32
    %c0_i32_1 = arith.constant 0 : i32
    %c0_i32_2 = arith.constant 0 : i32
    return %c0_i32, %c0_i32_0, %c0_i32_1 : i32, i32, i32
  }
  func.func @transform_9(%arg0: i32) -> (i32, i32) {
    %c0_i32 = arith.constant 0 : i32
    %c0_i32_0 = arith.constant 0 : i32
    %c0_i32_1 = arith.constant 0 : i32
    return %c0_i32, %c0_i32_0 : i32, i32
  }
  func.func @transform_10(%arg0: i32) -> (i32, i32) {
    %c0_i32 = arith.constant 0 : i32
    %c0_i32_0 = arith.constant 0 : i32
    %c0_i32_1 = arith.constant 0 : i32
    return %c0_i32, %c0_i32_0 : i32, i32
  }
  func.func @transform_11(%arg0: i32) -> (i32, i32) {
    %c0_i32 = arith.constant 0 : i32
    %c0_i32_0 = arith.constant 0 : i32
    %c0_i32_1 = arith.constant 0 : i32
    return %c0_i32, %c0_i32_0 : i32, i32
  }
  func.func @transform_12(%arg0: i32) -> (i32, i32) {
    %c0_i32 = arith.constant 0 : i32
    %c0_i32_0 = arith.constant 0 : i32
    %c0_i32_1 = arith.constant 0 : i32
    return %c0_i32, %c0_i32_0 : i32, i32
  }
  func.func @transform_13(%arg0: i32) -> (i32, i32) {
    %c0_i32 = arith.constant 0 : i32
    %c0_i32_0 = arith.constant 0 : i32
    %c0_i32_1 = arith.constant 0 : i32
    return %c0_i32, %c0_i32_0 : i32, i32
  }
  func.func @transform_14(%arg0: i32) -> (i32, i32) {
    %c0_i32 = arith.constant 0 : i32
    %c0_i32_0 = arith.constant 0 : i32
    %c0_i32_1 = arith.constant 0 : i32
    return %c0_i32, %c0_i32_0 : i32, i32
  }
  func.func @transform_15(%arg0: i32) -> (i32, i32, i32) {
    %c0_i32 = arith.constant 0 : i32
    %c0_i32_0 = arith.constant 0 : i32
    %c0_i32_1 = arith.constant 0 : i32
    return %arg0, %c0_i32, %c0_i32_0 : i32, i32, i32
  }
}

</mosaic_0001>

<llo_original>
// kernel: act_first_res_blk_forward.1
$region0: #{act_first_res_blk_forward.1}
  #allocation0 [shape = 'u32[]', space=smem, size = 0x4, offset = 0x4, fixed_abs, tag = 'smem constant byte address 0x4 - core index']
  #allocation1 [shape = 'u32[144,128]{1,0:T(1,128)}', space=vmem, size = 0x12000, scoped, tag = 'internal scratch']
  %s0 = inlined_call_operand.hbm [shape: f32[2,256,64], index: 0, kind: input, shape index: {}]
  %s1 = inlined_call_operand.hbm [shape: f32[9,64,256], index: 1, kind: input, shape index: {}]
  %s2 = inlined_call_operand.hbm [shape: f32[9,64,64], index: 2, kind: input, shape index: {}]
  %s3 = inlined_call_operand.vmem [shape: f32[1,64], index: 3, kind: input, shape index: {}]
  %s4 = inlined_call_operand.vmem [shape: f32[1,64], index: 4, kind: input, shape index: {}]
  %s5 = inlined_call_operand.vmem [shape: f32[1,64], index: 5, kind: input, shape index: {}]
  %s6 = inlined_call_operand.vmem [shape: f32[1,64], index: 6, kind: input, shape index: {}]
  %s7 = inlined_call_operand.hbm [shape: f32[9,64,64], index: 7, kind: input, shape index: {}]
  %s8 = inlined_call_operand.hbm [shape: f32[9,64,128], index: 8, kind: input, shape index: {}]
  %s9 = inlined_call_operand.vmem [shape: f32[1,128], index: 9, kind: input, shape index: {}]
  %s10 = inlined_call_operand.vmem [shape: f32[1,64], index: 10, kind: input, shape index: {}]
  %s11 = inlined_call_operand.vmem [shape: f32[1,64], index: 11, kind: input, shape index: {}]
  %s12 = inlined_call_operand.vmem [shape: f32[1,64], index: 12, kind: input, shape index: {}]
  %s13 = inlined_call_operand.hbm [shape: f32[64,256], index: 13, kind: input, shape index: {}]
  %s14 = inlined_call_operand.hbm [shape: f32[64,128], index: 14, kind: input, shape index: {}]
  %s15 = inlined_call_operand.hbm [shape: f32[2,64,128], index: 15, kind: output, shape index: {}]
  %s16 = sld [smem:[#allocation0]]
  $region121: #{act_first_res_blk_forward.1} parent=0
    _
  %s18 = ssub.s32 1, %s16
  %s19 = scalar_select 0, %s18, %s16
  $region1: #{act_first_res_blk_forward.1} parent=0
    #allocation2 [shape = 'u8[262144]{0}', space=vmem, size = 0x40000, scoped, tag = 'input window, operand 0']
    #allocation3 [shape = 's32[2]{0}', space=sflag, size = 0x8, scoped, tag = 'scoped memory for act_first_res_blk_forward.1']
    #allocation4 [shape = 's32[2]{0}', space=sflag, size = 0x8, scoped, tag = 'scoped memory for act_first_res_blk_forward.1']
    #allocation5 [shape = 'u8[589824]{0}', space=vmem, size = 0x90000, scoped, tag = 'input window, operand 1, single buffered']
    #allocation6 [shape = 's32[1]{0}', space=sflag, size = 0x4, scoped, tag = 'scoped memory for act_first_res_blk_forward.1']
    #allocation7 [shape = 'u8[294912]{0}', space=vmem, size = 0x48000, scoped, tag = 'input window, operand 2, single buffered']
    #allocation8 [shape = 'u8[294912]{0}', space=vmem, size = 0x48000, scoped, tag = 'input window, operand 7, single buffered']
    #allocation9 [shape = 's32[1]{0}', space=sflag, size = 0x4, scoped, tag = 'scoped memory for act_first_res_blk_forward.1']
    #allocation10 [shape = 'u8[294912]{0}', space=vmem, size = 0x48000, scoped, tag = 'input window, operand 8, single buffered']
    #allocation11 [shape = 'u8[65536]{0}', space=vmem, size = 0x10000, scoped, tag = 'input window, operand 13, single buffered']
    #allocation12 [shape = 's32[1]{0}', space=sflag, size = 0x4, scoped, tag = 'scoped memory for act_first_res_blk_forward.1']
    #allocation13 [shape = 'u8[32768]{0}', space=vmem, size = 0x8000, scoped, tag = 'input window, operand 14, single buffered']
    #allocation14 [shape = 'u8[65536]{0}', space=vmem, size = 0x10000, scoped, tag = 'output window, operand 0']
    %20 = vsyncpa [#allocation3], 0
    %s21 = scalar_lea.sflag [#allocation3], 1
    %22 = vsyncpa %s21, 0
    %23 = vsyncpa [#allocation6], 0
    %24 = vsyncpa [#allocation9], 0
    %25 = vsyncpa [#allocation12], 0
    %26 = vsyncpa [#allocation4], 0
    %s27 = scalar_lea.sflag [#allocation4], 1
    %28 = vsyncpa %s27, 0
    loop: start=0, step=1, limit=4
    $region2: #{act_first_res_blk_forward.1} parent=1 // loop_pre_header
      _
    $region3: #{act_first_res_blk_forward.1} parent=1 // loop_header
      %s30 = sphi 0, %s34
      %p31 = scmp.ge.s32.totalorder %s30, 4
      %s40 = sphi 0, %s42
      %s43 = sphi 0, %s40
      %s44 = sphi 0, %s43
      %s60 = sphi 0, %s44
      %s64 = sphi 0, %s64
      %s66 = sphi 0, %s64
      %s67 = sphi 0, %s66
      %s81 = sphi 0, %s67
      %s85 = sphi 0, %s85
      %s87 = sphi 0, %s85
      %s88 = sphi 0, %s87
      %s102 = sphi 0, %s88
      %s106 = sphi 0, %s106
      %s108 = sphi 0, %s106
      %s109 = sphi 0, %s108
      %s123 = sphi 0, %s109
      %s127 = sphi 0, %s127
      %s129 = sphi 0, %s127
      %s130 = sphi 0, %s129
      %s144 = sphi 0, %s130
      %s148 = sphi 0, %s148
      %s150 = sphi 0, %s148
      %s151 = sphi 0, %s150
      %s165 = sphi 0, %s151
      %s169 = sphi 0, %s169
      %s171 = sphi 0, %s169
      %s172 = sphi 0, %s171
      %s186 = sphi 0, %s172
      %s190 = sphi 0, %s190
      %s192 = sphi 0, %s190
      %s193 = sphi 0, %s192
      %s207 = sphi 0, %s193
      %s211 = sphi 0, %s211
      %s213 = sphi 0, %s211
      %s214 = sphi 0, %s213
      %s228 = sphi 0, %s214
      %s232 = sphi 0, %s232
      %s234 = sphi 0, %s232
      %s235 = sphi 0, %s234
      %s249 = sphi 0, %s235
      %s253 = sphi 0, %s253
      %s255 = sphi 0, %s253
      %s256 = sphi 0, %s255
      %s270 = sphi 0, %s256
      %s274 = sphi 0, %s274
      %s276 = sphi 0, %s274
      %s277 = sphi 0, %s276
      %s291 = sphi 0, %s277
      %s295 = sphi 0, %s295
      %s297 = sphi 0, %s295
      %s298 = sphi 0, %s297
      %s312 = sphi 0, %s298
      %s316 = sphi 0, %s316
      %s318 = sphi 0, %s316
      %s319 = sphi 0, %s318
      %s333 = sphi 0, %s319
      %s337 = sphi 0, %s337
      %s339 = sphi 0, %s337
      %s340 = sphi 0, %s339
      %s354 = sphi 0, %s340
      %s360 = sphi 0, %s362
      %s363 = sphi 0, %s360
      %s364 = sphi 0, %s363
      %s380 = sphi 0, %s364
    $region4: #{act_first_res_blk_forward.1} parent=1 // loop_header_branch
      %33 = sbr.rel (%p31) target = $region8
    $region5: #{act_first_res_blk_forward.1} parent=1 // loop_body
      %s35 = ssub.s32 %s30, 1
      %s36 = ssub.s32 %s30, 2
      %s37 = sadd.s32 %s30, 1
      %s38 = ssub.s32 %s30, %s37
      %p39 = scmp.eq.s32.totalorder %s38, 0
      %s41 = sadd.s32 %s40, 1
      %s42 = scalar_select %p39, %s40, %s41
      %p45 = pneg %p39
      %p46 = scmp.eq.s32.totalorder %s30, 1
      %p47 = por %p45, %p46
      %p48 = scmp.ne.s32.totalorder %s40, %s43
      %p49 = scmp.eq.s32.totalorder %s30, 0
      %p50 = por %p48, %p49
      %p51 = scmp.ne.s32.totalorder %s40, %s43
      %p52 = scmp.eq.s32.totalorder %s35, 1
      %p53 = por %p51, %p52
      %p54 = scmp.ne.s32.totalorder %s43, %s44
      %p55 = scmp.eq.s32.totalorder %s35, 0
      %p56 = por %p54, %p55
      %p57 = scmp.ne.s32.totalorder %s43, %s44
      %p58 = scmp.eq.s32.totalorder %s36, 1
      %p59 = por %p57, %p58
      %p61 = scmp.ne.s32.totalorder %s44, %s60
      %p62 = scmp.eq.s32.totalorder %s36, 0
      %p63 = por %p61, %p62
      %s65 = sadd.s32 %s64, 1
      %p68 = scmp.eq.s32.totalorder %s30, 1
      %p69 = scmp.ne.s32.totalorder %s64, %s66
      %p70 = scmp.eq.s32.totalorder %s30, 0
      %p71 = por %p69, %p70
      %p72 = scmp.ne.s32.totalorder %s64, %s66
      %p73 = scmp.eq.s32.totalorder %s35, 1
      %p74 = por %p72, %p73
      %p75 = scmp.ne.s32.totalorder %s66, %s67
      %p76 = scmp.eq.s32.totalorder %s35, 0
      %p77 = por %p75, %p76
      %p78 = scmp.ne.s32.totalorder %s66, %s67
      %p79 = scmp.eq.s32.totalorder %s36, 1
      %p80 = por %p78, %p79
      %p82 = scmp.ne.s32.totalorder %s67, %s81
      %p83 = scmp.eq.s32.totalorder %s36, 0
      %p84 = por %p82, %p83
      %s86 = sadd.s32 %s85, 1
      %p89 = scmp.eq.s32.totalorder %s30, 1
      %p90 = scmp.ne.s32.totalorder %s85, %s87
      %p91 = scmp.eq.s32.totalorder %s30, 0
      %p92 = por %p90, %p91
      %p93 = scmp.ne.s32.totalorder %s85, %s87
      %p94 = scmp.eq.s32.totalorder %s35, 1
      %p95 = por %p93, %p94
      %p96 = scmp.ne.s32.totalorder %s87, %s88
      %p97 = scmp.eq.s32.totalorder %s35, 0
      %p98 = por %p96, %p97
      %p99 = scmp.ne.s32.totalorder %s87, %s88
      %p100 = scmp.eq.s32.totalorder %s36, 1
      %p101 = por %p99, %p100
      %p103 = scmp.ne.s32.totalorder %s88, %s102
      %p104 = scmp.eq.s32.totalorder %s36, 0
      %p105 = por %p103, %p104
      %s107 = sadd.s32 %s106, 1
      %p110 = scmp.eq.s32.totalorder %s30, 1
      %p111 = scmp.ne.s32.totalorder %s106, %s108
      %p112 = scmp.eq.s32.totalorder %s30, 0
      %p113 = por %p111, %p112
      %p114 = scmp.ne.s32.totalorder %s106, %s108
      %p115 = scmp.eq.s32.totalorder %s35, 1
      %p116 = por %p114, %p115
      %p117 = scmp.ne.s32.totalorder %s108, %s109
      %p118 = scmp.eq.s32.totalorder %s35, 0
      %p119 = por %p117, %p118
      %p120 = scmp.ne.s32.totalorder %s108, %s109
      %p121 = scmp.eq.s32.totalorder %s36, 1
      %p122 = por %p120, %p121
      %p124 = scmp.ne.s32.totalorder %s109, %s123
      %p125 = scmp.eq.s32.totalorder %s36, 0
      %p126 = por %p124, %p125
      %s128 = sadd.s32 %s127, 1
      %p131 = scmp.eq.s32.totalorder %s30, 1
      %p132 = scmp.ne.s32.totalorder %s127, %s129
      %p133 = scmp.eq.s32.totalorder %s30, 0
      %p134 = por %p132, %p133
      %p135 = scmp.ne.s32.totalorder %s127, %s129
      %p136 = scmp.eq.s32.totalorder %s35, 1
      %p137 = por %p135, %p136
      %p138 = scmp.ne.s32.totalorder %s129, %s130
      %p139 = scmp.eq.s32.totalorder %s35, 0
      %p140 = por %p138, %p139
      %p141 = scmp.ne.s32.totalorder %s129, %s130
      %p142 = scmp.eq.s32.totalorder %s36, 1
      %p143 = por %p141, %p142
      %p145 = scmp.ne.s32.totalorder %s130, %s144
      %p146 = scmp.eq.s32.totalorder %s36, 0
      %p147 = por %p145, %p146
      %s149 = sadd.s32 %s148, 1
      %p152 = scmp.eq.s32.totalorder %s30, 1
      %p153 = scmp.ne.s32.totalorder %s148, %s150
      %p154 = scmp.eq.s32.totalorder %s30, 0
      %p155 = por %p153, %p154
      %p156 = scmp.ne.s32.totalorder %s148, %s150
      %p157 = scmp.eq.s32.totalorder %s35, 1
      %p158 = por %p156, %p157
      %p159 = scmp.ne.s32.totalorder %s150, %s151
      %p160 = scmp.eq.s32.totalorder %s35, 0
      %p161 = por %p159, %p160
      %p162 = scmp.ne.s32.totalorder %s150, %s151
      %p163 = scmp.eq.s32.totalorder %s36, 1
      %p164 = por %p162, %p163
      %p166 = scmp.ne.s32.totalorder %s151, %s165
      %p167 = scmp.eq.s32.totalorder %s36, 0
      %p168 = por %p166, %p167
      %s170 = sadd.s32 %s169, 1
      %p173 = scmp.eq.s32.totalorder %s30, 1
      %p174 = scmp.ne.s32.totalorder %s169, %s171
      %p175 = scmp.eq.s32.totalorder %s30, 0
      %p176 = por %p174, %p175
      %p177 = scmp.ne.s32.totalorder %s169, %s171
      %p178 = scmp.eq.s32.totalorder %s35, 1
      %p179 = por %p177, %p178
      %p180 = scmp.ne.s32.totalorder %s171, %s172
      %p181 = scmp.eq.s32.totalorder %s35, 0
      %p182 = por %p180, %p181
      %p183 = scmp.ne.s32.totalorder %s171, %s172
      %p184 = scmp.eq.s32.totalorder %s36, 1
      %p185 = por %p183, %p184
      %p187 = scmp.ne.s32.totalorder %s172, %s186
      %p188 = scmp.eq.s32.totalorder %s36, 0
      %p189 = por %p187, %p188
      %s191 = sadd.s32 %s190, 1
      %p194 = scmp.eq.s32.totalorder %s30, 1
      %p195 = scmp.ne.s32.totalorder %s190, %s192
      %p196 = scmp.eq.s32.totalorder %s30, 0
      %p197 = por %p195, %p196
      %p198 = scmp.ne.s32.totalorder %s190, %s192
      %p199 = scmp.eq.s32.totalorder %s35, 1
      %p200 = por %p198, %p199
      %p201 = scmp.ne.s32.totalorder %s192, %s193
      %p202 = scmp.eq.s32.totalorder %s35, 0
      %p203 = por %p201, %p202
      %p204 = scmp.ne.s32.totalorder %s192, %s193
      %p205 = scmp.eq.s32.totalorder %s36, 1
      %p206 = por %p204, %p205
      %p208 = scmp.ne.s32.totalorder %s193, %s207
      %p209 = scmp.eq.s32.totalorder %s36, 0
      %p210 = por %p208, %p209
      %s212 = sadd.s32 %s211, 1
      %p215 = scmp.eq.s32.totalorder %s30, 1
      %p216 = scmp.ne.s32.totalorder %s211, %s213
      %p217 = scmp.eq.s32.totalorder %s30, 0
      %p218 = por %p216, %p217
      %p219 = scmp.ne.s32.totalorder %s211, %s213
      %p220 = scmp.eq.s32.totalorder %s35, 1
      %p221 = por %p219, %p220
      %p222 = scmp.ne.s32.totalorder %s213, %s214
      %p223 = scmp.eq.s32.totalorder %s35, 0
      %p224 = por %p222, %p223
      %p225 = scmp.ne.s32.totalorder %s213, %s214
      %p226 = scmp.eq.s32.totalorder %s36, 1
      %p227 = por %p225, %p226
      %p229 = scmp.ne.s32.totalorder %s214, %s228
      %p230 = scmp.eq.s32.totalorder %s36, 0
      %p231 = por %p229, %p230
      %s233 = sadd.s32 %s232, 1
      %p236 = scmp.eq.s32.totalorder %s30, 1
      %p237 = scmp.ne.s32.totalorder %s232, %s234
      %p238 = scmp.eq.s32.totalorder %s30, 0
      %p239 = por %p237, %p238
      %p240 = scmp.ne.s32.totalorder %s232, %s234
      %p241 = scmp.eq.s32.totalorder %s35, 1
      %p242 = por %p240, %p241
      %p243 = scmp.ne.s32.totalorder %s234, %s235
      %p244 = scmp.eq.s32.totalorder %s35, 0
      %p245 = por %p243, %p244
      %p246 = scmp.ne.s32.totalorder %s234, %s235
      %p247 = scmp.eq.s32.totalorder %s36, 1
      %p248 = por %p246, %p247
      %p250 = scmp.ne.s32.totalorder %s235, %s249
      %p251 = scmp.eq.s32.totalorder %s36, 0
      %p252 = por %p250, %p251
      %s254 = sadd.s32 %s253, 1
      %p257 = scmp.eq.s32.totalorder %s30, 1
      %p258 = scmp.ne.s32.totalorder %s253, %s255
      %p259 = scmp.eq.s32.totalorder %s30, 0
      %p260 = por %p258, %p259
      %p261 = scmp.ne.s32.totalorder %s253, %s255
      %p262 = scmp.eq.s32.totalorder %s35, 1
      %p263 = por %p261, %p262
      %p264 = scmp.ne.s32.totalorder %s255, %s256
      %p265 = scmp.eq.s32.totalorder %s35, 0
      %p266 = por %p264, %p265
      %p267 = scmp.ne.s32.totalorder %s255, %s256
      %p268 = scmp.eq.s32.totalorder %s36, 1
      %p269 = por %p267, %p268
      %p271 = scmp.ne.s32.totalorder %s256, %s270
      %p272 = scmp.eq.s32.totalorder %s36, 0
      %p273 = por %p271, %p272
      %s275 = sadd.s32 %s274, 1
      %p278 = scmp.eq.s32.totalorder %s30, 1
      %p279 = scmp.ne.s32.totalorder %s274, %s276
      %p280 = scmp.eq.s32.totalorder %s30, 0
      %p281 = por %p279, %p280
      %p282 = scmp.ne.s32.totalorder %s274, %s276
      %p283 = scmp.eq.s32.totalorder %s35, 1
      %p284 = por %p282, %p283
      %p285 = scmp.ne.s32.totalorder %s276, %s277
      %p286 = scmp.eq.s32.totalorder %s35, 0
      %p287 = por %p285, %p286
      %p288 = scmp.ne.s32.totalorder %s276, %s277
      %p289 = scmp.eq.s32.totalorder %s36, 1
      %p290 = por %p288, %p289
      %p292 = scmp.ne.s32.totalorder %s277, %s291
      %p293 = scmp.eq.s32.totalorder %s36, 0
      %p294 = por %p292, %p293
      %s296 = sadd.s32 %s295, 1
      %p299 = scmp.eq.s32.totalorder %s30, 1
      %p300 = scmp.ne.s32.totalorder %s295, %s297
      %p301 = scmp.eq.s32.totalorder %s30, 0
      %p302 = por %p300, %p301
      %p303 = scmp.ne.s32.totalorder %s295, %s297
      %p304 = scmp.eq.s32.totalorder %s35, 1
      %p305 = por %p303, %p304
      %p306 = scmp.ne.s32.totalorder %s297, %s298
      %p307 = scmp.eq.s32.totalorder %s35, 0
      %p308 = por %p306, %p307
      %p309 = scmp.ne.s32.totalorder %s297, %s298
      %p310 = scmp.eq.s32.totalorder %s36, 1
      %p311 = por %p309, %p310
      %p313 = scmp.ne.s32.totalorder %s298, %s312
      %p314 = scmp.eq.s32.totalorder %s36, 0
      %p315 = por %p313, %p314
      %s317 = sadd.s32 %s316, 1
      %p320 = scmp.eq.s32.totalorder %s30, 1
      %p321 = scmp.ne.s32.totalorder %s316, %s318
      %p322 = scmp.eq.s32.totalorder %s30, 0
      %p323 = por %p321, %p322
      %p324 = scmp.ne.s32.totalorder %s316, %s318
      %p325 = scmp.eq.s32.totalorder %s35, 1
      %p326 = por %p324, %p325
      %p327 = scmp.ne.s32.totalorder %s318, %s319
      %p328 = scmp.eq.s32.totalorder %s35, 0
      %p329 = por %p327, %p328
      %p330 = scmp.ne.s32.totalorder %s318, %s319
      %p331 = scmp.eq.s32.totalorder %s36, 1
      %p332 = por %p330, %p331
      %p334 = scmp.ne.s32.totalorder %s319, %s333
      %p335 = scmp.eq.s32.totalorder %s36, 0
      %p336 = por %p334, %p335
      %s338 = sadd.s32 %s337, 1
      %p341 = scmp.eq.s32.totalorder %s30, 1
      %p342 = scmp.ne.s32.totalorder %s337, %s339
      %p343 = scmp.eq.s32.totalorder %s30, 0
      %p344 = por %p342, %p343
      %p345 = scmp.ne.s32.totalorder %s337, %s339
      %p346 = scmp.eq.s32.totalorder %s35, 1
      %p347 = por %p345, %p346
      %p348 = scmp.ne.s32.totalorder %s339, %s340
      %p349 = scmp.eq.s32.totalorder %s35, 0
      %p350 = por %p348, %p349
      %p351 = scmp.ne.s32.totalorder %s339, %s340
      %p352 = scmp.eq.s32.totalorder %s36, 1
      %p353 = por %p351, %p352
      %p355 = scmp.ne.s32.totalorder %s340, %s354
      %p356 = scmp.eq.s32.totalorder %s36, 0
      %p357 = por %p355, %p356
      %s358 = ssub.s32 %s30, %s37
      %p359 = scmp.eq.s32.totalorder %s358, 0
      %s361 = sadd.s32 %s360, 1
      %s362 = scalar_select %p359, %s360, %s361
      %p365 = pneg %p359
      %p366 = scmp.eq.s32.totalorder %s30, 1
      %p367 = por %p365, %p366
      %p368 = scmp.ne.s32.totalorder %s360, %s363
      %p369 = scmp.eq.s32.totalorder %s30, 0
      %p370 = por %p368, %p369
      %p371 = scmp.ne.s32.totalorder %s360, %s363
      %p372 = scmp.eq.s32.totalorder %s35, 1
      %p373 = por %p371, %p372
      %p374 = scmp.ne.s32.totalorder %s363, %s364
      %p375 = scmp.eq.s32.totalorder %s35, 0
      %p376 = por %p374, %p375
      %p377 = scmp.ne.s32.totalorder %s363, %s364
      %p378 = scmp.eq.s32.totalorder %s36, 1
      %p379 = por %p377, %p378
      %p381 = scmp.ne.s32.totalorder %s364, %s380
      %p382 = scmp.eq.s32.totalorder %s36, 0
      %p383 = por %p381, %p382
      %p384 = scmp.le.s32.totalorder 1, %s30
      %p385 = scmp.lt.s32.totalorder %s30, 3
      %p386 = pnand %p384, %p385
      %p387 = pneg %p386
      // Predicated region
      $region9: #{act_first_res_blk_forward.1} parent=5 // pred_check
        _
      $region10: #{act_first_res_blk_forward.1} parent=5 // pred_check_branch
        %389 = sbr.rel (%p386) target = $region12
      $region11: #{act_first_res_blk_forward.1} parent=5 // pred_region
        %s390 = ssub.s32 %s30, 1
        // Predicated region
        $region13: #{act_first_res_blk_forward.1} parent=11 // pred_check
          %p391 = pneg %p77
        $region14: #{act_first_res_blk_forward.1} parent=11 // pred_check_branch
          %393 = sbr.rel (%p391) target = $region16
        $region15: #{act_first_res_blk_forward.1} parent=11 // pred_region
          %s395 = ssub.s32 18432, 18432
          %396 = vsyncadd [#allocation6], %s395
          %s397 = sshll.u32 [#allocation5], 4
          %s398 = int_to_ptr.vmem [resolvable:$true] %s397
          %403 = dma.hbm_to_vmem [thread:$0]  %s1, 18432, %s398, [#allocation6], 256, 256, 16
        $region16: #{act_first_res_blk_forward.1} parent=11 // pred_fallthru
          _
        // Predicated region
        $region17: #{act_first_res_blk_forward.1} parent=11 // pred_check
          %p404 = pneg %p98
        $region18: #{act_first_res_blk_forward.1} parent=11 // pred_check_branch
          %406 = sbr.rel (%p404) target = $region20
        $region19: #{act_first_res_blk_forward.1} parent=11 // pred_region
          %s408 = ssub.s32 9216, 9216
          %409 = vsyncadd [#allocation6], %s408
          %s410 = sshll.u32 [#allocation7], 4
          %s411 = int_to_ptr.vmem [resolvable:$true] %s410
          %416 = dma.hbm_to_vmem [thread:$0]  %s2, 9216, %s411, [#allocation6], 128, 128, 8
        $region20: #{act_first_res_blk_forward.1} parent=11 // pred_fallthru
          _
        // Predicated region
        $region21: #{act_first_res_blk_forward.1} parent=11 // pred_check
          %p417 = pneg %p119
        $region22: #{act_first_res_blk_forward.1} parent=11 // pred_check_branch
          %419 = sbr.rel (%p417) target = $region24
        $region23: #{act_first_res_blk_forward.1} parent=11 // pred_region
          _
        $region24: #{act_first_res_blk_forward.1} parent=11 // pred_fallthru
          _
        // Predicated region
        $region25: #{act_first_res_blk_forward.1} parent=11 // pred_check
          %p420 = pneg %p140
        $region26: #{act_first_res_blk_forward.1} parent=11 // pred_check_branch
          %422 = sbr.rel (%p420) target = $region28
        $region27: #{act_first_res_blk_forward.1} parent=11 // pred_region
          _
        $region28: #{act_first_res_blk_forward.1} parent=11 // pred_fallthru
          _
        // Predicated region
        $region29: #{act_first_res_blk_forward.1} parent=11 // pred_check
          %p423 = pneg %p161
        $region30: #{act_first_res_blk_forward.1} parent=11 // pred_check_branch
          %425 = sbr.rel (%p423) target = $region32
        $region31: #{act_first_res_blk_forward.1} parent=11 // pred_region
          _
        $region32: #{act_first_res_blk_forward.1} parent=11 // pred_fallthru
          _
        // Predicated region
        $region33: #{act_first_res_blk_forward.1} parent=11 // pred_check
          %p426 = pneg %p182
        $region34: #{act_first_res_blk_forward.1} parent=11 // pred_check_branch
          %428 = sbr.rel (%p426) target = $region36
        $region35: #{act_first_res_blk_forward.1} parent=11 // pred_region
          _
        $region36: #{act_first_res_blk_forward.1} parent=11 // pred_fallthru
          _
        // Predicated region
        $region37: #{act_first_res_blk_forward.1} parent=11 // pred_check
          %p429 = pneg %p203
        $region38: #{act_first_res_blk_forward.1} parent=11 // pred_check_branch
          %431 = sbr.rel (%p429) target = $region40
        $region39: #{act_first_res_blk_forward.1} parent=11 // pred_region
          %s433 = ssub.s32 9216, 9216
          %434 = vsyncadd [#allocation9], %s433
          %s435 = sshll.u32 [#allocation8], 4
          %s436 = int_to_ptr.vmem [resolvable:$true] %s435
          %441 = dma.hbm_to_vmem [thread:$0]  %s7, 9216, %s436, [#allocation9], 128, 128, 8
        $region40: #{act_first_res_blk_forward.1} parent=11 // pred_fallthru
          _
        // Predicated region
        $region41: #{act_first_res_blk_forward.1} parent=11 // pred_check
          %p442 = pneg %p224
        $region42: #{act_first_res_blk_forward.1} parent=11 // pred_check_branch
          %444 = sbr.rel (%p442) target = $region44
        $region43: #{act_first_res_blk_forward.1} parent=11 // pred_region
          %s446 = ssub.s32 9216, 9216
          %447 = vsyncadd [#allocation9], %s446
          %s448 = sshll.u32 [#allocation10], 4
          %s449 = int_to_ptr.vmem [resolvable:$true] %s448
          %454 = dma.hbm_to_vmem [thread:$0]  %s8, 9216, %s449, [#allocation9], 128, 128, 8
        $region44: #{act_first_res_blk_forward.1} parent=11 // pred_fallthru
          _
        // Predicated region
        $region45: #{act_first_res_blk_forward.1} parent=11 // pred_check
          %p455 = pneg %p245
        $region46: #{act_first_res_blk_forward.1} parent=11 // pred_check_branch
          %457 = sbr.rel (%p455) target = $region48
        $region47: #{act_first_res_blk_forward.1} parent=11 // pred_region
          _
        $region48: #{act_first_res_blk_forward.1} parent=11 // pred_fallthru
          _
        // Predicated region
        $region49: #{act_first_res_blk_forward.1} parent=11 // pred_check
          %p458 = pneg %p266
        $region50: #{act_first_res_blk_forward.1} parent=11 // pred_check_branch
          %460 = sbr.rel (%p458) target = $region52
        $region51: #{act_first_res_blk_forward.1} parent=11 // pred_region
          _
        $region52: #{act_first_res_blk_forward.1} parent=11 // pred_fallthru
          _
        // Predicated region
        $region53: #{act_first_res_blk_forward.1} parent=11 // pred_check
          %p461 = pneg %p287
        $region54: #{act_first_res_blk_forward.1} parent=11 // pred_check_branch
          %463 = sbr.rel (%p461) target = $region56
        $region55: #{act_first_res_blk_forward.1} parent=11 // pred_region
          _
        $region56: #{act_first_res_blk_forward.1} parent=11 // pred_fallthru
          _
        // Predicated region
        $region57: #{act_first_res_blk_forward.1} parent=11 // pred_check
          %p464 = pneg %p308
        $region58: #{act_first_res_blk_forward.1} parent=11 // pred_check_branch
          %466 = sbr.rel (%p464) target = $region60
        $region59: #{act_first_res_blk_forward.1} parent=11 // pred_region
          _
        $region60: #{act_first_res_blk_forward.1} parent=11 // pred_fallthru
          _
        // Predicated region
        $region61: #{act_first_res_blk_forward.1} parent=11 // pred_check
          %p467 = pneg %p329
        $region62: #{act_first_res_blk_forward.1} parent=11 // pred_check_branch
          %469 = sbr.rel (%p467) target = $region64
        $region63: #{act_first_res_blk_forward.1} parent=11 // pred_region
          %s471 = ssub.s32 2048, 2048
          %472 = vsyncadd [#allocation12], %s471
          %s473 = sshll.u32 [#allocation11], 4
          %s474 = int_to_ptr.vmem [resolvable:$true] %s473
          %479 = dma.hbm_to_vmem [thread:$0]  %s13, 2048, %s474, [#allocation12], 256, 256, 16
        $region64: #{act_first_res_blk_forward.1} parent=11 // pred_fallthru
          _
        // Predicated region
        $region65: #{act_first_res_blk_forward.1} parent=11 // pred_check
          %p480 = pneg %p350
        $region66: #{act_first_res_blk_forward.1} parent=11 // pred_check_branch
          %482 = sbr.rel (%p480) target = $region68
        $region67: #{act_first_res_blk_forward.1} parent=11 // pred_region
          %s484 = ssub.s32 1024, 1024
          %485 = vsyncadd [#allocation12], %s484
          %s486 = sshll.u32 [#allocation13], 4
          %s487 = int_to_ptr.vmem [resolvable:$true] %s486
          %492 = dma.hbm_to_vmem [thread:$0]  %s14, 1024, %s487, [#allocation12], 128, 128, 8
        $region68: #{act_first_res_blk_forward.1} parent=11 // pred_fallthru
          _
      $region12: #{act_first_res_blk_forward.1} parent=5 // pred_fallthru
        _
      %p493 = scmp.lt.s32.totalorder %s30, 2
      // Predicated region
      $region69: #{act_first_res_blk_forward.1} parent=5 // pred_check
        %p494 = pneg %p493
      $region70: #{act_first_res_blk_forward.1} parent=5 // pred_check_branch
        %496 = sbr.rel (%p494) target = $region72
      $region71: #{act_first_res_blk_forward.1} parent=5 // pred_region
        // Predicated region
        $region73: #{act_first_res_blk_forward.1} parent=71 // pred_check
          %p497 = pneg %p50
        $region74: #{act_first_res_blk_forward.1} parent=71 // pred_check_branch
          %499 = sbr.rel (%p497) target = $region76
        $region75: #{act_first_res_blk_forward.1} parent=71 // pred_region
          %s500 = sand.u32 %s40, 1
          %s501 = scalar_lea.sflag [#allocation3], %s500
          %s502 = sand.u32 %s40, 1
          %s503 = smul.addr %s502, 256
          %s504 = scalar_lea.vmem [#allocation2], %s503
          %s506 = ssub.s32 4096, 4096
          %507 = vsyncadd %s501, %s506
          %s508 = smul.addr %s30, 32
          %s509 = smul.addr %s508, 128
          %s510 = scalar_lea.hbm %s0, %s509
          %s511 = sshll.u32 %s504, 4
          %s512 = int_to_ptr.vmem [resolvable:$true] %s511
          %517 = dma.hbm_to_vmem [thread:$0]  %s510, 4096, %s512, %s501, 128, 128, 8
        $region76: #{act_first_res_blk_forward.1} parent=71 // pred_fallthru
          _
      $region72: #{act_first_res_blk_forward.1} parent=5 // pred_fallthru
        _
      %p518 = scmp.le.s32.totalorder 1, %s30
      %p519 = scmp.lt.s32.totalorder %s30, 3
      %p520 = pnand %p518, %p519
      %p521 = pneg %p520
      // Predicated region
      $region77: #{act_first_res_blk_forward.1} parent=5 // pred_check
        _
      $region78: #{act_first_res_blk_forward.1} parent=5 // pred_check_branch
        %523 = sbr.rel (%p520) target = $region80
      $region79: #{act_first_res_blk_forward.1} parent=5 // pred_region
        %s524 = ssub.s32 %s30, 1
        %s525 = sand.u32 %s43, 1
        %s526 = scalar_lea.sflag [#allocation3], %s525
        %s527 = sand.u32 %s43, 1
        %s528 = smul.addr %s527, 256
        %s529 = scalar_lea.vmem [#allocation2], %s528
        // Predicated region
        $region81: #{act_first_res_blk_forward.1} parent=79 // pred_check
          %p530 = pneg %p56
        $region82: #{act_first_res_blk_forward.1} parent=79 // pred_check_branch
          %532 = sbr.rel (%p530) target = $region84
        $region83: #{act_first_res_blk_forward.1} parent=79 // pred_region
          %533 = dma.done %s526, 4096
        $region84: #{act_first_res_blk_forward.1} parent=79 // pred_fallthru
          _
        // Predicated region
        $region85: #{act_first_res_blk_forward.1} parent=79 // pred_check
          %p534 = pneg %p77
        $region86: #{act_first_res_blk_forward.1} parent=79 // pred_check_branch
          %536 = sbr.rel (%p534) target = $region88
        $region87: #{act_first_res_blk_forward.1} parent=79 // pred_region
          %537 = dma.done [#allocation6], 18432
        $region88: #{act_first_res_blk_forward.1} parent=79 // pred_fallthru
          _
        // Predicated region
        $region89: #{act_first_res_blk_forward.1} parent=79 // pred_check
          %p538 = pneg %p98
        $region90: #{act_first_res_blk_forward.1} parent=79 // pred_check_branch
          %540 = sbr.rel (%p538) target = $region92
        $region91: #{act_first_res_blk_forward.1} parent=79 // pred_region
          %541 = dma.done [#allocation6], 9216
        $region92: #{act_first_res_blk_forward.1} parent=79 // pred_fallthru
          _
        // Predicated region
        $region93: #{act_first_res_blk_forward.1} parent=79 // pred_check
          %p542 = pneg %p203
        $region94: #{act_first_res_blk_forward.1} parent=79 // pred_check_branch
          %544 = sbr.rel (%p542) target = $region96
        $region95: #{act_first_res_blk_forward.1} parent=79 // pred_region
          %545 = dma.done [#allocation9], 9216
        $region96: #{act_first_res_blk_forward.1} parent=79 // pred_fallthru
          _
        // Predicated region
        $region97: #{act_first_res_blk_forward.1} parent=79 // pred_check
          %p546 = pneg %p224
        $region98: #{act_first_res_blk_forward.1} parent=79 // pred_check_branch
          %548 = sbr.rel (%p546) target = $region100
        $region99: #{act_first_res_blk_forward.1} parent=79 // pred_region
          %549 = dma.done [#allocation9], 9216
        $region100: #{act_first_res_blk_forward.1} parent=79 // pred_fallthru
          _
        // Predicated region
        $region101: #{act_first_res_blk_forward.1} parent=79 // pred_check
          %p550 = pneg %p329
        $region102: #{act_first_res_blk_forward.1} parent=79 // pred_check_branch
          %552 = sbr.rel (%p550) target = $region104
        $region103: #{act_first_res_blk_forward.1} parent=79 // pred_region
          %553 = dma.done [#allocation12], 2048
        $region104: #{act_first_res_blk_forward.1} parent=79 // pred_fallthru
          _
        // Predicated region
        $region105: #{act_first_res_blk_forward.1} parent=79 // pred_check
          %p554 = pneg %p350
        $region106: #{act_first_res_blk_forward.1} parent=79 // pred_check_branch
          %556 = sbr.rel (%p554) target = $region108
        $region107: #{act_first_res_blk_forward.1} parent=79 // pred_region
          %557 = dma.done [#allocation12], 1024
        $region108: #{act_first_res_blk_forward.1} parent=79 // pred_fallthru
          _
        %s558 = sand.u32 %s43, 1
        %s559 = scalar_lea.sflag [#allocation3], %s558
        %s560 = sand.u32 %s43, 1
        %s561 = smul.addr %s560, 256
        %s562 = scalar_lea.vmem [#allocation2], %s561
        %p563 = pneg %p56
        %p564 = pneg %p53
        %p565 = pneg %p77
        %p566 = pneg %p74
        %p567 = pneg %p98
        %p568 = pneg %p95
        %p569 = pneg %p119
        %p570 = pneg %p116
        %p571 = pneg %p140
        %p572 = pneg %p137
        %p573 = pneg %p161
        %p574 = pneg %p158
        %p575 = pneg %p182
        %p576 = pneg %p179
        %p577 = pneg %p203
        %p578 = pneg %p200
        %p579 = pneg %p224
        %p580 = pneg %p221
        %p581 = pneg %p245
        %p582 = pneg %p242
        %p583 = pneg %p266
        %p584 = pneg %p263
        %p585 = pneg %p287
        %p586 = pneg %p284
        %p587 = pneg %p308
        %p588 = pneg %p305
        %p589 = pneg %p329
        %p590 = pneg %p326
        %p591 = pneg %p350
        %p592 = pneg %p347
        %p593 = pneg %p376
        %p594 = pneg %p373
        %s595 = sand.u32 %s363, 1
        %s596 = scalar_lea.sflag [#allocation4], %s595
        %s597 = sand.u32 %s363, 1
        %s598 = smul.addr %s597, 64
        %s599 = scalar_lea.vmem [#allocation14], %s598
        %v600 = vld [vmem:[%s529] sm:$0xff]
        %v601 = vld [vmem:[%s529 + $0x8] sm:$0xff]
        %v602 = vld [vmem:[%s529 + $0x10] sm:$0xff]
        %v603 = vld [vmem:[%s529 + $0x18] sm:$0xff]
        %v604 = vld [vmem:[%s529 + $0x20] sm:$0xff]
        %v605 = vld [vmem:[%s529 + $0x28] sm:$0xff]
        %v606 = vld [vmem:[%s529 + $0x30] sm:$0xff]
        %v607 = vld [vmem:[%s529 + $0x38] sm:$0xff]
        %v608 = vld [vmem:[%s529 + $0x40] sm:$0xff]
        %v609 = vld [vmem:[%s529 + $0x48] sm:$0xff]
        %v610 = vld [vmem:[%s529 + $0x50] sm:$0xff]
        %v611 = vld [vmem:[%s529 + $0x58] sm:$0xff]
        %v612 = vld [vmem:[%s529 + $0x60] sm:$0xff]
        %v613 = vld [vmem:[%s529 + $0x68] sm:$0xff]
        %v614 = vld [vmem:[%s529 + $0x70] sm:$0xff]
        %v615 = vld [vmem:[%s529 + $0x78] sm:$0xff]
        %v616 = vld [vmem:[%s529 + $0x80] sm:$0xff]
        %v617 = vld [vmem:[%s529 + $0x88] sm:$0xff]
        %v618 = vld [vmem:[%s529 + $0x90] sm:$0xff]
        %v619 = vld [vmem:[%s529 + $0x98] sm:$0xff]
        %v620 = vld [vmem:[%s529 + $0xa0] sm:$0xff]
        %v621 = vld [vmem:[%s529 + $0xa8] sm:$0xff]
        %v622 = vld [vmem:[%s529 + $0xb0] sm:$0xff]
        %v623 = vld [vmem:[%s529 + $0xb8] sm:$0xff]
        %v624 = vld [vmem:[%s529 + $0xc0] sm:$0xff]
        %v625 = vld [vmem:[%s529 + $0xc8] sm:$0xff]
        %v626 = vld [vmem:[%s529 + $0xd0] sm:$0xff]
        %v627 = vld [vmem:[%s529 + $0xd8] sm:$0xff]
        %v628 = vld [vmem:[%s529 + $0xe0] sm:$0xff]
        %v629 = vld [vmem:[%s529 + $0xe8] sm:$0xff]
        %v630 = vld [vmem:[%s529 + $0xf0] sm:$0xff]
        %v631 = vld [vmem:[%s529 + $0xf8] sm:$0xff]
        %v632 = vmul.f32 %v600, %v600
        %v633 = vmul.f32 %v601, %v601
        %v634 = vmul.f32 %v602, %v602
        %v635 = vmul.f32 %v603, %v603
        %v636 = vmul.f32 %v604, %v604
        %v637 = vmul.f32 %v605, %v605
        %v638 = vmul.f32 %v606, %v606
        %v639 = vmul.f32 %v607, %v607
        %v640 = vmul.f32 %v608, %v608
        %v641 = vmul.f32 %v609, %v609
        %v642 = vmul.f32 %v610, %v610
        %v643 = vmul.f32 %v611, %v611
        %v644 = vmul.f32 %v612, %v612
        %v645 = vmul.f32 %v613, %v613
        %v646 = vmul.f32 %v614, %v614
        %v647 = vmul.f32 %v615, %v615
        %v648 = vmul.f32 %v616, %v616
        %v649 = vmul.f32 %v617, %v617
        %v650 = vmul.f32 %v618, %v618
        %v651 = vmul.f32 %v619, %v619
        %v652 = vmul.f32 %v620, %v620
        %v653 = vmul.f32 %v621, %v621
        %v654 = vmul.f32 %v622, %v622
        %v655 = vmul.f32 %v623, %v623
        %v656 = vmul.f32 %v624, %v624
        %v657 = vmul.f32 %v625, %v625
        %v658 = vmul.f32 %v626, %v626
        %v659 = vmul.f32 %v627, %v627
        %v660 = vmul.f32 %v628, %v628
        %v661 = vmul.f32 %v629, %v629
        %v662 = vmul.f32 %v630, %v630
        %v663 = vmul.f32 %v631, %v631
        %vm664 = vcmask 523264
        %v665 = vsel %vm664, %v632, 0.0
        %v666 = vsel %vm664, %v633, 0.0
        %v667 = vadd.f32 %v665, %v666
        %v668 = vsel %vm664, %v634, 0.0
        %v669 = vadd.f32 %v667, %v668
        %v670 = vsel %vm664, %v635, 0.0
        %v671 = vadd.f32 %v669, %v670
        %v672 = vsel %vm664, %v636, 0.0
        %v673 = vadd.f32 %v671, %v672
        %v674 = vsel %vm664, %v637, 0.0
        %v675 = vadd.f32 %v673, %v674
        %v676 = vsel %vm664, %v638, 0.0
        %v677 = vadd.f32 %v675, %v676
        %v678 = vsel %vm664, %v639, 0.0
        %v679 = vadd.f32 %v677, %v678
        %v680 = vsel %vm664, %v640, 0.0
        %v681 = vadd.f32 %v679, %v680
        %v682 = vsel %vm664, %v641, 0.0
        %v683 = vadd.f32 %v681, %v682
        %v684 = vsel %vm664, %v642, 0.0
        %v685 = vadd.f32 %v683, %v684
        %v686 = vsel %vm664, %v643, 0.0
        %v687 = vadd.f32 %v685, %v686
        %v688 = vsel %vm664, %v644, 0.0
        %v689 = vadd.f32 %v687, %v688
        %v690 = vsel %vm664, %v645, 0.0
        %v691 = vadd.f32 %v689, %v690
        %v692 = vsel %vm664, %v646, 0.0
        %v693 = vadd.f32 %v691, %v692
        %v694 = vsel %vm664, %v647, 0.0
        %v695 = vadd.f32 %v693, %v694
        %v696 = vsel %vm664, %v648, 0.0
        %v697 = vadd.f32 %v695, %v696
        %v698 = vsel %vm664, %v649, 0.0
        %v699 = vadd.f32 %v697, %v698
        %v700 = vsel %vm664, %v650, 0.0
        %v701 = vadd.f32 %v699, %v700
        %v702 = vsel %vm664, %v651, 0.0
        %v703 = vadd.f32 %v701, %v702
        %v704 = vsel %vm664, %v652, 0.0
        %v705 = vadd.f32 %v703, %v704
        %v706 = vsel %vm664, %v653, 0.0
        %v707 = vadd.f32 %v705, %v706
        %v708 = vsel %vm664, %v654, 0.0
        %v709 = vadd.f32 %v707, %v708
        %v710 = vsel %vm664, %v655, 0.0
        %v711 = vadd.f32 %v709, %v710
        %v712 = vsel %vm664, %v656, 0.0
        %v713 = vadd.f32 %v711, %v712
        %v714 = vsel %vm664, %v657, 0.0
        %v715 = vadd.f32 %v713, %v714
        %v716 = vsel %vm664, %v658, 0.0
        %v717 = vadd.f32 %v715, %v716
        %v718 = vsel %vm664, %v659, 0.0
        %v719 = vadd.f32 %v717, %v718
        %v720 = vsel %vm664, %v660, 0.0
        %v721 = vadd.f32 %v719, %v720
        %v722 = vsel %vm664, %v661, 0.0
        %v723 = vadd.f32 %v721, %v722
        %v724 = vsel %vm664, %v662, 0.0
        %v725 = vadd.f32 %v723, %v724
        %v726 = vsel %vm664, %v663, 0.0
        %v727 = vadd.f32 %v725, %v726
        %v728 = vrot.slane %v727, 4
        %v729 = vadd.f32 %v727, %v728
        %v730 = vrot.slane %v729, 2
        %v731 = vadd.f32 %v729, %v730
        %v732 = vrot.slane %v731, 1
        %v733 = vadd.f32 %v731, %v732
        %v734 = vrcp.pop 256.0
        %v735 = vmul.f32 %v733, %v734
        %v736 = vadd.f32 %v735, 1e-06
        %v737 = vrsqrt.pop %v736
        %v738 = vmul.f32 %v600, %v737
        %v739 = vmul.f32 %v601, %v737
        %v740 = vmul.f32 %v602, %v737
        %v741 = vmul.f32 %v603, %v737
        %v742 = vmul.f32 %v604, %v737
        %v743 = vmul.f32 %v605, %v737
        %v744 = vmul.f32 %v606, %v737
        %v745 = vmul.f32 %v607, %v737
        %v746 = vmul.f32 %v608, %v737
        %v747 = vmul.f32 %v609, %v737
        %v748 = vmul.f32 %v610, %v737
        %v749 = vmul.f32 %v611, %v737
        %v750 = vmul.f32 %v612, %v737
        %v751 = vmul.f32 %v613, %v737
        %v752 = vmul.f32 %v614, %v737
        %v753 = vmul.f32 %v615, %v737
        %v754 = vmul.f32 %v616, %v737
        %v755 = vmul.f32 %v617, %v737
        %v756 = vmul.f32 %v618, %v737
        %v757 = vmul.f32 %v619, %v737
        %v758 = vmul.f32 %v620, %v737
        %v759 = vmul.f32 %v621, %v737
        %v760 = vmul.f32 %v622, %v737
        %v761 = vmul.f32 %v623, %v737
        %v762 = vmul.f32 %v624, %v737
        %v763 = vmul.f32 %v625, %v737
        %v764 = vmul.f32 %v626, %v737
        %v765 = vmul.f32 %v627, %v737
        %v766 = vmul.f32 %v628, %v737
        %v767 = vmul.f32 %v629, %v737
        %v768 = vmul.f32 %v630, %v737
        %v769 = vmul.f32 %v631, %v737
        %v770 = vld [vmem:[%s4] sm:$0x1]
        %v772 = vlaneseq
        %v773 = vshrl.u32 %v772, 7
        %v774 = vsub.s32 0, %v773
        %v775 = vrot.slane %v770, %v774
        %v777 = vmul.f32 %v775, %v738
        %v778 = vmul.f32 %v775, %v739
        %v779 = vmul.f32 %v775, %v740
        %v780 = vmul.f32 %v775, %v741
        %v781 = vmul.f32 %v775, %v742
        %v782 = vmul.f32 %v775, %v743
        %v783 = vmul.f32 %v775, %v744
        %v784 = vmul.f32 %v775, %v745
        %v785 = vmul.f32 %v775, %v746
        %v786 = vmul.f32 %v775, %v747
        %v787 = vmul.f32 %v775, %v748
        %v788 = vmul.f32 %v775, %v749
        %v789 = vmul.f32 %v775, %v750
        %v790 = vmul.f32 %v775, %v751
        %v791 = vmul.f32 %v775, %v752
        %v792 = vmul.f32 %v775, %v753
        %v793 = vmul.f32 %v775, %v754
        %v794 = vmul.f32 %v775, %v755
        %v795 = vmul.f32 %v775, %v756
        %v796 = vmul.f32 %v775, %v757
        %v797 = vmul.f32 %v775, %v758
        %v798 = vmul.f32 %v775, %v759
        %v799 = vmul.f32 %v775, %v760
        %v800 = vmul.f32 %v775, %v761
        %v801 = vmul.f32 %v775, %v762
        %v802 = vmul.f32 %v775, %v763
        %v803 = vmul.f32 %v775, %v764
        %v804 = vmul.f32 %v775, %v765
        %v805 = vmul.f32 %v775, %v766
        %v806 = vmul.f32 %v775, %v767
        %v807 = vmul.f32 %v775, %v768
        %v808 = vmul.f32 %v775, %v769
        %v809 = vld [vmem:[%s5] sm:$0x1]
        %v811 = vlaneseq
        %v812 = vshrl.u32 %v811, 7
        %v813 = vsub.s32 0, %v812
        %v814 = vrot.slane %v809, %v813
        %v816 = vadd.f32 %v777, %v814
        %v817 = vadd.f32 %v778, %v814
        %v818 = vadd.f32 %v779, %v814
        %v819 = vadd.f32 %v780, %v814
        %v820 = vadd.f32 %v781, %v814
        %v821 = vadd.f32 %v782, %v814
        %v822 = vadd.f32 %v783, %v814
        %v823 = vadd.f32 %v784, %v814
        %v824 = vadd.f32 %v785, %v814
        %v825 = vadd.f32 %v786, %v814
        %v826 = vadd.f32 %v787, %v814
        %v827 = vadd.f32 %v788, %v814
        %v828 = vadd.f32 %v789, %v814
        %v829 = vadd.f32 %v790, %v814
        %v830 = vadd.f32 %v791, %v814
        %v831 = vadd.f32 %v792, %v814
        %v832 = vadd.f32 %v793, %v814
        %v833 = vadd.f32 %v794, %v814
        %v834 = vadd.f32 %v795, %v814
        %v835 = vadd.f32 %v796, %v814
        %v836 = vadd.f32 %v797, %v814
        %v837 = vadd.f32 %v798, %v814
        %v838 = vadd.f32 %v799, %v814
        %v839 = vadd.f32 %v800, %v814
        %v840 = vadd.f32 %v801, %v814
        %v841 = vadd.f32 %v802, %v814
        %v842 = vadd.f32 %v803, %v814
        %v843 = vadd.f32 %v804, %v814
        %v844 = vadd.f32 %v805, %v814
        %v845 = vadd.f32 %v806, %v814
        %v846 = vadd.f32 %v807, %v814
        %v847 = vadd.f32 %v808, %v814
        %v848 = vld [vmem:[%s6] sm:$0x1]
        %v850 = vlaneseq
        %v851 = vshrl.u32 %v850, 7
        %v852 = vsub.s32 0, %v851
        %v853 = vrot.slane %v848, %v852
        %v855 = vmax.f32 %v816, %v853
        %v856 = vmax.f32 %v817, %v853
        %v857 = vmax.f32 %v818, %v853
        %v858 = vmax.f32 %v819, %v853
        %v859 = vmax.f32 %v820, %v853
        %v860 = vmax.f32 %v821, %v853
        %v861 = vmax.f32 %v822, %v853
        %v862 = vmax.f32 %v823, %v853
        %v863 = vmax.f32 %v824, %v853
        %v864 = vmax.f32 %v825, %v853
        %v865 = vmax.f32 %v826, %v853
        %v866 = vmax.f32 %v827, %v853
        %v867 = vmax.f32 %v828, %v853
        %v868 = vmax.f32 %v829, %v853
        %v869 = vmax.f32 %v830, %v853
        %v870 = vmax.f32 %v831, %v853
        %v871 = vmax.f32 %v832, %v853
        %v872 = vmax.f32 %v833, %v853
        %v873 = vmax.f32 %v834, %v853
        %v874 = vmax.f32 %v835, %v853
        %v875 = vmax.f32 %v836, %v853
        %v876 = vmax.f32 %v837, %v853
        %v877 = vmax.f32 %v838, %v853
        %v878 = vmax.f32 %v839, %v853
        %v879 = vmax.f32 %v840, %v853
        %v880 = vmax.f32 %v841, %v853
        %v881 = vmax.f32 %v842, %v853
        %v882 = vmax.f32 %v843, %v853
        %v883 = vmax.f32 %v844, %v853
        %v884 = vmax.f32 %v845, %v853
        %v885 = vmax.f32 %v846, %v853
        %v886 = vmax.f32 %v847, %v853
        %v887 = vld [vmem:[#allocation5] sm:$0xff]
        %v888 = vld [vmem:[#allocation5 + $0x8] sm:$0xff]
        %v889 = vld [vmem:[#allocation5 + $0x10] sm:$0xff]
        %v890 = vld [vmem:[#allocation5 + $0x18] sm:$0xff]
        %v891 = vld [vmem:[#allocation5 + $0x20] sm:$0xff]
        %v892 = vld [vmem:[#allocation5 + $0x28] sm:$0xff]
        %v893 = vld [vmem:[#allocation5 + $0x30] sm:$0xff]
        %v894 = vld [vmem:[#allocation5 + $0x38] sm:$0xff]
        %v895 = vld [vmem:[#allocation5 + $0x40] sm:$0xff]
        %v896 = vld [vmem:[#allocation5 + $0x48] sm:$0xff]
        %v897 = vld [vmem:[#allocation5 + $0x50] sm:$0xff]
        %v898 = vld [vmem:[#allocation5 + $0x58] sm:$0xff]
        %v899 = vld [vmem:[#allocation5 + $0x60] sm:$0xff]
        %v900 = vld [vmem:[#allocation5 + $0x68] sm:$0xff]
        %v901 = vld [vmem:[#allocation5 + $0x70] sm:$0xff]
        %v902 = vld [vmem:[#allocation5 + $0x78] sm:$0xff]
        %903 = vmatprep.subr.mxu0 0.0
        %904 = vmatpush1.msra.mxu0 %v870
        %905 = vmatprep.subr.mxu0 0.0
        %906 = vmatpush1.msra.mxu0 %v869
        %907 = vmatprep.subr.mxu0 0.0
        %908 = vmatpush1.msra.mxu0 %v868
        %909 = vmatprep.subr.mxu0 0.0
        %910 = vmatpush1.msra.mxu0 %v867
        %911 = vmatprep.subr.mxu0 0.0
        %912 = vmatpush1.msra.mxu0 %v866
        %913 = vmatprep.subr.mxu0 0.0
        %914 = vmatpush1.msra.mxu0 %v865
        %915 = vmatprep.subr.mxu0 0.0
        %916 = vmatpush1.msra.mxu0 %v864
        %917 = vmatprep.subr.mxu0 0.0
        %918 = vmatpush1.msra.mxu0 %v863
        %919 = vmatprep.subr.mxu0 0.0
        %920 = vmatpush1.msra.mxu0 %v862
        %921 = vmatprep.subr.mxu0 0.0
        %922 = vmatpush1.msra.mxu0 %v861
        %923 = vmatprep.subr.mxu0 0.0
        %924 = vmatpush1.msra.mxu0 %v860
        %925 = vmatprep.subr.mxu0 0.0
        %926 = vmatpush1.msra.mxu0 %v859
        %927 = vmatprep.subr.mxu0 0.0
        %928 = vmatpush1.msra.mxu0 %v858
        %929 = vmatprep.subr.mxu0 0.0
        %930 = vmatpush1.msra.mxu0 %v857
        %931 = vmatprep.subr.mxu0 0.0
        %932 = vmatpush1.msra.mxu0 %v856
        %933 = vmatprep.subr.mxu0 0.0
        %934 = vmatpush1.msra.mxu0 %v855
        %935 = vmatprep.subr.mxu0 0.0
        %936 = vmatpush2.msra.mxu0 %v886
        %937 = vmatprep.subr.mxu0 0.0
        %938 = vmatpush2.msra.mxu0 %v885
        %939 = vmatprep.subr.mxu0 0.0
        %940 = vmatpush2.msra.mxu0 %v884
        %941 = vmatprep.subr.mxu0 0.0
        %942 = vmatpush2.msra.mxu0 %v883
        %943 = vmatprep.subr.mxu0 0.0
        %944 = vmatpush2.msra.mxu0 %v882
        %945 = vmatprep.subr.mxu0 0.0
        %946 = vmatpush2.msra.mxu0 %v881
        %947 = vmatprep.subr.mxu0 0.0
        %948 = vmatpush2.msra.mxu0 %v880
        %949 = vmatprep.subr.mxu0 0.0
        %950 = vmatpush2.msra.mxu0 %v879
        %951 = vmatprep.subr.mxu0 0.0
        %952 = vmatpush2.msra.mxu0 %v878
        %953 = vmatprep.subr.mxu0 0.0
        %954 = vmatpush2.msra.mxu0 %v877
        %955 = vmatprep.subr.mxu0 0.0
        %956 = vmatpush2.msra.mxu0 %v876
        %957 = vmatprep.subr.mxu0 0.0
        %958 = vmatpush2.msra.mxu0 %v875
        %959 = vmatprep.subr.mxu0 0.0
        %960 = vmatpush2.msra.mxu0 %v874
        %961 = vmatprep.subr.mxu0 0.0
        %962 = vmatpush2.msra.mxu0 %v873
        %963 = vmatprep.subr.mxu0 0.0
        %964 = vmatpush2.msra.mxu0 %v872
        %965 = vmatprep.subr.mxu0 0.0
        %966 = vmatpush2.msra.mxu0 %v871
        %967 = vmatprep.mubr.f32.mxu0 %v888
        %968 = vmatmul.mubr.f32.gmra.mxu0 %v887
        %v969 = vpop.f32.mrf.mxu0
        %v970 = vadd.f32 0.0, %v969
        %v971 = vpop.f32.mrf.mxu0
        %972 = vmatprep.mubr.f32.mxu0 %v890
        %973 = vmatmul.mubr.f32.gmra.mxu0 %v889
        %v974 = vpop.f32.mrf.mxu0
        %v975 = vadd.f32 0.0, %v974
        %v976 = vpop.f32.mrf.mxu0
        %977 = vmatprep.mubr.f32.mxu0 %v892
        %978 = vmatmul.mubr.f32.gmra.mxu0 %v891
        %v979 = vpop.f32.mrf.mxu0
        %v980 = vadd.f32 0.0, %v979
        %v981 = vpop.f32.mrf.mxu0
        %982 = vmatprep.mubr.f32.mxu0 %v894
        %983 = vmatmul.mubr.f32.gmra.mxu0 %v893
        %v984 = vpop.f32.mrf.mxu0
        %v985 = vadd.f32 0.0, %v984
        %v986 = vpop.f32.mrf.mxu0
        %987 = vmatprep.mubr.f32.mxu0 %v896
        %988 = vmatmul.mubr.f32.gmra.mxu0 %v895
        %v989 = vpop.f32.mrf.mxu0
        %v990 = vadd.f32 0.0, %v989
        %v991 = vpop.f32.mrf.mxu0
        %992 = vmatprep.mubr.f32.mxu0 %v898
        %993 = vmatmul.mubr.f32.gmra.mxu0 %v897
        %v994 = vpop.f32.mrf.mxu0
        %v995 = vadd.f32 0.0, %v994
        %v996 = vpop.f32.mrf.mxu0
        %997 = vmatprep.mubr.f32.mxu0 %v900
        %998 = vmatmul.mubr.f32.gmra.mxu0 %v899
        %v999 = vpop.f32.mrf.mxu0
        %v1000 = vadd.f32 0.0, %v999
        %v1001 = vpop.f32.mrf.mxu0
        %1002 = vmatprep.mubr.f32.mxu0 %v902
        %1003 = vmatmul.mubr.f32.gmra.mxu0 %v901
        %v1004 = vpop.f32.mrf.mxu0
        %v1005 = vadd.f32 0.0, %v1004
        %v1006 = vpop.f32.mrf.mxu0
        %1007 = vdwg.mxu0
        %v1008 = vld [vmem:[#allocation7] sm:$0xff]
        %v1009 = vld [vmem:[#allocation7 + $0x8] sm:$0xff]
        %v1010 = vld [vmem:[#allocation7 + $0x10] sm:$0xff]
        %v1011 = vld [vmem:[#allocation7 + $0x18] sm:$0xff]
        %v1012 = vld [vmem:[#allocation7 + $0x20] sm:$0xff]
        %v1013 = vld [vmem:[#allocation7 + $0x28] sm:$0xff]
        %v1014 = vld [vmem:[#allocation7 + $0x30] sm:$0xff]
        %v1015 = vld [vmem:[#allocation7 + $0x38] sm:$0xff]
        %s1016 = scalar_lea.vmem [#allocation5], 128
        %v1017 = vld [vmem:[%s1016] sm:$0xff]
        %v1018 = vld [vmem:[%s1016 + $0x8] sm:$0xff]
        %v1019 = vld [vmem:[%s1016 + $0x10] sm:$0xff]
        %v1020 = vld [vmem:[%s1016 + $0x18] sm:$0xff]
        %v1021 = vld [vmem:[%s1016 + $0x20] sm:$0xff]
        %v1022 = vld [vmem:[%s1016 + $0x28] sm:$0xff]
        %v1023 = vld [vmem:[%s1016 + $0x30] sm:$0xff]
        %v1024 = vld [vmem:[%s1016 + $0x38] sm:$0xff]
        %v1025 = vld [vmem:[%s1016 + $0x40] sm:$0xff]
        %v1026 = vld [vmem:[%s1016 + $0x48] sm:$0xff]
        %v1027 = vld [vmem:[%s1016 + $0x50] sm:$0xff]
        %v1028 = vld [vmem:[%s1016 + $0x58] sm:$0xff]
        %v1029 = vld [vmem:[%s1016 + $0x60] sm:$0xff]
        %v1030 = vld [vmem:[%s1016 + $0x68] sm:$0xff]
        %v1031 = vld [vmem:[%s1016 + $0x70] sm:$0xff]
        %v1032 = vld [vmem:[%s1016 + $0x78] sm:$0xff]
        %1033 = vmatprep.subr.mxu0 0.0
        %1034 = vmatpush1.msra.mxu0 %v870
        %1035 = vmatprep.subr.mxu0 0.0
        %1036 = vmatpush1.msra.mxu0 %v869
        %1037 = vmatprep.subr.mxu0 0.0
        %1038 = vmatpush1.msra.mxu0 %v868
        %1039 = vmatprep.subr.mxu0 0.0
        %1040 = vmatpush1.msra.mxu0 %v867
        %1041 = vmatprep.subr.mxu0 0.0
        %1042 = vmatpush1.msra.mxu0 %v866
        %1043 = vmatprep.subr.mxu0 0.0
        %1044 = vmatpush1.msra.mxu0 %v865
        %1045 = vmatprep.subr.mxu0 0.0
        %1046 = vmatpush1.msra.mxu0 %v864
        %1047 = vmatprep.subr.mxu0 0.0
        %1048 = vmatpush1.msra.mxu0 %v863
        %1049 = vmatprep.subr.mxu0 0.0
        %1050 = vmatpush1.msra.mxu0 %v862
        %1051 = vmatprep.subr.mxu0 0.0
        %1052 = vmatpush1.msra.mxu0 %v861
        %1053 = vmatprep.subr.mxu0 0.0
        %1054 = vmatpush1.msra.mxu0 %v860
        %1055 = vmatprep.subr.mxu0 0.0
        %1056 = vmatpush1.msra.mxu0 %v859
        %1057 = vmatprep.subr.mxu0 0.0
        %1058 = vmatpush1.msra.mxu0 %v858
        %1059 = vmatprep.subr.mxu0 0.0
        %1060 = vmatpush1.msra.mxu0 %v857
        %1061 = vmatprep.subr.mxu0 0.0
        %1062 = vmatpush1.msra.mxu0 %v856
        %1063 = vmatprep.subr.mxu0 0.0
        %1064 = vmatpush1.msra.mxu0 %v855
        %1065 = vmatprep.subr.mxu0 0.0
        %1066 = vmatpush2.msra.mxu0 %v886
        %1067 = vmatprep.subr.mxu0 0.0
        %1068 = vmatpush2.msra.mxu0 %v885
        %1069 = vmatprep.subr.mxu0 0.0
        %1070 = vmatpush2.msra.mxu0 %v884
        %1071 = vmatprep.subr.mxu0 0.0
        %1072 = vmatpush2.msra.mxu0 %v883
        %1073 = vmatprep.subr.mxu0 0.0
        %1074 = vmatpush2.msra.mxu0 %v882
        %1075 = vmatprep.subr.mxu0 0.0
        %1076 = vmatpush2.msra.mxu0 %v881
        %1077 = vmatprep.subr.mxu0 0.0
        %1078 = vmatpush2.msra.mxu0 %v880
        %1079 = vmatprep.subr.mxu0 0.0
        %1080 = vmatpush2.msra.mxu0 %v879
        %1081 = vmatprep.subr.mxu0 0.0
        %1082 = vmatpush2.msra.mxu0 %v878
        %1083 = vmatprep.subr.mxu0 0.0
        %1084 = vmatpush2.msra.mxu0 %v877
        %1085 = vmatprep.subr.mxu0 0.0
        %1086 = vmatpush2.msra.mxu0 %v876
        %1087 = vmatprep.subr.mxu0 0.0
        %1088 = vmatpush2.msra.mxu0 %v875
        %1089 = vmatprep.subr.mxu0 0.0
        %1090 = vmatpush2.msra.mxu0 %v874
        %1091 = vmatprep.subr.mxu0 0.0
        %1092 = vmatpush2.msra.mxu0 %v873
        %1093 = vmatprep.subr.mxu0 0.0
        %1094 = vmatpush2.msra.mxu0 %v872
        %1095 = vmatprep.subr.mxu0 0.0
        %1096 = vmatpush2.msra.mxu0 %v871
        %1097 = vmatprep.mubr.f32.mxu0 %v1018
        %1098 = vmatmul.mubr.f32.gmra.mxu0 %v1017
        %v1099 = vpop.f32.mrf.mxu0
        %v1100 = vadd.f32 0.0, %v1099
        %v1101 = vpop.f32.mrf.mxu0
        %1102 = vmatprep.mubr.f32.mxu0 %v1020
        %1103 = vmatmul.mubr.f32.gmra.mxu0 %v1019
        %v1104 = vpop.f32.mrf.mxu0
        %v1105 = vadd.f32 0.0, %v1104
        %v1106 = vpop.f32.mrf.mxu0
        %1107 = vmatprep.mubr.f32.mxu0 %v1022
        %1108 = vmatmul.mubr.f32.gmra.mxu0 %v1021
        %v1109 = vpop.f32.mrf.mxu0
        %v1110 = vadd.f32 0.0, %v1109
        %v1111 = vpop.f32.mrf.mxu0
        %1112 = vmatprep.mubr.f32.mxu0 %v1024
        %1113 = vmatmul.mubr.f32.gmra.mxu0 %v1023
        %v1114 = vpop.f32.mrf.mxu0
        %v1115 = vadd.f32 0.0, %v1114
        %v1116 = vpop.f32.mrf.mxu0
        %1117 = vmatprep.mubr.f32.mxu0 %v1026
        %1118 = vmatmul.mubr.f32.gmra.mxu0 %v1025
        %v1119 = vpop.f32.mrf.mxu0
        %v1120 = vadd.f32 0.0, %v1119
        %v1121 = vpop.f32.mrf.mxu0
        %1122 = vmatprep.mubr.f32.mxu0 %v1028
        %1123 = vmatmul.mubr.f32.gmra.mxu0 %v1027
        %v1124 = vpop.f32.mrf.mxu0
        %v1125 = vadd.f32 0.0, %v1124
        %v1126 = vpop.f32.mrf.mxu0
        %1127 = vmatprep.mubr.f32.mxu0 %v1030
        %1128 = vmatmul.mubr.f32.gmra.mxu0 %v1029
        %v1129 = vpop.f32.mrf.mxu0
        %v1130 = vadd.f32 0.0, %v1129
        %v1131 = vpop.f32.mrf.mxu0
        %1132 = vmatprep.mubr.f32.mxu0 %v1032
        %1133 = vmatmul.mubr.f32.gmra.mxu0 %v1031
        %v1134 = vpop.f32.mrf.mxu0
        %v1135 = vadd.f32 0.0, %v1134
        %v1136 = vpop.f32.mrf.mxu0
        %1137 = vdwg.mxu0
        %s1138 = scalar_lea.vmem [#allocation7], 64
        %v1139 = vld [vmem:[%s1138] sm:$0xff]
        %v1140 = vld [vmem:[%s1138 + $0x8] sm:$0xff]
        %v1141 = vld [vmem:[%s1138 + $0x10] sm:$0xff]
        %v1142 = vld [vmem:[%s1138 + $0x18] sm:$0xff]
        %v1143 = vld [vmem:[%s1138 + $0x20] sm:$0xff]
        %v1144 = vld [vmem:[%s1138 + $0x28] sm:$0xff]
        %v1145 = vld [vmem:[%s1138 + $0x30] sm:$0xff]
        %v1146 = vld [vmem:[%s1138 + $0x38] sm:$0xff]
        %v1148 = vsel %vm664, %v1100, 0
        %v1151 = vsel %vm664, %v1105, 0
        %v1154 = vsel %vm664, %v1110, 0
        %v1157 = vsel %vm664, %v1115, 0
        %v1160 = vsel %vm664, %v1120, 0
        %v1163 = vsel %vm664, %v1125, 0
        %v1166 = vsel %vm664, %v1130, 0
        %v1169 = vsel %vm664, %v1135, 0
        %1171 = vmatprep.subr.mxu0 0.0
        %1172 = vmatpush1.msra.mxu0 0.0
        %1173 = vmatprep.subr.mxu0 0.0
        %1174 = vmatpush1.msra.mxu0 0.0
        %1175 = vmatprep.subr.mxu0 0.0
        %1176 = vmatpush1.msra.mxu0 0.0
        %1177 = vmatprep.subr.mxu0 0.0
        %1178 = vmatpush1.msra.mxu0 0.0
        %1179 = vmatprep.subr.mxu0 0.0
        %1180 = vmatpush1.msra.mxu0 0.0
        %1181 = vmatprep.subr.mxu0 0.0
        %1182 = vmatpush1.msra.mxu0 0.0
        %1183 = vmatprep.subr.mxu0 0.0
        %1184 = vmatpush1.msra.mxu0 0.0
        %1185 = vmatprep.subr.mxu0 0.0
        %1186 = vmatpush1.msra.mxu0 0.0
        %1187 = vmatprep.subr.mxu0 0.0
        %1188 = vmatpush1.msra.mxu0 %v1146
        %1189 = vmatprep.subr.mxu0 0.0
        %1190 = vmatpush1.msra.mxu0 %v1145
        %1191 = vmatprep.subr.mxu0 0.0
        %1192 = vmatpush1.msra.mxu0 %v1144
        %1193 = vmatprep.subr.mxu0 0.0
        %1194 = vmatpush1.msra.mxu0 %v1143
        %1195 = vmatprep.subr.mxu0 0.0
        %1196 = vmatpush1.msra.mxu0 %v1142
        %1197 = vmatprep.subr.mxu0 0.0
        %1198 = vmatpush1.msra.mxu0 %v1141
        %1199 = vmatprep.subr.mxu0 0.0
        %1200 = vmatpush1.msra.mxu0 %v1140
        %1201 = vmatprep.subr.mxu0 0.0
        %1202 = vmatpush1.msra.mxu0 %v1139
        %1203 = vmatprep.subr.mxu0 0.0
        %1204 = vmatpush2.msra.mxu0 0.0
        %1205 = vmatprep.subr.mxu0 0.0
        %1206 = vmatpush2.msra.mxu0 0.0
        %1207 = vmatprep.subr.mxu0 0.0
        %1208 = vmatpush2.msra.mxu0 0.0
        %1209 = vmatprep.subr.mxu0 0.0
        %1210 = vmatpush2.msra.mxu0 0.0
        %1211 = vmatprep.subr.mxu0 0.0
        %1212 = vmatpush2.msra.mxu0 0.0
        %1213 = vmatprep.subr.mxu0 0.0
        %1214 = vmatpush2.msra.mxu0 0.0
        %1215 = vmatprep.subr.mxu0 0.0
        %1216 = vmatpush2.msra.mxu0 0.0
        %1217 = vmatprep.subr.mxu0 0.0
        %1218 = vmatpush2.msra.mxu0 0.0
        %1219 = vmatprep.subr.mxu0 0.0
        %1220 = vmatpush2.msra.mxu0 0.0
        %1221 = vmatprep.subr.mxu0 0.0
        %1222 = vmatpush2.msra.mxu0 0.0
        %1223 = vmatprep.subr.mxu0 0.0
        %1224 = vmatpush2.msra.mxu0 0.0
        %1225 = vmatprep.subr.mxu0 0.0
        %1226 = vmatpush2.msra.mxu0 0.0
        %1227 = vmatprep.subr.mxu0 0.0
        %1228 = vmatpush2.msra.mxu0 0.0
        %1229 = vmatprep.subr.mxu0 0.0
        %1230 = vmatpush2.msra.mxu0 0.0
        %1231 = vmatprep.subr.mxu0 0.0
        %1232 = vmatpush2.msra.mxu0 0.0
        %1233 = vmatprep.subr.mxu0 0.0
        %1234 = vmatpush2.msra.mxu0 0.0
        %1235 = vmatprep.mubr.f32.mxu0 0.0
        %1236 = vmatmul.mubr.f32.gmra.mxu0 %v1148
        %v1237 = vpop.f32.mrf.mxu0
        %v1238 = vadd.f32 0.0, %v1237
        %v1239 = vpop.f32.mrf.mxu0
        %1240 = vmatprep.mubr.f32.mxu0 0.0
        %1241 = vmatmul.mubr.f32.gmra.mxu0 %v1151
        %v1242 = vpop.f32.mrf.mxu0
        %v1243 = vadd.f32 0.0, %v1242
        %v1244 = vpop.f32.mrf.mxu0
        %1245 = vmatprep.mubr.f32.mxu0 0.0
        %1246 = vmatmul.mubr.f32.gmra.mxu0 %v1154
        %v1247 = vpop.f32.mrf.mxu0
        %v1248 = vadd.f32 0.0, %v1247
        %v1249 = vpop.f32.mrf.mxu0
        %1250 = vmatprep.mubr.f32.mxu0 0.0
        %1251 = vmatmul.mubr.f32.gmra.mxu0 %v1157
        %v1252 = vpop.f32.mrf.mxu0
        %v1253 = vadd.f32 0.0, %v1252
        %v1254 = vpop.f32.mrf.mxu0
        %1255 = vmatprep.mubr.f32.mxu0 0.0
        %1256 = vmatmul.mubr.f32.gmra.mxu0 %v1160
        %v1257 = vpop.f32.mrf.mxu0
        %v1258 = vadd.f32 0.0, %v1257
        %v1259 = vpop.f32.mrf.mxu0
        %1260 = vmatprep.mubr.f32.mxu0 0.0
        %1261 = vmatmul.mubr.f32.gmra.mxu0 %v1163
        %v1262 = vpop.f32.mrf.mxu0
        %v1263 = vadd.f32 0.0, %v1262
        %v1264 = vpop.f32.mrf.mxu0
        %1265 = vmatprep.mubr.f32.mxu0 0.0
        %1266 = vmatmul.mubr.f32.gmra.mxu0 %v1166
        %v1267 = vpop.f32.mrf.mxu0
        %v1268 = vadd.f32 0.0, %v1267
        %v1269 = vpop.f32.mrf.mxu0
        %1270 = vmatprep.mubr.f32.mxu0 0.0
        %1271 = vmatmul.mubr.f32.gmra.mxu0 %v1169
        %v1272 = vpop.f32.mrf.mxu0
        %v1273 = vadd.f32 0.0, %v1272
        %v1274 = vpop.f32.mrf.mxu0
        %1275 = vdwg.mxu0
        %v1277 = vsel %vm664, %v970, 0
        %v1280 = vsel %vm664, %v975, 0
        %v1283 = vsel %vm664, %v980, 0
        %v1286 = vsel %vm664, %v985, 0
        %v1289 = vsel %vm664, %v990, 0
        %v1292 = vsel %vm664, %v995, 0
        %v1295 = vsel %vm664, %v1000, 0
        %v1298 = vsel %vm664, %v1005, 0
        %1300 = vmatprep.subr.mxu0 0.0
        %1301 = vmatpush1.msra.mxu0 0.0
        %1302 = vmatprep.subr.mxu0 0.0
        %1303 = vmatpush1.msra.mxu0 0.0
        %1304 = vmatprep.subr.mxu0 0.0
        %1305 = vmatpush1.msra.mxu0 0.0
        %1306 = vmatprep.subr.mxu0 0.0
        %1307 = vmatpush1.msra.mxu0 0.0
        %1308 = vmatprep.subr.mxu0 0.0
        %1309 = vmatpush1.msra.mxu0 0.0
        %1310 = vmatprep.subr.mxu0 0.0
        %1311 = vmatpush1.msra.mxu0 0.0
        %1312 = vmatprep.subr.mxu0 0.0
        %1313 = vmatpush1.msra.mxu0 0.0
        %1314 = vmatprep.subr.mxu0 0.0
        %1315 = vmatpush1.msra.mxu0 0.0
        %1316 = vmatprep.subr.mxu0 0.0
        %1317 = vmatpush1.msra.mxu0 %v1015
        %1318 = vmatprep.subr.mxu0 0.0
        %1319 = vmatpush1.msra.mxu0 %v1014
        %1320 = vmatprep.subr.mxu0 0.0
        %1321 = vmatpush1.msra.mxu0 %v1013
        %1322 = vmatprep.subr.mxu0 0.0
        %1323 = vmatpush1.msra.mxu0 %v1012
        %1324 = vmatprep.subr.mxu0 0.0
        %1325 = vmatpush1.msra.mxu0 %v1011
        %1326 = vmatprep.subr.mxu0 0.0
        %1327 = vmatpush1.msra.mxu0 %v1010
        %1328 = vmatprep.subr.mxu0 0.0
        %1329 = vmatpush1.msra.mxu0 %v1009
        %1330 = vmatprep.subr.mxu0 0.0
        %1331 = vmatpush1.msra.mxu0 %v1008
        %1332 = vmatprep.subr.mxu0 0.0
        %1333 = vmatpush2.msra.mxu0 0.0
        %1334 = vmatprep.subr.mxu0 0.0
        %1335 = vmatpush2.msra.mxu0 0.0
        %1336 = vmatprep.subr.mxu0 0.0
        %1337 = vmatpush2.msra.mxu0 0.0
        %1338 = vmatprep.subr.mxu0 0.0
        %1339 = vmatpush2.msra.mxu0 0.0
        %1340 = vmatprep.subr.mxu0 0.0
        %1341 = vmatpush2.msra.mxu0 0.0
        %1342 = vmatprep.subr.mxu0 0.0
        %1343 = vmatpush2.msra.mxu0 0.0
        %1344 = vmatprep.subr.mxu0 0.0
        %1345 = vmatpush2.msra.mxu0 0.0
        %1346 = vmatprep.subr.mxu0 0.0
        %1347 = vmatpush2.msra.mxu0 0.0
        %1348 = vmatprep.subr.mxu0 0.0
        %1349 = vmatpush2.msra.mxu0 0.0
        %1350 = vmatprep.subr.mxu0 0.0
        %1351 = vmatpush2.msra.mxu0 0.0
        %1352 = vmatprep.subr.mxu0 0.0
        %1353 = vmatpush2.msra.mxu0 0.0
        %1354 = vmatprep.subr.mxu0 0.0
        %1355 = vmatpush2.msra.mxu0 0.0
        %1356 = vmatprep.subr.mxu0 0.0
        %1357 = vmatpush2.msra.mxu0 0.0
        %1358 = vmatprep.subr.mxu0 0.0
        %1359 = vmatpush2.msra.mxu0 0.0
        %1360 = vmatprep.subr.mxu0 0.0
        %1361 = vmatpush2.msra.mxu0 0.0
        %1362 = vmatprep.subr.mxu0 0.0
        %1363 = vmatpush2.msra.mxu0 0.0
        %1364 = vmatprep.mubr.f32.mxu0 0.0
        %1365 = vmatmul.mubr.f32.gmra.mxu0 %v1277
        %v1366 = vpop.f32.mrf.mxu0
        %v1367 = vadd.f32 %v1238, %v1366
        %v1368 = vpop.f32.mrf.mxu0
        %1369 = vmatprep.mubr.f32.mxu0 0.0
        %1370 = vmatmul.mubr.f32.gmra.mxu0 %v1280
        %v1371 = vpop.f32.mrf.mxu0
        %v1372 = vadd.f32 %v1243, %v1371
        %v1373 = vpop.f32.mrf.mxu0
        %1374 = vmatprep.mubr.f32.mxu0 0.0
        %1375 = vmatmul.mubr.f32.gmra.mxu0 %v1283
        %v1376 = vpop.f32.mrf.mxu0
        %v1377 = vadd.f32 %v1248, %v1376
        %v1378 = vpop.f32.mrf.mxu0
        %1379 = vmatprep.mubr.f32.mxu0 0.0
        %1380 = vmatmul.mubr.f32.gmra.mxu0 %v1286
        %v1381 = vpop.f32.mrf.mxu0
        %v1382 = vadd.f32 %v1253, %v1381
        %v1383 = vpop.f32.mrf.mxu0
        %1384 = vmatprep.mubr.f32.mxu0 0.0
        %1385 = vmatmul.mubr.f32.gmra.mxu0 %v1289
        %v1386 = vpop.f32.mrf.mxu0
        %v1387 = vadd.f32 %v1258, %v1386
        %v1388 = vpop.f32.mrf.mxu0
        %1389 = vmatprep.mubr.f32.mxu0 0.0
        %1390 = vmatmul.mubr.f32.gmra.mxu0 %v1292
        %v1391 = vpop.f32.mrf.mxu0
        %v1392 = vadd.f32 %v1263, %v1391
        %v1393 = vpop.f32.mrf.mxu0
        %1394 = vmatprep.mubr.f32.mxu0 0.0
        %1395 = vmatmul.mubr.f32.gmra.mxu0 %v1295
        %v1396 = vpop.f32.mrf.mxu0
        %v1397 = vadd.f32 %v1268, %v1396
        %v1398 = vpop.f32.mrf.mxu0
        %1399 = vmatprep.mubr.f32.mxu0 0.0
        %1400 = vmatmul.mubr.f32.gmra.mxu0 %v1298
        %v1401 = vpop.f32.mrf.mxu0
        %v1402 = vadd.f32 %v1273, %v1401
        %v1403 = vpop.f32.mrf.mxu0
        %1404 = vdwg.mxu0
        %s1405 = scalar_lea.vmem [#allocation5], 256
        %v1406 = vld [vmem:[%s1405] sm:$0xff]
        %v1407 = vld [vmem:[%s1405 + $0x8] sm:$0xff]
        %v1408 = vld [vmem:[%s1405 + $0x10] sm:$0xff]
        %v1409 = vld [vmem:[%s1405 + $0x18] sm:$0xff]
        %v1410 = vld [vmem:[%s1405 + $0x20] sm:$0xff]
        %v1411 = vld [vmem:[%s1405 + $0x28] sm:$0xff]
        %v1412 = vld [vmem:[%s1405 + $0x30] sm:$0xff]
        %v1413 = vld [vmem:[%s1405 + $0x38] sm:$0xff]
        %v1414 = vld [vmem:[%s1405 + $0x40] sm:$0xff]
        %v1415 = vld [vmem:[%s1405 + $0x48] sm:$0xff]
        %v1416 = vld [vmem:[%s1405 + $0x50] sm:$0xff]
        %v1417 = vld [vmem:[%s1405 + $0x58] sm:$0xff]
        %v1418 = vld [vmem:[%s1405 + $0x60] sm:$0xff]
        %v1419 = vld [vmem:[%s1405 + $0x68] sm:$0xff]
        %v1420 = vld [vmem:[%s1405 + $0x70] sm:$0xff]
        %v1421 = vld [vmem:[%s1405 + $0x78] sm:$0xff]
        %1422 = vmatprep.subr.mxu0 0.0
        %1423 = vmatpush1.msra.mxu0 %v870
        %1424 = vmatprep.subr.mxu0 0.0
        %1425 = vmatpush1.msra.mxu0 %v869
        %1426 = vmatprep.subr.mxu0 0.0
        %1427 = vmatpush1.msra.mxu0 %v868
        %1428 = vmatprep.subr.mxu0 0.0
        %1429 = vmatpush1.msra.mxu0 %v867
        %1430 = vmatprep.subr.mxu0 0.0
        %1431 = vmatpush1.msra.mxu0 %v866
        %1432 = vmatprep.subr.mxu0 0.0
        %1433 = vmatpush1.msra.mxu0 %v865
        %1434 = vmatprep.subr.mxu0 0.0
        %1435 = vmatpush1.msra.mxu0 %v864
        %1436 = vmatprep.subr.mxu0 0.0
        %1437 = vmatpush1.msra.mxu0 %v863
        %1438 = vmatprep.subr.mxu0 0.0
        %1439 = vmatpush1.msra.mxu0 %v862
        %1440 = vmatprep.subr.mxu0 0.0
        %1441 = vmatpush1.msra.mxu0 %v861
        %1442 = vmatprep.subr.mxu0 0.0
        %1443 = vmatpush1.msra.mxu0 %v860
        %1444 = vmatprep.subr.mxu0 0.0
        %1445 = vmatpush1.msra.mxu0 %v859
        %1446 = vmatprep.subr.mxu0 0.0
        %1447 = vmatpush1.msra.mxu0 %v858
        %1448 = vmatprep.subr.mxu0 0.0
        %1449 = vmatpush1.msra.mxu0 %v857
        %1450 = vmatprep.subr.mxu0 0.0
        %1451 = vmatpush1.msra.mxu0 %v856
        %1452 = vmatprep.subr.mxu0 0.0
        %1453 = vmatpush1.msra.mxu0 %v855
        %1454 = vmatprep.subr.mxu0 0.0
        %1455 = vmatpush2.msra.mxu0 %v886
        %1456 = vmatprep.subr.mxu0 0.0
        %1457 = vmatpush2.msra.mxu0 %v885
        %1458 = vmatprep.subr.mxu0 0.0
        %1459 = vmatpush2.msra.mxu0 %v884
        %1460 = vmatprep.subr.mxu0 0.0
        %1461 = vmatpush2.msra.mxu0 %v883
        %1462 = vmatprep.subr.mxu0 0.0
        %1463 = vmatpush2.msra.mxu0 %v882
        %1464 = vmatprep.subr.mxu0 0.0
        %1465 = vmatpush2.msra.mxu0 %v881
        %1466 = vmatprep.subr.mxu0 0.0
        %1467 = vmatpush2.msra.mxu0 %v880
        %1468 = vmatprep.subr.mxu0 0.0
        %1469 = vmatpush2.msra.mxu0 %v879
        %1470 = vmatprep.subr.mxu0 0.0
        %1471 = vmatpush2.msra.mxu0 %v878
        %1472 = vmatprep.subr.mxu0 0.0
        %1473 = vmatpush2.msra.mxu0 %v877
        %1474 = vmatprep.subr.mxu0 0.0
        %1475 = vmatpush2.msra.mxu0 %v876
        %1476 = vmatprep.subr.mxu0 0.0
        %1477 = vmatpush2.msra.mxu0 %v875
        %1478 = vmatprep.subr.mxu0 0.0
        %1479 = vmatpush2.msra.mxu0 %v874
        %1480 = vmatprep.subr.mxu0 0.0
        %1481 = vmatpush2.msra.mxu0 %v873
        %1482 = vmatprep.subr.mxu0 0.0
        %1483 = vmatpush2.msra.mxu0 %v872
        %1484 = vmatprep.subr.mxu0 0.0
        %1485 = vmatpush2.msra.mxu0 %v871
        %1486 = vmatprep.mubr.f32.mxu0 %v1407
        %1487 = vmatmul.mubr.f32.gmra.mxu0 %v1406
        %v1488 = vpop.f32.mrf.mxu0
        %v1489 = vadd.f32 0.0, %v1488
        %v1490 = vpop.f32.mrf.mxu0
        %1491 = vmatprep.mubr.f32.mxu0 %v1409
        %1492 = vmatmul.mubr.f32.gmra.mxu0 %v1408
        %v1493 = vpop.f32.mrf.mxu0
        %v1494 = vadd.f32 0.0, %v1493
        %v1495 = vpop.f32.mrf.mxu0
        %1496 = vmatprep.mubr.f32.mxu0 %v1411
        %1497 = vmatmul.mubr.f32.gmra.mxu0 %v1410
        %v1498 = vpop.f32.mrf.mxu0
        %v1499 = vadd.f32 0.0, %v1498
        %v1500 = vpop.f32.mrf.mxu0
        %1501 = vmatprep.mubr.f32.mxu0 %v1413
        %1502 = vmatmul.mubr.f32.gmra.mxu0 %v1412
        %v1503 = vpop.f32.mrf.mxu0
        %v1504 = vadd.f32 0.0, %v1503
        %v1505 = vpop.f32.mrf.mxu0
        %1506 = vmatprep.mubr.f32.mxu0 %v1415
        %1507 = vmatmul.mubr.f32.gmra.mxu0 %v1414
        %v1508 = vpop.f32.mrf.mxu0
        %v1509 = vadd.f32 0.0, %v1508
        %v1510 = vpop.f32.mrf.mxu0
        %1511 = vmatprep.mubr.f32.mxu0 %v1417
        %1512 = vmatmul.mubr.f32.gmra.mxu0 %v1416
        %v1513 = vpop.f32.mrf.mxu0
        %v1514 = vadd.f32 0.0, %v1513
        %v1515 = vpop.f32.mrf.mxu0
        %1516 = vmatprep.mubr.f32.mxu0 %v1419
        %1517 = vmatmul.mubr.f32.gmra.mxu0 %v1418
        %v1518 = vpop.f32.mrf.mxu0
        %v1519 = vadd.f32 0.0, %v1518
        %v1520 = vpop.f32.mrf.mxu0
        %1521 = vmatprep.mubr.f32.mxu0 %v1421
        %1522 = vmatmul.mubr.f32.gmra.mxu0 %v1420
        %v1523 = vpop.f32.mrf.mxu0
        %v1524 = vadd.f32 0.0, %v1523
        %v1525 = vpop.f32.mrf.mxu0
        %1526 = vdwg.mxu0
        %s1527 = scalar_lea.vmem [#allocation7], 128
        %v1528 = vld [vmem:[%s1527] sm:$0xff]
        %v1529 = vld [vmem:[%s1527 + $0x8] sm:$0xff]
        %v1530 = vld [vmem:[%s1527 + $0x10] sm:$0xff]
        %v1531 = vld [vmem:[%s1527 + $0x18] sm:$0xff]
        %v1532 = vld [vmem:[%s1527 + $0x20] sm:$0xff]
        %v1533 = vld [vmem:[%s1527 + $0x28] sm:$0xff]
        %v1534 = vld [vmem:[%s1527 + $0x30] sm:$0xff]
        %v1535 = vld [vmem:[%s1527 + $0x38] sm:$0xff]
        %v1537 = vsel %vm664, %v1489, 0
        %v1540 = vsel %vm664, %v1494, 0
        %v1543 = vsel %vm664, %v1499, 0
        %v1546 = vsel %vm664, %v1504, 0
        %v1549 = vsel %vm664, %v1509, 0
        %v1552 = vsel %vm664, %v1514, 0
        %v1555 = vsel %vm664, %v1519, 0
        %v1558 = vsel %vm664, %v1524, 0
        %1560 = vmatprep.subr.mxu0 0.0
        %1561 = vmatpush1.msra.mxu0 0.0
        %1562 = vmatprep.subr.mxu0 0.0
        %1563 = vmatpush1.msra.mxu0 0.0
        %1564 = vmatprep.subr.mxu0 0.0
        %1565 = vmatpush1.msra.mxu0 0.0
        %1566 = vmatprep.subr.mxu0 0.0
        %1567 = vmatpush1.msra.mxu0 0.0
        %1568 = vmatprep.subr.mxu0 0.0
        %1569 = vmatpush1.msra.mxu0 0.0
        %1570 = vmatprep.subr.mxu0 0.0
        %1571 = vmatpush1.msra.mxu0 0.0
        %1572 = vmatprep.subr.mxu0 0.0
        %1573 = vmatpush1.msra.mxu0 0.0
        %1574 = vmatprep.subr.mxu0 0.0
        %1575 = vmatpush1.msra.mxu0 0.0
        %1576 = vmatprep.subr.mxu0 0.0
        %1577 = vmatpush1.msra.mxu0 %v1535
        %1578 = vmatprep.subr.mxu0 0.0
        %1579 = vmatpush1.msra.mxu0 %v1534
        %1580 = vmatprep.subr.mxu0 0.0
        %1581 = vmatpush1.msra.mxu0 %v1533
        %1582 = vmatprep.subr.mxu0 0.0
        %1583 = vmatpush1.msra.mxu0 %v1532
        %1584 = vmatprep.subr.mxu0 0.0
        %1585 = vmatpush1.msra.mxu0 %v1531
        %1586 = vmatprep.subr.mxu0 0.0
        %1587 = vmatpush1.msra.mxu0 %v1530
        %1588 = vmatprep.subr.mxu0 0.0
        %1589 = vmatpush1.msra.mxu0 %v1529
        %1590 = vmatprep.subr.mxu0 0.0
        %1591 = vmatpush1.msra.mxu0 %v1528
        %1592 = vmatprep.subr.mxu0 0.0
        %1593 = vmatpush2.msra.mxu0 0.0
        %1594 = vmatprep.subr.mxu0 0.0
        %1595 = vmatpush2.msra.mxu0 0.0
        %1596 = vmatprep.subr.mxu0 0.0
        %1597 = vmatpush2.msra.mxu0 0.0
        %1598 = vmatprep.subr.mxu0 0.0
        %1599 = vmatpush2.msra.mxu0 0.0
        %1600 = vmatprep.subr.mxu0 0.0
        %1601 = vmatpush2.msra.mxu0 0.0
        %1602 = vmatprep.subr.mxu0 0.0
        %1603 = vmatpush2.msra.mxu0 0.0
        %1604 = vmatprep.subr.mxu0 0.0
        %1605 = vmatpush2.msra.mxu0 0.0
        %1606 = vmatprep.subr.mxu0 0.0
        %1607 = vmatpush2.msra.mxu0 0.0
        %1608 = vmatprep.subr.mxu0 0.0
        %1609 = vmatpush2.msra.mxu0 0.0
        %1610 = vmatprep.subr.mxu0 0.0
        %1611 = vmatpush2.msra.mxu0 0.0
        %1612 = vmatprep.subr.mxu0 0.0
        %1613 = vmatpush2.msra.mxu0 0.0
        %1614 = vmatprep.subr.mxu0 0.0
        %1615 = vmatpush2.msra.mxu0 0.0
        %1616 = vmatprep.subr.mxu0 0.0
        %1617 = vmatpush2.msra.mxu0 0.0
        %1618 = vmatprep.subr.mxu0 0.0
        %1619 = vmatpush2.msra.mxu0 0.0
        %1620 = vmatprep.subr.mxu0 0.0
        %1621 = vmatpush2.msra.mxu0 0.0
        %1622 = vmatprep.subr.mxu0 0.0
        %1623 = vmatpush2.msra.mxu0 0.0
        %1624 = vmatprep.mubr.f32.mxu0 0.0
        %1625 = vmatmul.mubr.f32.gmra.mxu0 %v1537
        %v1626 = vpop.f32.mrf.mxu0
        %v1627 = vadd.f32 0.0, %v1626
        %v1628 = vpop.f32.mrf.mxu0
        %1629 = vmatprep.mubr.f32.mxu0 0.0
        %1630 = vmatmul.mubr.f32.gmra.mxu0 %v1540
        %v1631 = vpop.f32.mrf.mxu0
        %v1632 = vadd.f32 0.0, %v1631
        %v1633 = vpop.f32.mrf.mxu0
        %1634 = vmatprep.mubr.f32.mxu0 0.0
        %1635 = vmatmul.mubr.f32.gmra.mxu0 %v1543
        %v1636 = vpop.f32.mrf.mxu0
        %v1637 = vadd.f32 0.0, %v1636
        %v1638 = vpop.f32.mrf.mxu0
        %1639 = vmatprep.mubr.f32.mxu0 0.0
        %1640 = vmatmul.mubr.f32.gmra.mxu0 %v1546
        %v1641 = vpop.f32.mrf.mxu0
        %v1642 = vadd.f32 0.0, %v1641
        %v1643 = vpop.f32.mrf.mxu0
        %1644 = vmatprep.mubr.f32.mxu0 0.0
        %1645 = vmatmul.mubr.f32.gmra.mxu0 %v1549
        %v1646 = vpop.f32.mrf.mxu0
        %v1647 = vadd.f32 0.0, %v1646
        %v1648 = vpop.f32.mrf.mxu0
        %1649 = vmatprep.mubr.f32.mxu0 0.0
        %1650 = vmatmul.mubr.f32.gmra.mxu0 %v1552
        %v1651 = vpop.f32.mrf.mxu0
        %v1652 = vadd.f32 0.0, %v1651
        %v1653 = vpop.f32.mrf.mxu0
        %1654 = vmatprep.mubr.f32.mxu0 0.0
        %1655 = vmatmul.mubr.f32.gmra.mxu0 %v1555
        %v1656 = vpop.f32.mrf.mxu0
        %v1657 = vadd.f32 0.0, %v1656
        %v1658 = vpop.f32.mrf.mxu0
        %1659 = vmatprep.mubr.f32.mxu0 0.0
        %1660 = vmatmul.mubr.f32.gmra.mxu0 %v1558
        %v1661 = vpop.f32.mrf.mxu0
        %v1662 = vadd.f32 0.0, %v1661
        %v1663 = vpop.f32.mrf.mxu0
        %1664 = vdwg.mxu0
        %v1665 = vadd.f32 %v1367, %v1627
        %v1666 = vadd.f32 %v1372, %v1632
        %v1667 = vadd.f32 %v1377, %v1637
        %v1668 = vadd.f32 %v1382, %v1642
        %v1669 = vadd.f32 %v1387, %v1647
        %v1670 = vadd.f32 %v1392, %v1652
        %v1671 = vadd.f32 %v1397, %v1657
        %v1672 = vadd.f32 %v1402, %v1662
        %s1673 = scalar_lea.vmem [#allocation5], 384
        %v1674 = vld [vmem:[%s1673] sm:$0xff]
        %v1675 = vld [vmem:[%s1673 + $0x8] sm:$0xff]
        %v1676 = vld [vmem:[%s1673 + $0x10] sm:$0xff]
        %v1677 = vld [vmem:[%s1673 + $0x18] sm:$0xff]
        %v1678 = vld [vmem:[%s1673 + $0x20] sm:$0xff]
        %v1679 = vld [vmem:[%s1673 + $0x28] sm:$0xff]
        %v1680 = vld [vmem:[%s1673 + $0x30] sm:$0xff]
        %v1681 = vld [vmem:[%s1673 + $0x38] sm:$0xff]
        %v1682 = vld [vmem:[%s1673 + $0x40] sm:$0xff]
        %v1683 = vld [vmem:[%s1673 + $0x48] sm:$0xff]
        %v1684 = vld [vmem:[%s1673 + $0x50] sm:$0xff]
        %v1685 = vld [vmem:[%s1673 + $0x58] sm:$0xff]
        %v1686 = vld [vmem:[%s1673 + $0x60] sm:$0xff]
        %v1687 = vld [vmem:[%s1673 + $0x68] sm:$0xff]
        %v1688 = vld [vmem:[%s1673 + $0x70] sm:$0xff]
        %v1689 = vld [vmem:[%s1673 + $0x78] sm:$0xff]
        %1690 = vmatprep.subr.mxu0 0.0
        %1691 = vmatpush1.msra.mxu0 %v870
        %1692 = vmatprep.subr.mxu0 0.0
        %1693 = vmatpush1.msra.mxu0 %v869
        %1694 = vmatprep.subr.mxu0 0.0
        %1695 = vmatpush1.msra.mxu0 %v868
        %1696 = vmatprep.subr.mxu0 0.0
        %1697 = vmatpush1.msra.mxu0 %v867
        %1698 = vmatprep.subr.mxu0 0.0
        %1699 = vmatpush1.msra.mxu0 %v866
        %1700 = vmatprep.subr.mxu0 0.0
        %1701 = vmatpush1.msra.mxu0 %v865
        %1702 = vmatprep.subr.mxu0 0.0
        %1703 = vmatpush1.msra.mxu0 %v864
        %1704 = vmatprep.subr.mxu0 0.0
        %1705 = vmatpush1.msra.mxu0 %v863
        %1706 = vmatprep.subr.mxu0 0.0
        %1707 = vmatpush1.msra.mxu0 %v862
        %1708 = vmatprep.subr.mxu0 0.0
        %1709 = vmatpush1.msra.mxu0 %v861
        %1710 = vmatprep.subr.mxu0 0.0
        %1711 = vmatpush1.msra.mxu0 %v860
        %1712 = vmatprep.subr.mxu0 0.0
        %1713 = vmatpush1.msra.mxu0 %v859
        %1714 = vmatprep.subr.mxu0 0.0
        %1715 = vmatpush1.msra.mxu0 %v858
        %1716 = vmatprep.subr.mxu0 0.0
        %1717 = vmatpush1.msra.mxu0 %v857
        %1718 = vmatprep.subr.mxu0 0.0
        %1719 = vmatpush1.msra.mxu0 %v856
        %1720 = vmatprep.subr.mxu0 0.0
        %1721 = vmatpush1.msra.mxu0 %v855
        %1722 = vmatprep.subr.mxu0 0.0
        %1723 = vmatpush2.msra.mxu0 %v886
        %1724 = vmatprep.subr.mxu0 0.0
        %1725 = vmatpush2.msra.mxu0 %v885
        %1726 = vmatprep.subr.mxu0 0.0
        %1727 = vmatpush2.msra.mxu0 %v884
        %1728 = vmatprep.subr.mxu0 0.0
        %1729 = vmatpush2.msra.mxu0 %v883
        %1730 = vmatprep.subr.mxu0 0.0
        %1731 = vmatpush2.msra.mxu0 %v882
        %1732 = vmatprep.subr.mxu0 0.0
        %1733 = vmatpush2.msra.mxu0 %v881
        %1734 = vmatprep.subr.mxu0 0.0
        %1735 = vmatpush2.msra.mxu0 %v880
        %1736 = vmatprep.subr.mxu0 0.0
        %1737 = vmatpush2.msra.mxu0 %v879
        %1738 = vmatprep.subr.mxu0 0.0
        %1739 = vmatpush2.msra.mxu0 %v878
        %1740 = vmatprep.subr.mxu0 0.0
        %1741 = vmatpush2.msra.mxu0 %v877
        %1742 = vmatprep.subr.mxu0 0.0
        %1743 = vmatpush2.msra.mxu0 %v876
        %1744 = vmatprep.subr.mxu0 0.0
        %1745 = vmatpush2.msra.mxu0 %v875
        %1746 = vmatprep.subr.mxu0 0.0
        %1747 = vmatpush2.msra.mxu0 %v874
        %1748 = vmatprep.subr.mxu0 0.0
        %1749 = vmatpush2.msra.mxu0 %v873
        %1750 = vmatprep.subr.mxu0 0.0
        %1751 = vmatpush2.msra.mxu0 %v872
        %1752 = vmatprep.subr.mxu0 0.0
        %1753 = vmatpush2.msra.mxu0 %v871
        %1754 = vmatprep.mubr.f32.mxu0 %v1675
        %1755 = vmatmul.mubr.f32.gmra.mxu0 %v1674
        %v1756 = vpop.f32.mrf.mxu0
        %v1757 = vadd.f32 0.0, %v1756
        %v1758 = vpop.f32.mrf.mxu0
        %1759 = vmatprep.mubr.f32.mxu0 %v1677
        %1760 = vmatmul.mubr.f32.gmra.mxu0 %v1676
        %v1761 = vpop.f32.mrf.mxu0
        %v1762 = vadd.f32 0.0, %v1761
        %v1763 = vpop.f32.mrf.mxu0
        %1764 = vmatprep.mubr.f32.mxu0 %v1679
        %1765 = vmatmul.mubr.f32.gmra.mxu0 %v1678
        %v1766 = vpop.f32.mrf.mxu0
        %v1767 = vadd.f32 0.0, %v1766
        %v1768 = vpop.f32.mrf.mxu0
        %1769 = vmatprep.mubr.f32.mxu0 %v1681
        %1770 = vmatmul.mubr.f32.gmra.mxu0 %v1680
        %v1771 = vpop.f32.mrf.mxu0
        %v1772 = vadd.f32 0.0, %v1771
        %v1773 = vpop.f32.mrf.mxu0
        %1774 = vmatprep.mubr.f32.mxu0 %v1683
        %1775 = vmatmul.mubr.f32.gmra.mxu0 %v1682
        %v1776 = vpop.f32.mrf.mxu0
        %v1777 = vadd.f32 0.0, %v1776
        %v1778 = vpop.f32.mrf.mxu0
        %1779 = vmatprep.mubr.f32.mxu0 %v1685
        %1780 = vmatmul.mubr.f32.gmra.mxu0 %v1684
        %v1781 = vpop.f32.mrf.mxu0
        %v1782 = vadd.f32 0.0, %v1781
        %v1783 = vpop.f32.mrf.mxu0
        %1784 = vmatprep.mubr.f32.mxu0 %v1687
        %1785 = vmatmul.mubr.f32.gmra.mxu0 %v1686
        %v1786 = vpop.f32.mrf.mxu0
        %v1787 = vadd.f32 0.0, %v1786
        %v1788 = vpop.f32.mrf.mxu0
        %1789 = vmatprep.mubr.f32.mxu0 %v1689
        %1790 = vmatmul.mubr.f32.gmra.mxu0 %v1688
        %v1791 = vpop.f32.mrf.mxu0
        %v1792 = vadd.f32 0.0, %v1791
        %v1793 = vpop.f32.mrf.mxu0
        %1794 = vdwg.mxu0
        %s1795 = scalar_lea.vmem [#allocation7], 192
        %v1796 = vld [vmem:[%s1795] sm:$0xff]
        %v1797 = vld [vmem:[%s1795 + $0x8] sm:$0xff]
        %v1798 = vld [vmem:[%s1795 + $0x10] sm:$0xff]
        %v1799 = vld [vmem:[%s1795 + $0x18] sm:$0xff]
        %v1800 = vld [vmem:[%s1795 + $0x20] sm:$0xff]
        %v1801 = vld [vmem:[%s1795 + $0x28] sm:$0xff]
        %v1802 = vld [vmem:[%s1795 + $0x30] sm:$0xff]
        %v1803 = vld [vmem:[%s1795 + $0x38] sm:$0xff]
        %v1805 = vsel %vm664, %v1757, 0
        %v1808 = vsel %vm664, %v1762, 0
        %v1811 = vsel %vm664, %v1767, 0
        %v1814 = vsel %vm664, %v1772, 0
        %v1817 = vsel %vm664, %v1777, 0
        %v1820 = vsel %vm664, %v1782, 0
        %v1823 = vsel %vm664, %v1787, 0
        %v1826 = vsel %vm664, %v1792, 0
        %1828 = vmatprep.subr.mxu0 0.0
        %1829 = vmatpush1.msra.mxu0 0.0
        %1830 = vmatprep.subr.mxu0 0.0
        %1831 = vmatpush1.msra.mxu0 0.0
        %1832 = vmatprep.subr.mxu0 0.0
        %1833 = vmatpush1.msra.mxu0 0.0
        %1834 = vmatprep.subr.mxu0 0.0
        %1835 = vmatpush1.msra.mxu0 0.0
        %1836 = vmatprep.subr.mxu0 0.0
        %1837 = vmatpush1.msra.mxu0 0.0
        %1838 = vmatprep.subr.mxu0 0.0
        %1839 = vmatpush1.msra.mxu0 0.0
        %1840 = vmatprep.subr.mxu0 0.0
        %1841 = vmatpush1.msra.mxu0 0.0
        %1842 = vmatprep.subr.mxu0 0.0
        %1843 = vmatpush1.msra.mxu0 0.0
        %1844 = vmatprep.subr.mxu0 0.0
        %1845 = vmatpush1.msra.mxu0 %v1803
        %1846 = vmatprep.subr.mxu0 0.0
        %1847 = vmatpush1.msra.mxu0 %v1802
        %1848 = vmatprep.subr.mxu0 0.0
        %1849 = vmatpush1.msra.mxu0 %v1801
        %1850 = vmatprep.subr.mxu0 0.0
        %1851 = vmatpush1.msra.mxu0 %v1800
        %1852 = vmatprep.subr.mxu0 0.0
        %1853 = vmatpush1.msra.mxu0 %v1799
        %1854 = vmatprep.subr.mxu0 0.0
        %1855 = vmatpush1.msra.mxu0 %v1798
        %1856 = vmatprep.subr.mxu0 0.0
        %1857 = vmatpush1.msra.mxu0 %v1797
        %1858 = vmatprep.subr.mxu0 0.0
        %1859 = vmatpush1.msra.mxu0 %v1796
        %1860 = vmatprep.subr.mxu0 0.0
        %1861 = vmatpush2.msra.mxu0 0.0
        %1862 = vmatprep.subr.mxu0 0.0
        %1863 = vmatpush2.msra.mxu0 0.0
        %1864 = vmatprep.subr.mxu0 0.0
        %1865 = vmatpush2.msra.mxu0 0.0
        %1866 = vmatprep.subr.mxu0 0.0
        %1867 = vmatpush2.msra.mxu0 0.0
        %1868 = vmatprep.subr.mxu0 0.0
        %1869 = vmatpush2.msra.mxu0 0.0
        %1870 = vmatprep.subr.mxu0 0.0
        %1871 = vmatpush2.msra.mxu0 0.0
        %1872 = vmatprep.subr.mxu0 0.0
        %1873 = vmatpush2.msra.mxu0 0.0
        %1874 = vmatprep.subr.mxu0 0.0
        %1875 = vmatpush2.msra.mxu0 0.0
        %1876 = vmatprep.subr.mxu0 0.0
        %1877 = vmatpush2.msra.mxu0 0.0
        %1878 = vmatprep.subr.mxu0 0.0
        %1879 = vmatpush2.msra.mxu0 0.0
        %1880 = vmatprep.subr.mxu0 0.0
        %1881 = vmatpush2.msra.mxu0 0.0
        %1882 = vmatprep.subr.mxu0 0.0
        %1883 = vmatpush2.msra.mxu0 0.0
        %1884 = vmatprep.subr.mxu0 0.0
        %1885 = vmatpush2.msra.mxu0 0.0
        %1886 = vmatprep.subr.mxu0 0.0
        %1887 = vmatpush2.msra.mxu0 0.0
        %1888 = vmatprep.subr.mxu0 0.0
        %1889 = vmatpush2.msra.mxu0 0.0
        %1890 = vmatprep.subr.mxu0 0.0
        %1891 = vmatpush2.msra.mxu0 0.0
        %1892 = vmatprep.mubr.f32.mxu0 0.0
        %1893 = vmatmul.mubr.f32.gmra.mxu0 %v1805
        %v1894 = vpop.f32.mrf.mxu0
        %v1895 = vadd.f32 0.0, %v1894
        %v1896 = vpop.f32.mrf.mxu0
        %1897 = vmatprep.mubr.f32.mxu0 0.0
        %1898 = vmatmul.mubr.f32.gmra.mxu0 %v1808
        %v1899 = vpop.f32.mrf.mxu0
        %v1900 = vadd.f32 0.0, %v1899
        %v1901 = vpop.f32.mrf.mxu0
        %1902 = vmatprep.mubr.f32.mxu0 0.0
        %1903 = vmatmul.mubr.f32.gmra.mxu0 %v1811
        %v1904 = vpop.f32.mrf.mxu0
        %v1905 = vadd.f32 0.0, %v1904
        %v1906 = vpop.f32.mrf.mxu0
        %1907 = vmatprep.mubr.f32.mxu0 0.0
        %1908 = vmatmul.mubr.f32.gmra.mxu0 %v1814
        %v1909 = vpop.f32.mrf.mxu0
        %v1910 = vadd.f32 0.0, %v1909
        %v1911 = vpop.f32.mrf.mxu0
        %1912 = vmatprep.mubr.f32.mxu0 0.0
        %1913 = vmatmul.mubr.f32.gmra.mxu0 %v1817
        %v1914 = vpop.f32.mrf.mxu0
        %v1915 = vadd.f32 0.0, %v1914
        %v1916 = vpop.f32.mrf.mxu0
        %1917 = vmatprep.mubr.f32.mxu0 0.0
        %1918 = vmatmul.mubr.f32.gmra.mxu0 %v1820
        %v1919 = vpop.f32.mrf.mxu0
        %v1920 = vadd.f32 0.0, %v1919
        %v1921 = vpop.f32.mrf.mxu0
        %1922 = vmatprep.mubr.f32.mxu0 0.0
        %1923 = vmatmul.mubr.f32.gmra.mxu0 %v1823
        %v1924 = vpop.f32.mrf.mxu0
        %v1925 = vadd.f32 0.0, %v1924
        %v1926 = vpop.f32.mrf.mxu0
        %1927 = vmatprep.mubr.f32.mxu0 0.0
        %1928 = vmatmul.mubr.f32.gmra.mxu0 %v1826
        %v1929 = vpop.f32.mrf.mxu0
        %v1930 = vadd.f32 0.0, %v1929
        %v1931 = vpop.f32.mrf.mxu0
        %1932 = vdwg.mxu0
        %v1933 = vadd.f32 %v1665, %v1895
        %v1934 = vadd.f32 %v1666, %v1900
        %v1935 = vadd.f32 %v1667, %v1905
        %v1936 = vadd.f32 %v1668, %v1910
        %v1937 = vadd.f32 %v1669, %v1915
        %v1938 = vadd.f32 %v1670, %v1920
        %v1939 = vadd.f32 %v1671, %v1925
        %v1940 = vadd.f32 %v1672, %v1930
        %s1941 = scalar_lea.vmem [#allocation5], 512
        %v1942 = vld [vmem:[%s1941] sm:$0xff]
        %v1943 = vld [vmem:[%s1941 + $0x8] sm:$0xff]
        %v1944 = vld [vmem:[%s1941 + $0x10] sm:$0xff]
        %v1945 = vld [vmem:[%s1941 + $0x18] sm:$0xff]
        %v1946 = vld [vmem:[%s1941 + $0x20] sm:$0xff]
        %v1947 = vld [vmem:[%s1941 + $0x28] sm:$0xff]
        %v1948 = vld [vmem:[%s1941 + $0x30] sm:$0xff]
        %v1949 = vld [vmem:[%s1941 + $0x38] sm:$0xff]
        %v1950 = vld [vmem:[%s1941 + $0x40] sm:$0xff]
        %v1951 = vld [vmem:[%s1941 + $0x48] sm:$0xff]
        %v1952 = vld [vmem:[%s1941 + $0x50] sm:$0xff]
        %v1953 = vld [vmem:[%s1941 + $0x58] sm:$0xff]
        %v1954 = vld [vmem:[%s1941 + $0x60] sm:$0xff]
        %v1955 = vld [vmem:[%s1941 + $0x68] sm:$0xff]
        %v1956 = vld [vmem:[%s1941 + $0x70] sm:$0xff]
        %v1957 = vld [vmem:[%s1941 + $0x78] sm:$0xff]
        %1958 = vmatprep.subr.mxu0 0.0
        %1959 = vmatpush1.msra.mxu0 %v870
        %1960 = vmatprep.subr.mxu0 0.0
        %1961 = vmatpush1.msra.mxu0 %v869
        %1962 = vmatprep.subr.mxu0 0.0
        %1963 = vmatpush1.msra.mxu0 %v868
        %1964 = vmatprep.subr.mxu0 0.0
        %1965 = vmatpush1.msra.mxu0 %v867
        %1966 = vmatprep.subr.mxu0 0.0
        %1967 = vmatpush1.msra.mxu0 %v866
        %1968 = vmatprep.subr.mxu0 0.0
        %1969 = vmatpush1.msra.mxu0 %v865
        %1970 = vmatprep.subr.mxu0 0.0
        %1971 = vmatpush1.msra.mxu0 %v864
        %1972 = vmatprep.subr.mxu0 0.0
        %1973 = vmatpush1.msra.mxu0 %v863
        %1974 = vmatprep.subr.mxu0 0.0
        %1975 = vmatpush1.msra.mxu0 %v862
        %1976 = vmatprep.subr.mxu0 0.0
        %1977 = vmatpush1.msra.mxu0 %v861
        %1978 = vmatprep.subr.mxu0 0.0
        %1979 = vmatpush1.msra.mxu0 %v860
        %1980 = vmatprep.subr.mxu0 0.0
        %1981 = vmatpush1.msra.mxu0 %v859
        %1982 = vmatprep.subr.mxu0 0.0
        %1983 = vmatpush1.msra.mxu0 %v858
        %1984 = vmatprep.subr.mxu0 0.0
        %1985 = vmatpush1.msra.mxu0 %v857
        %1986 = vmatprep.subr.mxu0 0.0
        %1987 = vmatpush1.msra.mxu0 %v856
        %1988 = vmatprep.subr.mxu0 0.0
        %1989 = vmatpush1.msra.mxu0 %v855
        %1990 = vmatprep.subr.mxu0 0.0
        %1991 = vmatpush2.msra.mxu0 %v886
        %1992 = vmatprep.subr.mxu0 0.0
        %1993 = vmatpush2.msra.mxu0 %v885
        %1994 = vmatprep.subr.mxu0 0.0
        %1995 = vmatpush2.msra.mxu0 %v884
        %1996 = vmatprep.subr.mxu0 0.0
        %1997 = vmatpush2.msra.mxu0 %v883
        %1998 = vmatprep.subr.mxu0 0.0
        %1999 = vmatpush2.msra.mxu0 %v882
        %2000 = vmatprep.subr.mxu0 0.0
        %2001 = vmatpush2.msra.mxu0 %v881
        %2002 = vmatprep.subr.mxu0 0.0
        %2003 = vmatpush2.msra.mxu0 %v880
        %2004 = vmatprep.subr.mxu0 0.0
        %2005 = vmatpush2.msra.mxu0 %v879
        %2006 = vmatprep.subr.mxu0 0.0
        %2007 = vmatpush2.msra.mxu0 %v878
        %2008 = vmatprep.subr.mxu0 0.0
        %2009 = vmatpush2.msra.mxu0 %v877
        %2010 = vmatprep.subr.mxu0 0.0
        %2011 = vmatpush2.msra.mxu0 %v876
        %2012 = vmatprep.subr.mxu0 0.0
        %2013 = vmatpush2.msra.mxu0 %v875
        %2014 = vmatprep.subr.mxu0 0.0
        %2015 = vmatpush2.msra.mxu0 %v874
        %2016 = vmatprep.subr.mxu0 0.0
        %2017 = vmatpush2.msra.mxu0 %v873
        %2018 = vmatprep.subr.mxu0 0.0
        %2019 = vmatpush2.msra.mxu0 %v872
        %2020 = vmatprep.subr.mxu0 0.0
        %2021 = vmatpush2.msra.mxu0 %v871
        %2022 = vmatprep.mubr.f32.mxu0 %v1943
        %2023 = vmatmul.mubr.f32.gmra.mxu0 %v1942
        %v2024 = vpop.f32.mrf.mxu0
        %v2025 = vadd.f32 0.0, %v2024
        %v2026 = vpop.f32.mrf.mxu0
        %2027 = vmatprep.mubr.f32.mxu0 %v1945
        %2028 = vmatmul.mubr.f32.gmra.mxu0 %v1944
        %v2029 = vpop.f32.mrf.mxu0
        %v2030 = vadd.f32 0.0, %v2029
        %v2031 = vpop.f32.mrf.mxu0
        %2032 = vmatprep.mubr.f32.mxu0 %v1947
        %2033 = vmatmul.mubr.f32.gmra.mxu0 %v1946
        %v2034 = vpop.f32.mrf.mxu0
        %v2035 = vadd.f32 0.0, %v2034
        %v2036 = vpop.f32.mrf.mxu0
        %2037 = vmatprep.mubr.f32.mxu0 %v1949
        %2038 = vmatmul.mubr.f32.gmra.mxu0 %v1948
        %v2039 = vpop.f32.mrf.mxu0
        %v2040 = vadd.f32 0.0, %v2039
        %v2041 = vpop.f32.mrf.mxu0
        %2042 = vmatprep.mubr.f32.mxu0 %v1951
        %2043 = vmatmul.mubr.f32.gmra.mxu0 %v1950
        %v2044 = vpop.f32.mrf.mxu0
        %v2045 = vadd.f32 0.0, %v2044
        %v2046 = vpop.f32.mrf.mxu0
        %2047 = vmatprep.mubr.f32.mxu0 %v1953
        %2048 = vmatmul.mubr.f32.gmra.mxu0 %v1952
        %v2049 = vpop.f32.mrf.mxu0
        %v2050 = vadd.f32 0.0, %v2049
        %v2051 = vpop.f32.mrf.mxu0
        %2052 = vmatprep.mubr.f32.mxu0 %v1955
        %2053 = vmatmul.mubr.f32.gmra.mxu0 %v1954
        %v2054 = vpop.f32.mrf.mxu0
        %v2055 = vadd.f32 0.0, %v2054
        %v2056 = vpop.f32.mrf.mxu0
        %2057 = vmatprep.mubr.f32.mxu0 %v1957
        %2058 = vmatmul.mubr.f32.gmra.mxu0 %v1956
        %v2059 = vpop.f32.mrf.mxu0
        %v2060 = vadd.f32 0.0, %v2059
        %v2061 = vpop.f32.mrf.mxu0
        %2062 = vdwg.mxu0
        %s2063 = scalar_lea.vmem [#allocation7], 256
        %v2064 = vld [vmem:[%s2063] sm:$0xff]
        %v2065 = vld [vmem:[%s2063 + $0x8] sm:$0xff]
        %v2066 = vld [vmem:[%s2063 + $0x10] sm:$0xff]
        %v2067 = vld [vmem:[%s2063 + $0x18] sm:$0xff]
        %v2068 = vld [vmem:[%s2063 + $0x20] sm:$0xff]
        %v2069 = vld [vmem:[%s2063 + $0x28] sm:$0xff]
        %v2070 = vld [vmem:[%s2063 + $0x30] sm:$0xff]
        %v2071 = vld [vmem:[%s2063 + $0x38] sm:$0xff]
        %v2073 = vsel %vm664, %v2025, 0
        %v2076 = vsel %vm664, %v2030, 0
        %v2079 = vsel %vm664, %v2035, 0
        %v2082 = vsel %vm664, %v2040, 0
        %v2085 = vsel %vm664, %v2045, 0
        %v2088 = vsel %vm664, %v2050, 0
        %v2091 = vsel %vm664, %v2055, 0
        %v2094 = vsel %vm664, %v2060, 0
        %2096 = vmatprep.subr.mxu0 0.0
        %2097 = vmatpush1.msra.mxu0 0.0
        %2098 = vmatprep.subr.mxu0 0.0
        %2099 = vmatpush1.msra.mxu0 0.0
        %2100 = vmatprep.subr.mxu0 0.0
        %2101 = vmatpush1.msra.mxu0 0.0
        %2102 = vmatprep.subr.mxu0 0.0
        %2103 = vmatpush1.msra.mxu0 0.0
        %2104 = vmatprep.subr.mxu0 0.0
        %2105 = vmatpush1.msra.mxu0 0.0
        %2106 = vmatprep.subr.mxu0 0.0
        %2107 = vmatpush1.msra.mxu0 0.0
        %2108 = vmatprep.subr.mxu0 0.0
        %2109 = vmatpush1.msra.mxu0 0.0
        %2110 = vmatprep.subr.mxu0 0.0
        %2111 = vmatpush1.msra.mxu0 0.0
        %2112 = vmatprep.subr.mxu0 0.0
        %2113 = vmatpush1.msra.mxu0 %v2071
        %2114 = vmatprep.subr.mxu0 0.0
        %2115 = vmatpush1.msra.mxu0 %v2070
        %2116 = vmatprep.subr.mxu0 0.0
        %2117 = vmatpush1.msra.mxu0 %v2069
        %2118 = vmatprep.subr.mxu0 0.0
        %2119 = vmatpush1.msra.mxu0 %v2068
        %2120 = vmatprep.subr.mxu0 0.0
        %2121 = vmatpush1.msra.mxu0 %v2067
        %2122 = vmatprep.subr.mxu0 0.0
        %2123 = vmatpush1.msra.mxu0 %v2066
        %2124 = vmatprep.subr.mxu0 0.0
        %2125 = vmatpush1.msra.mxu0 %v2065
        %2126 = vmatprep.subr.mxu0 0.0
        %2127 = vmatpush1.msra.mxu0 %v2064
        %2128 = vmatprep.subr.mxu0 0.0
        %2129 = vmatpush2.msra.mxu0 0.0
        %2130 = vmatprep.subr.mxu0 0.0
        %2131 = vmatpush2.msra.mxu0 0.0
        %2132 = vmatprep.subr.mxu0 0.0
        %2133 = vmatpush2.msra.mxu0 0.0
        %2134 = vmatprep.subr.mxu0 0.0
        %2135 = vmatpush2.msra.mxu0 0.0
        %2136 = vmatprep.subr.mxu0 0.0
        %2137 = vmatpush2.msra.mxu0 0.0
        %2138 = vmatprep.subr.mxu0 0.0
        %2139 = vmatpush2.msra.mxu0 0.0
        %2140 = vmatprep.subr.mxu0 0.0
        %2141 = vmatpush2.msra.mxu0 0.0
        %2142 = vmatprep.subr.mxu0 0.0
        %2143 = vmatpush2.msra.mxu0 0.0
        %2144 = vmatprep.subr.mxu0 0.0
        %2145 = vmatpush2.msra.mxu0 0.0
        %2146 = vmatprep.subr.mxu0 0.0
        %2147 = vmatpush2.msra.mxu0 0.0
        %2148 = vmatprep.subr.mxu0 0.0
        %2149 = vmatpush2.msra.mxu0 0.0
        %2150 = vmatprep.subr.mxu0 0.0
        %2151 = vmatpush2.msra.mxu0 0.0
        %2152 = vmatprep.subr.mxu0 0.0
        %2153 = vmatpush2.msra.mxu0 0.0
        %2154 = vmatprep.subr.mxu0 0.0
        %2155 = vmatpush2.msra.mxu0 0.0
        %2156 = vmatprep.subr.mxu0 0.0
        %2157 = vmatpush2.msra.mxu0 0.0
        %2158 = vmatprep.subr.mxu0 0.0
        %2159 = vmatpush2.msra.mxu0 0.0
        %2160 = vmatprep.mubr.f32.mxu0 0.0
        %2161 = vmatmul.mubr.f32.gmra.mxu0 %v2073
        %v2162 = vpop.f32.mrf.mxu0
        %v2163 = vadd.f32 0.0, %v2162
        %v2164 = vpop.f32.mrf.mxu0
        %2165 = vmatprep.mubr.f32.mxu0 0.0
        %2166 = vmatmul.mubr.f32.gmra.mxu0 %v2076
        %v2167 = vpop.f32.mrf.mxu0
        %v2168 = vadd.f32 0.0, %v2167
        %v2169 = vpop.f32.mrf.mxu0
        %2170 = vmatprep.mubr.f32.mxu0 0.0
        %2171 = vmatmul.mubr.f32.gmra.mxu0 %v2079
        %v2172 = vpop.f32.mrf.mxu0
        %v2173 = vadd.f32 0.0, %v2172
        %v2174 = vpop.f32.mrf.mxu0
        %2175 = vmatprep.mubr.f32.mxu0 0.0
        %2176 = vmatmul.mubr.f32.gmra.mxu0 %v2082
        %v2177 = vpop.f32.mrf.mxu0
        %v2178 = vadd.f32 0.0, %v2177
        %v2179 = vpop.f32.mrf.mxu0
        %2180 = vmatprep.mubr.f32.mxu0 0.0
        %2181 = vmatmul.mubr.f32.gmra.mxu0 %v2085
        %v2182 = vpop.f32.mrf.mxu0
        %v2183 = vadd.f32 0.0, %v2182
        %v2184 = vpop.f32.mrf.mxu0
        %2185 = vmatprep.mubr.f32.mxu0 0.0
        %2186 = vmatmul.mubr.f32.gmra.mxu0 %v2088
        %v2187 = vpop.f32.mrf.mxu0
        %v2188 = vadd.f32 0.0, %v2187
        %v2189 = vpop.f32.mrf.mxu0
        %2190 = vmatprep.mubr.f32.mxu0 0.0
        %2191 = vmatmul.mubr.f32.gmra.mxu0 %v2091
        %v2192 = vpop.f32.mrf.mxu0
        %v2193 = vadd.f32 0.0, %v2192
        %v2194 = vpop.f32.mrf.mxu0
        %2195 = vmatprep.mubr.f32.mxu0 0.0
        %2196 = vmatmul.mubr.f32.gmra.mxu0 %v2094
        %v2197 = vpop.f32.mrf.mxu0
        %v2198 = vadd.f32 0.0, %v2197
        %v2199 = vpop.f32.mrf.mxu0
        %2200 = vdwg.mxu0
        %v2201 = vadd.f32 %v1933, %v2163
        %v2202 = vadd.f32 %v1934, %v2168
        %v2203 = vadd.f32 %v1935, %v2173
        %v2204 = vadd.f32 %v1936, %v2178
        %v2205 = vadd.f32 %v1937, %v2183
        %v2206 = vadd.f32 %v1938, %v2188
        %v2207 = vadd.f32 %v1939, %v2193
        %v2208 = vadd.f32 %v1940, %v2198
        %s2209 = scalar_lea.vmem [#allocation5], 640
        %v2210 = vld [vmem:[%s2209] sm:$0xff]
        %v2211 = vld [vmem:[%s2209 + $0x8] sm:$0xff]
        %v2212 = vld [vmem:[%s2209 + $0x10] sm:$0xff]
        %v2213 = vld [vmem:[%s2209 + $0x18] sm:$0xff]
        %v2214 = vld [vmem:[%s2209 + $0x20] sm:$0xff]
        %v2215 = vld [vmem:[%s2209 + $0x28] sm:$0xff]
        %v2216 = vld [vmem:[%s2209 + $0x30] sm:$0xff]
        %v2217 = vld [vmem:[%s2209 + $0x38] sm:$0xff]
        %v2218 = vld [vmem:[%s2209 + $0x40] sm:$0xff]
        %v2219 = vld [vmem:[%s2209 + $0x48] sm:$0xff]
        %v2220 = vld [vmem:[%s2209 + $0x50] sm:$0xff]
        %v2221 = vld [vmem:[%s2209 + $0x58] sm:$0xff]
        %v2222 = vld [vmem:[%s2209 + $0x60] sm:$0xff]
        %v2223 = vld [vmem:[%s2209 + $0x68] sm:$0xff]
        %v2224 = vld [vmem:[%s2209 + $0x70] sm:$0xff]
        %v2225 = vld [vmem:[%s2209 + $0x78] sm:$0xff]
        %2226 = vmatprep.subr.mxu0 0.0
        %2227 = vmatpush1.msra.mxu0 %v870
        %2228 = vmatprep.subr.mxu0 0.0
        %2229 = vmatpush1.msra.mxu0 %v869
        %2230 = vmatprep.subr.mxu0 0.0
        %2231 = vmatpush1.msra.mxu0 %v868
        %2232 = vmatprep.subr.mxu0 0.0
        %2233 = vmatpush1.msra.mxu0 %v867
        %2234 = vmatprep.subr.mxu0 0.0
        %2235 = vmatpush1.msra.mxu0 %v866
        %2236 = vmatprep.subr.mxu0 0.0
        %2237 = vmatpush1.msra.mxu0 %v865
        %2238 = vmatprep.subr.mxu0 0.0
        %2239 = vmatpush1.msra.mxu0 %v864
        %2240 = vmatprep.subr.mxu0 0.0
        %2241 = vmatpush1.msra.mxu0 %v863
        %2242 = vmatprep.subr.mxu0 0.0
        %2243 = vmatpush1.msra.mxu0 %v862
        %2244 = vmatprep.subr.mxu0 0.0
        %2245 = vmatpush1.msra.mxu0 %v861
        %2246 = vmatprep.subr.mxu0 0.0
        %2247 = vmatpush1.msra.mxu0 %v860
        %2248 = vmatprep.subr.mxu0 0.0
        %2249 = vmatpush1.msra.mxu0 %v859
        %2250 = vmatprep.subr.mxu0 0.0
        %2251 = vmatpush1.msra.mxu0 %v858
        %2252 = vmatprep.subr.mxu0 0.0
        %2253 = vmatpush1.msra.mxu0 %v857
        %2254 = vmatprep.subr.mxu0 0.0
        %2255 = vmatpush1.msra.mxu0 %v856
        %2256 = vmatprep.subr.mxu0 0.0
        %2257 = vmatpush1.msra.mxu0 %v855
        %2258 = vmatprep.subr.mxu0 0.0
        %2259 = vmatpush2.msra.mxu0 %v886
        %2260 = vmatprep.subr.mxu0 0.0
        %2261 = vmatpush2.msra.mxu0 %v885
        %2262 = vmatprep.subr.mxu0 0.0
        %2263 = vmatpush2.msra.mxu0 %v884
        %2264 = vmatprep.subr.mxu0 0.0
        %2265 = vmatpush2.msra.mxu0 %v883
        %2266 = vmatprep.subr.mxu0 0.0
        %2267 = vmatpush2.msra.mxu0 %v882
        %2268 = vmatprep.subr.mxu0 0.0
        %2269 = vmatpush2.msra.mxu0 %v881
        %2270 = vmatprep.subr.mxu0 0.0
        %2271 = vmatpush2.msra.mxu0 %v880
        %2272 = vmatprep.subr.mxu0 0.0
        %2273 = vmatpush2.msra.mxu0 %v879
        %2274 = vmatprep.subr.mxu0 0.0
        %2275 = vmatpush2.msra.mxu0 %v878
        %2276 = vmatprep.subr.mxu0 0.0
        %2277 = vmatpush2.msra.mxu0 %v877
        %2278 = vmatprep.subr.mxu0 0.0
        %2279 = vmatpush2.msra.mxu0 %v876
        %2280 = vmatprep.subr.mxu0 0.0
        %2281 = vmatpush2.msra.mxu0 %v875
        %2282 = vmatprep.subr.mxu0 0.0
        %2283 = vmatpush2.msra.mxu0 %v874
        %2284 = vmatprep.subr.mxu0 0.0
        %2285 = vmatpush2.msra.mxu0 %v873
        %2286 = vmatprep.subr.mxu0 0.0
        %2287 = vmatpush2.msra.mxu0 %v872
        %2288 = vmatprep.subr.mxu0 0.0
        %2289 = vmatpush2.msra.mxu0 %v871
        %2290 = vmatprep.mubr.f32.mxu0 %v2211
        %2291 = vmatmul.mubr.f32.gmra.mxu0 %v2210
        %v2292 = vpop.f32.mrf.mxu0
        %v2293 = vadd.f32 0.0, %v2292
        %v2294 = vpop.f32.mrf.mxu0
        %2295 = vmatprep.mubr.f32.mxu0 %v2213
        %2296 = vmatmul.mubr.f32.gmra.mxu0 %v2212
        %v2297 = vpop.f32.mrf.mxu0
        %v2298 = vadd.f32 0.0, %v2297
        %v2299 = vpop.f32.mrf.mxu0
        %2300 = vmatprep.mubr.f32.mxu0 %v2215
        %2301 = vmatmul.mubr.f32.gmra.mxu0 %v2214
        %v2302 = vpop.f32.mrf.mxu0
        %v2303 = vadd.f32 0.0, %v2302
        %v2304 = vpop.f32.mrf.mxu0
        %2305 = vmatprep.mubr.f32.mxu0 %v2217
        %2306 = vmatmul.mubr.f32.gmra.mxu0 %v2216
        %v2307 = vpop.f32.mrf.mxu0
        %v2308 = vadd.f32 0.0, %v2307
        %v2309 = vpop.f32.mrf.mxu0
        %2310 = vmatprep.mubr.f32.mxu0 %v2219
        %2311 = vmatmul.mubr.f32.gmra.mxu0 %v2218
        %v2312 = vpop.f32.mrf.mxu0
        %v2313 = vadd.f32 0.0, %v2312
        %v2314 = vpop.f32.mrf.mxu0
        %2315 = vmatprep.mubr.f32.mxu0 %v2221
        %2316 = vmatmul.mubr.f32.gmra.mxu0 %v2220
        %v2317 = vpop.f32.mrf.mxu0
        %v2318 = vadd.f32 0.0, %v2317
        %v2319 = vpop.f32.mrf.mxu0
        %2320 = vmatprep.mubr.f32.mxu0 %v2223
        %2321 = vmatmul.mubr.f32.gmra.mxu0 %v2222
        %v2322 = vpop.f32.mrf.mxu0
        %v2323 = vadd.f32 0.0, %v2322
        %v2324 = vpop.f32.mrf.mxu0
        %2325 = vmatprep.mubr.f32.mxu0 %v2225
        %2326 = vmatmul.mubr.f32.gmra.mxu0 %v2224
        %v2327 = vpop.f32.mrf.mxu0
        %v2328 = vadd.f32 0.0, %v2327
        %v2329 = vpop.f32.mrf.mxu0
        %2330 = vdwg.mxu0
        %s2331 = scalar_lea.vmem [#allocation7], 320
        %v2332 = vld [vmem:[%s2331] sm:$0xff]
        %v2333 = vld [vmem:[%s2331 + $0x8] sm:$0xff]
        %v2334 = vld [vmem:[%s2331 + $0x10] sm:$0xff]
        %v2335 = vld [vmem:[%s2331 + $0x18] sm:$0xff]
        %v2336 = vld [vmem:[%s2331 + $0x20] sm:$0xff]
        %v2337 = vld [vmem:[%s2331 + $0x28] sm:$0xff]
        %v2338 = vld [vmem:[%s2331 + $0x30] sm:$0xff]
        %v2339 = vld [vmem:[%s2331 + $0x38] sm:$0xff]
        %v2341 = vsel %vm664, %v2293, 0
        %v2344 = vsel %vm664, %v2298, 0
        %v2347 = vsel %vm664, %v2303, 0
        %v2350 = vsel %vm664, %v2308, 0
        %v2353 = vsel %vm664, %v2313, 0
        %v2356 = vsel %vm664, %v2318, 0
        %v2359 = vsel %vm664, %v2323, 0
        %v2362 = vsel %vm664, %v2328, 0
        %2364 = vmatprep.subr.mxu0 0.0
        %2365 = vmatpush1.msra.mxu0 0.0
        %2366 = vmatprep.subr.mxu0 0.0
        %2367 = vmatpush1.msra.mxu0 0.0
        %2368 = vmatprep.subr.mxu0 0.0
        %2369 = vmatpush1.msra.mxu0 0.0
        %2370 = vmatprep.subr.mxu0 0.0
        %2371 = vmatpush1.msra.mxu0 0.0
        %2372 = vmatprep.subr.mxu0 0.0
        %2373 = vmatpush1.msra.mxu0 0.0
        %2374 = vmatprep.subr.mxu0 0.0
        %2375 = vmatpush1.msra.mxu0 0.0
        %2376 = vmatprep.subr.mxu0 0.0
        %2377 = vmatpush1.msra.mxu0 0.0
        %2378 = vmatprep.subr.mxu0 0.0
        %2379 = vmatpush1.msra.mxu0 0.0
        %2380 = vmatprep.subr.mxu0 0.0
        %2381 = vmatpush1.msra.mxu0 %v2339
        %2382 = vmatprep.subr.mxu0 0.0
        %2383 = vmatpush1.msra.mxu0 %v2338
        %2384 = vmatprep.subr.mxu0 0.0
        %2385 = vmatpush1.msra.mxu0 %v2337
        %2386 = vmatprep.subr.mxu0 0.0
        %2387 = vmatpush1.msra.mxu0 %v2336
        %2388 = vmatprep.subr.mxu0 0.0
        %2389 = vmatpush1.msra.mxu0 %v2335
        %2390 = vmatprep.subr.mxu0 0.0
        %2391 = vmatpush1.msra.mxu0 %v2334
        %2392 = vmatprep.subr.mxu0 0.0
        %2393 = vmatpush1.msra.mxu0 %v2333
        %2394 = vmatprep.subr.mxu0 0.0
        %2395 = vmatpush1.msra.mxu0 %v2332
        %2396 = vmatprep.subr.mxu0 0.0
        %2397 = vmatpush2.msra.mxu0 0.0
        %2398 = vmatprep.subr.mxu0 0.0
        %2399 = vmatpush2.msra.mxu0 0.0
        %2400 = vmatprep.subr.mxu0 0.0
        %2401 = vmatpush2.msra.mxu0 0.0
        %2402 = vmatprep.subr.mxu0 0.0
        %2403 = vmatpush2.msra.mxu0 0.0
        %2404 = vmatprep.subr.mxu0 0.0
        %2405 = vmatpush2.msra.mxu0 0.0
        %2406 = vmatprep.subr.mxu0 0.0
        %2407 = vmatpush2.msra.mxu0 0.0
        %2408 = vmatprep.subr.mxu0 0.0
        %2409 = vmatpush2.msra.mxu0 0.0
        %2410 = vmatprep.subr.mxu0 0.0
        %2411 = vmatpush2.msra.mxu0 0.0
        %2412 = vmatprep.subr.mxu0 0.0
        %2413 = vmatpush2.msra.mxu0 0.0
        %2414 = vmatprep.subr.mxu0 0.0
        %2415 = vmatpush2.msra.mxu0 0.0
        %2416 = vmatprep.subr.mxu0 0.0
        %2417 = vmatpush2.msra.mxu0 0.0
        %2418 = vmatprep.subr.mxu0 0.0
        %2419 = vmatpush2.msra.mxu0 0.0
        %2420 = vmatprep.subr.mxu0 0.0
        %2421 = vmatpush2.msra.mxu0 0.0
        %2422 = vmatprep.subr.mxu0 0.0
        %2423 = vmatpush2.msra.mxu0 0.0
        %2424 = vmatprep.subr.mxu0 0.0
        %2425 = vmatpush2.msra.mxu0 0.0
        %2426 = vmatprep.subr.mxu0 0.0
        %2427 = vmatpush2.msra.mxu0 0.0
        %2428 = vmatprep.mubr.f32.mxu0 0.0
        %2429 = vmatmul.mubr.f32.gmra.mxu0 %v2341
        %v2430 = vpop.f32.mrf.mxu0
        %v2431 = vadd.f32 0.0, %v2430
        %v2432 = vpop.f32.mrf.mxu0
        %2433 = vmatprep.mubr.f32.mxu0 0.0
        %2434 = vmatmul.mubr.f32.gmra.mxu0 %v2344
        %v2435 = vpop.f32.mrf.mxu0
        %v2436 = vadd.f32 0.0, %v2435
        %v2437 = vpop.f32.mrf.mxu0
        %2438 = vmatprep.mubr.f32.mxu0 0.0
        %2439 = vmatmul.mubr.f32.gmra.mxu0 %v2347
        %v2440 = vpop.f32.mrf.mxu0
        %v2441 = vadd.f32 0.0, %v2440
        %v2442 = vpop.f32.mrf.mxu0
        %2443 = vmatprep.mubr.f32.mxu0 0.0
        %2444 = vmatmul.mubr.f32.gmra.mxu0 %v2350
        %v2445 = vpop.f32.mrf.mxu0
        %v2446 = vadd.f32 0.0, %v2445
        %v2447 = vpop.f32.mrf.mxu0
        %2448 = vmatprep.mubr.f32.mxu0 0.0
        %2449 = vmatmul.mubr.f32.gmra.mxu0 %v2353
        %v2450 = vpop.f32.mrf.mxu0
        %v2451 = vadd.f32 0.0, %v2450
        %v2452 = vpop.f32.mrf.mxu0
        %2453 = vmatprep.mubr.f32.mxu0 0.0
        %2454 = vmatmul.mubr.f32.gmra.mxu0 %v2356
        %v2455 = vpop.f32.mrf.mxu0
        %v2456 = vadd.f32 0.0, %v2455
        %v2457 = vpop.f32.mrf.mxu0
        %2458 = vmatprep.mubr.f32.mxu0 0.0
        %2459 = vmatmul.mubr.f32.gmra.mxu0 %v2359
        %v2460 = vpop.f32.mrf.mxu0
        %v2461 = vadd.f32 0.0, %v2460
        %v2462 = vpop.f32.mrf.mxu0
        %2463 = vmatprep.mubr.f32.mxu0 0.0
        %2464 = vmatmul.mubr.f32.gmra.mxu0 %v2362
        %v2465 = vpop.f32.mrf.mxu0
        %v2466 = vadd.f32 0.0, %v2465
        %v2467 = vpop.f32.mrf.mxu0
        %2468 = vdwg.mxu0
        %v2469 = vadd.f32 %v2201, %v2431
        %v2470 = vadd.f32 %v2202, %v2436
        %v2471 = vadd.f32 %v2203, %v2441
        %v2472 = vadd.f32 %v2204, %v2446
        %v2473 = vadd.f32 %v2205, %v2451
        %v2474 = vadd.f32 %v2206, %v2456
        %v2475 = vadd.f32 %v2207, %v2461
        %v2476 = vadd.f32 %v2208, %v2466
        %s2477 = scalar_lea.vmem [#allocation5], 768
        %v2478 = vld [vmem:[%s2477] sm:$0xff]
        %v2479 = vld [vmem:[%s2477 + $0x8] sm:$0xff]
        %v2480 = vld [vmem:[%s2477 + $0x10] sm:$0xff]
        %v2481 = vld [vmem:[%s2477 + $0x18] sm:$0xff]
        %v2482 = vld [vmem:[%s2477 + $0x20] sm:$0xff]
        %v2483 = vld [vmem:[%s2477 + $0x28] sm:$0xff]
        %v2484 = vld [vmem:[%s2477 + $0x30] sm:$0xff]
        %v2485 = vld [vmem:[%s2477 + $0x38] sm:$0xff]
        %v2486 = vld [vmem:[%s2477 + $0x40] sm:$0xff]
        %v2487 = vld [vmem:[%s2477 + $0x48] sm:$0xff]
        %v2488 = vld [vmem:[%s2477 + $0x50] sm:$0xff]
        %v2489 = vld [vmem:[%s2477 + $0x58] sm:$0xff]
        %v2490 = vld [vmem:[%s2477 + $0x60] sm:$0xff]
        %v2491 = vld [vmem:[%s2477 + $0x68] sm:$0xff]
        %v2492 = vld [vmem:[%s2477 + $0x70] sm:$0xff]
        %v2493 = vld [vmem:[%s2477 + $0x78] sm:$0xff]
        %2494 = vmatprep.subr.mxu0 0.0
        %2495 = vmatpush1.msra.mxu0 %v870
        %2496 = vmatprep.subr.mxu0 0.0
        %2497 = vmatpush1.msra.mxu0 %v869
        %2498 = vmatprep.subr.mxu0 0.0
        %2499 = vmatpush1.msra.mxu0 %v868
        %2500 = vmatprep.subr.mxu0 0.0
        %2501 = vmatpush1.msra.mxu0 %v867
        %2502 = vmatprep.subr.mxu0 0.0
        %2503 = vmatpush1.msra.mxu0 %v866
        %2504 = vmatprep.subr.mxu0 0.0
        %2505 = vmatpush1.msra.mxu0 %v865
        %2506 = vmatprep.subr.mxu0 0.0
        %2507 = vmatpush1.msra.mxu0 %v864
        %2508 = vmatprep.subr.mxu0 0.0
        %2509 = vmatpush1.msra.mxu0 %v863
        %2510 = vmatprep.subr.mxu0 0.0
        %2511 = vmatpush1.msra.mxu0 %v862
        %2512 = vmatprep.subr.mxu0 0.0
        %2513 = vmatpush1.msra.mxu0 %v861
        %2514 = vmatprep.subr.mxu0 0.0
        %2515 = vmatpush1.msra.mxu0 %v860
        %2516 = vmatprep.subr.mxu0 0.0
        %2517 = vmatpush1.msra.mxu0 %v859
        %2518 = vmatprep.subr.mxu0 0.0
        %2519 = vmatpush1.msra.mxu0 %v858
        %2520 = vmatprep.subr.mxu0 0.0
        %2521 = vmatpush1.msra.mxu0 %v857
        %2522 = vmatprep.subr.mxu0 0.0
        %2523 = vmatpush1.msra.mxu0 %v856
        %2524 = vmatprep.subr.mxu0 0.0
        %2525 = vmatpush1.msra.mxu0 %v855
        %2526 = vmatprep.subr.mxu0 0.0
        %2527 = vmatpush2.msra.mxu0 %v886
        %2528 = vmatprep.subr.mxu0 0.0
        %2529 = vmatpush2.msra.mxu0 %v885
        %2530 = vmatprep.subr.mxu0 0.0
        %2531 = vmatpush2.msra.mxu0 %v884
        %2532 = vmatprep.subr.mxu0 0.0
        %2533 = vmatpush2.msra.mxu0 %v883
        %2534 = vmatprep.subr.mxu0 0.0
        %2535 = vmatpush2.msra.mxu0 %v882
        %2536 = vmatprep.subr.mxu0 0.0
        %2537 = vmatpush2.msra.mxu0 %v881
        %2538 = vmatprep.subr.mxu0 0.0
        %2539 = vmatpush2.msra.mxu0 %v880
        %2540 = vmatprep.subr.mxu0 0.0
        %2541 = vmatpush2.msra.mxu0 %v879
        %2542 = vmatprep.subr.mxu0 0.0
        %2543 = vmatpush2.msra.mxu0 %v878
        %2544 = vmatprep.subr.mxu0 0.0
        %2545 = vmatpush2.msra.mxu0 %v877
        %2546 = vmatprep.subr.mxu0 0.0
        %2547 = vmatpush2.msra.mxu0 %v876
        %2548 = vmatprep.subr.mxu0 0.0
        %2549 = vmatpush2.msra.mxu0 %v875
        %2550 = vmatprep.subr.mxu0 0.0
        %2551 = vmatpush2.msra.mxu0 %v874
        %2552 = vmatprep.subr.mxu0 0.0
        %2553 = vmatpush2.msra.mxu0 %v873
        %2554 = vmatprep.subr.mxu0 0.0
        %2555 = vmatpush2.msra.mxu0 %v872
        %2556 = vmatprep.subr.mxu0 0.0
        %2557 = vmatpush2.msra.mxu0 %v871
        %2558 = vmatprep.mubr.f32.mxu0 %v2479
        %2559 = vmatmul.mubr.f32.gmra.mxu0 %v2478
        %v2560 = vpop.f32.mrf.mxu0
        %v2561 = vadd.f32 0.0, %v2560
        %v2562 = vpop.f32.mrf.mxu0
        %2563 = vmatprep.mubr.f32.mxu0 %v2481
        %2564 = vmatmul.mubr.f32.gmra.mxu0 %v2480
        %v2565 = vpop.f32.mrf.mxu0
        %v2566 = vadd.f32 0.0, %v2565
        %v2567 = vpop.f32.mrf.mxu0
        %2568 = vmatprep.mubr.f32.mxu0 %v2483
        %2569 = vmatmul.mubr.f32.gmra.mxu0 %v2482
        %v2570 = vpop.f32.mrf.mxu0
        %v2571 = vadd.f32 0.0, %v2570
        %v2572 = vpop.f32.mrf.mxu0
        %2573 = vmatprep.mubr.f32.mxu0 %v2485
        %2574 = vmatmul.mubr.f32.gmra.mxu0 %v2484
        %v2575 = vpop.f32.mrf.mxu0
        %v2576 = vadd.f32 0.0, %v2575
        %v2577 = vpop.f32.mrf.mxu0
        %2578 = vmatprep.mubr.f32.mxu0 %v2487
        %2579 = vmatmul.mubr.f32.gmra.mxu0 %v2486
        %v2580 = vpop.f32.mrf.mxu0
        %v2581 = vadd.f32 0.0, %v2580
        %v2582 = vpop.f32.mrf.mxu0
        %2583 = vmatprep.mubr.f32.mxu0 %v2489
        %2584 = vmatmul.mubr.f32.gmra.mxu0 %v2488
        %v2585 = vpop.f32.mrf.mxu0
        %v2586 = vadd.f32 0.0, %v2585
        %v2587 = vpop.f32.mrf.mxu0
        %2588 = vmatprep.mubr.f32.mxu0 %v2491
        %2589 = vmatmul.mubr.f32.gmra.mxu0 %v2490
        %v2590 = vpop.f32.mrf.mxu0
        %v2591 = vadd.f32 0.0, %v2590
        %v2592 = vpop.f32.mrf.mxu0
        %2593 = vmatprep.mubr.f32.mxu0 %v2493
        %2594 = vmatmul.mubr.f32.gmra.mxu0 %v2492
        %v2595 = vpop.f32.mrf.mxu0
        %v2596 = vadd.f32 0.0, %v2595
        %v2597 = vpop.f32.mrf.mxu0
        %2598 = vdwg.mxu0
        %s2599 = scalar_lea.vmem [#allocation7], 384
        %v2600 = vld [vmem:[%s2599] sm:$0xff]
        %v2601 = vld [vmem:[%s2599 + $0x8] sm:$0xff]
        %v2602 = vld [vmem:[%s2599 + $0x10] sm:$0xff]
        %v2603 = vld [vmem:[%s2599 + $0x18] sm:$0xff]
        %v2604 = vld [vmem:[%s2599 + $0x20] sm:$0xff]
        %v2605 = vld [vmem:[%s2599 + $0x28] sm:$0xff]
        %v2606 = vld [vmem:[%s2599 + $0x30] sm:$0xff]
        %v2607 = vld [vmem:[%s2599 + $0x38] sm:$0xff]
        %v2609 = vsel %vm664, %v2561, 0
        %v2612 = vsel %vm664, %v2566, 0
        %v2615 = vsel %vm664, %v2571, 0
        %v2618 = vsel %vm664, %v2576, 0
        %v2621 = vsel %vm664, %v2581, 0
        %v2624 = vsel %vm664, %v2586, 0
        %v2627 = vsel %vm664, %v2591, 0
        %v2630 = vsel %vm664, %v2596, 0
        %2632 = vmatprep.subr.mxu0 0.0
        %2633 = vmatpush1.msra.mxu0 0.0
        %2634 = vmatprep.subr.mxu0 0.0
        %2635 = vmatpush1.msra.mxu0 0.0
        %2636 = vmatprep.subr.mxu0 0.0
        %2637 = vmatpush1.msra.mxu0 0.0
        %2638 = vmatprep.subr.mxu0 0.0
        %2639 = vmatpush1.msra.mxu0 0.0
        %2640 = vmatprep.subr.mxu0 0.0
        %2641 = vmatpush1.msra.mxu0 0.0
        %2642 = vmatprep.subr.mxu0 0.0
        %2643 = vmatpush1.msra.mxu0 0.0
        %2644 = vmatprep.subr.mxu0 0.0
        %2645 = vmatpush1.msra.mxu0 0.0
        %2646 = vmatprep.subr.mxu0 0.0
        %2647 = vmatpush1.msra.mxu0 0.0
        %2648 = vmatprep.subr.mxu0 0.0
        %2649 = vmatpush1.msra.mxu0 %v2607
        %2650 = vmatprep.subr.mxu0 0.0
        %2651 = vmatpush1.msra.mxu0 %v2606
        %2652 = vmatprep.subr.mxu0 0.0
        %2653 = vmatpush1.msra.mxu0 %v2605
        %2654 = vmatprep.subr.mxu0 0.0
        %2655 = vmatpush1.msra.mxu0 %v2604
        %2656 = vmatprep.subr.mxu0 0.0
        %2657 = vmatpush1.msra.mxu0 %v2603
        %2658 = vmatprep.subr.mxu0 0.0
        %2659 = vmatpush1.msra.mxu0 %v2602
        %2660 = vmatprep.subr.mxu0 0.0
        %2661 = vmatpush1.msra.mxu0 %v2601
        %2662 = vmatprep.subr.mxu0 0.0
        %2663 = vmatpush1.msra.mxu0 %v2600
        %2664 = vmatprep.subr.mxu0 0.0
        %2665 = vmatpush2.msra.mxu0 0.0
        %2666 = vmatprep.subr.mxu0 0.0
        %2667 = vmatpush2.msra.mxu0 0.0
        %2668 = vmatprep.subr.mxu0 0.0
        %2669 = vmatpush2.msra.mxu0 0.0
        %2670 = vmatprep.subr.mxu0 0.0
        %2671 = vmatpush2.msra.mxu0 0.0
        %2672 = vmatprep.subr.mxu0 0.0
        %2673 = vmatpush2.msra.mxu0 0.0
        %2674 = vmatprep.subr.mxu0 0.0
        %2675 = vmatpush2.msra.mxu0 0.0
        %2676 = vmatprep.subr.mxu0 0.0
        %2677 = vmatpush2.msra.mxu0 0.0
        %2678 = vmatprep.subr.mxu0 0.0
        %2679 = vmatpush2.msra.mxu0 0.0
        %2680 = vmatprep.subr.mxu0 0.0
        %2681 = vmatpush2.msra.mxu0 0.0
        %2682 = vmatprep.subr.mxu0 0.0
        %2683 = vmatpush2.msra.mxu0 0.0
        %2684 = vmatprep.subr.mxu0 0.0
        %2685 = vmatpush2.msra.mxu0 0.0
        %2686 = vmatprep.subr.mxu0 0.0
        %2687 = vmatpush2.msra.mxu0 0.0
        %2688 = vmatprep.subr.mxu0 0.0
        %2689 = vmatpush2.msra.mxu0 0.0
        %2690 = vmatprep.subr.mxu0 0.0
        %2691 = vmatpush2.msra.mxu0 0.0
        %2692 = vmatprep.subr.mxu0 0.0
        %2693 = vmatpush2.msra.mxu0 0.0
        %2694 = vmatprep.subr.mxu0 0.0
        %2695 = vmatpush2.msra.mxu0 0.0
        %2696 = vmatprep.mubr.f32.mxu0 0.0
        %2697 = vmatmul.mubr.f32.gmra.mxu0 %v2609
        %v2698 = vpop.f32.mrf.mxu0
        %v2699 = vadd.f32 0.0, %v2698
        %v2700 = vpop.f32.mrf.mxu0
        %2701 = vmatprep.mubr.f32.mxu0 0.0
        %2702 = vmatmul.mubr.f32.gmra.mxu0 %v2612
        %v2703 = vpop.f32.mrf.mxu0
        %v2704 = vadd.f32 0.0, %v2703
        %v2705 = vpop.f32.mrf.mxu0
        %2706 = vmatprep.mubr.f32.mxu0 0.0
        %2707 = vmatmul.mubr.f32.gmra.mxu0 %v2615
        %v2708 = vpop.f32.mrf.mxu0
        %v2709 = vadd.f32 0.0, %v2708
        %v2710 = vpop.f32.mrf.mxu0
        %2711 = vmatprep.mubr.f32.mxu0 0.0
        %2712 = vmatmul.mubr.f32.gmra.mxu0 %v2618
        %v2713 = vpop.f32.mrf.mxu0
        %v2714 = vadd.f32 0.0, %v2713
        %v2715 = vpop.f32.mrf.mxu0
        %2716 = vmatprep.mubr.f32.mxu0 0.0
        %2717 = vmatmul.mubr.f32.gmra.mxu0 %v2621
        %v2718 = vpop.f32.mrf.mxu0
        %v2719 = vadd.f32 0.0, %v2718
        %v2720 = vpop.f32.mrf.mxu0
        %2721 = vmatprep.mubr.f32.mxu0 0.0
        %2722 = vmatmul.mubr.f32.gmra.mxu0 %v2624
        %v2723 = vpop.f32.mrf.mxu0
        %v2724 = vadd.f32 0.0, %v2723
        %v2725 = vpop.f32.mrf.mxu0
        %2726 = vmatprep.mubr.f32.mxu0 0.0
        %2727 = vmatmul.mubr.f32.gmra.mxu0 %v2627
        %v2728 = vpop.f32.mrf.mxu0
        %v2729 = vadd.f32 0.0, %v2728
        %v2730 = vpop.f32.mrf.mxu0
        %2731 = vmatprep.mubr.f32.mxu0 0.0
        %2732 = vmatmul.mubr.f32.gmra.mxu0 %v2630
        %v2733 = vpop.f32.mrf.mxu0
        %v2734 = vadd.f32 0.0, %v2733
        %v2735 = vpop.f32.mrf.mxu0
        %2736 = vdwg.mxu0
        %v2737 = vadd.f32 %v2469, %v2699
        %v2738 = vadd.f32 %v2470, %v2704
        %v2739 = vadd.f32 %v2471, %v2709
        %v2740 = vadd.f32 %v2472, %v2714
        %v2741 = vadd.f32 %v2473, %v2719
        %v2742 = vadd.f32 %v2474, %v2724
        %v2743 = vadd.f32 %v2475, %v2729
        %v2744 = vadd.f32 %v2476, %v2734
        %s2745 = scalar_lea.vmem [#allocation5], 896
        %v2746 = vld [vmem:[%s2745] sm:$0xff]
        %v2747 = vld [vmem:[%s2745 + $0x8] sm:$0xff]
        %v2748 = vld [vmem:[%s2745 + $0x10] sm:$0xff]
        %v2749 = vld [vmem:[%s2745 + $0x18] sm:$0xff]
        %v2750 = vld [vmem:[%s2745 + $0x20] sm:$0xff]
        %v2751 = vld [vmem:[%s2745 + $0x28] sm:$0xff]
        %v2752 = vld [vmem:[%s2745 + $0x30] sm:$0xff]
        %v2753 = vld [vmem:[%s2745 + $0x38] sm:$0xff]
        %v2754 = vld [vmem:[%s2745 + $0x40] sm:$0xff]
        %v2755 = vld [vmem:[%s2745 + $0x48] sm:$0xff]
        %v2756 = vld [vmem:[%s2745 + $0x50] sm:$0xff]
        %v2757 = vld [vmem:[%s2745 + $0x58] sm:$0xff]
        %v2758 = vld [vmem:[%s2745 + $0x60] sm:$0xff]
        %v2759 = vld [vmem:[%s2745 + $0x68] sm:$0xff]
        %v2760 = vld [vmem:[%s2745 + $0x70] sm:$0xff]
        %v2761 = vld [vmem:[%s2745 + $0x78] sm:$0xff]
        %2762 = vmatprep.subr.mxu0 0.0
        %2763 = vmatpush1.msra.mxu0 %v870
        %2764 = vmatprep.subr.mxu0 0.0
        %2765 = vmatpush1.msra.mxu0 %v869
        %2766 = vmatprep.subr.mxu0 0.0
        %2767 = vmatpush1.msra.mxu0 %v868
        %2768 = vmatprep.subr.mxu0 0.0
        %2769 = vmatpush1.msra.mxu0 %v867
        %2770 = vmatprep.subr.mxu0 0.0
        %2771 = vmatpush1.msra.mxu0 %v866
        %2772 = vmatprep.subr.mxu0 0.0
        %2773 = vmatpush1.msra.mxu0 %v865
        %2774 = vmatprep.subr.mxu0 0.0
        %2775 = vmatpush1.msra.mxu0 %v864
        %2776 = vmatprep.subr.mxu0 0.0
        %2777 = vmatpush1.msra.mxu0 %v863
        %2778 = vmatprep.subr.mxu0 0.0
        %2779 = vmatpush1.msra.mxu0 %v862
        %2780 = vmatprep.subr.mxu0 0.0
        %2781 = vmatpush1.msra.mxu0 %v861
        %2782 = vmatprep.subr.mxu0 0.0
        %2783 = vmatpush1.msra.mxu0 %v860
        %2784 = vmatprep.subr.mxu0 0.0
        %2785 = vmatpush1.msra.mxu0 %v859
        %2786 = vmatprep.subr.mxu0 0.0
        %2787 = vmatpush1.msra.mxu0 %v858
        %2788 = vmatprep.subr.mxu0 0.0
        %2789 = vmatpush1.msra.mxu0 %v857
        %2790 = vmatprep.subr.mxu0 0.0
        %2791 = vmatpush1.msra.mxu0 %v856
        %2792 = vmatprep.subr.mxu0 0.0
        %2793 = vmatpush1.msra.mxu0 %v855
        %2794 = vmatprep.subr.mxu0 0.0
        %2795 = vmatpush2.msra.mxu0 %v886
        %2796 = vmatprep.subr.mxu0 0.0
        %2797 = vmatpush2.msra.mxu0 %v885
        %2798 = vmatprep.subr.mxu0 0.0
        %2799 = vmatpush2.msra.mxu0 %v884
        %2800 = vmatprep.subr.mxu0 0.0
        %2801 = vmatpush2.msra.mxu0 %v883
        %2802 = vmatprep.subr.mxu0 0.0
        %2803 = vmatpush2.msra.mxu0 %v882
        %2804 = vmatprep.subr.mxu0 0.0
        %2805 = vmatpush2.msra.mxu0 %v881
        %2806 = vmatprep.subr.mxu0 0.0
        %2807 = vmatpush2.msra.mxu0 %v880
        %2808 = vmatprep.subr.mxu0 0.0
        %2809 = vmatpush2.msra.mxu0 %v879
        %2810 = vmatprep.subr.mxu0 0.0
        %2811 = vmatpush2.msra.mxu0 %v878
        %2812 = vmatprep.subr.mxu0 0.0
        %2813 = vmatpush2.msra.mxu0 %v877
        %2814 = vmatprep.subr.mxu0 0.0
        %2815 = vmatpush2.msra.mxu0 %v876
        %2816 = vmatprep.subr.mxu0 0.0
        %2817 = vmatpush2.msra.mxu0 %v875
        %2818 = vmatprep.subr.mxu0 0.0
        %2819 = vmatpush2.msra.mxu0 %v874
        %2820 = vmatprep.subr.mxu0 0.0
        %2821 = vmatpush2.msra.mxu0 %v873
        %2822 = vmatprep.subr.mxu0 0.0
        %2823 = vmatpush2.msra.mxu0 %v872
        %2824 = vmatprep.subr.mxu0 0.0
        %2825 = vmatpush2.msra.mxu0 %v871
        %2826 = vmatprep.mubr.f32.mxu0 %v2747
        %2827 = vmatmul.mubr.f32.gmra.mxu0 %v2746
        %v2828 = vpop.f32.mrf.mxu0
        %v2829 = vadd.f32 0.0, %v2828
        %v2830 = vpop.f32.mrf.mxu0
        %2831 = vmatprep.mubr.f32.mxu0 %v2749
        %2832 = vmatmul.mubr.f32.gmra.mxu0 %v2748
        %v2833 = vpop.f32.mrf.mxu0
        %v2834 = vadd.f32 0.0, %v2833
        %v2835 = vpop.f32.mrf.mxu0
        %2836 = vmatprep.mubr.f32.mxu0 %v2751
        %2837 = vmatmul.mubr.f32.gmra.mxu0 %v2750
        %v2838 = vpop.f32.mrf.mxu0
        %v2839 = vadd.f32 0.0, %v2838
        %v2840 = vpop.f32.mrf.mxu0
        %2841 = vmatprep.mubr.f32.mxu0 %v2753
        %2842 = vmatmul.mubr.f32.gmra.mxu0 %v2752
        %v2843 = vpop.f32.mrf.mxu0
        %v2844 = vadd.f32 0.0, %v2843
        %v2845 = vpop.f32.mrf.mxu0
        %2846 = vmatprep.mubr.f32.mxu0 %v2755
        %2847 = vmatmul.mubr.f32.gmra.mxu0 %v2754
        %v2848 = vpop.f32.mrf.mxu0
        %v2849 = vadd.f32 0.0, %v2848
        %v2850 = vpop.f32.mrf.mxu0
        %2851 = vmatprep.mubr.f32.mxu0 %v2757
        %2852 = vmatmul.mubr.f32.gmra.mxu0 %v2756
        %v2853 = vpop.f32.mrf.mxu0
        %v2854 = vadd.f32 0.0, %v2853
        %v2855 = vpop.f32.mrf.mxu0
        %2856 = vmatprep.mubr.f32.mxu0 %v2759
        %2857 = vmatmul.mubr.f32.gmra.mxu0 %v2758
        %v2858 = vpop.f32.mrf.mxu0
        %v2859 = vadd.f32 0.0, %v2858
        %v2860 = vpop.f32.mrf.mxu0
        %2861 = vmatprep.mubr.f32.mxu0 %v2761
        %2862 = vmatmul.mubr.f32.gmra.mxu0 %v2760
        %v2863 = vpop.f32.mrf.mxu0
        %v2864 = vadd.f32 0.0, %v2863
        %v2865 = vpop.f32.mrf.mxu0
        %2866 = vdwg.mxu0
        %s2867 = scalar_lea.vmem [#allocation7], 448
        %v2868 = vld [vmem:[%s2867] sm:$0xff]
        %v2869 = vld [vmem:[%s2867 + $0x8] sm:$0xff]
        %v2870 = vld [vmem:[%s2867 + $0x10] sm:$0xff]
        %v2871 = vld [vmem:[%s2867 + $0x18] sm:$0xff]
        %v2872 = vld [vmem:[%s2867 + $0x20] sm:$0xff]
        %v2873 = vld [vmem:[%s2867 + $0x28] sm:$0xff]
        %v2874 = vld [vmem:[%s2867 + $0x30] sm:$0xff]
        %v2875 = vld [vmem:[%s2867 + $0x38] sm:$0xff]
        %v2877 = vsel %vm664, %v2829, 0
        %v2880 = vsel %vm664, %v2834, 0
        %v2883 = vsel %vm664, %v2839, 0
        %v2886 = vsel %vm664, %v2844, 0
        %v2889 = vsel %vm664, %v2849, 0
        %v2892 = vsel %vm664, %v2854, 0
        %v2895 = vsel %vm664, %v2859, 0
        %v2898 = vsel %vm664, %v2864, 0
        %2900 = vmatprep.subr.mxu0 0.0
        %2901 = vmatpush1.msra.mxu0 0.0
        %2902 = vmatprep.subr.mxu0 0.0
        %2903 = vmatpush1.msra.mxu0 0.0
        %2904 = vmatprep.subr.mxu0 0.0
        %2905 = vmatpush1.msra.mxu0 0.0
        %2906 = vmatprep.subr.mxu0 0.0
        %2907 = vmatpush1.msra.mxu0 0.0
        %2908 = vmatprep.subr.mxu0 0.0
        %2909 = vmatpush1.msra.mxu0 0.0
        %2910 = vmatprep.subr.mxu0 0.0
        %2911 = vmatpush1.msra.mxu0 0.0
        %2912 = vmatprep.subr.mxu0 0.0
        %2913 = vmatpush1.msra.mxu0 0.0
        %2914 = vmatprep.subr.mxu0 0.0
        %2915 = vmatpush1.msra.mxu0 0.0
        %2916 = vmatprep.subr.mxu0 0.0
        %2917 = vmatpush1.msra.mxu0 %v2875
        %2918 = vmatprep.subr.mxu0 0.0
        %2919 = vmatpush1.msra.mxu0 %v2874
        %2920 = vmatprep.subr.mxu0 0.0
        %2921 = vmatpush1.msra.mxu0 %v2873
        %2922 = vmatprep.subr.mxu0 0.0
        %2923 = vmatpush1.msra.mxu0 %v2872
        %2924 = vmatprep.subr.mxu0 0.0
        %2925 = vmatpush1.msra.mxu0 %v2871
        %2926 = vmatprep.subr.mxu0 0.0
        %2927 = vmatpush1.msra.mxu0 %v2870
        %2928 = vmatprep.subr.mxu0 0.0
        %2929 = vmatpush1.msra.mxu0 %v2869
        %2930 = vmatprep.subr.mxu0 0.0
        %2931 = vmatpush1.msra.mxu0 %v2868
        %2932 = vmatprep.subr.mxu0 0.0
        %2933 = vmatpush2.msra.mxu0 0.0
        %2934 = vmatprep.subr.mxu0 0.0
        %2935 = vmatpush2.msra.mxu0 0.0
        %2936 = vmatprep.subr.mxu0 0.0
        %2937 = vmatpush2.msra.mxu0 0.0
        %2938 = vmatprep.subr.mxu0 0.0
        %2939 = vmatpush2.msra.mxu0 0.0
        %2940 = vmatprep.subr.mxu0 0.0
        %2941 = vmatpush2.msra.mxu0 0.0
        %2942 = vmatprep.subr.mxu0 0.0
        %2943 = vmatpush2.msra.mxu0 0.0
        %2944 = vmatprep.subr.mxu0 0.0
        %2945 = vmatpush2.msra.mxu0 0.0
        %2946 = vmatprep.subr.mxu0 0.0
        %2947 = vmatpush2.msra.mxu0 0.0
        %2948 = vmatprep.subr.mxu0 0.0
        %2949 = vmatpush2.msra.mxu0 0.0
        %2950 = vmatprep.subr.mxu0 0.0
        %2951 = vmatpush2.msra.mxu0 0.0
        %2952 = vmatprep.subr.mxu0 0.0
        %2953 = vmatpush2.msra.mxu0 0.0
        %2954 = vmatprep.subr.mxu0 0.0
        %2955 = vmatpush2.msra.mxu0 0.0
        %2956 = vmatprep.subr.mxu0 0.0
        %2957 = vmatpush2.msra.mxu0 0.0
        %2958 = vmatprep.subr.mxu0 0.0
        %2959 = vmatpush2.msra.mxu0 0.0
        %2960 = vmatprep.subr.mxu0 0.0
        %2961 = vmatpush2.msra.mxu0 0.0
        %2962 = vmatprep.subr.mxu0 0.0
        %2963 = vmatpush2.msra.mxu0 0.0
        %2964 = vmatprep.mubr.f32.mxu0 0.0
        %2965 = vmatmul.mubr.f32.gmra.mxu0 %v2877
        %v2966 = vpop.f32.mrf.mxu0
        %v2967 = vadd.f32 0.0, %v2966
        %v2968 = vpop.f32.mrf.mxu0
        %2969 = vmatprep.mubr.f32.mxu0 0.0
        %2970 = vmatmul.mubr.f32.gmra.mxu0 %v2880
        %v2971 = vpop.f32.mrf.mxu0
        %v2972 = vadd.f32 0.0, %v2971
        %v2973 = vpop.f32.mrf.mxu0
        %2974 = vmatprep.mubr.f32.mxu0 0.0
        %2975 = vmatmul.mubr.f32.gmra.mxu0 %v2883
        %v2976 = vpop.f32.mrf.mxu0
        %v2977 = vadd.f32 0.0, %v2976
        %v2978 = vpop.f32.mrf.mxu0
        %2979 = vmatprep.mubr.f32.mxu0 0.0
        %2980 = vmatmul.mubr.f32.gmra.mxu0 %v2886
        %v2981 = vpop.f32.mrf.mxu0
        %v2982 = vadd.f32 0.0, %v2981
        %v2983 = vpop.f32.mrf.mxu0
        %2984 = vmatprep.mubr.f32.mxu0 0.0
        %2985 = vmatmul.mubr.f32.gmra.mxu0 %v2889
        %v2986 = vpop.f32.mrf.mxu0
        %v2987 = vadd.f32 0.0, %v2986
        %v2988 = vpop.f32.mrf.mxu0
        %2989 = vmatprep.mubr.f32.mxu0 0.0
        %2990 = vmatmul.mubr.f32.gmra.mxu0 %v2892
        %v2991 = vpop.f32.mrf.mxu0
        %v2992 = vadd.f32 0.0, %v2991
        %v2993 = vpop.f32.mrf.mxu0
        %2994 = vmatprep.mubr.f32.mxu0 0.0
        %2995 = vmatmul.mubr.f32.gmra.mxu0 %v2895
        %v2996 = vpop.f32.mrf.mxu0
        %v2997 = vadd.f32 0.0, %v2996
        %v2998 = vpop.f32.mrf.mxu0
        %2999 = vmatprep.mubr.f32.mxu0 0.0
        %3000 = vmatmul.mubr.f32.gmra.mxu0 %v2898
        %v3001 = vpop.f32.mrf.mxu0
        %v3002 = vadd.f32 0.0, %v3001
        %v3003 = vpop.f32.mrf.mxu0
        %3004 = vdwg.mxu0
        %v3005 = vadd.f32 %v2737, %v2967
        %v3006 = vadd.f32 %v2738, %v2972
        %v3007 = vadd.f32 %v2739, %v2977
        %v3008 = vadd.f32 %v2740, %v2982
        %v3009 = vadd.f32 %v2741, %v2987
        %v3010 = vadd.f32 %v2742, %v2992
        %v3011 = vadd.f32 %v2743, %v2997
        %v3012 = vadd.f32 %v2744, %v3002
        %s3013 = scalar_lea.vmem [#allocation5], 1024
        %v3014 = vld [vmem:[%s3013] sm:$0xff]
        %v3015 = vld [vmem:[%s3013 + $0x8] sm:$0xff]
        %v3016 = vld [vmem:[%s3013 + $0x10] sm:$0xff]
        %v3017 = vld [vmem:[%s3013 + $0x18] sm:$0xff]
        %v3018 = vld [vmem:[%s3013 + $0x20] sm:$0xff]
        %v3019 = vld [vmem:[%s3013 + $0x28] sm:$0xff]
        %v3020 = vld [vmem:[%s3013 + $0x30] sm:$0xff]
        %v3021 = vld [vmem:[%s3013 + $0x38] sm:$0xff]
        %v3022 = vld [vmem:[%s3013 + $0x40] sm:$0xff]
        %v3023 = vld [vmem:[%s3013 + $0x48] sm:$0xff]
        %v3024 = vld [vmem:[%s3013 + $0x50] sm:$0xff]
        %v3025 = vld [vmem:[%s3013 + $0x58] sm:$0xff]
        %v3026 = vld [vmem:[%s3013 + $0x60] sm:$0xff]
        %v3027 = vld [vmem:[%s3013 + $0x68] sm:$0xff]
        %v3028 = vld [vmem:[%s3013 + $0x70] sm:$0xff]
        %v3029 = vld [vmem:[%s3013 + $0x78] sm:$0xff]
        %3030 = vmatprep.subr.mxu0 0.0
        %3031 = vmatpush1.msra.mxu0 %v870
        %3032 = vmatprep.subr.mxu0 0.0
        %3033 = vmatpush1.msra.mxu0 %v869
        %3034 = vmatprep.subr.mxu0 0.0
        %3035 = vmatpush1.msra.mxu0 %v868
        %3036 = vmatprep.subr.mxu0 0.0
        %3037 = vmatpush1.msra.mxu0 %v867
        %3038 = vmatprep.subr.mxu0 0.0
        %3039 = vmatpush1.msra.mxu0 %v866
        %3040 = vmatprep.subr.mxu0 0.0
        %3041 = vmatpush1.msra.mxu0 %v865
        %3042 = vmatprep.subr.mxu0 0.0
        %3043 = vmatpush1.msra.mxu0 %v864
        %3044 = vmatprep.subr.mxu0 0.0
        %3045 = vmatpush1.msra.mxu0 %v863
        %3046 = vmatprep.subr.mxu0 0.0
        %3047 = vmatpush1.msra.mxu0 %v862
        %3048 = vmatprep.subr.mxu0 0.0
        %3049 = vmatpush1.msra.mxu0 %v861
        %3050 = vmatprep.subr.mxu0 0.0
        %3051 = vmatpush1.msra.mxu0 %v860
        %3052 = vmatprep.subr.mxu0 0.0
        %3053 = vmatpush1.msra.mxu0 %v859
        %3054 = vmatprep.subr.mxu0 0.0
        %3055 = vmatpush1.msra.mxu0 %v858
        %3056 = vmatprep.subr.mxu0 0.0
        %3057 = vmatpush1.msra.mxu0 %v857
        %3058 = vmatprep.subr.mxu0 0.0
        %3059 = vmatpush1.msra.mxu0 %v856
        %3060 = vmatprep.subr.mxu0 0.0
        %3061 = vmatpush1.msra.mxu0 %v855
        %3062 = vmatprep.subr.mxu0 0.0
        %3063 = vmatpush2.msra.mxu0 %v886
        %3064 = vmatprep.subr.mxu0 0.0
        %3065 = vmatpush2.msra.mxu0 %v885
        %3066 = vmatprep.subr.mxu0 0.0
        %3067 = vmatpush2.msra.mxu0 %v884
        %3068 = vmatprep.subr.mxu0 0.0
        %3069 = vmatpush2.msra.mxu0 %v883
        %3070 = vmatprep.subr.mxu0 0.0
        %3071 = vmatpush2.msra.mxu0 %v882
        %3072 = vmatprep.subr.mxu0 0.0
        %3073 = vmatpush2.msra.mxu0 %v881
        %3074 = vmatprep.subr.mxu0 0.0
        %3075 = vmatpush2.msra.mxu0 %v880
        %3076 = vmatprep.subr.mxu0 0.0
        %3077 = vmatpush2.msra.mxu0 %v879
        %3078 = vmatprep.subr.mxu0 0.0
        %3079 = vmatpush2.msra.mxu0 %v878
        %3080 = vmatprep.subr.mxu0 0.0
        %3081 = vmatpush2.msra.mxu0 %v877
        %3082 = vmatprep.subr.mxu0 0.0
        %3083 = vmatpush2.msra.mxu0 %v876
        %3084 = vmatprep.subr.mxu0 0.0
        %3085 = vmatpush2.msra.mxu0 %v875
        %3086 = vmatprep.subr.mxu0 0.0
        %3087 = vmatpush2.msra.mxu0 %v874
        %3088 = vmatprep.subr.mxu0 0.0
        %3089 = vmatpush2.msra.mxu0 %v873
        %3090 = vmatprep.subr.mxu0 0.0
        %3091 = vmatpush2.msra.mxu0 %v872
        %3092 = vmatprep.subr.mxu0 0.0
        %3093 = vmatpush2.msra.mxu0 %v871
        %3094 = vmatprep.mubr.f32.mxu0 %v3015
        %3095 = vmatmul.mubr.f32.gmra.mxu0 %v3014
        %v3096 = vpop.f32.mrf.mxu0
        %v3097 = vadd.f32 0.0, %v3096
        %v3098 = vpop.f32.mrf.mxu0
        %3099 = vmatprep.mubr.f32.mxu0 %v3017
        %3100 = vmatmul.mubr.f32.gmra.mxu0 %v3016
        %v3101 = vpop.f32.mrf.mxu0
        %v3102 = vadd.f32 0.0, %v3101
        %v3103 = vpop.f32.mrf.mxu0
        %3104 = vmatprep.mubr.f32.mxu0 %v3019
        %3105 = vmatmul.mubr.f32.gmra.mxu0 %v3018
        %v3106 = vpop.f32.mrf.mxu0
        %v3107 = vadd.f32 0.0, %v3106
        %v3108 = vpop.f32.mrf.mxu0
        %3109 = vmatprep.mubr.f32.mxu0 %v3021
        %3110 = vmatmul.mubr.f32.gmra.mxu0 %v3020
        %v3111 = vpop.f32.mrf.mxu0
        %v3112 = vadd.f32 0.0, %v3111
        %v3113 = vpop.f32.mrf.mxu0
        %3114 = vmatprep.mubr.f32.mxu0 %v3023
        %3115 = vmatmul.mubr.f32.gmra.mxu0 %v3022
        %v3116 = vpop.f32.mrf.mxu0
        %v3117 = vadd.f32 0.0, %v3116
        %v3118 = vpop.f32.mrf.mxu0
        %3119 = vmatprep.mubr.f32.mxu0 %v3025
        %3120 = vmatmul.mubr.f32.gmra.mxu0 %v3024
        %v3121 = vpop.f32.mrf.mxu0
        %v3122 = vadd.f32 0.0, %v3121
        %v3123 = vpop.f32.mrf.mxu0
        %3124 = vmatprep.mubr.f32.mxu0 %v3027
        %3125 = vmatmul.mubr.f32.gmra.mxu0 %v3026
        %v3126 = vpop.f32.mrf.mxu0
        %v3127 = vadd.f32 0.0, %v3126
        %v3128 = vpop.f32.mrf.mxu0
        %3129 = vmatprep.mubr.f32.mxu0 %v3029
        %3130 = vmatmul.mubr.f32.gmra.mxu0 %v3028
        %v3131 = vpop.f32.mrf.mxu0
        %v3132 = vadd.f32 0.0, %v3131
        %v3133 = vpop.f32.mrf.mxu0
        %3134 = vdwg.mxu0
        %s3135 = scalar_lea.vmem [#allocation7], 512
        %v3136 = vld [vmem:[%s3135] sm:$0xff]
        %v3137 = vld [vmem:[%s3135 + $0x8] sm:$0xff]
        %v3138 = vld [vmem:[%s3135 + $0x10] sm:$0xff]
        %v3139 = vld [vmem:[%s3135 + $0x18] sm:$0xff]
        %v3140 = vld [vmem:[%s3135 + $0x20] sm:$0xff]
        %v3141 = vld [vmem:[%s3135 + $0x28] sm:$0xff]
        %v3142 = vld [vmem:[%s3135 + $0x30] sm:$0xff]
        %v3143 = vld [vmem:[%s3135 + $0x38] sm:$0xff]
        %v3145 = vsel %vm664, %v3097, 0
        %v3148 = vsel %vm664, %v3102, 0
        %v3151 = vsel %vm664, %v3107, 0
        %v3154 = vsel %vm664, %v3112, 0
        %v3157 = vsel %vm664, %v3117, 0
        %v3160 = vsel %vm664, %v3122, 0
        %v3163 = vsel %vm664, %v3127, 0
        %v3166 = vsel %vm664, %v3132, 0
        %3168 = vmatprep.subr.mxu0 0.0
        %3169 = vmatpush1.msra.mxu0 0.0
        %3170 = vmatprep.subr.mxu0 0.0
        %3171 = vmatpush1.msra.mxu0 0.0
        %3172 = vmatprep.subr.mxu0 0.0
        %3173 = vmatpush1.msra.mxu0 0.0
        %3174 = vmatprep.subr.mxu0 0.0
        %3175 = vmatpush1.msra.mxu0 0.0
        %3176 = vmatprep.subr.mxu0 0.0
        %3177 = vmatpush1.msra.mxu0 0.0
        %3178 = vmatprep.subr.mxu0 0.0
        %3179 = vmatpush1.msra.mxu0 0.0
        %3180 = vmatprep.subr.mxu0 0.0
        %3181 = vmatpush1.msra.mxu0 0.0
        %3182 = vmatprep.subr.mxu0 0.0
        %3183 = vmatpush1.msra.mxu0 0.0
        %3184 = vmatprep.subr.mxu0 0.0
        %3185 = vmatpush1.msra.mxu0 %v3143
        %3186 = vmatprep.subr.mxu0 0.0
        %3187 = vmatpush1.msra.mxu0 %v3142
        %3188 = vmatprep.subr.mxu0 0.0
        %3189 = vmatpush1.msra.mxu0 %v3141
        %3190 = vmatprep.subr.mxu0 0.0
        %3191 = vmatpush1.msra.mxu0 %v3140
        %3192 = vmatprep.subr.mxu0 0.0
        %3193 = vmatpush1.msra.mxu0 %v3139
        %3194 = vmatprep.subr.mxu0 0.0
        %3195 = vmatpush1.msra.mxu0 %v3138
        %3196 = vmatprep.subr.mxu0 0.0
        %3197 = vmatpush1.msra.mxu0 %v3137
        %3198 = vmatprep.subr.mxu0 0.0
        %3199 = vmatpush1.msra.mxu0 %v3136
        %3200 = vmatprep.subr.mxu0 0.0
        %3201 = vmatpush2.msra.mxu0 0.0
        %3202 = vmatprep.subr.mxu0 0.0
        %3203 = vmatpush2.msra.mxu0 0.0
        %3204 = vmatprep.subr.mxu0 0.0
        %3205 = vmatpush2.msra.mxu0 0.0
        %3206 = vmatprep.subr.mxu0 0.0
        %3207 = vmatpush2.msra.mxu0 0.0
        %3208 = vmatprep.subr.mxu0 0.0
        %3209 = vmatpush2.msra.mxu0 0.0
        %3210 = vmatprep.subr.mxu0 0.0
        %3211 = vmatpush2.msra.mxu0 0.0
        %3212 = vmatprep.subr.mxu0 0.0
        %3213 = vmatpush2.msra.mxu0 0.0
        %3214 = vmatprep.subr.mxu0 0.0
        %3215 = vmatpush2.msra.mxu0 0.0
        %3216 = vmatprep.subr.mxu0 0.0
        %3217 = vmatpush2.msra.mxu0 0.0
        %3218 = vmatprep.subr.mxu0 0.0
        %3219 = vmatpush2.msra.mxu0 0.0
        %3220 = vmatprep.subr.mxu0 0.0
        %3221 = vmatpush2.msra.mxu0 0.0
        %3222 = vmatprep.subr.mxu0 0.0
        %3223 = vmatpush2.msra.mxu0 0.0
        %3224 = vmatprep.subr.mxu0 0.0
        %3225 = vmatpush2.msra.mxu0 0.0
        %3226 = vmatprep.subr.mxu0 0.0
        %3227 = vmatpush2.msra.mxu0 0.0
        %3228 = vmatprep.subr.mxu0 0.0
        %3229 = vmatpush2.msra.mxu0 0.0
        %3230 = vmatprep.subr.mxu0 0.0
        %3231 = vmatpush2.msra.mxu0 0.0
        %3232 = vmatprep.mubr.f32.mxu0 0.0
        %3233 = vmatmul.mubr.f32.gmra.mxu0 %v3145
        %v3234 = vpop.f32.mrf.mxu0
        %v3235 = vadd.f32 0.0, %v3234
        %v3236 = vpop.f32.mrf.mxu0
        %3237 = vmatprep.mubr.f32.mxu0 0.0
        %3238 = vmatmul.mubr.f32.gmra.mxu0 %v3148
        %v3239 = vpop.f32.mrf.mxu0
        %v3240 = vadd.f32 0.0, %v3239
        %v3241 = vpop.f32.mrf.mxu0
        %3242 = vmatprep.mubr.f32.mxu0 0.0
        %3243 = vmatmul.mubr.f32.gmra.mxu0 %v3151
        %v3244 = vpop.f32.mrf.mxu0
        %v3245 = vadd.f32 0.0, %v3244
        %v3246 = vpop.f32.mrf.mxu0
        %3247 = vmatprep.mubr.f32.mxu0 0.0
        %3248 = vmatmul.mubr.f32.gmra.mxu0 %v3154
        %v3249 = vpop.f32.mrf.mxu0
        %v3250 = vadd.f32 0.0, %v3249
        %v3251 = vpop.f32.mrf.mxu0
        %3252 = vmatprep.mubr.f32.mxu0 0.0
        %3253 = vmatmul.mubr.f32.gmra.mxu0 %v3157
        %v3254 = vpop.f32.mrf.mxu0
        %v3255 = vadd.f32 0.0, %v3254
        %v3256 = vpop.f32.mrf.mxu0
        %3257 = vmatprep.mubr.f32.mxu0 0.0
        %3258 = vmatmul.mubr.f32.gmra.mxu0 %v3160
        %v3259 = vpop.f32.mrf.mxu0
        %v3260 = vadd.f32 0.0, %v3259
        %v3261 = vpop.f32.mrf.mxu0
        %3262 = vmatprep.mubr.f32.mxu0 0.0
        %3263 = vmatmul.mubr.f32.gmra.mxu0 %v3163
        %v3264 = vpop.f32.mrf.mxu0
        %v3265 = vadd.f32 0.0, %v3264
        %v3266 = vpop.f32.mrf.mxu0
        %3267 = vmatprep.mubr.f32.mxu0 0.0
        %3268 = vmatmul.mubr.f32.gmra.mxu0 %v3166
        %v3269 = vpop.f32.mrf.mxu0
        %v3270 = vadd.f32 0.0, %v3269
        %v3271 = vpop.f32.mrf.mxu0
        %3272 = vdwg.mxu0
        %v3273 = vadd.f32 %v3005, %v3235
        %v3274 = vadd.f32 %v3006, %v3240
        %v3275 = vadd.f32 %v3007, %v3245
        %v3276 = vadd.f32 %v3008, %v3250
        %v3277 = vadd.f32 %v3009, %v3255
        %v3278 = vadd.f32 %v3010, %v3260
        %v3279 = vadd.f32 %v3011, %v3265
        %v3280 = vadd.f32 %v3012, %v3270
        %v3281 = vld [vmem:[%s3] sm:$0x1]
        %v3283 = vlaneseq
        %v3284 = vshrl.u32 %v3283, 7
        %v3285 = vsub.s32 0, %v3284
        %v3286 = vrot.slane %v3281, %v3285
        %v3288 = vadd.f32 %v3273, %v3286
        %v3289 = vadd.f32 %v3274, %v3286
        %v3290 = vadd.f32 %v3275, %v3286
        %v3291 = vadd.f32 %v3276, %v3286
        %v3292 = vadd.f32 %v3277, %v3286
        %v3293 = vadd.f32 %v3278, %v3286
        %v3294 = vadd.f32 %v3279, %v3286
        %v3295 = vadd.f32 %v3280, %v3286
        %v3296 = vmul.f32 %v3288, %v3288
        %v3297 = vmul.f32 %v3289, %v3289
        %v3298 = vmul.f32 %v3290, %v3290
        %v3299 = vmul.f32 %v3291, %v3291
        %v3300 = vmul.f32 %v3292, %v3292
        %v3301 = vmul.f32 %v3293, %v3293
        %v3302 = vmul.f32 %v3294, %v3294
        %v3303 = vmul.f32 %v3295, %v3295
        %v3304 = vsel %vm664, %v3296, 0.0
        %v3305 = vsel %vm664, %v3297, 0.0
        %v3306 = vadd.f32 %v3304, %v3305
        %v3307 = vsel %vm664, %v3298, 0.0
        %v3308 = vadd.f32 %v3306, %v3307
        %v3309 = vsel %vm664, %v3299, 0.0
        %v3310 = vadd.f32 %v3308, %v3309
        %v3311 = vsel %vm664, %v3300, 0.0
        %v3312 = vadd.f32 %v3310, %v3311
        %v3313 = vsel %vm664, %v3301, 0.0
        %v3314 = vadd.f32 %v3312, %v3313
        %v3315 = vsel %vm664, %v3302, 0.0
        %v3316 = vadd.f32 %v3314, %v3315
        %v3317 = vsel %vm664, %v3303, 0.0
        %v3318 = vadd.f32 %v3316, %v3317
        %v3319 = vrot.slane %v3318, 4
        %v3320 = vadd.f32 %v3318, %v3319
        %v3321 = vrot.slane %v3320, 2
        %v3322 = vadd.f32 %v3320, %v3321
        %v3323 = vrot.slane %v3322, 1
        %v3324 = vadd.f32 %v3322, %v3323
        %v3325 = vrcp.pop 64.0
        %v3326 = vmul.f32 %v3324, %v3325
        %v3327 = vadd.f32 %v3326, 1e-06
        %v3328 = vrsqrt.pop %v3327
        %v3329 = vmul.f32 %v3288, %v3328
        %v3330 = vmul.f32 %v3289, %v3328
        %v3331 = vmul.f32 %v3290, %v3328
        %v3332 = vmul.f32 %v3291, %v3328
        %v3333 = vmul.f32 %v3292, %v3328
        %v3334 = vmul.f32 %v3293, %v3328
        %v3335 = vmul.f32 %v3294, %v3328
        %v3336 = vmul.f32 %v3295, %v3328
        %v3337 = vld [vmem:[%s10] sm:$0x1]
        %v3339 = vlaneseq
        %v3340 = vshrl.u32 %v3339, 7
        %v3341 = vsub.s32 0, %v3340
        %v3342 = vrot.slane %v3337, %v3341
        %v3344 = vmul.f32 %v3342, %v3329
        %v3345 = vmul.f32 %v3342, %v3330
        %v3346 = vmul.f32 %v3342, %v3331
        %v3347 = vmul.f32 %v3342, %v3332
        %v3348 = vmul.f32 %v3342, %v3333
        %v3349 = vmul.f32 %v3342, %v3334
        %v3350 = vmul.f32 %v3342, %v3335
        %v3351 = vmul.f32 %v3342, %v3336
        %v3352 = vld [vmem:[%s11] sm:$0x1]
        %v3354 = vlaneseq
        %v3355 = vshrl.u32 %v3354, 7
        %v3356 = vsub.s32 0, %v3355
        %v3357 = vrot.slane %v3352, %v3356
        %v3359 = vadd.f32 %v3344, %v3357
        %v3360 = vadd.f32 %v3345, %v3357
        %v3361 = vadd.f32 %v3346, %v3357
        %v3362 = vadd.f32 %v3347, %v3357
        %v3363 = vadd.f32 %v3348, %v3357
        %v3364 = vadd.f32 %v3349, %v3357
        %v3365 = vadd.f32 %v3350, %v3357
        %v3366 = vadd.f32 %v3351, %v3357
        %v3367 = vld [vmem:[%s12] sm:$0x1]
        %v3369 = vlaneseq
        %v3370 = vshrl.u32 %v3369, 7
        %v3371 = vsub.s32 0, %v3370
        %v3372 = vrot.slane %v3367, %v3371
        %v3374 = vmax.f32 %v3359, %v3372
        %v3375 = vmax.f32 %v3360, %v3372
        %v3376 = vmax.f32 %v3361, %v3372
        %v3377 = vmax.f32 %v3362, %v3372
        %v3378 = vmax.f32 %v3363, %v3372
        %v3379 = vmax.f32 %v3364, %v3372
        %v3380 = vmax.f32 %v3365, %v3372
        %v3381 = vmax.f32 %v3366, %v3372
        %v3382 = vld [vmem:[#allocation8] sm:$0xff]
        %v3383 = vld [vmem:[#allocation8 + $0x8] sm:$0xff]
        %v3384 = vld [vmem:[#allocation8 + $0x10] sm:$0xff]
        %v3385 = vld [vmem:[#allocation8 + $0x18] sm:$0xff]
        %v3386 = vld [vmem:[#allocation8 + $0x20] sm:$0xff]
        %v3387 = vld [vmem:[#allocation8 + $0x28] sm:$0xff]
        %v3388 = vld [vmem:[#allocation8 + $0x30] sm:$0xff]
        %v3389 = vld [vmem:[#allocation8 + $0x38] sm:$0xff]
        %v3391 = vsel %vm664, %v3382, 0
        %v3394 = vsel %vm664, %v3383, 0
        %v3397 = vsel %vm664, %v3384, 0
        %v3400 = vsel %vm664, %v3385, 0
        %v3403 = vsel %vm664, %v3386, 0
        %v3406 = vsel %vm664, %v3387, 0
        %v3409 = vsel %vm664, %v3388, 0
        %v3412 = vsel %vm664, %v3389, 0
        %3414 = vmatprep.subr.mxu0 0.0
        %3415 = vmatpush1.msra.mxu0 0.0
        %3416 = vmatprep.subr.mxu0 0.0
        %3417 = vmatpush1.msra.mxu0 0.0
        %3418 = vmatprep.subr.mxu0 0.0
        %3419 = vmatpush1.msra.mxu0 0.0
        %3420 = vmatprep.subr.mxu0 0.0
        %3421 = vmatpush1.msra.mxu0 0.0
        %3422 = vmatprep.subr.mxu0 0.0
        %3423 = vmatpush1.msra.mxu0 0.0
        %3424 = vmatprep.subr.mxu0 0.0
        %3425 = vmatpush1.msra.mxu0 0.0
        %3426 = vmatprep.subr.mxu0 0.0
        %3427 = vmatpush1.msra.mxu0 0.0
        %3428 = vmatprep.subr.mxu0 0.0
        %3429 = vmatpush1.msra.mxu0 0.0
        %3430 = vmatprep.subr.mxu0 0.0
        %3431 = vmatpush1.msra.mxu0 %v3381
        %3432 = vmatprep.subr.mxu0 0.0
        %3433 = vmatpush1.msra.mxu0 %v3380
        %3434 = vmatprep.subr.mxu0 0.0
        %3435 = vmatpush1.msra.mxu0 %v3379
        %3436 = vmatprep.subr.mxu0 0.0
        %3437 = vmatpush1.msra.mxu0 %v3378
        %3438 = vmatprep.subr.mxu0 0.0
        %3439 = vmatpush1.msra.mxu0 %v3377
        %3440 = vmatprep.subr.mxu0 0.0
        %3441 = vmatpush1.msra.mxu0 %v3376
        %3442 = vmatprep.subr.mxu0 0.0
        %3443 = vmatpush1.msra.mxu0 %v3375
        %3444 = vmatprep.subr.mxu0 0.0
        %3445 = vmatpush1.msra.mxu0 %v3374
        %3446 = vmatprep.subr.mxu0 0.0
        %3447 = vmatpush2.msra.mxu0 0.0
        %3448 = vmatprep.subr.mxu0 0.0
        %3449 = vmatpush2.msra.mxu0 0.0
        %3450 = vmatprep.subr.mxu0 0.0
        %3451 = vmatpush2.msra.mxu0 0.0
        %3452 = vmatprep.subr.mxu0 0.0
        %3453 = vmatpush2.msra.mxu0 0.0
        %3454 = vmatprep.subr.mxu0 0.0
        %3455 = vmatpush2.msra.mxu0 0.0
        %3456 = vmatprep.subr.mxu0 0.0
        %3457 = vmatpush2.msra.mxu0 0.0
        %3458 = vmatprep.subr.mxu0 0.0
        %3459 = vmatpush2.msra.mxu0 0.0
        %3460 = vmatprep.subr.mxu0 0.0
        %3461 = vmatpush2.msra.mxu0 0.0
        %3462 = vmatprep.subr.mxu0 0.0
        %3463 = vmatpush2.msra.mxu0 0.0
        %3464 = vmatprep.subr.mxu0 0.0
        %3465 = vmatpush2.msra.mxu0 0.0
        %3466 = vmatprep.subr.mxu0 0.0
        %3467 = vmatpush2.msra.mxu0 0.0
        %3468 = vmatprep.subr.mxu0 0.0
        %3469 = vmatpush2.msra.mxu0 0.0
        %3470 = vmatprep.subr.mxu0 0.0
        %3471 = vmatpush2.msra.mxu0 0.0
        %3472 = vmatprep.subr.mxu0 0.0
        %3473 = vmatpush2.msra.mxu0 0.0
        %3474 = vmatprep.subr.mxu0 0.0
        %3475 = vmatpush2.msra.mxu0 0.0
        %3476 = vmatprep.subr.mxu0 0.0
        %3477 = vmatpush2.msra.mxu0 0.0
        %3478 = vmatprep.mubr.f32.mxu0 0.0
        %3479 = vmatmul.mubr.f32.gmra.mxu0 %v3391
        %v3480 = vpop.f32.mrf.mxu0
        %v3481 = vadd.f32 0.0, %v3480
        %v3482 = vpop.f32.mrf.mxu0
        %3483 = vmatprep.mubr.f32.mxu0 0.0
        %3484 = vmatmul.mubr.f32.gmra.mxu0 %v3394
        %v3485 = vpop.f32.mrf.mxu0
        %v3486 = vadd.f32 0.0, %v3485
        %v3487 = vpop.f32.mrf.mxu0
        %3488 = vmatprep.mubr.f32.mxu0 0.0
        %3489 = vmatmul.mubr.f32.gmra.mxu0 %v3397
        %v3490 = vpop.f32.mrf.mxu0
        %v3491 = vadd.f32 0.0, %v3490
        %v3492 = vpop.f32.mrf.mxu0
        %3493 = vmatprep.mubr.f32.mxu0 0.0
        %3494 = vmatmul.mubr.f32.gmra.mxu0 %v3400
        %v3495 = vpop.f32.mrf.mxu0
        %v3496 = vadd.f32 0.0, %v3495
        %v3497 = vpop.f32.mrf.mxu0
        %3498 = vmatprep.mubr.f32.mxu0 0.0
        %3499 = vmatmul.mubr.f32.gmra.mxu0 %v3403
        %v3500 = vpop.f32.mrf.mxu0
        %v3501 = vadd.f32 0.0, %v3500
        %v3502 = vpop.f32.mrf.mxu0
        %3503 = vmatprep.mubr.f32.mxu0 0.0
        %3504 = vmatmul.mubr.f32.gmra.mxu0 %v3406
        %v3505 = vpop.f32.mrf.mxu0
        %v3506 = vadd.f32 0.0, %v3505
        %v3507 = vpop.f32.mrf.mxu0
        %3508 = vmatprep.mubr.f32.mxu0 0.0
        %3509 = vmatmul.mubr.f32.gmra.mxu0 %v3409
        %v3510 = vpop.f32.mrf.mxu0
        %v3511 = vadd.f32 0.0, %v3510
        %v3512 = vpop.f32.mrf.mxu0
        %3513 = vmatprep.mubr.f32.mxu0 0.0
        %3514 = vmatmul.mubr.f32.gmra.mxu0 %v3412
        %v3515 = vpop.f32.mrf.mxu0
        %v3516 = vadd.f32 0.0, %v3515
        %v3517 = vpop.f32.mrf.mxu0
        %3518 = vdwg.mxu0
        %v3519 = vld [vmem:[#allocation10] sm:$0xff]
        %v3520 = vld [vmem:[#allocation10 + $0x8] sm:$0xff]
        %v3521 = vld [vmem:[#allocation10 + $0x10] sm:$0xff]
        %v3522 = vld [vmem:[#allocation10 + $0x18] sm:$0xff]
        %v3523 = vld [vmem:[#allocation10 + $0x20] sm:$0xff]
        %v3524 = vld [vmem:[#allocation10 + $0x28] sm:$0xff]
        %v3525 = vld [vmem:[#allocation10 + $0x30] sm:$0xff]
        %v3526 = vld [vmem:[#allocation10 + $0x38] sm:$0xff]
        %s3527 = scalar_lea.vmem [#allocation8], 64
        %v3528 = vld [vmem:[%s3527] sm:$0xff]
        %v3529 = vld [vmem:[%s3527 + $0x8] sm:$0xff]
        %v3530 = vld [vmem:[%s3527 + $0x10] sm:$0xff]
        %v3531 = vld [vmem:[%s3527 + $0x18] sm:$0xff]
        %v3532 = vld [vmem:[%s3527 + $0x20] sm:$0xff]
        %v3533 = vld [vmem:[%s3527 + $0x28] sm:$0xff]
        %v3534 = vld [vmem:[%s3527 + $0x30] sm:$0xff]
        %v3535 = vld [vmem:[%s3527 + $0x38] sm:$0xff]
        %v3537 = vsel %vm664, %v3528, 0
        %v3540 = vsel %vm664, %v3529, 0
        %v3543 = vsel %vm664, %v3530, 0
        %v3546 = vsel %vm664, %v3531, 0
        %v3549 = vsel %vm664, %v3532, 0
        %v3552 = vsel %vm664, %v3533, 0
        %v3555 = vsel %vm664, %v3534, 0
        %v3558 = vsel %vm664, %v3535, 0
        %3560 = vmatprep.subr.mxu0 0.0
        %3561 = vmatpush1.msra.mxu0 0.0
        %3562 = vmatprep.subr.mxu0 0.0
        %3563 = vmatpush1.msra.mxu0 0.0
        %3564 = vmatprep.subr.mxu0 0.0
        %3565 = vmatpush1.msra.mxu0 0.0
        %3566 = vmatprep.subr.mxu0 0.0
        %3567 = vmatpush1.msra.mxu0 0.0
        %3568 = vmatprep.subr.mxu0 0.0
        %3569 = vmatpush1.msra.mxu0 0.0
        %3570 = vmatprep.subr.mxu0 0.0
        %3571 = vmatpush1.msra.mxu0 0.0
        %3572 = vmatprep.subr.mxu0 0.0
        %3573 = vmatpush1.msra.mxu0 0.0
        %3574 = vmatprep.subr.mxu0 0.0
        %3575 = vmatpush1.msra.mxu0 0.0
        %3576 = vmatprep.subr.mxu0 0.0
        %3577 = vmatpush1.msra.mxu0 %v3381
        %3578 = vmatprep.subr.mxu0 0.0
        %3579 = vmatpush1.msra.mxu0 %v3380
        %3580 = vmatprep.subr.mxu0 0.0
        %3581 = vmatpush1.msra.mxu0 %v3379
        %3582 = vmatprep.subr.mxu0 0.0
        %3583 = vmatpush1.msra.mxu0 %v3378
        %3584 = vmatprep.subr.mxu0 0.0
        %3585 = vmatpush1.msra.mxu0 %v3377
        %3586 = vmatprep.subr.mxu0 0.0
        %3587 = vmatpush1.msra.mxu0 %v3376
        %3588 = vmatprep.subr.mxu0 0.0
        %3589 = vmatpush1.msra.mxu0 %v3375
        %3590 = vmatprep.subr.mxu0 0.0
        %3591 = vmatpush1.msra.mxu0 %v3374
        %3592 = vmatprep.subr.mxu0 0.0
        %3593 = vmatpush2.msra.mxu0 0.0
        %3594 = vmatprep.subr.mxu0 0.0
        %3595 = vmatpush2.msra.mxu0 0.0
        %3596 = vmatprep.subr.mxu0 0.0
        %3597 = vmatpush2.msra.mxu0 0.0
        %3598 = vmatprep.subr.mxu0 0.0
        %3599 = vmatpush2.msra.mxu0 0.0
        %3600 = vmatprep.subr.mxu0 0.0
        %3601 = vmatpush2.msra.mxu0 0.0
        %3602 = vmatprep.subr.mxu0 0.0
        %3603 = vmatpush2.msra.mxu0 0.0
        %3604 = vmatprep.subr.mxu0 0.0
        %3605 = vmatpush2.msra.mxu0 0.0
        %3606 = vmatprep.subr.mxu0 0.0
        %3607 = vmatpush2.msra.mxu0 0.0
        %3608 = vmatprep.subr.mxu0 0.0
        %3609 = vmatpush2.msra.mxu0 0.0
        %3610 = vmatprep.subr.mxu0 0.0
        %3611 = vmatpush2.msra.mxu0 0.0
        %3612 = vmatprep.subr.mxu0 0.0
        %3613 = vmatpush2.msra.mxu0 0.0
        %3614 = vmatprep.subr.mxu0 0.0
        %3615 = vmatpush2.msra.mxu0 0.0
        %3616 = vmatprep.subr.mxu0 0.0
        %3617 = vmatpush2.msra.mxu0 0.0
        %3618 = vmatprep.subr.mxu0 0.0
        %3619 = vmatpush2.msra.mxu0 0.0
        %3620 = vmatprep.subr.mxu0 0.0
        %3621 = vmatpush2.msra.mxu0 0.0
        %3622 = vmatprep.subr.mxu0 0.0
        %3623 = vmatpush2.msra.mxu0 0.0
        %3624 = vmatprep.mubr.f32.mxu0 0.0
        %3625 = vmatmul.mubr.f32.gmra.mxu0 %v3537
        %v3626 = vpop.f32.mrf.mxu0
        %v3627 = vadd.f32 0.0, %v3626
        %v3628 = vpop.f32.mrf.mxu0
        %3629 = vmatprep.mubr.f32.mxu0 0.0
        %3630 = vmatmul.mubr.f32.gmra.mxu0 %v3540
        %v3631 = vpop.f32.mrf.mxu0
        %v3632 = vadd.f32 0.0, %v3631
        %v3633 = vpop.f32.mrf.mxu0
        %3634 = vmatprep.mubr.f32.mxu0 0.0
        %3635 = vmatmul.mubr.f32.gmra.mxu0 %v3543
        %v3636 = vpop.f32.mrf.mxu0
        %v3637 = vadd.f32 0.0, %v3636
        %v3638 = vpop.f32.mrf.mxu0
        %3639 = vmatprep.mubr.f32.mxu0 0.0
        %3640 = vmatmul.mubr.f32.gmra.mxu0 %v3546
        %v3641 = vpop.f32.mrf.mxu0
        %v3642 = vadd.f32 0.0, %v3641
        %v3643 = vpop.f32.mrf.mxu0
        %3644 = vmatprep.mubr.f32.mxu0 0.0
        %3645 = vmatmul.mubr.f32.gmra.mxu0 %v3549
        %v3646 = vpop.f32.mrf.mxu0
        %v3647 = vadd.f32 0.0, %v3646
        %v3648 = vpop.f32.mrf.mxu0
        %3649 = vmatprep.mubr.f32.mxu0 0.0
        %3650 = vmatmul.mubr.f32.gmra.mxu0 %v3552
        %v3651 = vpop.f32.mrf.mxu0
        %v3652 = vadd.f32 0.0, %v3651
        %v3653 = vpop.f32.mrf.mxu0
        %3654 = vmatprep.mubr.f32.mxu0 0.0
        %3655 = vmatmul.mubr.f32.gmra.mxu0 %v3555
        %v3656 = vpop.f32.mrf.mxu0
        %v3657 = vadd.f32 0.0, %v3656
        %v3658 = vpop.f32.mrf.mxu0
        %3659 = vmatprep.mubr.f32.mxu0 0.0
        %3660 = vmatmul.mubr.f32.gmra.mxu0 %v3558
        %v3661 = vpop.f32.mrf.mxu0
        %v3662 = vadd.f32 0.0, %v3661
        %v3663 = vpop.f32.mrf.mxu0
        %3664 = vdwg.mxu0
        %s3665 = scalar_lea.vmem [#allocation10], 64
        %v3666 = vld [vmem:[%s3665] sm:$0xff]
        %v3667 = vld [vmem:[%s3665 + $0x8] sm:$0xff]
        %v3668 = vld [vmem:[%s3665 + $0x10] sm:$0xff]
        %v3669 = vld [vmem:[%s3665 + $0x18] sm:$0xff]
        %v3670 = vld [vmem:[%s3665 + $0x20] sm:$0xff]
        %v3671 = vld [vmem:[%s3665 + $0x28] sm:$0xff]
        %v3672 = vld [vmem:[%s3665 + $0x30] sm:$0xff]
        %v3673 = vld [vmem:[%s3665 + $0x38] sm:$0xff]
        %v3675 = vsel %vm664, %v3627, 0
        %v3678 = vsel %vm664, %v3632, 0
        %v3681 = vsel %vm664, %v3637, 0
        %v3684 = vsel %vm664, %v3642, 0
        %v3687 = vsel %vm664, %v3647, 0
        %v3690 = vsel %vm664, %v3652, 0
        %v3693 = vsel %vm664, %v3657, 0
        %v3696 = vsel %vm664, %v3662, 0
        %3698 = vmatprep.subr.mxu0 0.0
        %3699 = vmatpush1.msra.mxu0 0.0
        %3700 = vmatprep.subr.mxu0 0.0
        %3701 = vmatpush1.msra.mxu0 0.0
        %3702 = vmatprep.subr.mxu0 0.0
        %3703 = vmatpush1.msra.mxu0 0.0
        %3704 = vmatprep.subr.mxu0 0.0
        %3705 = vmatpush1.msra.mxu0 0.0
        %3706 = vmatprep.subr.mxu0 0.0
        %3707 = vmatpush1.msra.mxu0 0.0
        %3708 = vmatprep.subr.mxu0 0.0
        %3709 = vmatpush1.msra.mxu0 0.0
        %3710 = vmatprep.subr.mxu0 0.0
        %3711 = vmatpush1.msra.mxu0 0.0
        %3712 = vmatprep.subr.mxu0 0.0
        %3713 = vmatpush1.msra.mxu0 0.0
        %3714 = vmatprep.subr.mxu0 0.0
        %3715 = vmatpush1.msra.mxu0 %v3673
        %3716 = vmatprep.subr.mxu0 0.0
        %3717 = vmatpush1.msra.mxu0 %v3672
        %3718 = vmatprep.subr.mxu0 0.0
        %3719 = vmatpush1.msra.mxu0 %v3671
        %3720 = vmatprep.subr.mxu0 0.0
        %3721 = vmatpush1.msra.mxu0 %v3670
        %3722 = vmatprep.subr.mxu0 0.0
        %3723 = vmatpush1.msra.mxu0 %v3669
        %3724 = vmatprep.subr.mxu0 0.0
        %3725 = vmatpush1.msra.mxu0 %v3668
        %3726 = vmatprep.subr.mxu0 0.0
        %3727 = vmatpush1.msra.mxu0 %v3667
        %3728 = vmatprep.subr.mxu0 0.0
        %3729 = vmatpush1.msra.mxu0 %v3666
        %3730 = vmatprep.subr.mxu0 0.0
        %3731 = vmatpush2.msra.mxu0 0.0
        %3732 = vmatprep.subr.mxu0 0.0
        %3733 = vmatpush2.msra.mxu0 0.0
        %3734 = vmatprep.subr.mxu0 0.0
        %3735 = vmatpush2.msra.mxu0 0.0
        %3736 = vmatprep.subr.mxu0 0.0
        %3737 = vmatpush2.msra.mxu0 0.0
        %3738 = vmatprep.subr.mxu0 0.0
        %3739 = vmatpush2.msra.mxu0 0.0
        %3740 = vmatprep.subr.mxu0 0.0
        %3741 = vmatpush2.msra.mxu0 0.0
        %3742 = vmatprep.subr.mxu0 0.0
        %3743 = vmatpush2.msra.mxu0 0.0
        %3744 = vmatprep.subr.mxu0 0.0
        %3745 = vmatpush2.msra.mxu0 0.0
        %3746 = vmatprep.subr.mxu0 0.0
        %3747 = vmatpush2.msra.mxu0 0.0
        %3748 = vmatprep.subr.mxu0 0.0
        %3749 = vmatpush2.msra.mxu0 0.0
        %3750 = vmatprep.subr.mxu0 0.0
        %3751 = vmatpush2.msra.mxu0 0.0
        %3752 = vmatprep.subr.mxu0 0.0
        %3753 = vmatpush2.msra.mxu0 0.0
        %3754 = vmatprep.subr.mxu0 0.0
        %3755 = vmatpush2.msra.mxu0 0.0
        %3756 = vmatprep.subr.mxu0 0.0
        %3757 = vmatpush2.msra.mxu0 0.0
        %3758 = vmatprep.subr.mxu0 0.0
        %3759 = vmatpush2.msra.mxu0 0.0
        %3760 = vmatprep.subr.mxu0 0.0
        %3761 = vmatpush2.msra.mxu0 0.0
        %3762 = vmatprep.mubr.f32.mxu0 0.0
        %3763 = vmatmul.mubr.f32.gmra.mxu0 %v3675
        %v3764 = vpop.f32.mrf.mxu0
        %v3765 = vadd.f32 0.0, %v3764
        %v3766 = vpop.f32.mrf.mxu0
        %3767 = vmatprep.mubr.f32.mxu0 0.0
        %3768 = vmatmul.mubr.f32.gmra.mxu0 %v3678
        %v3769 = vpop.f32.mrf.mxu0
        %v3770 = vadd.f32 0.0, %v3769
        %v3771 = vpop.f32.mrf.mxu0
        %3772 = vmatprep.mubr.f32.mxu0 0.0
        %3773 = vmatmul.mubr.f32.gmra.mxu0 %v3681
        %v3774 = vpop.f32.mrf.mxu0
        %v3775 = vadd.f32 0.0, %v3774
        %v3776 = vpop.f32.mrf.mxu0
        %3777 = vmatprep.mubr.f32.mxu0 0.0
        %3778 = vmatmul.mubr.f32.gmra.mxu0 %v3684
        %v3779 = vpop.f32.mrf.mxu0
        %v3780 = vadd.f32 0.0, %v3779
        %v3781 = vpop.f32.mrf.mxu0
        %3782 = vmatprep.mubr.f32.mxu0 0.0
        %3783 = vmatmul.mubr.f32.gmra.mxu0 %v3687
        %v3784 = vpop.f32.mrf.mxu0
        %v3785 = vadd.f32 0.0, %v3784
        %v3786 = vpop.f32.mrf.mxu0
        %3787 = vmatprep.mubr.f32.mxu0 0.0
        %3788 = vmatmul.mubr.f32.gmra.mxu0 %v3690
        %v3789 = vpop.f32.mrf.mxu0
        %v3790 = vadd.f32 0.0, %v3789
        %v3791 = vpop.f32.mrf.mxu0
        %3792 = vmatprep.mubr.f32.mxu0 0.0
        %3793 = vmatmul.mubr.f32.gmra.mxu0 %v3693
        %v3794 = vpop.f32.mrf.mxu0
        %v3795 = vadd.f32 0.0, %v3794
        %v3796 = vpop.f32.mrf.mxu0
        %3797 = vmatprep.mubr.f32.mxu0 0.0
        %3798 = vmatmul.mubr.f32.gmra.mxu0 %v3696
        %v3799 = vpop.f32.mrf.mxu0
        %v3800 = vadd.f32 0.0, %v3799
        %v3801 = vpop.f32.mrf.mxu0
        %3802 = vdwg.mxu0
        %v3804 = vsel %vm664, %v3481, 0
        %v3807 = vsel %vm664, %v3486, 0
        %v3810 = vsel %vm664, %v3491, 0
        %v3813 = vsel %vm664, %v3496, 0
        %v3816 = vsel %vm664, %v3501, 0
        %v3819 = vsel %vm664, %v3506, 0
        %v3822 = vsel %vm664, %v3511, 0
        %v3825 = vsel %vm664, %v3516, 0
        %3827 = vmatprep.subr.mxu0 0.0
        %3828 = vmatpush1.msra.mxu0 0.0
        %3829 = vmatprep.subr.mxu0 0.0
        %3830 = vmatpush1.msra.mxu0 0.0
        %3831 = vmatprep.subr.mxu0 0.0
        %3832 = vmatpush1.msra.mxu0 0.0
        %3833 = vmatprep.subr.mxu0 0.0
        %3834 = vmatpush1.msra.mxu0 0.0
        %3835 = vmatprep.subr.mxu0 0.0
        %3836 = vmatpush1.msra.mxu0 0.0
        %3837 = vmatprep.subr.mxu0 0.0
        %3838 = vmatpush1.msra.mxu0 0.0
        %3839 = vmatprep.subr.mxu0 0.0
        %3840 = vmatpush1.msra.mxu0 0.0
        %3841 = vmatprep.subr.mxu0 0.0
        %3842 = vmatpush1.msra.mxu0 0.0
        %3843 = vmatprep.subr.mxu0 0.0
        %3844 = vmatpush1.msra.mxu0 %v3526
        %3845 = vmatprep.subr.mxu0 0.0
        %3846 = vmatpush1.msra.mxu0 %v3525
        %3847 = vmatprep.subr.mxu0 0.0
        %3848 = vmatpush1.msra.mxu0 %v3524
        %3849 = vmatprep.subr.mxu0 0.0
        %3850 = vmatpush1.msra.mxu0 %v3523
        %3851 = vmatprep.subr.mxu0 0.0
        %3852 = vmatpush1.msra.mxu0 %v3522
        %3853 = vmatprep.subr.mxu0 0.0
        %3854 = vmatpush1.msra.mxu0 %v3521
        %3855 = vmatprep.subr.mxu0 0.0
        %3856 = vmatpush1.msra.mxu0 %v3520
        %3857 = vmatprep.subr.mxu0 0.0
        %3858 = vmatpush1.msra.mxu0 %v3519
        %3859 = vmatprep.subr.mxu0 0.0
        %3860 = vmatpush2.msra.mxu0 0.0
        %3861 = vmatprep.subr.mxu0 0.0
        %3862 = vmatpush2.msra.mxu0 0.0
        %3863 = vmatprep.subr.mxu0 0.0
        %3864 = vmatpush2.msra.mxu0 0.0
        %3865 = vmatprep.subr.mxu0 0.0
        %3866 = vmatpush2.msra.mxu0 0.0
        %3867 = vmatprep.subr.mxu0 0.0
        %3868 = vmatpush2.msra.mxu0 0.0
        %3869 = vmatprep.subr.mxu0 0.0
        %3870 = vmatpush2.msra.mxu0 0.0
        %3871 = vmatprep.subr.mxu0 0.0
        %3872 = vmatpush2.msra.mxu0 0.0
        %3873 = vmatprep.subr.mxu0 0.0
        %3874 = vmatpush2.msra.mxu0 0.0
        %3875 = vmatprep.subr.mxu0 0.0
        %3876 = vmatpush2.msra.mxu0 0.0
        %3877 = vmatprep.subr.mxu0 0.0
        %3878 = vmatpush2.msra.mxu0 0.0
        %3879 = vmatprep.subr.mxu0 0.0
        %3880 = vmatpush2.msra.mxu0 0.0
        %3881 = vmatprep.subr.mxu0 0.0
        %3882 = vmatpush2.msra.mxu0 0.0
        %3883 = vmatprep.subr.mxu0 0.0
        %3884 = vmatpush2.msra.mxu0 0.0
        %3885 = vmatprep.subr.mxu0 0.0
        %3886 = vmatpush2.msra.mxu0 0.0
        %3887 = vmatprep.subr.mxu0 0.0
        %3888 = vmatpush2.msra.mxu0 0.0
        %3889 = vmatprep.subr.mxu0 0.0
        %3890 = vmatpush2.msra.mxu0 0.0
        %3891 = vmatprep.mubr.f32.mxu0 0.0
        %3892 = vmatmul.mubr.f32.gmra.mxu0 %v3804
        %v3893 = vpop.f32.mrf.mxu0
        %v3894 = vadd.f32 %v3765, %v3893
        %v3895 = vpop.f32.mrf.mxu0
        %3896 = vmatprep.mubr.f32.mxu0 0.0
        %3897 = vmatmul.mubr.f32.gmra.mxu0 %v3807
        %v3898 = vpop.f32.mrf.mxu0
        %v3899 = vadd.f32 %v3770, %v3898
        %v3900 = vpop.f32.mrf.mxu0
        %3901 = vmatprep.mubr.f32.mxu0 0.0
        %3902 = vmatmul.mubr.f32.gmra.mxu0 %v3810
        %v3903 = vpop.f32.mrf.mxu0
        %v3904 = vadd.f32 %v3775, %v3903
        %v3905 = vpop.f32.mrf.mxu0
        %3906 = vmatprep.mubr.f32.mxu0 0.0
        %3907 = vmatmul.mubr.f32.gmra.mxu0 %v3813
        %v3908 = vpop.f32.mrf.mxu0
        %v3909 = vadd.f32 %v3780, %v3908
        %v3910 = vpop.f32.mrf.mxu0
        %3911 = vmatprep.mubr.f32.mxu0 0.0
        %3912 = vmatmul.mubr.f32.gmra.mxu0 %v3816
        %v3913 = vpop.f32.mrf.mxu0
        %v3914 = vadd.f32 %v3785, %v3913
        %v3915 = vpop.f32.mrf.mxu0
        %3916 = vmatprep.mubr.f32.mxu0 0.0
        %3917 = vmatmul.mubr.f32.gmra.mxu0 %v3819
        %v3918 = vpop.f32.mrf.mxu0
        %v3919 = vadd.f32 %v3790, %v3918
        %v3920 = vpop.f32.mrf.mxu0
        %3921 = vmatprep.mubr.f32.mxu0 0.0
        %3922 = vmatmul.mubr.f32.gmra.mxu0 %v3822
        %v3923 = vpop.f32.mrf.mxu0
        %v3924 = vadd.f32 %v3795, %v3923
        %v3925 = vpop.f32.mrf.mxu0
        %3926 = vmatprep.mubr.f32.mxu0 0.0
        %3927 = vmatmul.mubr.f32.gmra.mxu0 %v3825
        %v3928 = vpop.f32.mrf.mxu0
        %v3929 = vadd.f32 %v3800, %v3928
        %v3930 = vpop.f32.mrf.mxu0
        %3931 = vdwg.mxu0
        %s3932 = scalar_lea.vmem [#allocation8], 128
        %v3933 = vld [vmem:[%s3932] sm:$0xff]
        %v3934 = vld [vmem:[%s3932 + $0x8] sm:$0xff]
        %v3935 = vld [vmem:[%s3932 + $0x10] sm:$0xff]
        %v3936 = vld [vmem:[%s3932 + $0x18] sm:$0xff]
        %v3937 = vld [vmem:[%s3932 + $0x20] sm:$0xff]
        %v3938 = vld [vmem:[%s3932 + $0x28] sm:$0xff]
        %v3939 = vld [vmem:[%s3932 + $0x30] sm:$0xff]
        %v3940 = vld [vmem:[%s3932 + $0x38] sm:$0xff]
        %v3942 = vsel %vm664, %v3933, 0
        %v3945 = vsel %vm664, %v3934, 0
        %v3948 = vsel %vm664, %v3935, 0
        %v3951 = vsel %vm664, %v3936, 0
        %v3954 = vsel %vm664, %v3937, 0
        %v3957 = vsel %vm664, %v3938, 0
        %v3960 = vsel %vm664, %v3939, 0
        %v3963 = vsel %vm664, %v3940, 0
        %3965 = vmatprep.subr.mxu0 0.0
        %3966 = vmatpush1.msra.mxu0 0.0
        %3967 = vmatprep.subr.mxu0 0.0
        %3968 = vmatpush1.msra.mxu0 0.0
        %3969 = vmatprep.subr.mxu0 0.0
        %3970 = vmatpush1.msra.mxu0 0.0
        %3971 = vmatprep.subr.mxu0 0.0
        %3972 = vmatpush1.msra.mxu0 0.0
        %3973 = vmatprep.subr.mxu0 0.0
        %3974 = vmatpush1.msra.mxu0 0.0
        %3975 = vmatprep.subr.mxu0 0.0
        %3976 = vmatpush1.msra.mxu0 0.0
        %3977 = vmatprep.subr.mxu0 0.0
        %3978 = vmatpush1.msra.mxu0 0.0
        %3979 = vmatprep.subr.mxu0 0.0
        %3980 = vmatpush1.msra.mxu0 0.0
        %3981 = vmatprep.subr.mxu0 0.0
        %3982 = vmatpush1.msra.mxu0 %v3381
        %3983 = vmatprep.subr.mxu0 0.0
        %3984 = vmatpush1.msra.mxu0 %v3380
        %3985 = vmatprep.subr.mxu0 0.0
        %3986 = vmatpush1.msra.mxu0 %v3379
        %3987 = vmatprep.subr.mxu0 0.0
        %3988 = vmatpush1.msra.mxu0 %v3378
        %3989 = vmatprep.subr.mxu0 0.0
        %3990 = vmatpush1.msra.mxu0 %v3377
        %3991 = vmatprep.subr.mxu0 0.0
        %3992 = vmatpush1.msra.mxu0 %v3376
        %3993 = vmatprep.subr.mxu0 0.0
        %3994 = vmatpush1.msra.mxu0 %v3375
        %3995 = vmatprep.subr.mxu0 0.0
        %3996 = vmatpush1.msra.mxu0 %v3374
        %3997 = vmatprep.subr.mxu0 0.0
        %3998 = vmatpush2.msra.mxu0 0.0
        %3999 = vmatprep.subr.mxu0 0.0
        %4000 = vmatpush2.msra.mxu0 0.0
        %4001 = vmatprep.subr.mxu0 0.0
        %4002 = vmatpush2.msra.mxu0 0.0
        %4003 = vmatprep.subr.mxu0 0.0
        %4004 = vmatpush2.msra.mxu0 0.0
        %4005 = vmatprep.subr.mxu0 0.0
        %4006 = vmatpush2.msra.mxu0 0.0
        %4007 = vmatprep.subr.mxu0 0.0
        %4008 = vmatpush2.msra.mxu0 0.0
        %4009 = vmatprep.subr.mxu0 0.0
        %4010 = vmatpush2.msra.mxu0 0.0
        %4011 = vmatprep.subr.mxu0 0.0
        %4012 = vmatpush2.msra.mxu0 0.0
        %4013 = vmatprep.subr.mxu0 0.0
        %4014 = vmatpush2.msra.mxu0 0.0
        %4015 = vmatprep.subr.mxu0 0.0
        %4016 = vmatpush2.msra.mxu0 0.0
        %4017 = vmatprep.subr.mxu0 0.0
        %4018 = vmatpush2.msra.mxu0 0.0
        %4019 = vmatprep.subr.mxu0 0.0
        %4020 = vmatpush2.msra.mxu0 0.0
        %4021 = vmatprep.subr.mxu0 0.0
        %4022 = vmatpush2.msra.mxu0 0.0
        %4023 = vmatprep.subr.mxu0 0.0
        %4024 = vmatpush2.msra.mxu0 0.0
        %4025 = vmatprep.subr.mxu0 0.0
        %4026 = vmatpush2.msra.mxu0 0.0
        %4027 = vmatprep.subr.mxu0 0.0
        %4028 = vmatpush2.msra.mxu0 0.0
        %4029 = vmatprep.mubr.f32.mxu0 0.0
        %4030 = vmatmul.mubr.f32.gmra.mxu0 %v3942
        %v4031 = vpop.f32.mrf.mxu0
        %v4032 = vadd.f32 0.0, %v4031
        %v4033 = vpop.f32.mrf.mxu0
        %4034 = vmatprep.mubr.f32.mxu0 0.0
        %4035 = vmatmul.mubr.f32.gmra.mxu0 %v3945
        %v4036 = vpop.f32.mrf.mxu0
        %v4037 = vadd.f32 0.0, %v4036
        %v4038 = vpop.f32.mrf.mxu0
        %4039 = vmatprep.mubr.f32.mxu0 0.0
        %4040 = vmatmul.mubr.f32.gmra.mxu0 %v3948
        %v4041 = vpop.f32.mrf.mxu0
        %v4042 = vadd.f32 0.0, %v4041
        %v4043 = vpop.f32.mrf.mxu0
        %4044 = vmatprep.mubr.f32.mxu0 0.0
        %4045 = vmatmul.mubr.f32.gmra.mxu0 %v3951
        %v4046 = vpop.f32.mrf.mxu0
        %v4047 = vadd.f32 0.0, %v4046
        %v4048 = vpop.f32.mrf.mxu0
        %4049 = vmatprep.mubr.f32.mxu0 0.0
        %4050 = vmatmul.mubr.f32.gmra.mxu0 %v3954
        %v4051 = vpop.f32.mrf.mxu0
        %v4052 = vadd.f32 0.0, %v4051
        %v4053 = vpop.f32.mrf.mxu0
        %4054 = vmatprep.mubr.f32.mxu0 0.0
        %4055 = vmatmul.mubr.f32.gmra.mxu0 %v3957
        %v4056 = vpop.f32.mrf.mxu0
        %v4057 = vadd.f32 0.0, %v4056
        %v4058 = vpop.f32.mrf.mxu0
        %4059 = vmatprep.mubr.f32.mxu0 0.0
        %4060 = vmatmul.mubr.f32.gmra.mxu0 %v3960
        %v4061 = vpop.f32.mrf.mxu0
        %v4062 = vadd.f32 0.0, %v4061
        %v4063 = vpop.f32.mrf.mxu0
        %4064 = vmatprep.mubr.f32.mxu0 0.0
        %4065 = vmatmul.mubr.f32.gmra.mxu0 %v3963
        %v4066 = vpop.f32.mrf.mxu0
        %v4067 = vadd.f32 0.0, %v4066
        %v4068 = vpop.f32.mrf.mxu0
        %4069 = vdwg.mxu0
        %s4070 = scalar_lea.vmem [#allocation10], 128
        %v4071 = vld [vmem:[%s4070] sm:$0xff]
        %v4072 = vld [vmem:[%s4070 + $0x8] sm:$0xff]
        %v4073 = vld [vmem:[%s4070 + $0x10] sm:$0xff]
        %v4074 = vld [vmem:[%s4070 + $0x18] sm:$0xff]
        %v4075 = vld [vmem:[%s4070 + $0x20] sm:$0xff]
        %v4076 = vld [vmem:[%s4070 + $0x28] sm:$0xff]
        %v4077 = vld [vmem:[%s4070 + $0x30] sm:$0xff]
        %v4078 = vld [vmem:[%s4070 + $0x38] sm:$0xff]
        %v4080 = vsel %vm664, %v4032, 0
        %v4083 = vsel %vm664, %v4037, 0
        %v4086 = vsel %vm664, %v4042, 0
        %v4089 = vsel %vm664, %v4047, 0
        %v4092 = vsel %vm664, %v4052, 0
        %v4095 = vsel %vm664, %v4057, 0
        %v4098 = vsel %vm664, %v4062, 0
        %v4101 = vsel %vm664, %v4067, 0
        %4103 = vmatprep.subr.mxu0 0.0
        %4104 = vmatpush1.msra.mxu0 0.0
        %4105 = vmatprep.subr.mxu0 0.0
        %4106 = vmatpush1.msra.mxu0 0.0
        %4107 = vmatprep.subr.mxu0 0.0
        %4108 = vmatpush1.msra.mxu0 0.0
        %4109 = vmatprep.subr.mxu0 0.0
        %4110 = vmatpush1.msra.mxu0 0.0
        %4111 = vmatprep.subr.mxu0 0.0
        %4112 = vmatpush1.msra.mxu0 0.0
        %4113 = vmatprep.subr.mxu0 0.0
        %4114 = vmatpush1.msra.mxu0 0.0
        %4115 = vmatprep.subr.mxu0 0.0
        %4116 = vmatpush1.msra.mxu0 0.0
        %4117 = vmatprep.subr.mxu0 0.0
        %4118 = vmatpush1.msra.mxu0 0.0
        %4119 = vmatprep.subr.mxu0 0.0
        %4120 = vmatpush1.msra.mxu0 %v4078
        %4121 = vmatprep.subr.mxu0 0.0
        %4122 = vmatpush1.msra.mxu0 %v4077
        %4123 = vmatprep.subr.mxu0 0.0
        %4124 = vmatpush1.msra.mxu0 %v4076
        %4125 = vmatprep.subr.mxu0 0.0
        %4126 = vmatpush1.msra.mxu0 %v4075
        %4127 = vmatprep.subr.mxu0 0.0
        %4128 = vmatpush1.msra.mxu0 %v4074
        %4129 = vmatprep.subr.mxu0 0.0
        %4130 = vmatpush1.msra.mxu0 %v4073
        %4131 = vmatprep.subr.mxu0 0.0
        %4132 = vmatpush1.msra.mxu0 %v4072
        %4133 = vmatprep.subr.mxu0 0.0
        %4134 = vmatpush1.msra.mxu0 %v4071
        %4135 = vmatprep.subr.mxu0 0.0
        %4136 = vmatpush2.msra.mxu0 0.0
        %4137 = vmatprep.subr.mxu0 0.0
        %4138 = vmatpush2.msra.mxu0 0.0
        %4139 = vmatprep.subr.mxu0 0.0
        %4140 = vmatpush2.msra.mxu0 0.0
        %4141 = vmatprep.subr.mxu0 0.0
        %4142 = vmatpush2.msra.mxu0 0.0
        %4143 = vmatprep.subr.mxu0 0.0
        %4144 = vmatpush2.msra.mxu0 0.0
        %4145 = vmatprep.subr.mxu0 0.0
        %4146 = vmatpush2.msra.mxu0 0.0
        %4147 = vmatprep.subr.mxu0 0.0
        %4148 = vmatpush2.msra.mxu0 0.0
        %4149 = vmatprep.subr.mxu0 0.0
        %4150 = vmatpush2.msra.mxu0 0.0
        %4151 = vmatprep.subr.mxu0 0.0
        %4152 = vmatpush2.msra.mxu0 0.0
        %4153 = vmatprep.subr.mxu0 0.0
        %4154 = vmatpush2.msra.mxu0 0.0
        %4155 = vmatprep.subr.mxu0 0.0
        %4156 = vmatpush2.msra.mxu0 0.0
        %4157 = vmatprep.subr.mxu0 0.0
        %4158 = vmatpush2.msra.mxu0 0.0
        %4159 = vmatprep.subr.mxu0 0.0
        %4160 = vmatpush2.msra.mxu0 0.0
        %4161 = vmatprep.subr.mxu0 0.0
        %4162 = vmatpush2.msra.mxu0 0.0
        %4163 = vmatprep.subr.mxu0 0.0
        %4164 = vmatpush2.msra.mxu0 0.0
        %4165 = vmatprep.subr.mxu0 0.0
        %4166 = vmatpush2.msra.mxu0 0.0
        %4167 = vmatprep.mubr.f32.mxu0 0.0
        %4168 = vmatmul.mubr.f32.gmra.mxu0 %v4080
        %v4169 = vpop.f32.mrf.mxu0
        %v4170 = vadd.f32 0.0, %v4169
        %v4171 = vpop.f32.mrf.mxu0
        %4172 = vmatprep.mubr.f32.mxu0 0.0
        %4173 = vmatmul.mubr.f32.gmra.mxu0 %v4083
        %v4174 = vpop.f32.mrf.mxu0
        %v4175 = vadd.f32 0.0, %v4174
        %v4176 = vpop.f32.mrf.mxu0
        %4177 = vmatprep.mubr.f32.mxu0 0.0
        %4178 = vmatmul.mubr.f32.gmra.mxu0 %v4086
        %v4179 = vpop.f32.mrf.mxu0
        %v4180 = vadd.f32 0.0, %v4179
        %v4181 = vpop.f32.mrf.mxu0
        %4182 = vmatprep.mubr.f32.mxu0 0.0
        %4183 = vmatmul.mubr.f32.gmra.mxu0 %v4089
        %v4184 = vpop.f32.mrf.mxu0
        %v4185 = vadd.f32 0.0, %v4184
        %v4186 = vpop.f32.mrf.mxu0
        %4187 = vmatprep.mubr.f32.mxu0 0.0
        %4188 = vmatmul.mubr.f32.gmra.mxu0 %v4092
        %v4189 = vpop.f32.mrf.mxu0
        %v4190 = vadd.f32 0.0, %v4189
        %v4191 = vpop.f32.mrf.mxu0
        %4192 = vmatprep.mubr.f32.mxu0 0.0
        %4193 = vmatmul.mubr.f32.gmra.mxu0 %v4095
        %v4194 = vpop.f32.mrf.mxu0
        %v4195 = vadd.f32 0.0, %v4194
        %v4196 = vpop.f32.mrf.mxu0
        %4197 = vmatprep.mubr.f32.mxu0 0.0
        %4198 = vmatmul.mubr.f32.gmra.mxu0 %v4098
        %v4199 = vpop.f32.mrf.mxu0
        %v4200 = vadd.f32 0.0, %v4199
        %v4201 = vpop.f32.mrf.mxu0
        %4202 = vmatprep.mubr.f32.mxu0 0.0
        %4203 = vmatmul.mubr.f32.gmra.mxu0 %v4101
        %v4204 = vpop.f32.mrf.mxu0
        %v4205 = vadd.f32 0.0, %v4204
        %v4206 = vpop.f32.mrf.mxu0
        %4207 = vdwg.mxu0
        %v4208 = vadd.f32 %v3894, %v4170
        %v4209 = vadd.f32 %v3899, %v4175
        %v4210 = vadd.f32 %v3904, %v4180
        %v4211 = vadd.f32 %v3909, %v4185
        %v4212 = vadd.f32 %v3914, %v4190
        %v4213 = vadd.f32 %v3919, %v4195
        %v4214 = vadd.f32 %v3924, %v4200
        %v4215 = vadd.f32 %v3929, %v4205
        %s4216 = scalar_lea.vmem [#allocation8], 192
        %v4217 = vld [vmem:[%s4216] sm:$0xff]
        %v4218 = vld [vmem:[%s4216 + $0x8] sm:$0xff]
        %v4219 = vld [vmem:[%s4216 + $0x10] sm:$0xff]
        %v4220 = vld [vmem:[%s4216 + $0x18] sm:$0xff]
        %v4221 = vld [vmem:[%s4216 + $0x20] sm:$0xff]
        %v4222 = vld [vmem:[%s4216 + $0x28] sm:$0xff]
        %v4223 = vld [vmem:[%s4216 + $0x30] sm:$0xff]
        %v4224 = vld [vmem:[%s4216 + $0x38] sm:$0xff]
        %v4226 = vsel %vm664, %v4217, 0
        %v4229 = vsel %vm664, %v4218, 0
        %v4232 = vsel %vm664, %v4219, 0
        %v4235 = vsel %vm664, %v4220, 0
        %v4238 = vsel %vm664, %v4221, 0
        %v4241 = vsel %vm664, %v4222, 0
        %v4244 = vsel %vm664, %v4223, 0
        %v4247 = vsel %vm664, %v4224, 0
        %4249 = vmatprep.subr.mxu0 0.0
        %4250 = vmatpush1.msra.mxu0 0.0
        %4251 = vmatprep.subr.mxu0 0.0
        %4252 = vmatpush1.msra.mxu0 0.0
        %4253 = vmatprep.subr.mxu0 0.0
        %4254 = vmatpush1.msra.mxu0 0.0
        %4255 = vmatprep.subr.mxu0 0.0
        %4256 = vmatpush1.msra.mxu0 0.0
        %4257 = vmatprep.subr.mxu0 0.0
        %4258 = vmatpush1.msra.mxu0 0.0
        %4259 = vmatprep.subr.mxu0 0.0
        %4260 = vmatpush1.msra.mxu0 0.0
        %4261 = vmatprep.subr.mxu0 0.0
        %4262 = vmatpush1.msra.mxu0 0.0
        %4263 = vmatprep.subr.mxu0 0.0
        %4264 = vmatpush1.msra.mxu0 0.0
        %4265 = vmatprep.subr.mxu0 0.0
        %4266 = vmatpush1.msra.mxu0 %v3381
        %4267 = vmatprep.subr.mxu0 0.0
        %4268 = vmatpush1.msra.mxu0 %v3380
        %4269 = vmatprep.subr.mxu0 0.0
        %4270 = vmatpush1.msra.mxu0 %v3379
        %4271 = vmatprep.subr.mxu0 0.0
        %4272 = vmatpush1.msra.mxu0 %v3378
        %4273 = vmatprep.subr.mxu0 0.0
        %4274 = vmatpush1.msra.mxu0 %v3377
        %4275 = vmatprep.subr.mxu0 0.0
        %4276 = vmatpush1.msra.mxu0 %v3376
        %4277 = vmatprep.subr.mxu0 0.0
        %4278 = vmatpush1.msra.mxu0 %v3375
        %4279 = vmatprep.subr.mxu0 0.0
        %4280 = vmatpush1.msra.mxu0 %v3374
        %4281 = vmatprep.subr.mxu0 0.0
        %4282 = vmatpush2.msra.mxu0 0.0
        %4283 = vmatprep.subr.mxu0 0.0
        %4284 = vmatpush2.msra.mxu0 0.0
        %4285 = vmatprep.subr.mxu0 0.0
        %4286 = vmatpush2.msra.mxu0 0.0
        %4287 = vmatprep.subr.mxu0 0.0
        %4288 = vmatpush2.msra.mxu0 0.0
        %4289 = vmatprep.subr.mxu0 0.0
        %4290 = vmatpush2.msra.mxu0 0.0
        %4291 = vmatprep.subr.mxu0 0.0
        %4292 = vmatpush2.msra.mxu0 0.0
        %4293 = vmatprep.subr.mxu0 0.0
        %4294 = vmatpush2.msra.mxu0 0.0
        %4295 = vmatprep.subr.mxu0 0.0
        %4296 = vmatpush2.msra.mxu0 0.0
        %4297 = vmatprep.subr.mxu0 0.0
        %4298 = vmatpush2.msra.mxu0 0.0
        %4299 = vmatprep.subr.mxu0 0.0
        %4300 = vmatpush2.msra.mxu0 0.0
        %4301 = vmatprep.subr.mxu0 0.0
        %4302 = vmatpush2.msra.mxu0 0.0
        %4303 = vmatprep.subr.mxu0 0.0
        %4304 = vmatpush2.msra.mxu0 0.0
        %4305 = vmatprep.subr.mxu0 0.0
        %4306 = vmatpush2.msra.mxu0 0.0
        %4307 = vmatprep.subr.mxu0 0.0
        %4308 = vmatpush2.msra.mxu0 0.0
        %4309 = vmatprep.subr.mxu0 0.0
        %4310 = vmatpush2.msra.mxu0 0.0
        %4311 = vmatprep.subr.mxu0 0.0
        %4312 = vmatpush2.msra.mxu0 0.0
        %4313 = vmatprep.mubr.f32.mxu0 0.0
        %4314 = vmatmul.mubr.f32.gmra.mxu0 %v4226
        %v4315 = vpop.f32.mrf.mxu0
        %v4316 = vadd.f32 0.0, %v4315
        %v4317 = vpop.f32.mrf.mxu0
        %4318 = vmatprep.mubr.f32.mxu0 0.0
        %4319 = vmatmul.mubr.f32.gmra.mxu0 %v4229
        %v4320 = vpop.f32.mrf.mxu0
        %v4321 = vadd.f32 0.0, %v4320
        %v4322 = vpop.f32.mrf.mxu0
        %4323 = vmatprep.mubr.f32.mxu0 0.0
        %4324 = vmatmul.mubr.f32.gmra.mxu0 %v4232
        %v4325 = vpop.f32.mrf.mxu0
        %v4326 = vadd.f32 0.0, %v4325
        %v4327 = vpop.f32.mrf.mxu0
        %4328 = vmatprep.mubr.f32.mxu0 0.0
        %4329 = vmatmul.mubr.f32.gmra.mxu0 %v4235
        %v4330 = vpop.f32.mrf.mxu0
        %v4331 = vadd.f32 0.0, %v4330
        %v4332 = vpop.f32.mrf.mxu0
        %4333 = vmatprep.mubr.f32.mxu0 0.0
        %4334 = vmatmul.mubr.f32.gmra.mxu0 %v4238
        %v4335 = vpop.f32.mrf.mxu0
        %v4336 = vadd.f32 0.0, %v4335
        %v4337 = vpop.f32.mrf.mxu0
        %4338 = vmatprep.mubr.f32.mxu0 0.0
        %4339 = vmatmul.mubr.f32.gmra.mxu0 %v4241
        %v4340 = vpop.f32.mrf.mxu0
        %v4341 = vadd.f32 0.0, %v4340
        %v4342 = vpop.f32.mrf.mxu0
        %4343 = vmatprep.mubr.f32.mxu0 0.0
        %4344 = vmatmul.mubr.f32.gmra.mxu0 %v4244
        %v4345 = vpop.f32.mrf.mxu0
        %v4346 = vadd.f32 0.0, %v4345
        %v4347 = vpop.f32.mrf.mxu0
        %4348 = vmatprep.mubr.f32.mxu0 0.0
        %4349 = vmatmul.mubr.f32.gmra.mxu0 %v4247
        %v4350 = vpop.f32.mrf.mxu0
        %v4351 = vadd.f32 0.0, %v4350
        %v4352 = vpop.f32.mrf.mxu0
        %4353 = vdwg.mxu0
        %s4354 = scalar_lea.vmem [#allocation10], 192
        %v4355 = vld [vmem:[%s4354] sm:$0xff]
        %v4356 = vld [vmem:[%s4354 + $0x8] sm:$0xff]
        %v4357 = vld [vmem:[%s4354 + $0x10] sm:$0xff]
        %v4358 = vld [vmem:[%s4354 + $0x18] sm:$0xff]
        %v4359 = vld [vmem:[%s4354 + $0x20] sm:$0xff]
        %v4360 = vld [vmem:[%s4354 + $0x28] sm:$0xff]
        %v4361 = vld [vmem:[%s4354 + $0x30] sm:$0xff]
        %v4362 = vld [vmem:[%s4354 + $0x38] sm:$0xff]
        %v4364 = vsel %vm664, %v4316, 0
        %v4367 = vsel %vm664, %v4321, 0
        %v4370 = vsel %vm664, %v4326, 0
        %v4373 = vsel %vm664, %v4331, 0
        %v4376 = vsel %vm664, %v4336, 0
        %v4379 = vsel %vm664, %v4341, 0
        %v4382 = vsel %vm664, %v4346, 0
        %v4385 = vsel %vm664, %v4351, 0
        %4387 = vmatprep.subr.mxu0 0.0
        %4388 = vmatpush1.msra.mxu0 0.0
        %4389 = vmatprep.subr.mxu0 0.0
        %4390 = vmatpush1.msra.mxu0 0.0
        %4391 = vmatprep.subr.mxu0 0.0
        %4392 = vmatpush1.msra.mxu0 0.0
        %4393 = vmatprep.subr.mxu0 0.0
        %4394 = vmatpush1.msra.mxu0 0.0
        %4395 = vmatprep.subr.mxu0 0.0
        %4396 = vmatpush1.msra.mxu0 0.0
        %4397 = vmatprep.subr.mxu0 0.0
        %4398 = vmatpush1.msra.mxu0 0.0
        %4399 = vmatprep.subr.mxu0 0.0
        %4400 = vmatpush1.msra.mxu0 0.0
        %4401 = vmatprep.subr.mxu0 0.0
        %4402 = vmatpush1.msra.mxu0 0.0
        %4403 = vmatprep.subr.mxu0 0.0
        %4404 = vmatpush1.msra.mxu0 %v4362
        %4405 = vmatprep.subr.mxu0 0.0
        %4406 = vmatpush1.msra.mxu0 %v4361
        %4407 = vmatprep.subr.mxu0 0.0
        %4408 = vmatpush1.msra.mxu0 %v4360
        %4409 = vmatprep.subr.mxu0 0.0
        %4410 = vmatpush1.msra.mxu0 %v4359
        %4411 = vmatprep.subr.mxu0 0.0
        %4412 = vmatpush1.msra.mxu0 %v4358
        %4413 = vmatprep.subr.mxu0 0.0
        %4414 = vmatpush1.msra.mxu0 %v4357
        %4415 = vmatprep.subr.mxu0 0.0
        %4416 = vmatpush1.msra.mxu0 %v4356
        %4417 = vmatprep.subr.mxu0 0.0
        %4418 = vmatpush1.msra.mxu0 %v4355
        %4419 = vmatprep.subr.mxu0 0.0
        %4420 = vmatpush2.msra.mxu0 0.0
        %4421 = vmatprep.subr.mxu0 0.0
        %4422 = vmatpush2.msra.mxu0 0.0
        %4423 = vmatprep.subr.mxu0 0.0
        %4424 = vmatpush2.msra.mxu0 0.0
        %4425 = vmatprep.subr.mxu0 0.0
        %4426 = vmatpush2.msra.mxu0 0.0
        %4427 = vmatprep.subr.mxu0 0.0
        %4428 = vmatpush2.msra.mxu0 0.0
        %4429 = vmatprep.subr.mxu0 0.0
        %4430 = vmatpush2.msra.mxu0 0.0
        %4431 = vmatprep.subr.mxu0 0.0
        %4432 = vmatpush2.msra.mxu0 0.0
        %4433 = vmatprep.subr.mxu0 0.0
        %4434 = vmatpush2.msra.mxu0 0.0
        %4435 = vmatprep.subr.mxu0 0.0
        %4436 = vmatpush2.msra.mxu0 0.0
        %4437 = vmatprep.subr.mxu0 0.0
        %4438 = vmatpush2.msra.mxu0 0.0
        %4439 = vmatprep.subr.mxu0 0.0
        %4440 = vmatpush2.msra.mxu0 0.0
        %4441 = vmatprep.subr.mxu0 0.0
        %4442 = vmatpush2.msra.mxu0 0.0
        %4443 = vmatprep.subr.mxu0 0.0
        %4444 = vmatpush2.msra.mxu0 0.0
        %4445 = vmatprep.subr.mxu0 0.0
        %4446 = vmatpush2.msra.mxu0 0.0
        %4447 = vmatprep.subr.mxu0 0.0
        %4448 = vmatpush2.msra.mxu0 0.0
        %4449 = vmatprep.subr.mxu0 0.0
        %4450 = vmatpush2.msra.mxu0 0.0
        %4451 = vmatprep.mubr.f32.mxu0 0.0
        %4452 = vmatmul.mubr.f32.gmra.mxu0 %v4364
        %v4453 = vpop.f32.mrf.mxu0
        %v4454 = vadd.f32 0.0, %v4453
        %v4455 = vpop.f32.mrf.mxu0
        %4456 = vmatprep.mubr.f32.mxu0 0.0
        %4457 = vmatmul.mubr.f32.gmra.mxu0 %v4367
        %v4458 = vpop.f32.mrf.mxu0
        %v4459 = vadd.f32 0.0, %v4458
        %v4460 = vpop.f32.mrf.mxu0
        %4461 = vmatprep.mubr.f32.mxu0 0.0
        %4462 = vmatmul.mubr.f32.gmra.mxu0 %v4370
        %v4463 = vpop.f32.mrf.mxu0
        %v4464 = vadd.f32 0.0, %v4463
        %v4465 = vpop.f32.mrf.mxu0
        %4466 = vmatprep.mubr.f32.mxu0 0.0
        %4467 = vmatmul.mubr.f32.gmra.mxu0 %v4373
        %v4468 = vpop.f32.mrf.mxu0
        %v4469 = vadd.f32 0.0, %v4468
        %v4470 = vpop.f32.mrf.mxu0
        %4471 = vmatprep.mubr.f32.mxu0 0.0
        %4472 = vmatmul.mubr.f32.gmra.mxu0 %v4376
        %v4473 = vpop.f32.mrf.mxu0
        %v4474 = vadd.f32 0.0, %v4473
        %v4475 = vpop.f32.mrf.mxu0
        %4476 = vmatprep.mubr.f32.mxu0 0.0
        %4477 = vmatmul.mubr.f32.gmra.mxu0 %v4379
        %v4478 = vpop.f32.mrf.mxu0
        %v4479 = vadd.f32 0.0, %v4478
        %v4480 = vpop.f32.mrf.mxu0
        %4481 = vmatprep.mubr.f32.mxu0 0.0
        %4482 = vmatmul.mubr.f32.gmra.mxu0 %v4382
        %v4483 = vpop.f32.mrf.mxu0
        %v4484 = vadd.f32 0.0, %v4483
        %v4485 = vpop.f32.mrf.mxu0
        %4486 = vmatprep.mubr.f32.mxu0 0.0
        %4487 = vmatmul.mubr.f32.gmra.mxu0 %v4385
        %v4488 = vpop.f32.mrf.mxu0
        %v4489 = vadd.f32 0.0, %v4488
        %v4490 = vpop.f32.mrf.mxu0
        %4491 = vdwg.mxu0
        %v4492 = vadd.f32 %v4208, %v4454
        %v4493 = vadd.f32 %v4209, %v4459
        %v4494 = vadd.f32 %v4210, %v4464
        %v4495 = vadd.f32 %v4211, %v4469
        %v4496 = vadd.f32 %v4212, %v4474
        %v4497 = vadd.f32 %v4213, %v4479
        %v4498 = vadd.f32 %v4214, %v4484
        %v4499 = vadd.f32 %v4215, %v4489
        %s4500 = scalar_lea.vmem [#allocation8], 256
        %v4501 = vld [vmem:[%s4500] sm:$0xff]
        %v4502 = vld [vmem:[%s4500 + $0x8] sm:$0xff]
        %v4503 = vld [vmem:[%s4500 + $0x10] sm:$0xff]
        %v4504 = vld [vmem:[%s4500 + $0x18] sm:$0xff]
        %v4505 = vld [vmem:[%s4500 + $0x20] sm:$0xff]
        %v4506 = vld [vmem:[%s4500 + $0x28] sm:$0xff]
        %v4507 = vld [vmem:[%s4500 + $0x30] sm:$0xff]
        %v4508 = vld [vmem:[%s4500 + $0x38] sm:$0xff]
        %v4510 = vsel %vm664, %v4501, 0
        %v4513 = vsel %vm664, %v4502, 0
        %v4516 = vsel %vm664, %v4503, 0
        %v4519 = vsel %vm664, %v4504, 0
        %v4522 = vsel %vm664, %v4505, 0
        %v4525 = vsel %vm664, %v4506, 0
        %v4528 = vsel %vm664, %v4507, 0
        %v4531 = vsel %vm664, %v4508, 0
        %4533 = vmatprep.subr.mxu0 0.0
        %4534 = vmatpush1.msra.mxu0 0.0
        %4535 = vmatprep.subr.mxu0 0.0
        %4536 = vmatpush1.msra.mxu0 0.0
        %4537 = vmatprep.subr.mxu0 0.0
        %4538 = vmatpush1.msra.mxu0 0.0
        %4539 = vmatprep.subr.mxu0 0.0
        %4540 = vmatpush1.msra.mxu0 0.0
        %4541 = vmatprep.subr.mxu0 0.0
        %4542 = vmatpush1.msra.mxu0 0.0
        %4543 = vmatprep.subr.mxu0 0.0
        %4544 = vmatpush1.msra.mxu0 0.0
        %4545 = vmatprep.subr.mxu0 0.0
        %4546 = vmatpush1.msra.mxu0 0.0
        %4547 = vmatprep.subr.mxu0 0.0
        %4548 = vmatpush1.msra.mxu0 0.0
        %4549 = vmatprep.subr.mxu0 0.0
        %4550 = vmatpush1.msra.mxu0 %v3381
        %4551 = vmatprep.subr.mxu0 0.0
        %4552 = vmatpush1.msra.mxu0 %v3380
        %4553 = vmatprep.subr.mxu0 0.0
        %4554 = vmatpush1.msra.mxu0 %v3379
        %4555 = vmatprep.subr.mxu0 0.0
        %4556 = vmatpush1.msra.mxu0 %v3378
        %4557 = vmatprep.subr.mxu0 0.0
        %4558 = vmatpush1.msra.mxu0 %v3377
        %4559 = vmatprep.subr.mxu0 0.0
        %4560 = vmatpush1.msra.mxu0 %v3376
        %4561 = vmatprep.subr.mxu0 0.0
        %4562 = vmatpush1.msra.mxu0 %v3375
        %4563 = vmatprep.subr.mxu0 0.0
        %4564 = vmatpush1.msra.mxu0 %v3374
        %4565 = vmatprep.subr.mxu0 0.0
        %4566 = vmatpush2.msra.mxu0 0.0
        %4567 = vmatprep.subr.mxu0 0.0
        %4568 = vmatpush2.msra.mxu0 0.0
        %4569 = vmatprep.subr.mxu0 0.0
        %4570 = vmatpush2.msra.mxu0 0.0
        %4571 = vmatprep.subr.mxu0 0.0
        %4572 = vmatpush2.msra.mxu0 0.0
        %4573 = vmatprep.subr.mxu0 0.0
        %4574 = vmatpush2.msra.mxu0 0.0
        %4575 = vmatprep.subr.mxu0 0.0
        %4576 = vmatpush2.msra.mxu0 0.0
        %4577 = vmatprep.subr.mxu0 0.0
        %4578 = vmatpush2.msra.mxu0 0.0
        %4579 = vmatprep.subr.mxu0 0.0
        %4580 = vmatpush2.msra.mxu0 0.0
        %4581 = vmatprep.subr.mxu0 0.0
        %4582 = vmatpush2.msra.mxu0 0.0
        %4583 = vmatprep.subr.mxu0 0.0
        %4584 = vmatpush2.msra.mxu0 0.0
        %4585 = vmatprep.subr.mxu0 0.0
        %4586 = vmatpush2.msra.mxu0 0.0
        %4587 = vmatprep.subr.mxu0 0.0
        %4588 = vmatpush2.msra.mxu0 0.0
        %4589 = vmatprep.subr.mxu0 0.0
        %4590 = vmatpush2.msra.mxu0 0.0
        %4591 = vmatprep.subr.mxu0 0.0
        %4592 = vmatpush2.msra.mxu0 0.0
        %4593 = vmatprep.subr.mxu0 0.0
        %4594 = vmatpush2.msra.mxu0 0.0
        %4595 = vmatprep.subr.mxu0 0.0
        %4596 = vmatpush2.msra.mxu0 0.0
        %4597 = vmatprep.mubr.f32.mxu0 0.0
        %4598 = vmatmul.mubr.f32.gmra.mxu0 %v4510
        %v4599 = vpop.f32.mrf.mxu0
        %v4600 = vadd.f32 0.0, %v4599
        %v4601 = vpop.f32.mrf.mxu0
        %4602 = vmatprep.mubr.f32.mxu0 0.0
        %4603 = vmatmul.mubr.f32.gmra.mxu0 %v4513
        %v4604 = vpop.f32.mrf.mxu0
        %v4605 = vadd.f32 0.0, %v4604
        %v4606 = vpop.f32.mrf.mxu0
        %4607 = vmatprep.mubr.f32.mxu0 0.0
        %4608 = vmatmul.mubr.f32.gmra.mxu0 %v4516
        %v4609 = vpop.f32.mrf.mxu0
        %v4610 = vadd.f32 0.0, %v4609
        %v4611 = vpop.f32.mrf.mxu0
        %4612 = vmatprep.mubr.f32.mxu0 0.0
        %4613 = vmatmul.mubr.f32.gmra.mxu0 %v4519
        %v4614 = vpop.f32.mrf.mxu0
        %v4615 = vadd.f32 0.0, %v4614
        %v4616 = vpop.f32.mrf.mxu0
        %4617 = vmatprep.mubr.f32.mxu0 0.0
        %4618 = vmatmul.mubr.f32.gmra.mxu0 %v4522
        %v4619 = vpop.f32.mrf.mxu0
        %v4620 = vadd.f32 0.0, %v4619
        %v4621 = vpop.f32.mrf.mxu0
        %4622 = vmatprep.mubr.f32.mxu0 0.0
        %4623 = vmatmul.mubr.f32.gmra.mxu0 %v4525
        %v4624 = vpop.f32.mrf.mxu0
        %v4625 = vadd.f32 0.0, %v4624
        %v4626 = vpop.f32.mrf.mxu0
        %4627 = vmatprep.mubr.f32.mxu0 0.0
        %4628 = vmatmul.mubr.f32.gmra.mxu0 %v4528
        %v4629 = vpop.f32.mrf.mxu0
        %v4630 = vadd.f32 0.0, %v4629
        %v4631 = vpop.f32.mrf.mxu0
        %4632 = vmatprep.mubr.f32.mxu0 0.0
        %4633 = vmatmul.mubr.f32.gmra.mxu0 %v4531
        %v4634 = vpop.f32.mrf.mxu0
        %v4635 = vadd.f32 0.0, %v4634
        %v4636 = vpop.f32.mrf.mxu0
        %4637 = vdwg.mxu0
        %s4638 = scalar_lea.vmem [#allocation10], 256
        %v4639 = vld [vmem:[%s4638] sm:$0xff]
        %v4640 = vld [vmem:[%s4638 + $0x8] sm:$0xff]
        %v4641 = vld [vmem:[%s4638 + $0x10] sm:$0xff]
        %v4642 = vld [vmem:[%s4638 + $0x18] sm:$0xff]
        %v4643 = vld [vmem:[%s4638 + $0x20] sm:$0xff]
        %v4644 = vld [vmem:[%s4638 + $0x28] sm:$0xff]
        %v4645 = vld [vmem:[%s4638 + $0x30] sm:$0xff]
        %v4646 = vld [vmem:[%s4638 + $0x38] sm:$0xff]
        %v4648 = vsel %vm664, %v4600, 0
        %v4651 = vsel %vm664, %v4605, 0
        %v4654 = vsel %vm664, %v4610, 0
        %v4657 = vsel %vm664, %v4615, 0
        %v4660 = vsel %vm664, %v4620, 0
        %v4663 = vsel %vm664, %v4625, 0
        %v4666 = vsel %vm664, %v4630, 0
        %v4669 = vsel %vm664, %v4635, 0
        %4671 = vmatprep.subr.mxu0 0.0
        %4672 = vmatpush1.msra.mxu0 0.0
        %4673 = vmatprep.subr.mxu0 0.0
        %4674 = vmatpush1.msra.mxu0 0.0
        %4675 = vmatprep.subr.mxu0 0.0
        %4676 = vmatpush1.msra.mxu0 0.0
        %4677 = vmatprep.subr.mxu0 0.0
        %4678 = vmatpush1.msra.mxu0 0.0
        %4679 = vmatprep.subr.mxu0 0.0
        %4680 = vmatpush1.msra.mxu0 0.0
        %4681 = vmatprep.subr.mxu0 0.0
        %4682 = vmatpush1.msra.mxu0 0.0
        %4683 = vmatprep.subr.mxu0 0.0
        %4684 = vmatpush1.msra.mxu0 0.0
        %4685 = vmatprep.subr.mxu0 0.0
        %4686 = vmatpush1.msra.mxu0 0.0
        %4687 = vmatprep.subr.mxu0 0.0
        %4688 = vmatpush1.msra.mxu0 %v4646
        %4689 = vmatprep.subr.mxu0 0.0
        %4690 = vmatpush1.msra.mxu0 %v4645
        %4691 = vmatprep.subr.mxu0 0.0
        %4692 = vmatpush1.msra.mxu0 %v4644
        %4693 = vmatprep.subr.mxu0 0.0
        %4694 = vmatpush1.msra.mxu0 %v4643
        %4695 = vmatprep.subr.mxu0 0.0
        %4696 = vmatpush1.msra.mxu0 %v4642
        %4697 = vmatprep.subr.mxu0 0.0
        %4698 = vmatpush1.msra.mxu0 %v4641
        %4699 = vmatprep.subr.mxu0 0.0
        %4700 = vmatpush1.msra.mxu0 %v4640
        %4701 = vmatprep.subr.mxu0 0.0
        %4702 = vmatpush1.msra.mxu0 %v4639
        %4703 = vmatprep.subr.mxu0 0.0
        %4704 = vmatpush2.msra.mxu0 0.0
        %4705 = vmatprep.subr.mxu0 0.0
        %4706 = vmatpush2.msra.mxu0 0.0
        %4707 = vmatprep.subr.mxu0 0.0
        %4708 = vmatpush2.msra.mxu0 0.0
        %4709 = vmatprep.subr.mxu0 0.0
        %4710 = vmatpush2.msra.mxu0 0.0
        %4711 = vmatprep.subr.mxu0 0.0
        %4712 = vmatpush2.msra.mxu0 0.0
        %4713 = vmatprep.subr.mxu0 0.0
        %4714 = vmatpush2.msra.mxu0 0.0
        %4715 = vmatprep.subr.mxu0 0.0
        %4716 = vmatpush2.msra.mxu0 0.0
        %4717 = vmatprep.subr.mxu0 0.0
        %4718 = vmatpush2.msra.mxu0 0.0
        %4719 = vmatprep.subr.mxu0 0.0
        %4720 = vmatpush2.msra.mxu0 0.0
        %4721 = vmatprep.subr.mxu0 0.0
        %4722 = vmatpush2.msra.mxu0 0.0
        %4723 = vmatprep.subr.mxu0 0.0
        %4724 = vmatpush2.msra.mxu0 0.0
        %4725 = vmatprep.subr.mxu0 0.0
        %4726 = vmatpush2.msra.mxu0 0.0
        %4727 = vmatprep.subr.mxu0 0.0
        %4728 = vmatpush2.msra.mxu0 0.0
        %4729 = vmatprep.subr.mxu0 0.0
        %4730 = vmatpush2.msra.mxu0 0.0
        %4731 = vmatprep.subr.mxu0 0.0
        %4732 = vmatpush2.msra.mxu0 0.0
        %4733 = vmatprep.subr.mxu0 0.0
        %4734 = vmatpush2.msra.mxu0 0.0
        %4735 = vmatprep.mubr.f32.mxu0 0.0
        %4736 = vmatmul.mubr.f32.gmra.mxu0 %v4648
        %v4737 = vpop.f32.mrf.mxu0
        %v4738 = vadd.f32 0.0, %v4737
        %v4739 = vpop.f32.mrf.mxu0
        %4740 = vmatprep.mubr.f32.mxu0 0.0
        %4741 = vmatmul.mubr.f32.gmra.mxu0 %v4651
        %v4742 = vpop.f32.mrf.mxu0
        %v4743 = vadd.f32 0.0, %v4742
        %v4744 = vpop.f32.mrf.mxu0
        %4745 = vmatprep.mubr.f32.mxu0 0.0
        %4746 = vmatmul.mubr.f32.gmra.mxu0 %v4654
        %v4747 = vpop.f32.mrf.mxu0
        %v4748 = vadd.f32 0.0, %v4747
        %v4749 = vpop.f32.mrf.mxu0
        %4750 = vmatprep.mubr.f32.mxu0 0.0
        %4751 = vmatmul.mubr.f32.gmra.mxu0 %v4657
        %v4752 = vpop.f32.mrf.mxu0
        %v4753 = vadd.f32 0.0, %v4752
        %v4754 = vpop.f32.mrf.mxu0
        %4755 = vmatprep.mubr.f32.mxu0 0.0
        %4756 = vmatmul.mubr.f32.gmra.mxu0 %v4660
        %v4757 = vpop.f32.mrf.mxu0
        %v4758 = vadd.f32 0.0, %v4757
        %v4759 = vpop.f32.mrf.mxu0
        %4760 = vmatprep.mubr.f32.mxu0 0.0
        %4761 = vmatmul.mubr.f32.gmra.mxu0 %v4663
        %v4762 = vpop.f32.mrf.mxu0
        %v4763 = vadd.f32 0.0, %v4762
        %v4764 = vpop.f32.mrf.mxu0
        %4765 = vmatprep.mubr.f32.mxu0 0.0
        %4766 = vmatmul.mubr.f32.gmra.mxu0 %v4666
        %v4767 = vpop.f32.mrf.mxu0
        %v4768 = vadd.f32 0.0, %v4767
        %v4769 = vpop.f32.mrf.mxu0
        %4770 = vmatprep.mubr.f32.mxu0 0.0
        %4771 = vmatmul.mubr.f32.gmra.mxu0 %v4669
        %v4772 = vpop.f32.mrf.mxu0
        %v4773 = vadd.f32 0.0, %v4772
        %v4774 = vpop.f32.mrf.mxu0
        %4775 = vdwg.mxu0
        %v4776 = vadd.f32 %v4492, %v4738
        %v4777 = vadd.f32 %v4493, %v4743
        %v4778 = vadd.f32 %v4494, %v4748
        %v4779 = vadd.f32 %v4495, %v4753
        %v4780 = vadd.f32 %v4496, %v4758
        %v4781 = vadd.f32 %v4497, %v4763
        %v4782 = vadd.f32 %v4498, %v4768
        %v4783 = vadd.f32 %v4499, %v4773
        %s4784 = scalar_lea.vmem [#allocation8], 320
        %v4785 = vld [vmem:[%s4784] sm:$0xff]
        %v4786 = vld [vmem:[%s4784 + $0x8] sm:$0xff]
        %v4787 = vld [vmem:[%s4784 + $0x10] sm:$0xff]
        %v4788 = vld [vmem:[%s4784 + $0x18] sm:$0xff]
        %v4789 = vld [vmem:[%s4784 + $0x20] sm:$0xff]
        %v4790 = vld [vmem:[%s4784 + $0x28] sm:$0xff]
        %v4791 = vld [vmem:[%s4784 + $0x30] sm:$0xff]
        %v4792 = vld [vmem:[%s4784 + $0x38] sm:$0xff]
        %v4794 = vsel %vm664, %v4785, 0
        %v4797 = vsel %vm664, %v4786, 0
        %v4800 = vsel %vm664, %v4787, 0
        %v4803 = vsel %vm664, %v4788, 0
        %v4806 = vsel %vm664, %v4789, 0
        %v4809 = vsel %vm664, %v4790, 0
        %v4812 = vsel %vm664, %v4791, 0
        %v4815 = vsel %vm664, %v4792, 0
        %4817 = vmatprep.subr.mxu0 0.0
        %4818 = vmatpush1.msra.mxu0 0.0
        %4819 = vmatprep.subr.mxu0 0.0
        %4820 = vmatpush1.msra.mxu0 0.0
        %4821 = vmatprep.subr.mxu0 0.0
        %4822 = vmatpush1.msra.mxu0 0.0
        %4823 = vmatprep.subr.mxu0 0.0
        %4824 = vmatpush1.msra.mxu0 0.0
        %4825 = vmatprep.subr.mxu0 0.0
        %4826 = vmatpush1.msra.mxu0 0.0
        %4827 = vmatprep.subr.mxu0 0.0
        %4828 = vmatpush1.msra.mxu0 0.0
        %4829 = vmatprep.subr.mxu0 0.0
        %4830 = vmatpush1.msra.mxu0 0.0
        %4831 = vmatprep.subr.mxu0 0.0
        %4832 = vmatpush1.msra.mxu0 0.0
        %4833 = vmatprep.subr.mxu0 0.0
        %4834 = vmatpush1.msra.mxu0 %v3381
        %4835 = vmatprep.subr.mxu0 0.0
        %4836 = vmatpush1.msra.mxu0 %v3380
        %4837 = vmatprep.subr.mxu0 0.0
        %4838 = vmatpush1.msra.mxu0 %v3379
        %4839 = vmatprep.subr.mxu0 0.0
        %4840 = vmatpush1.msra.mxu0 %v3378
        %4841 = vmatprep.subr.mxu0 0.0
        %4842 = vmatpush1.msra.mxu0 %v3377
        %4843 = vmatprep.subr.mxu0 0.0
        %4844 = vmatpush1.msra.mxu0 %v3376
        %4845 = vmatprep.subr.mxu0 0.0
        %4846 = vmatpush1.msra.mxu0 %v3375
        %4847 = vmatprep.subr.mxu0 0.0
        %4848 = vmatpush1.msra.mxu0 %v3374
        %4849 = vmatprep.subr.mxu0 0.0
        %4850 = vmatpush2.msra.mxu0 0.0
        %4851 = vmatprep.subr.mxu0 0.0
        %4852 = vmatpush2.msra.mxu0 0.0
        %4853 = vmatprep.subr.mxu0 0.0
        %4854 = vmatpush2.msra.mxu0 0.0
        %4855 = vmatprep.subr.mxu0 0.0
        %4856 = vmatpush2.msra.mxu0 0.0
        %4857 = vmatprep.subr.mxu0 0.0
        %4858 = vmatpush2.msra.mxu0 0.0
        %4859 = vmatprep.subr.mxu0 0.0
        %4860 = vmatpush2.msra.mxu0 0.0
        %4861 = vmatprep.subr.mxu0 0.0
        %4862 = vmatpush2.msra.mxu0 0.0
        %4863 = vmatprep.subr.mxu0 0.0
        %4864 = vmatpush2.msra.mxu0 0.0
        %4865 = vmatprep.subr.mxu0 0.0
        %4866 = vmatpush2.msra.mxu0 0.0
        %4867 = vmatprep.subr.mxu0 0.0
        %4868 = vmatpush2.msra.mxu0 0.0
        %4869 = vmatprep.subr.mxu0 0.0
        %4870 = vmatpush2.msra.mxu0 0.0
        %4871 = vmatprep.subr.mxu0 0.0
        %4872 = vmatpush2.msra.mxu0 0.0
        %4873 = vmatprep.subr.mxu0 0.0
        %4874 = vmatpush2.msra.mxu0 0.0
        %4875 = vmatprep.subr.mxu0 0.0
        %4876 = vmatpush2.msra.mxu0 0.0
        %4877 = vmatprep.subr.mxu0 0.0
        %4878 = vmatpush2.msra.mxu0 0.0
        %4879 = vmatprep.subr.mxu0 0.0
        %4880 = vmatpush2.msra.mxu0 0.0
        %4881 = vmatprep.mubr.f32.mxu0 0.0
        %4882 = vmatmul.mubr.f32.gmra.mxu0 %v4794
        %v4883 = vpop.f32.mrf.mxu0
        %v4884 = vadd.f32 0.0, %v4883
        %v4885 = vpop.f32.mrf.mxu0
        %4886 = vmatprep.mubr.f32.mxu0 0.0
        %4887 = vmatmul.mubr.f32.gmra.mxu0 %v4797
        %v4888 = vpop.f32.mrf.mxu0
        %v4889 = vadd.f32 0.0, %v4888
        %v4890 = vpop.f32.mrf.mxu0
        %4891 = vmatprep.mubr.f32.mxu0 0.0
        %4892 = vmatmul.mubr.f32.gmra.mxu0 %v4800
        %v4893 = vpop.f32.mrf.mxu0
        %v4894 = vadd.f32 0.0, %v4893
        %v4895 = vpop.f32.mrf.mxu0
        %4896 = vmatprep.mubr.f32.mxu0 0.0
        %4897 = vmatmul.mubr.f32.gmra.mxu0 %v4803
        %v4898 = vpop.f32.mrf.mxu0
        %v4899 = vadd.f32 0.0, %v4898
        %v4900 = vpop.f32.mrf.mxu0
        %4901 = vmatprep.mubr.f32.mxu0 0.0
        %4902 = vmatmul.mubr.f32.gmra.mxu0 %v4806
        %v4903 = vpop.f32.mrf.mxu0
        %v4904 = vadd.f32 0.0, %v4903
        %v4905 = vpop.f32.mrf.mxu0
        %4906 = vmatprep.mubr.f32.mxu0 0.0
        %4907 = vmatmul.mubr.f32.gmra.mxu0 %v4809
        %v4908 = vpop.f32.mrf.mxu0
        %v4909 = vadd.f32 0.0, %v4908
        %v4910 = vpop.f32.mrf.mxu0
        %4911 = vmatprep.mubr.f32.mxu0 0.0
        %4912 = vmatmul.mubr.f32.gmra.mxu0 %v4812
        %v4913 = vpop.f32.mrf.mxu0
        %v4914 = vadd.f32 0.0, %v4913
        %v4915 = vpop.f32.mrf.mxu0
        %4916 = vmatprep.mubr.f32.mxu0 0.0
        %4917 = vmatmul.mubr.f32.gmra.mxu0 %v4815
        %v4918 = vpop.f32.mrf.mxu0
        %v4919 = vadd.f32 0.0, %v4918
        %v4920 = vpop.f32.mrf.mxu0
        %4921 = vdwg.mxu0
        %s4922 = scalar_lea.vmem [#allocation10], 320
        %v4923 = vld [vmem:[%s4922] sm:$0xff]
        %v4924 = vld [vmem:[%s4922 + $0x8] sm:$0xff]
        %v4925 = vld [vmem:[%s4922 + $0x10] sm:$0xff]
        %v4926 = vld [vmem:[%s4922 + $0x18] sm:$0xff]
        %v4927 = vld [vmem:[%s4922 + $0x20] sm:$0xff]
        %v4928 = vld [vmem:[%s4922 + $0x28] sm:$0xff]
        %v4929 = vld [vmem:[%s4922 + $0x30] sm:$0xff]
        %v4930 = vld [vmem:[%s4922 + $0x38] sm:$0xff]
        %v4932 = vsel %vm664, %v4884, 0
        %v4935 = vsel %vm664, %v4889, 0
        %v4938 = vsel %vm664, %v4894, 0
        %v4941 = vsel %vm664, %v4899, 0
        %v4944 = vsel %vm664, %v4904, 0
        %v4947 = vsel %vm664, %v4909, 0
        %v4950 = vsel %vm664, %v4914, 0
        %v4953 = vsel %vm664, %v4919, 0
        %4955 = vmatprep.subr.mxu0 0.0
        %4956 = vmatpush1.msra.mxu0 0.0
        %4957 = vmatprep.subr.mxu0 0.0
        %4958 = vmatpush1.msra.mxu0 0.0
        %4959 = vmatprep.subr.mxu0 0.0
        %4960 = vmatpush1.msra.mxu0 0.0
        %4961 = vmatprep.subr.mxu0 0.0
        %4962 = vmatpush1.msra.mxu0 0.0
        %4963 = vmatprep.subr.mxu0 0.0
        %4964 = vmatpush1.msra.mxu0 0.0
        %4965 = vmatprep.subr.mxu0 0.0
        %4966 = vmatpush1.msra.mxu0 0.0
        %4967 = vmatprep.subr.mxu0 0.0
        %4968 = vmatpush1.msra.mxu0 0.0
        %4969 = vmatprep.subr.mxu0 0.0
        %4970 = vmatpush1.msra.mxu0 0.0
        %4971 = vmatprep.subr.mxu0 0.0
        %4972 = vmatpush1.msra.mxu0 %v4930
        %4973 = vmatprep.subr.mxu0 0.0
        %4974 = vmatpush1.msra.mxu0 %v4929
        %4975 = vmatprep.subr.mxu0 0.0
        %4976 = vmatpush1.msra.mxu0 %v4928
        %4977 = vmatprep.subr.mxu0 0.0
        %4978 = vmatpush1.msra.mxu0 %v4927
        %4979 = vmatprep.subr.mxu0 0.0
        %4980 = vmatpush1.msra.mxu0 %v4926
        %4981 = vmatprep.subr.mxu0 0.0
        %4982 = vmatpush1.msra.mxu0 %v4925
        %4983 = vmatprep.subr.mxu0 0.0
        %4984 = vmatpush1.msra.mxu0 %v4924
        %4985 = vmatprep.subr.mxu0 0.0
        %4986 = vmatpush1.msra.mxu0 %v4923
        %4987 = vmatprep.subr.mxu0 0.0
        %4988 = vmatpush2.msra.mxu0 0.0
        %4989 = vmatprep.subr.mxu0 0.0
        %4990 = vmatpush2.msra.mxu0 0.0
        %4991 = vmatprep.subr.mxu0 0.0
        %4992 = vmatpush2.msra.mxu0 0.0
        %4993 = vmatprep.subr.mxu0 0.0
        %4994 = vmatpush2.msra.mxu0 0.0
        %4995 = vmatprep.subr.mxu0 0.0
        %4996 = vmatpush2.msra.mxu0 0.0
        %4997 = vmatprep.subr.mxu0 0.0
        %4998 = vmatpush2.msra.mxu0 0.0
        %4999 = vmatprep.subr.mxu0 0.0
        %5000 = vmatpush2.msra.mxu0 0.0
        %5001 = vmatprep.subr.mxu0 0.0
        %5002 = vmatpush2.msra.mxu0 0.0
        %5003 = vmatprep.subr.mxu0 0.0
        %5004 = vmatpush2.msra.mxu0 0.0
        %5005 = vmatprep.subr.mxu0 0.0
        %5006 = vmatpush2.msra.mxu0 0.0
        %5007 = vmatprep.subr.mxu0 0.0
        %5008 = vmatpush2.msra.mxu0 0.0
        %5009 = vmatprep.subr.mxu0 0.0
        %5010 = vmatpush2.msra.mxu0 0.0
        %5011 = vmatprep.subr.mxu0 0.0
        %5012 = vmatpush2.msra.mxu0 0.0
        %5013 = vmatprep.subr.mxu0 0.0
        %5014 = vmatpush2.msra.mxu0 0.0
        %5015 = vmatprep.subr.mxu0 0.0
        %5016 = vmatpush2.msra.mxu0 0.0
        %5017 = vmatprep.subr.mxu0 0.0
        %5018 = vmatpush2.msra.mxu0 0.0
        %5019 = vmatprep.mubr.f32.mxu0 0.0
        %5020 = vmatmul.mubr.f32.gmra.mxu0 %v4932
        %v5021 = vpop.f32.mrf.mxu0
        %v5022 = vadd.f32 0.0, %v5021
        %v5023 = vpop.f32.mrf.mxu0
        %5024 = vmatprep.mubr.f32.mxu0 0.0
        %5025 = vmatmul.mubr.f32.gmra.mxu0 %v4935
        %v5026 = vpop.f32.mrf.mxu0
        %v5027 = vadd.f32 0.0, %v5026
        %v5028 = vpop.f32.mrf.mxu0
        %5029 = vmatprep.mubr.f32.mxu0 0.0
        %5030 = vmatmul.mubr.f32.gmra.mxu0 %v4938
        %v5031 = vpop.f32.mrf.mxu0
        %v5032 = vadd.f32 0.0, %v5031
        %v5033 = vpop.f32.mrf.mxu0
        %5034 = vmatprep.mubr.f32.mxu0 0.0
        %5035 = vmatmul.mubr.f32.gmra.mxu0 %v4941
        %v5036 = vpop.f32.mrf.mxu0
        %v5037 = vadd.f32 0.0, %v5036
        %v5038 = vpop.f32.mrf.mxu0
        %5039 = vmatprep.mubr.f32.mxu0 0.0
        %5040 = vmatmul.mubr.f32.gmra.mxu0 %v4944
        %v5041 = vpop.f32.mrf.mxu0
        %v5042 = vadd.f32 0.0, %v5041
        %v5043 = vpop.f32.mrf.mxu0
        %5044 = vmatprep.mubr.f32.mxu0 0.0
        %5045 = vmatmul.mubr.f32.gmra.mxu0 %v4947
        %v5046 = vpop.f32.mrf.mxu0
        %v5047 = vadd.f32 0.0, %v5046
        %v5048 = vpop.f32.mrf.mxu0
        %5049 = vmatprep.mubr.f32.mxu0 0.0
        %5050 = vmatmul.mubr.f32.gmra.mxu0 %v4950
        %v5051 = vpop.f32.mrf.mxu0
        %v5052 = vadd.f32 0.0, %v5051
        %v5053 = vpop.f32.mrf.mxu0
        %5054 = vmatprep.mubr.f32.mxu0 0.0
        %5055 = vmatmul.mubr.f32.gmra.mxu0 %v4953
        %v5056 = vpop.f32.mrf.mxu0
        %v5057 = vadd.f32 0.0, %v5056
        %v5058 = vpop.f32.mrf.mxu0
        %5059 = vdwg.mxu0
        %v5060 = vadd.f32 %v4776, %v5022
        %v5061 = vadd.f32 %v4777, %v5027
        %v5062 = vadd.f32 %v4778, %v5032
        %v5063 = vadd.f32 %v4779, %v5037
        %v5064 = vadd.f32 %v4780, %v5042
        %v5065 = vadd.f32 %v4781, %v5047
        %v5066 = vadd.f32 %v4782, %v5052
        %v5067 = vadd.f32 %v4783, %v5057
        %s5068 = scalar_lea.vmem [#allocation8], 384
        %v5069 = vld [vmem:[%s5068] sm:$0xff]
        %v5070 = vld [vmem:[%s5068 + $0x8] sm:$0xff]
        %v5071 = vld [vmem:[%s5068 + $0x10] sm:$0xff]
        %v5072 = vld [vmem:[%s5068 + $0x18] sm:$0xff]
        %v5073 = vld [vmem:[%s5068 + $0x20] sm:$0xff]
        %v5074 = vld [vmem:[%s5068 + $0x28] sm:$0xff]
        %v5075 = vld [vmem:[%s5068 + $0x30] sm:$0xff]
        %v5076 = vld [vmem:[%s5068 + $0x38] sm:$0xff]
        %v5078 = vsel %vm664, %v5069, 0
        %v5081 = vsel %vm664, %v5070, 0
        %v5084 = vsel %vm664, %v5071, 0
        %v5087 = vsel %vm664, %v5072, 0
        %v5090 = vsel %vm664, %v5073, 0
        %v5093 = vsel %vm664, %v5074, 0
        %v5096 = vsel %vm664, %v5075, 0
        %v5099 = vsel %vm664, %v5076, 0
        %5101 = vmatprep.subr.mxu0 0.0
        %5102 = vmatpush1.msra.mxu0 0.0
        %5103 = vmatprep.subr.mxu0 0.0
        %5104 = vmatpush1.msra.mxu0 0.0
        %5105 = vmatprep.subr.mxu0 0.0
        %5106 = vmatpush1.msra.mxu0 0.0
        %5107 = vmatprep.subr.mxu0 0.0
        %5108 = vmatpush1.msra.mxu0 0.0
        %5109 = vmatprep.subr.mxu0 0.0
        %5110 = vmatpush1.msra.mxu0 0.0
        %5111 = vmatprep.subr.mxu0 0.0
        %5112 = vmatpush1.msra.mxu0 0.0
        %5113 = vmatprep.subr.mxu0 0.0
        %5114 = vmatpush1.msra.mxu0 0.0
        %5115 = vmatprep.subr.mxu0 0.0
        %5116 = vmatpush1.msra.mxu0 0.0
        %5117 = vmatprep.subr.mxu0 0.0
        %5118 = vmatpush1.msra.mxu0 %v3381
        %5119 = vmatprep.subr.mxu0 0.0
        %5120 = vmatpush1.msra.mxu0 %v3380
        %5121 = vmatprep.subr.mxu0 0.0
        %5122 = vmatpush1.msra.mxu0 %v3379
        %5123 = vmatprep.subr.mxu0 0.0
        %5124 = vmatpush1.msra.mxu0 %v3378
        %5125 = vmatprep.subr.mxu0 0.0
        %5126 = vmatpush1.msra.mxu0 %v3377
        %5127 = vmatprep.subr.mxu0 0.0
        %5128 = vmatpush1.msra.mxu0 %v3376
        %5129 = vmatprep.subr.mxu0 0.0
        %5130 = vmatpush1.msra.mxu0 %v3375
        %5131 = vmatprep.subr.mxu0 0.0
        %5132 = vmatpush1.msra.mxu0 %v3374
        %5133 = vmatprep.subr.mxu0 0.0
        %5134 = vmatpush2.msra.mxu0 0.0
        %5135 = vmatprep.subr.mxu0 0.0
        %5136 = vmatpush2.msra.mxu0 0.0
        %5137 = vmatprep.subr.mxu0 0.0
        %5138 = vmatpush2.msra.mxu0 0.0
        %5139 = vmatprep.subr.mxu0 0.0
        %5140 = vmatpush2.msra.mxu0 0.0
        %5141 = vmatprep.subr.mxu0 0.0
        %5142 = vmatpush2.msra.mxu0 0.0
        %5143 = vmatprep.subr.mxu0 0.0
        %5144 = vmatpush2.msra.mxu0 0.0
        %5145 = vmatprep.subr.mxu0 0.0
        %5146 = vmatpush2.msra.mxu0 0.0
        %5147 = vmatprep.subr.mxu0 0.0
        %5148 = vmatpush2.msra.mxu0 0.0
        %5149 = vmatprep.subr.mxu0 0.0
        %5150 = vmatpush2.msra.mxu0 0.0
        %5151 = vmatprep.subr.mxu0 0.0
        %5152 = vmatpush2.msra.mxu0 0.0
        %5153 = vmatprep.subr.mxu0 0.0
        %5154 = vmatpush2.msra.mxu0 0.0
        %5155 = vmatprep.subr.mxu0 0.0
        %5156 = vmatpush2.msra.mxu0 0.0
        %5157 = vmatprep.subr.mxu0 0.0
        %5158 = vmatpush2.msra.mxu0 0.0
        %5159 = vmatprep.subr.mxu0 0.0
        %5160 = vmatpush2.msra.mxu0 0.0
        %5161 = vmatprep.subr.mxu0 0.0
        %5162 = vmatpush2.msra.mxu0 0.0
        %5163 = vmatprep.subr.mxu0 0.0
        %5164 = vmatpush2.msra.mxu0 0.0
        %5165 = vmatprep.mubr.f32.mxu0 0.0
        %5166 = vmatmul.mubr.f32.gmra.mxu0 %v5078
        %v5167 = vpop.f32.mrf.mxu0
        %v5168 = vadd.f32 0.0, %v5167
        %v5169 = vpop.f32.mrf.mxu0
        %5170 = vmatprep.mubr.f32.mxu0 0.0
        %5171 = vmatmul.mubr.f32.gmra.mxu0 %v5081
        %v5172 = vpop.f32.mrf.mxu0
        %v5173 = vadd.f32 0.0, %v5172
        %v5174 = vpop.f32.mrf.mxu0
        %5175 = vmatprep.mubr.f32.mxu0 0.0
        %5176 = vmatmul.mubr.f32.gmra.mxu0 %v5084
        %v5177 = vpop.f32.mrf.mxu0
        %v5178 = vadd.f32 0.0, %v5177
        %v5179 = vpop.f32.mrf.mxu0
        %5180 = vmatprep.mubr.f32.mxu0 0.0
        %5181 = vmatmul.mubr.f32.gmra.mxu0 %v5087
        %v5182 = vpop.f32.mrf.mxu0
        %v5183 = vadd.f32 0.0, %v5182
        %v5184 = vpop.f32.mrf.mxu0
        %5185 = vmatprep.mubr.f32.mxu0 0.0
        %5186 = vmatmul.mubr.f32.gmra.mxu0 %v5090
        %v5187 = vpop.f32.mrf.mxu0
        %v5188 = vadd.f32 0.0, %v5187
        %v5189 = vpop.f32.mrf.mxu0
        %5190 = vmatprep.mubr.f32.mxu0 0.0
        %5191 = vmatmul.mubr.f32.gmra.mxu0 %v5093
        %v5192 = vpop.f32.mrf.mxu0
        %v5193 = vadd.f32 0.0, %v5192
        %v5194 = vpop.f32.mrf.mxu0
        %5195 = vmatprep.mubr.f32.mxu0 0.0
        %5196 = vmatmul.mubr.f32.gmra.mxu0 %v5096
        %v5197 = vpop.f32.mrf.mxu0
        %v5198 = vadd.f32 0.0, %v5197
        %v5199 = vpop.f32.mrf.mxu0
        %5200 = vmatprep.mubr.f32.mxu0 0.0
        %5201 = vmatmul.mubr.f32.gmra.mxu0 %v5099
        %v5202 = vpop.f32.mrf.mxu0
        %v5203 = vadd.f32 0.0, %v5202
        %v5204 = vpop.f32.mrf.mxu0
        %5205 = vdwg.mxu0
        %s5206 = scalar_lea.vmem [#allocation10], 384
        %v5207 = vld [vmem:[%s5206] sm:$0xff]
        %v5208 = vld [vmem:[%s5206 + $0x8] sm:$0xff]
        %v5209 = vld [vmem:[%s5206 + $0x10] sm:$0xff]
        %v5210 = vld [vmem:[%s5206 + $0x18] sm:$0xff]
        %v5211 = vld [vmem:[%s5206 + $0x20] sm:$0xff]
        %v5212 = vld [vmem:[%s5206 + $0x28] sm:$0xff]
        %v5213 = vld [vmem:[%s5206 + $0x30] sm:$0xff]
        %v5214 = vld [vmem:[%s5206 + $0x38] sm:$0xff]
        %v5216 = vsel %vm664, %v5168, 0
        %v5219 = vsel %vm664, %v5173, 0
        %v5222 = vsel %vm664, %v5178, 0
        %v5225 = vsel %vm664, %v5183, 0
        %v5228 = vsel %vm664, %v5188, 0
        %v5231 = vsel %vm664, %v5193, 0
        %v5234 = vsel %vm664, %v5198, 0
        %v5237 = vsel %vm664, %v5203, 0
        %5239 = vmatprep.subr.mxu0 0.0
        %5240 = vmatpush1.msra.mxu0 0.0
        %5241 = vmatprep.subr.mxu0 0.0
        %5242 = vmatpush1.msra.mxu0 0.0
        %5243 = vmatprep.subr.mxu0 0.0
        %5244 = vmatpush1.msra.mxu0 0.0
        %5245 = vmatprep.subr.mxu0 0.0
        %5246 = vmatpush1.msra.mxu0 0.0
        %5247 = vmatprep.subr.mxu0 0.0
        %5248 = vmatpush1.msra.mxu0 0.0
        %5249 = vmatprep.subr.mxu0 0.0
        %5250 = vmatpush1.msra.mxu0 0.0
        %5251 = vmatprep.subr.mxu0 0.0
        %5252 = vmatpush1.msra.mxu0 0.0
        %5253 = vmatprep.subr.mxu0 0.0
        %5254 = vmatpush1.msra.mxu0 0.0
        %5255 = vmatprep.subr.mxu0 0.0
        %5256 = vmatpush1.msra.mxu0 %v5214
        %5257 = vmatprep.subr.mxu0 0.0
        %5258 = vmatpush1.msra.mxu0 %v5213
        %5259 = vmatprep.subr.mxu0 0.0
        %5260 = vmatpush1.msra.mxu0 %v5212
        %5261 = vmatprep.subr.mxu0 0.0
        %5262 = vmatpush1.msra.mxu0 %v5211
        %5263 = vmatprep.subr.mxu0 0.0
        %5264 = vmatpush1.msra.mxu0 %v5210
        %5265 = vmatprep.subr.mxu0 0.0
        %5266 = vmatpush1.msra.mxu0 %v5209
        %5267 = vmatprep.subr.mxu0 0.0
        %5268 = vmatpush1.msra.mxu0 %v5208
        %5269 = vmatprep.subr.mxu0 0.0
        %5270 = vmatpush1.msra.mxu0 %v5207
        %5271 = vmatprep.subr.mxu0 0.0
        %5272 = vmatpush2.msra.mxu0 0.0
        %5273 = vmatprep.subr.mxu0 0.0
        %5274 = vmatpush2.msra.mxu0 0.0
        %5275 = vmatprep.subr.mxu0 0.0
        %5276 = vmatpush2.msra.mxu0 0.0
        %5277 = vmatprep.subr.mxu0 0.0
        %5278 = vmatpush2.msra.mxu0 0.0
        %5279 = vmatprep.subr.mxu0 0.0
        %5280 = vmatpush2.msra.mxu0 0.0
        %5281 = vmatprep.subr.mxu0 0.0
        %5282 = vmatpush2.msra.mxu0 0.0
        %5283 = vmatprep.subr.mxu0 0.0
        %5284 = vmatpush2.msra.mxu0 0.0
        %5285 = vmatprep.subr.mxu0 0.0
        %5286 = vmatpush2.msra.mxu0 0.0
        %5287 = vmatprep.subr.mxu0 0.0
        %5288 = vmatpush2.msra.mxu0 0.0
        %5289 = vmatprep.subr.mxu0 0.0
        %5290 = vmatpush2.msra.mxu0 0.0
        %5291 = vmatprep.subr.mxu0 0.0
        %5292 = vmatpush2.msra.mxu0 0.0
        %5293 = vmatprep.subr.mxu0 0.0
        %5294 = vmatpush2.msra.mxu0 0.0
        %5295 = vmatprep.subr.mxu0 0.0
        %5296 = vmatpush2.msra.mxu0 0.0
        %5297 = vmatprep.subr.mxu0 0.0
        %5298 = vmatpush2.msra.mxu0 0.0
        %5299 = vmatprep.subr.mxu0 0.0
        %5300 = vmatpush2.msra.mxu0 0.0
        %5301 = vmatprep.subr.mxu0 0.0
        %5302 = vmatpush2.msra.mxu0 0.0
        %5303 = vmatprep.mubr.f32.mxu0 0.0
        %5304 = vmatmul.mubr.f32.gmra.mxu0 %v5216
        %v5305 = vpop.f32.mrf.mxu0
        %v5306 = vadd.f32 0.0, %v5305
        %v5307 = vpop.f32.mrf.mxu0
        %5308 = vmatprep.mubr.f32.mxu0 0.0
        %5309 = vmatmul.mubr.f32.gmra.mxu0 %v5219
        %v5310 = vpop.f32.mrf.mxu0
        %v5311 = vadd.f32 0.0, %v5310
        %v5312 = vpop.f32.mrf.mxu0
        %5313 = vmatprep.mubr.f32.mxu0 0.0
        %5314 = vmatmul.mubr.f32.gmra.mxu0 %v5222
        %v5315 = vpop.f32.mrf.mxu0
        %v5316 = vadd.f32 0.0, %v5315
        %v5317 = vpop.f32.mrf.mxu0
        %5318 = vmatprep.mubr.f32.mxu0 0.0
        %5319 = vmatmul.mubr.f32.gmra.mxu0 %v5225
        %v5320 = vpop.f32.mrf.mxu0
        %v5321 = vadd.f32 0.0, %v5320
        %v5322 = vpop.f32.mrf.mxu0
        %5323 = vmatprep.mubr.f32.mxu0 0.0
        %5324 = vmatmul.mubr.f32.gmra.mxu0 %v5228
        %v5325 = vpop.f32.mrf.mxu0
        %v5326 = vadd.f32 0.0, %v5325
        %v5327 = vpop.f32.mrf.mxu0
        %5328 = vmatprep.mubr.f32.mxu0 0.0
        %5329 = vmatmul.mubr.f32.gmra.mxu0 %v5231
        %v5330 = vpop.f32.mrf.mxu0
        %v5331 = vadd.f32 0.0, %v5330
        %v5332 = vpop.f32.mrf.mxu0
        %5333 = vmatprep.mubr.f32.mxu0 0.0
        %5334 = vmatmul.mubr.f32.gmra.mxu0 %v5234
        %v5335 = vpop.f32.mrf.mxu0
        %v5336 = vadd.f32 0.0, %v5335
        %v5337 = vpop.f32.mrf.mxu0
        %5338 = vmatprep.mubr.f32.mxu0 0.0
        %5339 = vmatmul.mubr.f32.gmra.mxu0 %v5237
        %v5340 = vpop.f32.mrf.mxu0
        %v5341 = vadd.f32 0.0, %v5340
        %v5342 = vpop.f32.mrf.mxu0
        %5343 = vdwg.mxu0
        %v5344 = vadd.f32 %v5060, %v5306
        %v5345 = vadd.f32 %v5061, %v5311
        %v5346 = vadd.f32 %v5062, %v5316
        %v5347 = vadd.f32 %v5063, %v5321
        %v5348 = vadd.f32 %v5064, %v5326
        %v5349 = vadd.f32 %v5065, %v5331
        %v5350 = vadd.f32 %v5066, %v5336
        %v5351 = vadd.f32 %v5067, %v5341
        %s5352 = scalar_lea.vmem [#allocation8], 448
        %v5353 = vld [vmem:[%s5352] sm:$0xff]
        %v5354 = vld [vmem:[%s5352 + $0x8] sm:$0xff]
        %v5355 = vld [vmem:[%s5352 + $0x10] sm:$0xff]
        %v5356 = vld [vmem:[%s5352 + $0x18] sm:$0xff]
        %v5357 = vld [vmem:[%s5352 + $0x20] sm:$0xff]
        %v5358 = vld [vmem:[%s5352 + $0x28] sm:$0xff]
        %v5359 = vld [vmem:[%s5352 + $0x30] sm:$0xff]
        %v5360 = vld [vmem:[%s5352 + $0x38] sm:$0xff]
        %v5362 = vsel %vm664, %v5353, 0
        %v5365 = vsel %vm664, %v5354, 0
        %v5368 = vsel %vm664, %v5355, 0
        %v5371 = vsel %vm664, %v5356, 0
        %v5374 = vsel %vm664, %v5357, 0
        %v5377 = vsel %vm664, %v5358, 0
        %v5380 = vsel %vm664, %v5359, 0
        %v5383 = vsel %vm664, %v5360, 0
        %5385 = vmatprep.subr.mxu0 0.0
        %5386 = vmatpush1.msra.mxu0 0.0
        %5387 = vmatprep.subr.mxu0 0.0
        %5388 = vmatpush1.msra.mxu0 0.0
        %5389 = vmatprep.subr.mxu0 0.0
        %5390 = vmatpush1.msra.mxu0 0.0
        %5391 = vmatprep.subr.mxu0 0.0
        %5392 = vmatpush1.msra.mxu0 0.0
        %5393 = vmatprep.subr.mxu0 0.0
        %5394 = vmatpush1.msra.mxu0 0.0
        %5395 = vmatprep.subr.mxu0 0.0
        %5396 = vmatpush1.msra.mxu0 0.0
        %5397 = vmatprep.subr.mxu0 0.0
        %5398 = vmatpush1.msra.mxu0 0.0
        %5399 = vmatprep.subr.mxu0 0.0
        %5400 = vmatpush1.msra.mxu0 0.0
        %5401 = vmatprep.subr.mxu0 0.0
        %5402 = vmatpush1.msra.mxu0 %v3381
        %5403 = vmatprep.subr.mxu0 0.0
        %5404 = vmatpush1.msra.mxu0 %v3380
        %5405 = vmatprep.subr.mxu0 0.0
        %5406 = vmatpush1.msra.mxu0 %v3379
        %5407 = vmatprep.subr.mxu0 0.0
        %5408 = vmatpush1.msra.mxu0 %v3378
        %5409 = vmatprep.subr.mxu0 0.0
        %5410 = vmatpush1.msra.mxu0 %v3377
        %5411 = vmatprep.subr.mxu0 0.0
        %5412 = vmatpush1.msra.mxu0 %v3376
        %5413 = vmatprep.subr.mxu0 0.0
        %5414 = vmatpush1.msra.mxu0 %v3375
        %5415 = vmatprep.subr.mxu0 0.0
        %5416 = vmatpush1.msra.mxu0 %v3374
        %5417 = vmatprep.subr.mxu0 0.0
        %5418 = vmatpush2.msra.mxu0 0.0
        %5419 = vmatprep.subr.mxu0 0.0
        %5420 = vmatpush2.msra.mxu0 0.0
        %5421 = vmatprep.subr.mxu0 0.0
        %5422 = vmatpush2.msra.mxu0 0.0
        %5423 = vmatprep.subr.mxu0 0.0
        %5424 = vmatpush2.msra.mxu0 0.0
        %5425 = vmatprep.subr.mxu0 0.0
        %5426 = vmatpush2.msra.mxu0 0.0
        %5427 = vmatprep.subr.mxu0 0.0
        %5428 = vmatpush2.msra.mxu0 0.0
        %5429 = vmatprep.subr.mxu0 0.0
        %5430 = vmatpush2.msra.mxu0 0.0
        %5431 = vmatprep.subr.mxu0 0.0
        %5432 = vmatpush2.msra.mxu0 0.0
        %5433 = vmatprep.subr.mxu0 0.0
        %5434 = vmatpush2.msra.mxu0 0.0
        %5435 = vmatprep.subr.mxu0 0.0
        %5436 = vmatpush2.msra.mxu0 0.0
        %5437 = vmatprep.subr.mxu0 0.0
        %5438 = vmatpush2.msra.mxu0 0.0
        %5439 = vmatprep.subr.mxu0 0.0
        %5440 = vmatpush2.msra.mxu0 0.0
        %5441 = vmatprep.subr.mxu0 0.0
        %5442 = vmatpush2.msra.mxu0 0.0
        %5443 = vmatprep.subr.mxu0 0.0
        %5444 = vmatpush2.msra.mxu0 0.0
        %5445 = vmatprep.subr.mxu0 0.0
        %5446 = vmatpush2.msra.mxu0 0.0
        %5447 = vmatprep.subr.mxu0 0.0
        %5448 = vmatpush2.msra.mxu0 0.0
        %5449 = vmatprep.mubr.f32.mxu0 0.0
        %5450 = vmatmul.mubr.f32.gmra.mxu0 %v5362
        %v5451 = vpop.f32.mrf.mxu0
        %v5452 = vadd.f32 0.0, %v5451
        %v5453 = vpop.f32.mrf.mxu0
        %5454 = vmatprep.mubr.f32.mxu0 0.0
        %5455 = vmatmul.mubr.f32.gmra.mxu0 %v5365
        %v5456 = vpop.f32.mrf.mxu0
        %v5457 = vadd.f32 0.0, %v5456
        %v5458 = vpop.f32.mrf.mxu0
        %5459 = vmatprep.mubr.f32.mxu0 0.0
        %5460 = vmatmul.mubr.f32.gmra.mxu0 %v5368
        %v5461 = vpop.f32.mrf.mxu0
        %v5462 = vadd.f32 0.0, %v5461
        %v5463 = vpop.f32.mrf.mxu0
        %5464 = vmatprep.mubr.f32.mxu0 0.0
        %5465 = vmatmul.mubr.f32.gmra.mxu0 %v5371
        %v5466 = vpop.f32.mrf.mxu0
        %v5467 = vadd.f32 0.0, %v5466
        %v5468 = vpop.f32.mrf.mxu0
        %5469 = vmatprep.mubr.f32.mxu0 0.0
        %5470 = vmatmul.mubr.f32.gmra.mxu0 %v5374
        %v5471 = vpop.f32.mrf.mxu0
        %v5472 = vadd.f32 0.0, %v5471
        %v5473 = vpop.f32.mrf.mxu0
        %5474 = vmatprep.mubr.f32.mxu0 0.0
        %5475 = vmatmul.mubr.f32.gmra.mxu0 %v5377
        %v5476 = vpop.f32.mrf.mxu0
        %v5477 = vadd.f32 0.0, %v5476
        %v5478 = vpop.f32.mrf.mxu0
        %5479 = vmatprep.mubr.f32.mxu0 0.0
        %5480 = vmatmul.mubr.f32.gmra.mxu0 %v5380
        %v5481 = vpop.f32.mrf.mxu0
        %v5482 = vadd.f32 0.0, %v5481
        %v5483 = vpop.f32.mrf.mxu0
        %5484 = vmatprep.mubr.f32.mxu0 0.0
        %5485 = vmatmul.mubr.f32.gmra.mxu0 %v5383
        %v5486 = vpop.f32.mrf.mxu0
        %v5487 = vadd.f32 0.0, %v5486
        %v5488 = vpop.f32.mrf.mxu0
        %5489 = vdwg.mxu0
        %s5490 = scalar_lea.vmem [#allocation10], 448
        %v5491 = vld [vmem:[%s5490] sm:$0xff]
        %v5492 = vld [vmem:[%s5490 + $0x8] sm:$0xff]
        %v5493 = vld [vmem:[%s5490 + $0x10] sm:$0xff]
        %v5494 = vld [vmem:[%s5490 + $0x18] sm:$0xff]
        %v5495 = vld [vmem:[%s5490 + $0x20] sm:$0xff]
        %v5496 = vld [vmem:[%s5490 + $0x28] sm:$0xff]
        %v5497 = vld [vmem:[%s5490 + $0x30] sm:$0xff]
        %v5498 = vld [vmem:[%s5490 + $0x38] sm:$0xff]
        %v5500 = vsel %vm664, %v5452, 0
        %v5503 = vsel %vm664, %v5457, 0
        %v5506 = vsel %vm664, %v5462, 0
        %v5509 = vsel %vm664, %v5467, 0
        %v5512 = vsel %vm664, %v5472, 0
        %v5515 = vsel %vm664, %v5477, 0
        %v5518 = vsel %vm664, %v5482, 0
        %v5521 = vsel %vm664, %v5487, 0
        %5523 = vmatprep.subr.mxu0 0.0
        %5524 = vmatpush1.msra.mxu0 0.0
        %5525 = vmatprep.subr.mxu0 0.0
        %5526 = vmatpush1.msra.mxu0 0.0
        %5527 = vmatprep.subr.mxu0 0.0
        %5528 = vmatpush1.msra.mxu0 0.0
        %5529 = vmatprep.subr.mxu0 0.0
        %5530 = vmatpush1.msra.mxu0 0.0
        %5531 = vmatprep.subr.mxu0 0.0
        %5532 = vmatpush1.msra.mxu0 0.0
        %5533 = vmatprep.subr.mxu0 0.0
        %5534 = vmatpush1.msra.mxu0 0.0
        %5535 = vmatprep.subr.mxu0 0.0
        %5536 = vmatpush1.msra.mxu0 0.0
        %5537 = vmatprep.subr.mxu0 0.0
        %5538 = vmatpush1.msra.mxu0 0.0
        %5539 = vmatprep.subr.mxu0 0.0
        %5540 = vmatpush1.msra.mxu0 %v5498
        %5541 = vmatprep.subr.mxu0 0.0
        %5542 = vmatpush1.msra.mxu0 %v5497
        %5543 = vmatprep.subr.mxu0 0.0
        %5544 = vmatpush1.msra.mxu0 %v5496
        %5545 = vmatprep.subr.mxu0 0.0
        %5546 = vmatpush1.msra.mxu0 %v5495
        %5547 = vmatprep.subr.mxu0 0.0
        %5548 = vmatpush1.msra.mxu0 %v5494
        %5549 = vmatprep.subr.mxu0 0.0
        %5550 = vmatpush1.msra.mxu0 %v5493
        %5551 = vmatprep.subr.mxu0 0.0
        %5552 = vmatpush1.msra.mxu0 %v5492
        %5553 = vmatprep.subr.mxu0 0.0
        %5554 = vmatpush1.msra.mxu0 %v5491
        %5555 = vmatprep.subr.mxu0 0.0
        %5556 = vmatpush2.msra.mxu0 0.0
        %5557 = vmatprep.subr.mxu0 0.0
        %5558 = vmatpush2.msra.mxu0 0.0
        %5559 = vmatprep.subr.mxu0 0.0
        %5560 = vmatpush2.msra.mxu0 0.0
        %5561 = vmatprep.subr.mxu0 0.0
        %5562 = vmatpush2.msra.mxu0 0.0
        %5563 = vmatprep.subr.mxu0 0.0
        %5564 = vmatpush2.msra.mxu0 0.0
        %5565 = vmatprep.subr.mxu0 0.0
        %5566 = vmatpush2.msra.mxu0 0.0
        %5567 = vmatprep.subr.mxu0 0.0
        %5568 = vmatpush2.msra.mxu0 0.0
        %5569 = vmatprep.subr.mxu0 0.0
        %5570 = vmatpush2.msra.mxu0 0.0
        %5571 = vmatprep.subr.mxu0 0.0
        %5572 = vmatpush2.msra.mxu0 0.0
        %5573 = vmatprep.subr.mxu0 0.0
        %5574 = vmatpush2.msra.mxu0 0.0
        %5575 = vmatprep.subr.mxu0 0.0
        %5576 = vmatpush2.msra.mxu0 0.0
        %5577 = vmatprep.subr.mxu0 0.0
        %5578 = vmatpush2.msra.mxu0 0.0
        %5579 = vmatprep.subr.mxu0 0.0
        %5580 = vmatpush2.msra.mxu0 0.0
        %5581 = vmatprep.subr.mxu0 0.0
        %5582 = vmatpush2.msra.mxu0 0.0
        %5583 = vmatprep.subr.mxu0 0.0
        %5584 = vmatpush2.msra.mxu0 0.0
        %5585 = vmatprep.subr.mxu0 0.0
        %5586 = vmatpush2.msra.mxu0 0.0
        %5587 = vmatprep.mubr.f32.mxu0 0.0
        %5588 = vmatmul.mubr.f32.gmra.mxu0 %v5500
        %v5589 = vpop.f32.mrf.mxu0
        %v5590 = vadd.f32 0.0, %v5589
        %v5591 = vpop.f32.mrf.mxu0
        %5592 = vmatprep.mubr.f32.mxu0 0.0
        %5593 = vmatmul.mubr.f32.gmra.mxu0 %v5503
        %v5594 = vpop.f32.mrf.mxu0
        %v5595 = vadd.f32 0.0, %v5594
        %v5596 = vpop.f32.mrf.mxu0
        %5597 = vmatprep.mubr.f32.mxu0 0.0
        %5598 = vmatmul.mubr.f32.gmra.mxu0 %v5506
        %v5599 = vpop.f32.mrf.mxu0
        %v5600 = vadd.f32 0.0, %v5599
        %v5601 = vpop.f32.mrf.mxu0
        %5602 = vmatprep.mubr.f32.mxu0 0.0
        %5603 = vmatmul.mubr.f32.gmra.mxu0 %v5509
        %v5604 = vpop.f32.mrf.mxu0
        %v5605 = vadd.f32 0.0, %v5604
        %v5606 = vpop.f32.mrf.mxu0
        %5607 = vmatprep.mubr.f32.mxu0 0.0
        %5608 = vmatmul.mubr.f32.gmra.mxu0 %v5512
        %v5609 = vpop.f32.mrf.mxu0
        %v5610 = vadd.f32 0.0, %v5609
        %v5611 = vpop.f32.mrf.mxu0
        %5612 = vmatprep.mubr.f32.mxu0 0.0
        %5613 = vmatmul.mubr.f32.gmra.mxu0 %v5515
        %v5614 = vpop.f32.mrf.mxu0
        %v5615 = vadd.f32 0.0, %v5614
        %v5616 = vpop.f32.mrf.mxu0
        %5617 = vmatprep.mubr.f32.mxu0 0.0
        %5618 = vmatmul.mubr.f32.gmra.mxu0 %v5518
        %v5619 = vpop.f32.mrf.mxu0
        %v5620 = vadd.f32 0.0, %v5619
        %v5621 = vpop.f32.mrf.mxu0
        %5622 = vmatprep.mubr.f32.mxu0 0.0
        %5623 = vmatmul.mubr.f32.gmra.mxu0 %v5521
        %v5624 = vpop.f32.mrf.mxu0
        %v5625 = vadd.f32 0.0, %v5624
        %v5626 = vpop.f32.mrf.mxu0
        %5627 = vdwg.mxu0
        %v5628 = vadd.f32 %v5344, %v5590
        %v5629 = vadd.f32 %v5345, %v5595
        %v5630 = vadd.f32 %v5346, %v5600
        %v5631 = vadd.f32 %v5347, %v5605
        %v5632 = vadd.f32 %v5348, %v5610
        %v5633 = vadd.f32 %v5349, %v5615
        %v5634 = vadd.f32 %v5350, %v5620
        %v5635 = vadd.f32 %v5351, %v5625
        %s5636 = scalar_lea.vmem [#allocation8], 512
        %v5637 = vld [vmem:[%s5636] sm:$0xff]
        %v5638 = vld [vmem:[%s5636 + $0x8] sm:$0xff]
        %v5639 = vld [vmem:[%s5636 + $0x10] sm:$0xff]
        %v5640 = vld [vmem:[%s5636 + $0x18] sm:$0xff]
        %v5641 = vld [vmem:[%s5636 + $0x20] sm:$0xff]
        %v5642 = vld [vmem:[%s5636 + $0x28] sm:$0xff]
        %v5643 = vld [vmem:[%s5636 + $0x30] sm:$0xff]
        %v5644 = vld [vmem:[%s5636 + $0x38] sm:$0xff]
        %v5646 = vsel %vm664, %v5637, 0
        %v5649 = vsel %vm664, %v5638, 0
        %v5652 = vsel %vm664, %v5639, 0
        %v5655 = vsel %vm664, %v5640, 0
        %v5658 = vsel %vm664, %v5641, 0
        %v5661 = vsel %vm664, %v5642, 0
        %v5664 = vsel %vm664, %v5643, 0
        %v5667 = vsel %vm664, %v5644, 0
        %5669 = vmatprep.subr.mxu0 0.0
        %5670 = vmatpush1.msra.mxu0 0.0
        %5671 = vmatprep.subr.mxu0 0.0
        %5672 = vmatpush1.msra.mxu0 0.0
        %5673 = vmatprep.subr.mxu0 0.0
        %5674 = vmatpush1.msra.mxu0 0.0
        %5675 = vmatprep.subr.mxu0 0.0
        %5676 = vmatpush1.msra.mxu0 0.0
        %5677 = vmatprep.subr.mxu0 0.0
        %5678 = vmatpush1.msra.mxu0 0.0
        %5679 = vmatprep.subr.mxu0 0.0
        %5680 = vmatpush1.msra.mxu0 0.0
        %5681 = vmatprep.subr.mxu0 0.0
        %5682 = vmatpush1.msra.mxu0 0.0
        %5683 = vmatprep.subr.mxu0 0.0
        %5684 = vmatpush1.msra.mxu0 0.0
        %5685 = vmatprep.subr.mxu0 0.0
        %5686 = vmatpush1.msra.mxu0 %v3381
        %5687 = vmatprep.subr.mxu0 0.0
        %5688 = vmatpush1.msra.mxu0 %v3380
        %5689 = vmatprep.subr.mxu0 0.0
        %5690 = vmatpush1.msra.mxu0 %v3379
        %5691 = vmatprep.subr.mxu0 0.0
        %5692 = vmatpush1.msra.mxu0 %v3378
        %5693 = vmatprep.subr.mxu0 0.0
        %5694 = vmatpush1.msra.mxu0 %v3377
        %5695 = vmatprep.subr.mxu0 0.0
        %5696 = vmatpush1.msra.mxu0 %v3376
        %5697 = vmatprep.subr.mxu0 0.0
        %5698 = vmatpush1.msra.mxu0 %v3375
        %5699 = vmatprep.subr.mxu0 0.0
        %5700 = vmatpush1.msra.mxu0 %v3374
        %5701 = vmatprep.subr.mxu0 0.0
        %5702 = vmatpush2.msra.mxu0 0.0
        %5703 = vmatprep.subr.mxu0 0.0
        %5704 = vmatpush2.msra.mxu0 0.0
        %5705 = vmatprep.subr.mxu0 0.0
        %5706 = vmatpush2.msra.mxu0 0.0
        %5707 = vmatprep.subr.mxu0 0.0
        %5708 = vmatpush2.msra.mxu0 0.0
        %5709 = vmatprep.subr.mxu0 0.0
        %5710 = vmatpush2.msra.mxu0 0.0
        %5711 = vmatprep.subr.mxu0 0.0
        %5712 = vmatpush2.msra.mxu0 0.0
        %5713 = vmatprep.subr.mxu0 0.0
        %5714 = vmatpush2.msra.mxu0 0.0
        %5715 = vmatprep.subr.mxu0 0.0
        %5716 = vmatpush2.msra.mxu0 0.0
        %5717 = vmatprep.subr.mxu0 0.0
        %5718 = vmatpush2.msra.mxu0 0.0
        %5719 = vmatprep.subr.mxu0 0.0
        %5720 = vmatpush2.msra.mxu0 0.0
        %5721 = vmatprep.subr.mxu0 0.0
        %5722 = vmatpush2.msra.mxu0 0.0
        %5723 = vmatprep.subr.mxu0 0.0
        %5724 = vmatpush2.msra.mxu0 0.0
        %5725 = vmatprep.subr.mxu0 0.0
        %5726 = vmatpush2.msra.mxu0 0.0
        %5727 = vmatprep.subr.mxu0 0.0
        %5728 = vmatpush2.msra.mxu0 0.0
        %5729 = vmatprep.subr.mxu0 0.0
        %5730 = vmatpush2.msra.mxu0 0.0
        %5731 = vmatprep.subr.mxu0 0.0
        %5732 = vmatpush2.msra.mxu0 0.0
        %5733 = vmatprep.mubr.f32.mxu0 0.0
        %5734 = vmatmul.mubr.f32.gmra.mxu0 %v5646
        %v5735 = vpop.f32.mrf.mxu0
        %v5736 = vadd.f32 0.0, %v5735
        %v5737 = vpop.f32.mrf.mxu0
        %5738 = vmatprep.mubr.f32.mxu0 0.0
        %5739 = vmatmul.mubr.f32.gmra.mxu0 %v5649
        %v5740 = vpop.f32.mrf.mxu0
        %v5741 = vadd.f32 0.0, %v5740
        %v5742 = vpop.f32.mrf.mxu0
        %5743 = vmatprep.mubr.f32.mxu0 0.0
        %5744 = vmatmul.mubr.f32.gmra.mxu0 %v5652
        %v5745 = vpop.f32.mrf.mxu0
        %v5746 = vadd.f32 0.0, %v5745
        %v5747 = vpop.f32.mrf.mxu0
        %5748 = vmatprep.mubr.f32.mxu0 0.0
        %5749 = vmatmul.mubr.f32.gmra.mxu0 %v5655
        %v5750 = vpop.f32.mrf.mxu0
        %v5751 = vadd.f32 0.0, %v5750
        %v5752 = vpop.f32.mrf.mxu0
        %5753 = vmatprep.mubr.f32.mxu0 0.0
        %5754 = vmatmul.mubr.f32.gmra.mxu0 %v5658
        %v5755 = vpop.f32.mrf.mxu0
        %v5756 = vadd.f32 0.0, %v5755
        %v5757 = vpop.f32.mrf.mxu0
        %5758 = vmatprep.mubr.f32.mxu0 0.0
        %5759 = vmatmul.mubr.f32.gmra.mxu0 %v5661
        %v5760 = vpop.f32.mrf.mxu0
        %v5761 = vadd.f32 0.0, %v5760
        %v5762 = vpop.f32.mrf.mxu0
        %5763 = vmatprep.mubr.f32.mxu0 0.0
        %5764 = vmatmul.mubr.f32.gmra.mxu0 %v5664
        %v5765 = vpop.f32.mrf.mxu0
        %v5766 = vadd.f32 0.0, %v5765
        %v5767 = vpop.f32.mrf.mxu0
        %5768 = vmatprep.mubr.f32.mxu0 0.0
        %5769 = vmatmul.mubr.f32.gmra.mxu0 %v5667
        %v5770 = vpop.f32.mrf.mxu0
        %v5771 = vadd.f32 0.0, %v5770
        %v5772 = vpop.f32.mrf.mxu0
        %5773 = vdwg.mxu0
        %s5774 = scalar_lea.vmem [#allocation10], 512
        %v5775 = vld [vmem:[%s5774] sm:$0xff]
        %v5776 = vld [vmem:[%s5774 + $0x8] sm:$0xff]
        %v5777 = vld [vmem:[%s5774 + $0x10] sm:$0xff]
        %v5778 = vld [vmem:[%s5774 + $0x18] sm:$0xff]
        %v5779 = vld [vmem:[%s5774 + $0x20] sm:$0xff]
        %v5780 = vld [vmem:[%s5774 + $0x28] sm:$0xff]
        %v5781 = vld [vmem:[%s5774 + $0x30] sm:$0xff]
        %v5782 = vld [vmem:[%s5774 + $0x38] sm:$0xff]
        %v5784 = vsel %vm664, %v5736, 0
        %v5787 = vsel %vm664, %v5741, 0
        %v5790 = vsel %vm664, %v5746, 0
        %v5793 = vsel %vm664, %v5751, 0
        %v5796 = vsel %vm664, %v5756, 0
        %v5799 = vsel %vm664, %v5761, 0
        %v5802 = vsel %vm664, %v5766, 0
        %v5805 = vsel %vm664, %v5771, 0
        %5807 = vmatprep.subr.mxu0 0.0
        %5808 = vmatpush1.msra.mxu0 0.0
        %5809 = vmatprep.subr.mxu0 0.0
        %5810 = vmatpush1.msra.mxu0 0.0
        %5811 = vmatprep.subr.mxu0 0.0
        %5812 = vmatpush1.msra.mxu0 0.0
        %5813 = vmatprep.subr.mxu0 0.0
        %5814 = vmatpush1.msra.mxu0 0.0
        %5815 = vmatprep.subr.mxu0 0.0
        %5816 = vmatpush1.msra.mxu0 0.0
        %5817 = vmatprep.subr.mxu0 0.0
        %5818 = vmatpush1.msra.mxu0 0.0
        %5819 = vmatprep.subr.mxu0 0.0
        %5820 = vmatpush1.msra.mxu0 0.0
        %5821 = vmatprep.subr.mxu0 0.0
        %5822 = vmatpush1.msra.mxu0 0.0
        %5823 = vmatprep.subr.mxu0 0.0
        %5824 = vmatpush1.msra.mxu0 %v5782
        %5825 = vmatprep.subr.mxu0 0.0
        %5826 = vmatpush1.msra.mxu0 %v5781
        %5827 = vmatprep.subr.mxu0 0.0
        %5828 = vmatpush1.msra.mxu0 %v5780
        %5829 = vmatprep.subr.mxu0 0.0
        %5830 = vmatpush1.msra.mxu0 %v5779
        %5831 = vmatprep.subr.mxu0 0.0
        %5832 = vmatpush1.msra.mxu0 %v5778
        %5833 = vmatprep.subr.mxu0 0.0
        %5834 = vmatpush1.msra.mxu0 %v5777
        %5835 = vmatprep.subr.mxu0 0.0
        %5836 = vmatpush1.msra.mxu0 %v5776
        %5837 = vmatprep.subr.mxu0 0.0
        %5838 = vmatpush1.msra.mxu0 %v5775
        %5839 = vmatprep.subr.mxu0 0.0
        %5840 = vmatpush2.msra.mxu0 0.0
        %5841 = vmatprep.subr.mxu0 0.0
        %5842 = vmatpush2.msra.mxu0 0.0
        %5843 = vmatprep.subr.mxu0 0.0
        %5844 = vmatpush2.msra.mxu0 0.0
        %5845 = vmatprep.subr.mxu0 0.0
        %5846 = vmatpush2.msra.mxu0 0.0
        %5847 = vmatprep.subr.mxu0 0.0
        %5848 = vmatpush2.msra.mxu0 0.0
        %5849 = vmatprep.subr.mxu0 0.0
        %5850 = vmatpush2.msra.mxu0 0.0
        %5851 = vmatprep.subr.mxu0 0.0
        %5852 = vmatpush2.msra.mxu0 0.0
        %5853 = vmatprep.subr.mxu0 0.0
        %5854 = vmatpush2.msra.mxu0 0.0
        %5855 = vmatprep.subr.mxu0 0.0
        %5856 = vmatpush2.msra.mxu0 0.0
        %5857 = vmatprep.subr.mxu0 0.0
        %5858 = vmatpush2.msra.mxu0 0.0
        %5859 = vmatprep.subr.mxu0 0.0
        %5860 = vmatpush2.msra.mxu0 0.0
        %5861 = vmatprep.subr.mxu0 0.0
        %5862 = vmatpush2.msra.mxu0 0.0
        %5863 = vmatprep.subr.mxu0 0.0
        %5864 = vmatpush2.msra.mxu0 0.0
        %5865 = vmatprep.subr.mxu0 0.0
        %5866 = vmatpush2.msra.mxu0 0.0
        %5867 = vmatprep.subr.mxu0 0.0
        %5868 = vmatpush2.msra.mxu0 0.0
        %5869 = vmatprep.subr.mxu0 0.0
        %5870 = vmatpush2.msra.mxu0 0.0
        %5871 = vmatprep.mubr.f32.mxu0 0.0
        %5872 = vmatmul.mubr.f32.gmra.mxu0 %v5784
        %v5873 = vpop.f32.mrf.mxu0
        %v5874 = vadd.f32 0.0, %v5873
        %v5875 = vpop.f32.mrf.mxu0
        %5876 = vmatprep.mubr.f32.mxu0 0.0
        %5877 = vmatmul.mubr.f32.gmra.mxu0 %v5787
        %v5878 = vpop.f32.mrf.mxu0
        %v5879 = vadd.f32 0.0, %v5878
        %v5880 = vpop.f32.mrf.mxu0
        %5881 = vmatprep.mubr.f32.mxu0 0.0
        %5882 = vmatmul.mubr.f32.gmra.mxu0 %v5790
        %v5883 = vpop.f32.mrf.mxu0
        %v5884 = vadd.f32 0.0, %v5883
        %v5885 = vpop.f32.mrf.mxu0
        %5886 = vmatprep.mubr.f32.mxu0 0.0
        %5887 = vmatmul.mubr.f32.gmra.mxu0 %v5793
        %v5888 = vpop.f32.mrf.mxu0
        %v5889 = vadd.f32 0.0, %v5888
        %v5890 = vpop.f32.mrf.mxu0
        %5891 = vmatprep.mubr.f32.mxu0 0.0
        %5892 = vmatmul.mubr.f32.gmra.mxu0 %v5796
        %v5893 = vpop.f32.mrf.mxu0
        %v5894 = vadd.f32 0.0, %v5893
        %v5895 = vpop.f32.mrf.mxu0
        %5896 = vmatprep.mubr.f32.mxu0 0.0
        %5897 = vmatmul.mubr.f32.gmra.mxu0 %v5799
        %v5898 = vpop.f32.mrf.mxu0
        %v5899 = vadd.f32 0.0, %v5898
        %v5900 = vpop.f32.mrf.mxu0
        %5901 = vmatprep.mubr.f32.mxu0 0.0
        %5902 = vmatmul.mubr.f32.gmra.mxu0 %v5802
        %v5903 = vpop.f32.mrf.mxu0
        %v5904 = vadd.f32 0.0, %v5903
        %v5905 = vpop.f32.mrf.mxu0
        %5906 = vmatprep.mubr.f32.mxu0 0.0
        %5907 = vmatmul.mubr.f32.gmra.mxu0 %v5805
        %v5908 = vpop.f32.mrf.mxu0
        %v5909 = vadd.f32 0.0, %v5908
        %v5910 = vpop.f32.mrf.mxu0
        %5911 = vdwg.mxu0
        %v5912 = vadd.f32 %v5628, %v5874
        %v5913 = vadd.f32 %v5629, %v5879
        %v5914 = vadd.f32 %v5630, %v5884
        %v5915 = vadd.f32 %v5631, %v5889
        %v5916 = vadd.f32 %v5632, %v5894
        %v5917 = vadd.f32 %v5633, %v5899
        %v5918 = vadd.f32 %v5634, %v5904
        %v5919 = vadd.f32 %v5635, %v5909
        %v5920 = vld [vmem:[%s9] sm:$0x1]
        %v5922 = vlaneseq
        %v5923 = vshrl.u32 %v5922, 7
        %v5924 = vsub.s32 0, %v5923
        %v5925 = vrot.slane %v5920, %v5924
        %v5927 = vadd.f32 %v5912, %v5925
        %v5928 = vadd.f32 %v5913, %v5925
        %v5929 = vadd.f32 %v5914, %v5925
        %v5930 = vadd.f32 %v5915, %v5925
        %v5931 = vadd.f32 %v5916, %v5925
        %v5932 = vadd.f32 %v5917, %v5925
        %v5933 = vadd.f32 %v5918, %v5925
        %v5934 = vadd.f32 %v5919, %v5925
        %v5935 = vld [vmem:[#allocation13] sm:$0xff]
        %v5936 = vld [vmem:[#allocation13 + $0x8] sm:$0xff]
        %v5937 = vld [vmem:[#allocation13 + $0x10] sm:$0xff]
        %v5938 = vld [vmem:[#allocation13 + $0x18] sm:$0xff]
        %v5939 = vld [vmem:[#allocation13 + $0x20] sm:$0xff]
        %v5940 = vld [vmem:[#allocation13 + $0x28] sm:$0xff]
        %v5941 = vld [vmem:[#allocation13 + $0x30] sm:$0xff]
        %v5942 = vld [vmem:[#allocation13 + $0x38] sm:$0xff]
        %v5944 = vsel %vm664, %v600, 0
        %v5947 = vsel %vm664, %v601, 0
        %v5950 = vsel %vm664, %v602, 0
        %v5953 = vsel %vm664, %v603, 0
        %v5956 = vsel %vm664, %v604, 0
        %v5959 = vsel %vm664, %v605, 0
        %v5962 = vsel %vm664, %v606, 0
        %v5965 = vsel %vm664, %v607, 0
        %v5968 = vsel %vm664, %v608, 0
        %v5971 = vsel %vm664, %v609, 0
        %v5974 = vsel %vm664, %v610, 0
        %v5977 = vsel %vm664, %v611, 0
        %v5980 = vsel %vm664, %v612, 0
        %v5983 = vsel %vm664, %v613, 0
        %v5986 = vsel %vm664, %v614, 0
        %v5989 = vsel %vm664, %v615, 0
        %v5992 = vsel %vm664, %v616, 0
        %v5995 = vsel %vm664, %v617, 0
        %v5998 = vsel %vm664, %v618, 0
        %v6001 = vsel %vm664, %v619, 0
        %v6004 = vsel %vm664, %v620, 0
        %v6007 = vsel %vm664, %v621, 0
        %v6010 = vsel %vm664, %v622, 0
        %v6013 = vsel %vm664, %v623, 0
        %v6016 = vsel %vm664, %v624, 0
        %v6019 = vsel %vm664, %v625, 0
        %v6022 = vsel %vm664, %v626, 0
        %v6025 = vsel %vm664, %v627, 0
        %v6028 = vsel %vm664, %v628, 0
        %v6031 = vsel %vm664, %v629, 0
        %v6034 = vsel %vm664, %v630, 0
        %v6037 = vsel %vm664, %v631, 0
        %6039 = vmatprep.subr.mxu0 0.0
        %6040 = vmatpush1.msra.mxu0 0.0
        %6041 = vmatprep.subr.mxu0 0.0
        %6042 = vmatpush1.msra.mxu0 0.0
        %6043 = vmatprep.subr.mxu0 0.0
        %6044 = vmatpush1.msra.mxu0 0.0
        %6045 = vmatprep.subr.mxu0 0.0
        %6046 = vmatpush1.msra.mxu0 0.0
        %6047 = vmatprep.subr.mxu0 0.0
        %6048 = vmatpush1.msra.mxu0 0.0
        %6049 = vmatprep.subr.mxu0 0.0
        %6050 = vmatpush1.msra.mxu0 0.0
        %6051 = vmatprep.subr.mxu0 0.0
        %6052 = vmatpush1.msra.mxu0 0.0
        %6053 = vmatprep.subr.mxu0 0.0
        %6054 = vmatpush1.msra.mxu0 0.0
        %6055 = vmatprep.subr.mxu0 0.0
        %6056 = vmatpush1.msra.mxu0 %v5942
        %6057 = vmatprep.subr.mxu0 0.0
        %6058 = vmatpush1.msra.mxu0 %v5941
        %6059 = vmatprep.subr.mxu0 0.0
        %6060 = vmatpush1.msra.mxu0 %v5940
        %6061 = vmatprep.subr.mxu0 0.0
        %6062 = vmatpush1.msra.mxu0 %v5939
        %6063 = vmatprep.subr.mxu0 0.0
        %6064 = vmatpush1.msra.mxu0 %v5938
        %6065 = vmatprep.subr.mxu0 0.0
        %6066 = vmatpush1.msra.mxu0 %v5937
        %6067 = vmatprep.subr.mxu0 0.0
        %6068 = vmatpush1.msra.mxu0 %v5936
        %6069 = vmatprep.subr.mxu0 0.0
        %6070 = vmatpush1.msra.mxu0 %v5935
        %6071 = vmatprep.subr.mxu0 0.0
        %6072 = vmatpush2.msra.mxu0 0.0
        %6073 = vmatprep.subr.mxu0 0.0
        %6074 = vmatpush2.msra.mxu0 0.0
        %6075 = vmatprep.subr.mxu0 0.0
        %6076 = vmatpush2.msra.mxu0 0.0
        %6077 = vmatprep.subr.mxu0 0.0
        %6078 = vmatpush2.msra.mxu0 0.0
        %6079 = vmatprep.subr.mxu0 0.0
        %6080 = vmatpush2.msra.mxu0 0.0
        %6081 = vmatprep.subr.mxu0 0.0
        %6082 = vmatpush2.msra.mxu0 0.0
        %6083 = vmatprep.subr.mxu0 0.0
        %6084 = vmatpush2.msra.mxu0 0.0
        %6085 = vmatprep.subr.mxu0 0.0
        %6086 = vmatpush2.msra.mxu0 0.0
        %6087 = vmatprep.subr.mxu0 0.0
        %6088 = vmatpush2.msra.mxu0 0.0
        %6089 = vmatprep.subr.mxu0 0.0
        %6090 = vmatpush2.msra.mxu0 0.0
        %6091 = vmatprep.subr.mxu0 0.0
        %6092 = vmatpush2.msra.mxu0 0.0
        %6093 = vmatprep.subr.mxu0 0.0
        %6094 = vmatpush2.msra.mxu0 0.0
        %6095 = vmatprep.subr.mxu0 0.0
        %6096 = vmatpush2.msra.mxu0 0.0
        %6097 = vmatprep.subr.mxu0 0.0
        %6098 = vmatpush2.msra.mxu0 0.0
        %6099 = vmatprep.subr.mxu0 0.0
        %6100 = vmatpush2.msra.mxu0 0.0
        %6101 = vmatprep.subr.mxu0 0.0
        %6102 = vmatpush2.msra.mxu0 0.0
        %6103 = vmatprep.mubr.f32.mxu0 0.0
        %6104 = vmatmul.mubr.f32.gmra.mxu0 %v5944
        %v6105 = vpop.f32.mrf.mxu0
        %v6106 = vadd.f32 0.0, %v6105
        %v6107 = vpop.f32.mrf.mxu0
        %6108 = vmatprep.mubr.f32.mxu0 0.0
        %6109 = vmatmul.mubr.f32.gmra.mxu0 %v5947
        %v6110 = vpop.f32.mrf.mxu0
        %v6111 = vadd.f32 0.0, %v6110
        %v6112 = vpop.f32.mrf.mxu0
        %6113 = vmatprep.mubr.f32.mxu0 0.0
        %6114 = vmatmul.mubr.f32.gmra.mxu0 %v5950
        %v6115 = vpop.f32.mrf.mxu0
        %v6116 = vadd.f32 0.0, %v6115
        %v6117 = vpop.f32.mrf.mxu0
        %6118 = vmatprep.mubr.f32.mxu0 0.0
        %6119 = vmatmul.mubr.f32.gmra.mxu0 %v5953
        %v6120 = vpop.f32.mrf.mxu0
        %v6121 = vadd.f32 0.0, %v6120
        %v6122 = vpop.f32.mrf.mxu0
        %6123 = vmatprep.mubr.f32.mxu0 0.0
        %6124 = vmatmul.mubr.f32.gmra.mxu0 %v5956
        %v6125 = vpop.f32.mrf.mxu0
        %v6126 = vadd.f32 0.0, %v6125
        %v6127 = vpop.f32.mrf.mxu0
        %6128 = vmatprep.mubr.f32.mxu0 0.0
        %6129 = vmatmul.mubr.f32.gmra.mxu0 %v5959
        %v6130 = vpop.f32.mrf.mxu0
        %v6131 = vadd.f32 0.0, %v6130
        %v6132 = vpop.f32.mrf.mxu0
        %6133 = vmatprep.mubr.f32.mxu0 0.0
        %6134 = vmatmul.mubr.f32.gmra.mxu0 %v5962
        %v6135 = vpop.f32.mrf.mxu0
        %v6136 = vadd.f32 0.0, %v6135
        %v6137 = vpop.f32.mrf.mxu0
        %6138 = vmatprep.mubr.f32.mxu0 0.0
        %6139 = vmatmul.mubr.f32.gmra.mxu0 %v5965
        %v6140 = vpop.f32.mrf.mxu0
        %v6141 = vadd.f32 0.0, %v6140
        %v6142 = vpop.f32.mrf.mxu0
        %6143 = vmatprep.mubr.f32.mxu0 0.0
        %6144 = vmatmul.mubr.f32.gmra.mxu0 %v5968
        %v6145 = vpop.f32.mrf.mxu0
        %v6146 = vadd.f32 0.0, %v6145
        %v6147 = vpop.f32.mrf.mxu0
        %6148 = vmatprep.mubr.f32.mxu0 0.0
        %6149 = vmatmul.mubr.f32.gmra.mxu0 %v5971
        %v6150 = vpop.f32.mrf.mxu0
        %v6151 = vadd.f32 0.0, %v6150
        %v6152 = vpop.f32.mrf.mxu0
        %6153 = vmatprep.mubr.f32.mxu0 0.0
        %6154 = vmatmul.mubr.f32.gmra.mxu0 %v5974
        %v6155 = vpop.f32.mrf.mxu0
        %v6156 = vadd.f32 0.0, %v6155
        %v6157 = vpop.f32.mrf.mxu0
        %6158 = vmatprep.mubr.f32.mxu0 0.0
        %6159 = vmatmul.mubr.f32.gmra.mxu0 %v5977
        %v6160 = vpop.f32.mrf.mxu0
        %v6161 = vadd.f32 0.0, %v6160
        %v6162 = vpop.f32.mrf.mxu0
        %6163 = vmatprep.mubr.f32.mxu0 0.0
        %6164 = vmatmul.mubr.f32.gmra.mxu0 %v5980
        %v6165 = vpop.f32.mrf.mxu0
        %v6166 = vadd.f32 0.0, %v6165
        %v6167 = vpop.f32.mrf.mxu0
        %6168 = vmatprep.mubr.f32.mxu0 0.0
        %6169 = vmatmul.mubr.f32.gmra.mxu0 %v5983
        %v6170 = vpop.f32.mrf.mxu0
        %v6171 = vadd.f32 0.0, %v6170
        %v6172 = vpop.f32.mrf.mxu0
        %6173 = vmatprep.mubr.f32.mxu0 0.0
        %6174 = vmatmul.mubr.f32.gmra.mxu0 %v5986
        %v6175 = vpop.f32.mrf.mxu0
        %v6176 = vadd.f32 0.0, %v6175
        %v6177 = vpop.f32.mrf.mxu0
        %6178 = vmatprep.mubr.f32.mxu0 0.0
        %6179 = vmatmul.mubr.f32.gmra.mxu0 %v5989
        %v6180 = vpop.f32.mrf.mxu0
        %v6181 = vadd.f32 0.0, %v6180
        %v6182 = vpop.f32.mrf.mxu0
        %6183 = vmatprep.mubr.f32.mxu0 0.0
        %6184 = vmatmul.mubr.f32.gmra.mxu0 %v5992
        %v6185 = vpop.f32.mrf.mxu0
        %v6186 = vadd.f32 0.0, %v6185
        %v6187 = vpop.f32.mrf.mxu0
        %6188 = vmatprep.mubr.f32.mxu0 0.0
        %6189 = vmatmul.mubr.f32.gmra.mxu0 %v5995
        %v6190 = vpop.f32.mrf.mxu0
        %v6191 = vadd.f32 0.0, %v6190
        %v6192 = vpop.f32.mrf.mxu0
        %6193 = vmatprep.mubr.f32.mxu0 0.0
        %6194 = vmatmul.mubr.f32.gmra.mxu0 %v5998
        %v6195 = vpop.f32.mrf.mxu0
        %v6196 = vadd.f32 0.0, %v6195
        %v6197 = vpop.f32.mrf.mxu0
        %6198 = vmatprep.mubr.f32.mxu0 0.0
        %6199 = vmatmul.mubr.f32.gmra.mxu0 %v6001
        %v6200 = vpop.f32.mrf.mxu0
        %v6201 = vadd.f32 0.0, %v6200
        %v6202 = vpop.f32.mrf.mxu0
        %6203 = vmatprep.mubr.f32.mxu0 0.0
        %6204 = vmatmul.mubr.f32.gmra.mxu0 %v6004
        %v6205 = vpop.f32.mrf.mxu0
        %v6206 = vadd.f32 0.0, %v6205
        %v6207 = vpop.f32.mrf.mxu0
        %6208 = vmatprep.mubr.f32.mxu0 0.0
        %6209 = vmatmul.mubr.f32.gmra.mxu0 %v6007
        %v6210 = vpop.f32.mrf.mxu0
        %v6211 = vadd.f32 0.0, %v6210
        %v6212 = vpop.f32.mrf.mxu0
        %6213 = vmatprep.mubr.f32.mxu0 0.0
        %6214 = vmatmul.mubr.f32.gmra.mxu0 %v6010
        %v6215 = vpop.f32.mrf.mxu0
        %v6216 = vadd.f32 0.0, %v6215
        %v6217 = vpop.f32.mrf.mxu0
        %6218 = vmatprep.mubr.f32.mxu0 0.0
        %6219 = vmatmul.mubr.f32.gmra.mxu0 %v6013
        %v6220 = vpop.f32.mrf.mxu0
        %v6221 = vadd.f32 0.0, %v6220
        %v6222 = vpop.f32.mrf.mxu0
        %6223 = vmatprep.mubr.f32.mxu0 0.0
        %6224 = vmatmul.mubr.f32.gmra.mxu0 %v6016
        %v6225 = vpop.f32.mrf.mxu0
        %v6226 = vadd.f32 0.0, %v6225
        %v6227 = vpop.f32.mrf.mxu0
        %6228 = vmatprep.mubr.f32.mxu0 0.0
        %6229 = vmatmul.mubr.f32.gmra.mxu0 %v6019
        %v6230 = vpop.f32.mrf.mxu0
        %v6231 = vadd.f32 0.0, %v6230
        %v6232 = vpop.f32.mrf.mxu0
        %6233 = vmatprep.mubr.f32.mxu0 0.0
        %6234 = vmatmul.mubr.f32.gmra.mxu0 %v6022
        %v6235 = vpop.f32.mrf.mxu0
        %v6236 = vadd.f32 0.0, %v6235
        %v6237 = vpop.f32.mrf.mxu0
        %6238 = vmatprep.mubr.f32.mxu0 0.0
        %6239 = vmatmul.mubr.f32.gmra.mxu0 %v6025
        %v6240 = vpop.f32.mrf.mxu0
        %v6241 = vadd.f32 0.0, %v6240
        %v6242 = vpop.f32.mrf.mxu0
        %6243 = vmatprep.mubr.f32.mxu0 0.0
        %6244 = vmatmul.mubr.f32.gmra.mxu0 %v6028
        %v6245 = vpop.f32.mrf.mxu0
        %v6246 = vadd.f32 0.0, %v6245
        %v6247 = vpop.f32.mrf.mxu0
        %6248 = vmatprep.mubr.f32.mxu0 0.0
        %6249 = vmatmul.mubr.f32.gmra.mxu0 %v6031
        %v6250 = vpop.f32.mrf.mxu0
        %v6251 = vadd.f32 0.0, %v6250
        %v6252 = vpop.f32.mrf.mxu0
        %6253 = vmatprep.mubr.f32.mxu0 0.0
        %6254 = vmatmul.mubr.f32.gmra.mxu0 %v6034
        %v6255 = vpop.f32.mrf.mxu0
        %v6256 = vadd.f32 0.0, %v6255
        %v6257 = vpop.f32.mrf.mxu0
        %6258 = vmatprep.mubr.f32.mxu0 0.0
        %6259 = vmatmul.mubr.f32.gmra.mxu0 %v6037
        %v6260 = vpop.f32.mrf.mxu0
        %v6261 = vadd.f32 0.0, %v6260
        %v6262 = vpop.f32.mrf.mxu0
        %6263 = vdwg.mxu0
        %v6264 = vld [vmem:[#allocation11] sm:$0xff]
        %v6265 = vld [vmem:[#allocation11 + $0x8] sm:$0xff]
        %v6266 = vld [vmem:[#allocation11 + $0x10] sm:$0xff]
        %v6267 = vld [vmem:[#allocation11 + $0x18] sm:$0xff]
        %v6268 = vld [vmem:[#allocation11 + $0x20] sm:$0xff]
        %v6269 = vld [vmem:[#allocation11 + $0x28] sm:$0xff]
        %v6270 = vld [vmem:[#allocation11 + $0x30] sm:$0xff]
        %v6271 = vld [vmem:[#allocation11 + $0x38] sm:$0xff]
        %v6272 = vld [vmem:[#allocation11 + $0x40] sm:$0xff]
        %v6273 = vld [vmem:[#allocation11 + $0x48] sm:$0xff]
        %v6274 = vld [vmem:[#allocation11 + $0x50] sm:$0xff]
        %v6275 = vld [vmem:[#allocation11 + $0x58] sm:$0xff]
        %v6276 = vld [vmem:[#allocation11 + $0x60] sm:$0xff]
        %v6277 = vld [vmem:[#allocation11 + $0x68] sm:$0xff]
        %v6278 = vld [vmem:[#allocation11 + $0x70] sm:$0xff]
        %v6279 = vld [vmem:[#allocation11 + $0x78] sm:$0xff]
        %6280 = vmatprep.subr.mxu0 0.0
        %6281 = vmatpush1.msra.mxu0 %v6181
        %6282 = vmatprep.subr.mxu0 0.0
        %6283 = vmatpush1.msra.mxu0 %v6176
        %6284 = vmatprep.subr.mxu0 0.0
        %6285 = vmatpush1.msra.mxu0 %v6171
        %6286 = vmatprep.subr.mxu0 0.0
        %6287 = vmatpush1.msra.mxu0 %v6166
        %6288 = vmatprep.subr.mxu0 0.0
        %6289 = vmatpush1.msra.mxu0 %v6161
        %6290 = vmatprep.subr.mxu0 0.0
        %6291 = vmatpush1.msra.mxu0 %v6156
        %6292 = vmatprep.subr.mxu0 0.0
        %6293 = vmatpush1.msra.mxu0 %v6151
        %6294 = vmatprep.subr.mxu0 0.0
        %6295 = vmatpush1.msra.mxu0 %v6146
        %6296 = vmatprep.subr.mxu0 0.0
        %6297 = vmatpush1.msra.mxu0 %v6141
        %6298 = vmatprep.subr.mxu0 0.0
        %6299 = vmatpush1.msra.mxu0 %v6136
        %6300 = vmatprep.subr.mxu0 0.0
        %6301 = vmatpush1.msra.mxu0 %v6131
        %6302 = vmatprep.subr.mxu0 0.0
        %6303 = vmatpush1.msra.mxu0 %v6126
        %6304 = vmatprep.subr.mxu0 0.0
        %6305 = vmatpush1.msra.mxu0 %v6121
        %6306 = vmatprep.subr.mxu0 0.0
        %6307 = vmatpush1.msra.mxu0 %v6116
        %6308 = vmatprep.subr.mxu0 0.0
        %6309 = vmatpush1.msra.mxu0 %v6111
        %6310 = vmatprep.subr.mxu0 0.0
        %6311 = vmatpush1.msra.mxu0 %v6106
        %6312 = vmatprep.subr.mxu0 0.0
        %6313 = vmatpush2.msra.mxu0 %v6261
        %6314 = vmatprep.subr.mxu0 0.0
        %6315 = vmatpush2.msra.mxu0 %v6256
        %6316 = vmatprep.subr.mxu0 0.0
        %6317 = vmatpush2.msra.mxu0 %v6251
        %6318 = vmatprep.subr.mxu0 0.0
        %6319 = vmatpush2.msra.mxu0 %v6246
        %6320 = vmatprep.subr.mxu0 0.0
        %6321 = vmatpush2.msra.mxu0 %v6241
        %6322 = vmatprep.subr.mxu0 0.0
        %6323 = vmatpush2.msra.mxu0 %v6236
        %6324 = vmatprep.subr.mxu0 0.0
        %6325 = vmatpush2.msra.mxu0 %v6231
        %6326 = vmatprep.subr.mxu0 0.0
        %6327 = vmatpush2.msra.mxu0 %v6226
        %6328 = vmatprep.subr.mxu0 0.0
        %6329 = vmatpush2.msra.mxu0 %v6221
        %6330 = vmatprep.subr.mxu0 0.0
        %6331 = vmatpush2.msra.mxu0 %v6216
        %6332 = vmatprep.subr.mxu0 0.0
        %6333 = vmatpush2.msra.mxu0 %v6211
        %6334 = vmatprep.subr.mxu0 0.0
        %6335 = vmatpush2.msra.mxu0 %v6206
        %6336 = vmatprep.subr.mxu0 0.0
        %6337 = vmatpush2.msra.mxu0 %v6201
        %6338 = vmatprep.subr.mxu0 0.0
        %6339 = vmatpush2.msra.mxu0 %v6196
        %6340 = vmatprep.subr.mxu0 0.0
        %6341 = vmatpush2.msra.mxu0 %v6191
        %6342 = vmatprep.subr.mxu0 0.0
        %6343 = vmatpush2.msra.mxu0 %v6186
        %6344 = vmatprep.mubr.f32.mxu0 %v6265
        %6345 = vmatmul.mubr.f32.gmra.mxu0 %v6264
        %v6346 = vpop.f32.mrf.mxu0
        %v6347 = vadd.f32 %v5927, %v6346
        %v6348 = vpop.f32.mrf.mxu0
        %6349 = vmatprep.mubr.f32.mxu0 %v6267
        %6350 = vmatmul.mubr.f32.gmra.mxu0 %v6266
        %v6351 = vpop.f32.mrf.mxu0
        %v6352 = vadd.f32 %v5928, %v6351
        %v6353 = vpop.f32.mrf.mxu0
        %6354 = vmatprep.mubr.f32.mxu0 %v6269
        %6355 = vmatmul.mubr.f32.gmra.mxu0 %v6268
        %v6356 = vpop.f32.mrf.mxu0
        %v6357 = vadd.f32 %v5929, %v6356
        %v6358 = vpop.f32.mrf.mxu0
        %6359 = vmatprep.mubr.f32.mxu0 %v6271
        %6360 = vmatmul.mubr.f32.gmra.mxu0 %v6270
        %v6361 = vpop.f32.mrf.mxu0
        %v6362 = vadd.f32 %v5930, %v6361
        %v6363 = vpop.f32.mrf.mxu0
        %6364 = vmatprep.mubr.f32.mxu0 %v6273
        %6365 = vmatmul.mubr.f32.gmra.mxu0 %v6272
        %v6366 = vpop.f32.mrf.mxu0
        %v6367 = vadd.f32 %v5931, %v6366
        %v6368 = vpop.f32.mrf.mxu0
        %6369 = vmatprep.mubr.f32.mxu0 %v6275
        %6370 = vmatmul.mubr.f32.gmra.mxu0 %v6274
        %v6371 = vpop.f32.mrf.mxu0
        %v6372 = vadd.f32 %v5932, %v6371
        %v6373 = vpop.f32.mrf.mxu0
        %6374 = vmatprep.mubr.f32.mxu0 %v6277
        %6375 = vmatmul.mubr.f32.gmra.mxu0 %v6276
        %v6376 = vpop.f32.mrf.mxu0
        %v6377 = vadd.f32 %v5933, %v6376
        %v6378 = vpop.f32.mrf.mxu0
        %6379 = vmatprep.mubr.f32.mxu0 %v6279
        %6380 = vmatmul.mubr.f32.gmra.mxu0 %v6278
        %v6381 = vpop.f32.mrf.mxu0
        %v6382 = vadd.f32 %v5934, %v6381
        %v6383 = vpop.f32.mrf.mxu0
        %6384 = vdwg.mxu0
        %v6385 = vmul.f32 %v6347, 0.70710677
        %v6386 = vmul.f32 %v6352, 0.70710677
        %v6387 = vmul.f32 %v6357, 0.70710677
        %v6388 = vmul.f32 %v6362, 0.70710677
        %v6389 = vmul.f32 %v6367, 0.70710677
        %v6390 = vmul.f32 %v6372, 0.70710677
        %v6391 = vmul.f32 %v6377, 0.70710677
        %v6392 = vmul.f32 %v6382, 0.70710677
        %6393 = vst [vmem:[%s599] sm:$0xff] %v6385
        %6394 = vst [vmem:[%s599 + $0x8] sm:$0xff] %v6386
        %6395 = vst [vmem:[%s599 + $0x10] sm:$0xff] %v6387
        %6396 = vst [vmem:[%s599 + $0x18] sm:$0xff] %v6388
        %6397 = vst [vmem:[%s599 + $0x20] sm:$0xff] %v6389
        %6398 = vst [vmem:[%s599 + $0x28] sm:$0xff] %v6390
        %6399 = vst [vmem:[%s599 + $0x30] sm:$0xff] %v6391
        %6400 = vst [vmem:[%s599 + $0x38] sm:$0xff] %v6392
        %s6401 = sand.u32 %s363, 1
        %s6402 = scalar_lea.sflag [#allocation4], %s6401
        %s6403 = sand.u32 %s363, 1
        %s6404 = smul.addr %s6403, 64
        %s6405 = scalar_lea.vmem [#allocation14], %s6404
        // Predicated region
        $region109: #{act_first_res_blk_forward.1} parent=79 // pred_check
          %p6406 = pneg %p373
        $region110: #{act_first_res_blk_forward.1} parent=79 // pred_check_branch
          %6408 = sbr.rel (%p6406) target = $region112
        $region111: #{act_first_res_blk_forward.1} parent=79 // pred_region
          %s6410 = ssub.s32 1024, 1024
          %6411 = vsyncadd %s6402, %s6410
          %s6412 = smul.addr %s35, 8
          %s6413 = smul.addr %s6412, 128
          %s6414 = scalar_lea.hbm %s15, %s6413
          %s6415 = sshll.u32 %s6405, 4
          %s6416 = int_to_ptr.vmem [resolvable:$true] %s6415
          %6421 = dma.vmem_to_hbm [thread:$0]  %s6416, 1024, %s6414, %s6402, 128, 128, 8
        $region112: #{act_first_res_blk_forward.1} parent=79 // pred_fallthru
          _
      $region80: #{act_first_res_blk_forward.1} parent=5 // pred_fallthru
        _
      %p6422 = scmp.le.s32.totalorder 2, %s30
      // Predicated region
      $region113: #{act_first_res_blk_forward.1} parent=5 // pred_check
        %p6423 = pneg %p6422
      $region114: #{act_first_res_blk_forward.1} parent=5 // pred_check_branch
        %6425 = sbr.rel (%p6423) target = $region116
      $region115: #{act_first_res_blk_forward.1} parent=5 // pred_region
        %s6426 = ssub.s32 %s30, 2
        // Predicated region
        $region117: #{act_first_res_blk_forward.1} parent=115 // pred_check
          %p6427 = pneg %p379
        $region118: #{act_first_res_blk_forward.1} parent=115 // pred_check_branch
          %6429 = sbr.rel (%p6427) target = $region120
        $region119: #{act_first_res_blk_forward.1} parent=115 // pred_region
          %s6430 = sand.u32 %s364, 1
          %s6431 = scalar_lea.sflag [#allocation4], %s6430
          %s6432 = sand.u32 %s364, 1
          %s6433 = smul.addr %s6432, 64
          %s6434 = scalar_lea.vmem [#allocation14], %s6433
          %6435 = dma.done %s6431, 1024
        $region120: #{act_first_res_blk_forward.1} parent=115 // pred_fallthru
          _
      $region116: #{act_first_res_blk_forward.1} parent=5 // pred_fallthru
        _
    $region6: #{act_first_res_blk_forward.1} parent=1 // loop_footer
      %s34 = sadd.s32 1, %s30
    $region7: #{act_first_res_blk_forward.1} parent=1 // loop_footer_branch
      %29 = sbr.rel target = $region3
    $region8: #{act_first_res_blk_forward.1} parent=1 // loop_exit
      _
    %6436 = vsyncpa [#allocation3], 1
    %s6437 = scalar_lea.sflag [#allocation3], 1
    %6438 = vsyncpa %s6437, 1
    %6439 = vsyncpa [#allocation6], 1
    %6440 = vsyncpa [#allocation9], 1
    %6441 = vsyncpa [#allocation12], 1
    %6442 = vsyncpa [#allocation4], 1
    %s6443 = scalar_lea.sflag [#allocation4], 1
    %6444 = vsyncpa %s6443, 1

</llo_original>
